<compile_context>
chip_gen: v6e
topology: v6e:2x2x1
jax: 0.10.0
libtpu: 0.0.40
codegen_flags: <defaults>
</compile_context>

<pallas_src>
import math

import jax
import jax.numpy as jnp
from jax import lax
from jax.experimental import pallas as pl
from jax.experimental.pallas import tpu as pltpu

CHNS = (32, 48, 80, 160, 224)          # fixed in APL.__init__


def gaussian_taps(window_size: int, sigma: float):
    """1-D normalized Gaussian taps as Python floats (baked into the kernel)."""
    center = window_size // 2
    vals = [math.exp(-((i - center) ** 2) / (2.0 * sigma ** 2)) for i in range(window_size)]
    s = sum(vals)
    return tuple(v / s for v in vals)


def _sds(start, size, stride):
    # static slice helper: only pass a stride when it is actually > 1
    return pl.ds(start, size) if stride == 1 else pl.ds(start, size, stride)


def make_apl_kernel(win, stride, tile_ho, Wo, chunks, g_taps):
    """Kernel body with static conv / tile / chunk parameters closed over."""

    def kernel(x_ref, fmean_ref, std_ref, tmp_m_ref, tmp_s_ref, acc_m_ref, acc_s_ref):
        # x_ref:      (1, h_in, W, C)   haloed input rows for this output-row tile
        # fmean_ref:  (tile_ho, Wo, C)  per-chunk L2-normalized window means
        # std_ref:    (tile_ho, Wo, 1)  per-pixel mean-over-channels local std
        # tmp_*_ref:  (tile_ho, W, C)   H-pass intermediates (VMEM scratch)
        # acc_*_ref:  (tile_ho, Wo, C)  separable conv results E[x], E[x^2]

        # ---- 1-D Gaussian pass along H (stride applied along H) ----------------
        # tmp[r] = sum_i g[i] * x[r*stride + i]; squares taken per slice so the
        # full x^2 buffer is never materialized.  2*win taps total instead of win^2.
        for i in range(win):
            gi = g_taps[i]
            xs = x_ref[0, _sds(i, tile_ho, stride), :, :]
            if i == 0:
                tmp_m_ref[...] = gi * xs
                tmp_s_ref[...] = gi * (xs * xs)
            else:
                tmp_m_ref[...] += gi * xs
                tmp_s_ref[...] += gi * (xs * xs)

        # ---- 1-D Gaussian pass along W (stride applied along W) ----------------
        for j in range(win):
            gj = g_taps[j]
            tm = tmp_m_ref[:, _sds(j, Wo, stride), :]
            ts = tmp_s_ref[:, _sds(j, Wo, stride), :]
            if j == 0:
                acc_m_ref[...] = gj * tm
                acc_s_ref[...] = gj * ts
            else:
                acc_m_ref[...] += gj * tm
                acc_s_ref[...] += gj * ts

        # ---- local std map: mean over channels of sqrt(relu(var)) --------------
        acc_m = acc_m_ref[...]
        var = acc_s_ref[...] - acc_m * acc_m
        std_ref[...] = jnp.mean(jnp.sqrt(jnp.maximum(var, 0.0)), axis=-1, keepdims=True)

        # ---- per-chunk L2 normalization via static channel slices --------------
        # reciprocal only on the (tile_ho, Wo, 1) norm; one lane-dense final store.
        parts = []
        off = 0
        for csz in chunks:
            seg = acc_m[:, :, off:off + csz]
            norm = jnp.sqrt(jnp.sum(seg * seg, axis=-1, keepdims=True))
            parts.append(seg * (1.0 / (norm + 1e-12)))
            off += csz
        fmean_ref[...] = jnp.concatenate(parts, axis=-1)

    return kernel


def _vmem_capacity_bytes():
    try:
        return int(pltpu.get_tpu_info().vmem_capacity_bytes)
    except Exception:
        return 64 * 1024 * 1024        # conservative (v7x-sized) fallback


def _round_up(x, m):
    return ((x + m - 1) // m) * m


def _tile_vmem_bytes(tile_ho, W, Wo, C, stride, win):
    """Rough per-grid-step VMEM footprint (padded to (8,128) tiles, f32)."""
    h_in = (tile_ho - 1) * stride + win
    Cp, Wp, Wop = _round_up(C, 128), _round_up(W, 8), _round_up(Wo, 8)
    blk_in = 2 * h_in * Wp * Cp * 4                    # double-buffered input block
    blk_out = 2 * tile_ho * Wop * (Cp + 128) * 4       # double-buffered outputs
    scratch = 2 * tile_ho * Wp * Cp * 4 + 2 * tile_ho * Wop * Cp * 4
    temps = 3 * tile_ho * Wop * Cp * 4                 # epilogue value temporaries
    return blk_in + blk_out + scratch + temps


def _pick_tile_ho(Ho, W, Wo, C, stride, win, budget):
    # Largest divisor of Ho whose working set fits comfortably in the VMEM budget.
    # Prefer >= 2 tiles so the "parallel" grid axis can feed both v7x TensorCores
    # and the DMAs pipeline; a single tile is used only when Ho == 1.
    best = 1
    for t in range(1, Ho + 1):
        if Ho % t:
            continue
        if t == Ho and Ho > 1:
            continue
        if _tile_vmem_bytes(t, W, Wo, C, stride, win) <= budget // 2:
            best = t
    return best


def apl_pallas(f: jnp.ndarray):
    """f: (1, C, H, W) float, C == sum(CHNS). Returns (f_mean (Ho*Wo, C), ps (Ho, Wo))."""
    N, C, H, W = f.shape
    assert N == 1, "APL's reshape(C, -1) semantics require batch size 1"
    assert C == sum(CHNS)
    win = max(3, min(H, W) // 32 * 2 + 1)
    stride = win // 2
    assert H >= win and W >= win
    Ho = (H - win) // stride + 1
    Wo = (W - win) // stride + 1
    g = gaussian_taps(win, win / 3.0)

    vmem_cap = _vmem_capacity_bytes()
    vmem_budget = int(0.70 * vmem_cap)         # headroom: ~45 MiB on v7x, ~90 MiB on v5e/v6e
    tile_ho = _pick_tile_ho(Ho, W, Wo, C, stride, win, vmem_budget)
    num_tiles = Ho // tile_ho
    h_in = (tile_ho - 1) * stride + win        # input rows per tile (with halo)
    est = _tile_vmem_bytes(tile_ho, W, Wo, C, stride, win)
    vmem_limit = min(int(0.95 * vmem_cap), max(vmem_budget, 2 * est))

    # channels-last + per-tile haloed row slabs in one fused XLA transpose+gather;
    # the kernel then uses plain Blocked specs -> automatic double-buffered DMA
    # pipelining and a megacore-safe "parallel" grid axis.
    x_hwc = jnp.transpose(f[0], (1, 2, 0)).astype(jnp.float32)               # (H, W, C)
    row_idx = (jnp.arange(num_tiles) * (tile_ho * stride))[:, None] + jnp.arange(h_in)[None, :]
    x_tiles = x_hwc[row_idx]                                                 # (T, h_in, W, C)

    kernel = make_apl_kernel(win, stride, tile_ho, Wo, CHNS, g)
    fmean3, std3 = pl.pallas_call(
        kernel,
        out_shape=(jax.ShapeDtypeStruct((Ho, Wo, C), jnp.float32),
                   jax.ShapeDtypeStruct((Ho, Wo, 1), jnp.float32)),
        grid=(num_tiles,),
        in_specs=[pl.BlockSpec((1, h_in, W, C), lambda t: (t, 0, 0, 0))],
        out_specs=(pl.BlockSpec((tile_ho, Wo, C), lambda t: (t, 0, 0)),
                   pl.BlockSpec((tile_ho, Wo, 1), lambda t: (t, 0, 0))),
        scratch_shapes=[pltpu.VMEM((tile_ho, W, C), jnp.float32),
                        pltpu.VMEM((tile_ho, W, C), jnp.float32),
                        pltpu.VMEM((tile_ho, Wo, C), jnp.float32),
                        pltpu.VMEM((tile_ho, Wo, C), jnp.float32)],
        compiler_params=pltpu.CompilerParams(
            dimension_semantics=("parallel",),
            vmem_limit_bytes=vmem_limit),
    )(x_tiles)

    # ps finalize: tiny (Ho, Wo) global mean / unbiased std / sigmoid in the wrapper
    # so the kernel grid stays embarrassingly parallel across tiles.
    std_map = std3[..., 0]
    n = Ho * Wo
    mu = jnp.mean(std_map)
    sd = jnp.sqrt(jnp.sum((std_map - mu) ** 2) / max(n - 1, 1))
    ps = jax.nn.sigmoid((std_map - mu) / (sd + 1e-12))

    f_mean = fmean3.reshape(Ho * Wo, C)        # == conv.reshape(C, -1).permute(1, 0)
    # TODO(synk): select=True branch (data-dependent boolean row filtering => dynamic
    # output shape) is not expressible as a fixed-shape Pallas output; the module's
    # default select=False path is implemented.
    return f_mean, ps


def apl_reference(f: jnp.ndarray):
    """Pure-JAX reference mirroring the PyTorch forward (select=False)."""
    N, C, H, W = f.shape
    win = max(3, min(H, W) // 32 * 2 + 1)
    stride = win // 2
    g = jnp.asarray(gaussian_taps(win, win / 3.0), jnp.float32)
    w2 = jnp.outer(g, g)
    weight = jnp.broadcast_to(w2, (C, 1, win, win)).astype(jnp.float32)

    def dwconv(z):
        return lax.conv_general_dilated(
            z, weight, (stride, stride), "VALID",
            feature_group_count=C,
            dimension_numbers=("NCHW", "OIHW", "NCHW"),
            precision=lax.Precision.HIGHEST)

    x = f.astype(jnp.float32)
    f_mean = dwconv(x)
    f_var = dwconv(x * x) - f_mean ** 2
    x_std = jnp.mean(jnp.sqrt(jnp.maximum(f_var, 0.0)), axis=1)[0]       # (Ho, Wo)
    ps = 1.0 / (1.0 + jnp.exp(-(x_std - jnp.mean(x_std)) / (jnp.std(x_std, ddof=1) + 1e-12)))

    fm = f_mean.reshape(C, -1).T                                         # (Ho*Wo, C)
    outs, off = [], 0
    for csz in CHNS:
        seg = fm[:, off:off + csz]
        outs.append(seg / (jnp.linalg.norm(seg, axis=1, keepdims=True) + 1e-12))
        off += csz
    return jnp.concatenate(outs, axis=1), ps


if __name__ == "__main__":
    key = jax.random.PRNGKey(0)
    # Small spatial size; channels fixed at sum(chns)=544 as the module requires.
    f = jax.random.normal(key, (1, sum(CHNS), 16, 16), dtype=jnp.float32)

    fwd = jax.jit(apl_pallas)
    f_mean, ps = fwd(f)
    jax.block_until_ready((f_mean, ps))

    f_mean_ref, ps_ref = apl_reference(f)
    assert f_mean.shape == f_mean_ref.shape and ps.shape == ps_ref.shape
    assert jnp.allclose(f_mean, f_mean_ref, rtol=1e-3, atol=1e-4), "f_mean mismatch"
    assert jnp.allclose(ps, ps_ref, rtol=1e-3, atol=1e-4), "ps mismatch"

    print("KERNEL_OK")
</pallas_src>

<mosaic_0001>
module attributes {stable_mosaic.version = 11 : i64} {
  func.func @kernel(%arg0: i32, %arg1: memref<1x9x16x544xf32, #tpu.memory_space<vmem>>, %arg2: memref<7x14x544xf32, #tpu.memory_space<vmem>>, %arg3: memref<7x14x1xf32, #tpu.memory_space<vmem>>, %arg4: memref<7x16x544xf32, #tpu.memory_space<vmem>>, %arg5: memref<7x16x544xf32, #tpu.memory_space<vmem>>, %arg6: memref<7x14x544xf32, #tpu.memory_space<vmem>>, %arg7: memref<7x14x544xf32, #tpu.memory_space<vmem>>) attributes {dimension_semantics = [#tpu.dimension_semantics<parallel>], iteration_bounds = array<i64: 2>, scalar_prefetch = 0 : i64, scratch_operands = 4 : i64, tpu.core_type = #tpu.core_type<tc>, window_params = [{transform_indices = @transform_0, window_bounds = array<i64: 1, 9, 16, 544>}, {transform_indices = @transform_1, window_bounds = array<i64: 7, 14, 544>}, {transform_indices = @transform_2, window_bounds = array<i64: 7, 14, 1>}]} {
    %c0 = arith.constant 0 : index
    %c0_0 = arith.constant 0 : index
    %c0_1 = arith.constant 0 : index
    %c0_2 = arith.constant 0 : index
    %0 = vector.load %arg1[%c0, %c0_0, %c0_1, %c0_2] : memref<1x9x16x544xf32, #tpu.memory_space<vmem>>, vector<1x7x16x544xf32>
    %1 = vector.shape_cast %0 : vector<1x7x16x544xf32> to vector<7x16x544xf32>
    %cst = arith.constant 0.274068624 : f32
    %2 = vector.broadcast %cst : f32 to vector<7x16x544xf32>
    %3 = arith.mulf %2, %1 : vector<7x16x544xf32>
    %c0_3 = arith.constant 0 : index
    %c0_4 = arith.constant 0 : index
    %c0_5 = arith.constant 0 : index
    %4 = vector.load %arg4[%c0_3, %c0_4, %c0_5] : memref<7x16x544xf32, #tpu.memory_space<vmem>>, vector<7x16x544xf32>
    tpu.vector_store %arg4[%c0_3, %c0_4, %c0_5], %3 {strides = array<i32>} : memref<7x16x544xf32, #tpu.memory_space<vmem>>, vector<7x16x544xf32>,
    %5 = arith.mulf %1, %1 : vector<7x16x544xf32>
    %cst_6 = arith.constant 0.274068624 : f32
    %6 = vector.broadcast %cst_6 : f32 to vector<7x16x544xf32>
    %7 = arith.mulf %6, %5 : vector<7x16x544xf32>
    %c0_7 = arith.constant 0 : index
    %c0_8 = arith.constant 0 : index
    %c0_9 = arith.constant 0 : index
    %8 = vector.load %arg5[%c0_7, %c0_8, %c0_9] : memref<7x16x544xf32, #tpu.memory_space<vmem>>, vector<7x16x544xf32>
    tpu.vector_store %arg5[%c0_7, %c0_8, %c0_9], %7 {strides = array<i32>} : memref<7x16x544xf32, #tpu.memory_space<vmem>>, vector<7x16x544xf32>,
    %c0_10 = arith.constant 0 : index
    %c1 = arith.constant 1 : index
    %c0_11 = arith.constant 0 : index
    %c0_12 = arith.constant 0 : index
    %9 = vector.load %arg1[%c0_10, %c1, %c0_11, %c0_12] : memref<1x9x16x544xf32, #tpu.memory_space<vmem>>, vector<1x7x16x544xf32>
    %10 = vector.shape_cast %9 : vector<1x7x16x544xf32> to vector<7x16x544xf32>
    %c0_13 = arith.constant 0 : index
    %c0_14 = arith.constant 0 : index
    %c0_15 = arith.constant 0 : index
    %11 = vector.load %arg4[%c0_13, %c0_14, %c0_15] : memref<7x16x544xf32, #tpu.memory_space<vmem>>, vector<7x16x544xf32>
    %cst_16 = arith.constant 0.451862752 : f32
    %12 = vector.broadcast %cst_16 : f32 to vector<7x16x544xf32>
    %13 = arith.mulf %12, %10 : vector<7x16x544xf32>
    %14 = arith.addf %11, %13 : vector<7x16x544xf32>
    %c0_17 = arith.constant 0 : index
    %c0_18 = arith.constant 0 : index
    %c0_19 = arith.constant 0 : index
    %15 = vector.load %arg4[%c0_17, %c0_18, %c0_19] : memref<7x16x544xf32, #tpu.memory_space<vmem>>, vector<7x16x544xf32>
    tpu.vector_store %arg4[%c0_17, %c0_18, %c0_19], %14 {strides = array<i32>} : memref<7x16x544xf32, #tpu.memory_space<vmem>>, vector<7x16x544xf32>,
    %c0_20 = arith.constant 0 : index
    %c0_21 = arith.constant 0 : index
    %c0_22 = arith.constant 0 : index
    %16 = vector.load %arg5[%c0_20, %c0_21, %c0_22] : memref<7x16x544xf32, #tpu.memory_space<vmem>>, vector<7x16x544xf32>
    %17 = arith.mulf %10, %10 : vector<7x16x544xf32>
    %cst_23 = arith.constant 0.451862752 : f32
    %18 = vector.broadcast %cst_23 : f32 to vector<7x16x544xf32>
    %19 = arith.mulf %18, %17 : vector<7x16x544xf32>
    %20 = arith.addf %16, %19 : vector<7x16x544xf32>
    %c0_24 = arith.constant 0 : index
    %c0_25 = arith.constant 0 : index
    %c0_26 = arith.constant 0 : index
    %21 = vector.load %arg5[%c0_24, %c0_25, %c0_26] : memref<7x16x544xf32, #tpu.memory_space<vmem>>, vector<7x16x544xf32>
    tpu.vector_store %arg5[%c0_24, %c0_25, %c0_26], %20 {strides = array<i32>} : memref<7x16x544xf32, #tpu.memory_space<vmem>>, vector<7x16x544xf32>,
    %c0_27 = arith.constant 0 : index
    %c2 = arith.constant 2 : index
    %c0_28 = arith.constant 0 : index
    %c0_29 = arith.constant 0 : index
    %22 = vector.load %arg1[%c0_27, %c2, %c0_28, %c0_29] : memref<1x9x16x544xf32, #tpu.memory_space<vmem>>, vector<1x7x16x544xf32>
    %23 = vector.shape_cast %22 : vector<1x7x16x544xf32> to vector<7x16x544xf32>
    %c0_30 = arith.constant 0 : index
    %c0_31 = arith.constant 0 : index
    %c0_32 = arith.constant 0 : index
    %24 = vector.load %arg4[%c0_30, %c0_31, %c0_32] : memref<7x16x544xf32, #tpu.memory_space<vmem>>, vector<7x16x544xf32>
    %cst_33 = arith.constant 0.274068624 : f32
    %25 = vector.broadcast %cst_33 : f32 to vector<7x16x544xf32>
    %26 = arith.mulf %25, %23 : vector<7x16x544xf32>
    %27 = arith.addf %24, %26 : vector<7x16x544xf32>
    %c0_34 = arith.constant 0 : index
    %c0_35 = arith.constant 0 : index
    %c0_36 = arith.constant 0 : index
    %28 = vector.load %arg4[%c0_34, %c0_35, %c0_36] : memref<7x16x544xf32, #tpu.memory_space<vmem>>, vector<7x16x544xf32>
    tpu.vector_store %arg4[%c0_34, %c0_35, %c0_36], %27 {strides = array<i32>} : memref<7x16x544xf32, #tpu.memory_space<vmem>>, vector<7x16x544xf32>,
    %c0_37 = arith.constant 0 : index
    %c0_38 = arith.constant 0 : index
    %c0_39 = arith.constant 0 : index
    %29 = vector.load %arg5[%c0_37, %c0_38, %c0_39] : memref<7x16x544xf32, #tpu.memory_space<vmem>>, vector<7x16x544xf32>
    %30 = arith.mulf %23, %23 : vector<7x16x544xf32>
    %cst_40 = arith.constant 0.274068624 : f32
    %31 = vector.broadcast %cst_40 : f32 to vector<7x16x544xf32>
    %32 = arith.mulf %31, %30 : vector<7x16x544xf32>
    %33 = arith.addf %29, %32 : vector<7x16x544xf32>
    %c0_41 = arith.constant 0 : index
    %c0_42 = arith.constant 0 : index
    %c0_43 = arith.constant 0 : index
    %34 = vector.load %arg5[%c0_41, %c0_42, %c0_43] : memref<7x16x544xf32, #tpu.memory_space<vmem>>, vector<7x16x544xf32>
    tpu.vector_store %arg5[%c0_41, %c0_42, %c0_43], %33 {strides = array<i32>} : memref<7x16x544xf32, #tpu.memory_space<vmem>>, vector<7x16x544xf32>,
    %c0_44 = arith.constant 0 : index
    %c0_45 = arith.constant 0 : index
    %c0_46 = arith.constant 0 : index
    %35 = vector.load %arg4[%c0_44, %c0_45, %c0_46] : memref<7x16x544xf32, #tpu.memory_space<vmem>>, vector<7x14x544xf32>
    %c0_47 = arith.constant 0 : index
    %c0_48 = arith.constant 0 : index
    %c0_49 = arith.constant 0 : index
    %36 = vector.load %arg5[%c0_47, %c0_48, %c0_49] : memref<7x16x544xf32, #tpu.memory_space<vmem>>, vector<7x14x544xf32>
    %cst_50 = arith.constant 0.274068624 : f32
    %37 = vector.broadcast %cst_50 : f32 to vector<7x14x544xf32>
    %38 = arith.mulf %37, %35 : vector<7x14x544xf32>
    %c0_51 = arith.constant 0 : index
    %c0_52 = arith.constant 0 : index
    %c0_53 = arith.constant 0 : index
    %39 = vector.load %arg6[%c0_51, %c0_52, %c0_53] : memref<7x14x544xf32, #tpu.memory_space<vmem>>, vector<7x14x544xf32>
    tpu.vector_store %arg6[%c0_51, %c0_52, %c0_53], %38 {strides = array<i32>} : memref<7x14x544xf32, #tpu.memory_space<vmem>>, vector<7x14x544xf32>,
    %cst_54 = arith.constant 0.274068624 : f32
    %40 = vector.broadcast %cst_54 : f32 to vector<7x14x544xf32>
    %41 = arith.mulf %40, %36 : vector<7x14x544xf32>
    %c0_55 = arith.constant 0 : index
    %c0_56 = arith.constant 0 : index
    %c0_57 = arith.constant 0 : index
    %42 = vector.load %arg7[%c0_55, %c0_56, %c0_57] : memref<7x14x544xf32, #tpu.memory_space<vmem>>, vector<7x14x544xf32>
    tpu.vector_store %arg7[%c0_55, %c0_56, %c0_57], %41 {strides = array<i32>} : memref<7x14x544xf32, #tpu.memory_space<vmem>>, vector<7x14x544xf32>,
    %c0_58 = arith.constant 0 : index
    %c1_59 = arith.constant 1 : index
    %c0_60 = arith.constant 0 : index
    %43 = vector.load %arg4[%c0_58, %c1_59, %c0_60] : memref<7x16x544xf32, #tpu.memory_space<vmem>>, vector<7x14x544xf32>
    %c0_61 = arith.constant 0 : index
    %c1_62 = arith.constant 1 : index
    %c0_63 = arith.constant 0 : index
    %44 = vector.load %arg5[%c0_61, %c1_62, %c0_63] : memref<7x16x544xf32, #tpu.memory_space<vmem>>, vector<7x14x544xf32>
    %c0_64 = arith.constant 0 : index
    %c0_65 = arith.constant 0 : index
    %c0_66 = arith.constant 0 : index
    %45 = vector.load %arg6[%c0_64, %c0_65, %c0_66] : memref<7x14x544xf32, #tpu.memory_space<vmem>>, vector<7x14x544xf32>
    %cst_67 = arith.constant 0.451862752 : f32
    %46 = vector.broadcast %cst_67 : f32 to vector<7x14x544xf32>
    %47 = arith.mulf %46, %43 : vector<7x14x544xf32>
    %48 = arith.addf %45, %47 : vector<7x14x544xf32>
    %c0_68 = arith.constant 0 : index
    %c0_69 = arith.constant 0 : index
    %c0_70 = arith.constant 0 : index
    %49 = vector.load %arg6[%c0_68, %c0_69, %c0_70] : memref<7x14x544xf32, #tpu.memory_space<vmem>>, vector<7x14x544xf32>
    tpu.vector_store %arg6[%c0_68, %c0_69, %c0_70], %48 {strides = array<i32>} : memref<7x14x544xf32, #tpu.memory_space<vmem>>, vector<7x14x544xf32>,
    %c0_71 = arith.constant 0 : index
    %c0_72 = arith.constant 0 : index
    %c0_73 = arith.constant 0 : index
    %50 = vector.load %arg7[%c0_71, %c0_72, %c0_73] : memref<7x14x544xf32, #tpu.memory_space<vmem>>, vector<7x14x544xf32>
    %cst_74 = arith.constant 0.451862752 : f32
    %51 = vector.broadcast %cst_74 : f32 to vector<7x14x544xf32>
    %52 = arith.mulf %51, %44 : vector<7x14x544xf32>
    %53 = arith.addf %50, %52 : vector<7x14x544xf32>
    %c0_75 = arith.constant 0 : index
    %c0_76 = arith.constant 0 : index
    %c0_77 = arith.constant 0 : index
    %54 = vector.load %arg7[%c0_75, %c0_76, %c0_77] : memref<7x14x544xf32, #tpu.memory_space<vmem>>, vector<7x14x544xf32>
    tpu.vector_store %arg7[%c0_75, %c0_76, %c0_77], %53 {strides = array<i32>} : memref<7x14x544xf32, #tpu.memory_space<vmem>>, vector<7x14x544xf32>,
    %c0_78 = arith.constant 0 : index
    %c2_79 = arith.constant 2 : index
    %c0_80 = arith.constant 0 : index
    %55 = vector.load %arg4[%c0_78, %c2_79, %c0_80] : memref<7x16x544xf32, #tpu.memory_space<vmem>>, vector<7x14x544xf32>
    %c0_81 = arith.constant 0 : index
    %c2_82 = arith.constant 2 : index
    %c0_83 = arith.constant 0 : index
    %56 = vector.load %arg5[%c0_81, %c2_82, %c0_83] : memref<7x16x544xf32, #tpu.memory_space<vmem>>, vector<7x14x544xf32>
    %c0_84 = arith.constant 0 : index
    %c0_85 = arith.constant 0 : index
    %c0_86 = arith.constant 0 : index
    %57 = vector.load %arg6[%c0_84, %c0_85, %c0_86] : memref<7x14x544xf32, #tpu.memory_space<vmem>>, vector<7x14x544xf32>
    %cst_87 = arith.constant 0.274068624 : f32
    %58 = vector.broadcast %cst_87 : f32 to vector<7x14x544xf32>
    %59 = arith.mulf %58, %55 : vector<7x14x544xf32>
    %60 = arith.addf %57, %59 : vector<7x14x544xf32>
    %c0_88 = arith.constant 0 : index
    %c0_89 = arith.constant 0 : index
    %c0_90 = arith.constant 0 : index
    %61 = vector.load %arg6[%c0_88, %c0_89, %c0_90] : memref<7x14x544xf32, #tpu.memory_space<vmem>>, vector<7x14x544xf32>
    tpu.vector_store %arg6[%c0_88, %c0_89, %c0_90], %60 {strides = array<i32>} : memref<7x14x544xf32, #tpu.memory_space<vmem>>, vector<7x14x544xf32>,
    %c0_91 = arith.constant 0 : index
    %c0_92 = arith.constant 0 : index
    %c0_93 = arith.constant 0 : index
    %62 = vector.load %arg7[%c0_91, %c0_92, %c0_93] : memref<7x14x544xf32, #tpu.memory_space<vmem>>, vector<7x14x544xf32>
    %cst_94 = arith.constant 0.274068624 : f32
    %63 = vector.broadcast %cst_94 : f32 to vector<7x14x544xf32>
    %64 = arith.mulf %63, %56 : vector<7x14x544xf32>
    %65 = arith.addf %62, %64 : vector<7x14x544xf32>
    %c0_95 = arith.constant 0 : index
    %c0_96 = arith.constant 0 : index
    %c0_97 = arith.constant 0 : index
    %66 = vector.load %arg7[%c0_95, %c0_96, %c0_97] : memref<7x14x544xf32, #tpu.memory_space<vmem>>, vector<7x14x544xf32>
    tpu.vector_store %arg7[%c0_95, %c0_96, %c0_97], %65 {strides = array<i32>} : memref<7x14x544xf32, #tpu.memory_space<vmem>>, vector<7x14x544xf32>,
    %c0_98 = arith.constant 0 : index
    %c0_99 = arith.constant 0 : index
    %c0_100 = arith.constant 0 : index
    %67 = vector.load %arg6[%c0_98, %c0_99, %c0_100] : memref<7x14x544xf32, #tpu.memory_space<vmem>>, vector<7x14x544xf32>
    %c0_101 = arith.constant 0 : index
    %c0_102 = arith.constant 0 : index
    %c0_103 = arith.constant 0 : index
    %68 = vector.load %arg7[%c0_101, %c0_102, %c0_103] : memref<7x14x544xf32, #tpu.memory_space<vmem>>, vector<7x14x544xf32>
    %69 = arith.mulf %67, %67 : vector<7x14x544xf32>
    %70 = arith.subf %68, %69 : vector<7x14x544xf32>
    %cst_104 = arith.constant 0.000000e+00 : f32
    %71 = vector.broadcast %cst_104 : f32 to vector<7x14x544xf32>
    %72 = arith.maximumf %70, %71 : vector<7x14x544xf32>
    %73 = math.sqrt %72 : vector<7x14x544xf32>
    %cst_105 = arith.constant dense<0.000000e+00> : vector<7x14xf32>
    %74 = vector.multi_reduction <add>, %73, %cst_105 [2] : vector<7x14x544xf32> to vector<7x14xf32>
    %75 = vector.shape_cast %74 : vector<7x14xf32> to vector<7x14x1xf32>
    %cst_106 = arith.constant 5.440000e+02 : f32
    %76 = vector.broadcast %cst_106 : f32 to vector<7x14x1xf32>
    %77 = arith.divf %75, %76 : vector<7x14x1xf32>
    %c0_107 = arith.constant 0 : index
    %c0_108 = arith.constant 0 : index
    %c0_109 = arith.constant 0 : index
    %78 = vector.load %arg3[%c0_107, %c0_108, %c0_109] : memref<7x14x1xf32, #tpu.memory_space<vmem>>, vector<7x14x1xf32>
    tpu.vector_store %arg3[%c0_107, %c0_108, %c0_109], %77 {strides = array<i32>} : memref<7x14x1xf32, #tpu.memory_space<vmem>>, vector<7x14x1xf32>,
    %79 = vector.extract_strided_slice %67 {offsets = [0, 0, 0], sizes = [7, 14, 32], strides = [1, 1, 1]} : vector<7x14x544xf32> to vector<7x14x32xf32>
    %80 = arith.mulf %79, %79 : vector<7x14x32xf32>
    %cst_110 = arith.constant dense<0.000000e+00> : vector<7x14xf32>
    %81 = vector.multi_reduction <add>, %80, %cst_110 [2] : vector<7x14x32xf32> to vector<7x14xf32>
    %82 = vector.shape_cast %81 : vector<7x14xf32> to vector<7x14x1xf32>
    %83 = math.sqrt %82 : vector<7x14x1xf32>
    %cst_111 = arith.constant 9.99999996E-13 : f32
    %84 = vector.broadcast %cst_111 : f32 to vector<7x14x1xf32>
    %85 = arith.addf %83, %84 : vector<7x14x1xf32>
    %cst_112 = arith.constant 1.000000e+00 : f32
    %86 = vector.broadcast %cst_112 : f32 to vector<7x14x1xf32>
    %87 = arith.divf %86, %85 : vector<7x14x1xf32>
    %88 = vector.broadcast %87 : vector<7x14x1xf32> to vector<7x14x32xf32>
    %89 = arith.mulf %79, %88 : vector<7x14x32xf32>
    %90 = vector.extract_strided_slice %67 {offsets = [0, 0, 32], sizes = [7, 14, 48], strides = [1, 1, 1]} : vector<7x14x544xf32> to vector<7x14x48xf32>
    %91 = arith.mulf %90, %90 : vector<7x14x48xf32>
    %cst_113 = arith.constant dense<0.000000e+00> : vector<7x14xf32>
    %92 = vector.multi_reduction <add>, %91, %cst_113 [2] : vector<7x14x48xf32> to vector<7x14xf32>
    %93 = vector.shape_cast %92 : vector<7x14xf32> to vector<7x14x1xf32>
    %94 = math.sqrt %93 : vector<7x14x1xf32>
    %cst_114 = arith.constant 9.99999996E-13 : f32
    %95 = vector.broadcast %cst_114 : f32 to vector<7x14x1xf32>
    %96 = arith.addf %94, %95 : vector<7x14x1xf32>
    %cst_115 = arith.constant 1.000000e+00 : f32
    %97 = vector.broadcast %cst_115 : f32 to vector<7x14x1xf32>
    %98 = arith.divf %97, %96 : vector<7x14x1xf32>
    %99 = vector.broadcast %98 : vector<7x14x1xf32> to vector<7x14x48xf32>
    %100 = arith.mulf %90, %99 : vector<7x14x48xf32>
    %101 = vector.extract_strided_slice %67 {offsets = [0, 0, 80], sizes = [7, 14, 80], strides = [1, 1, 1]} : vector<7x14x544xf32> to vector<7x14x80xf32>
    %102 = arith.mulf %101, %101 : vector<7x14x80xf32>
    %cst_116 = arith.constant dense<0.000000e+00> : vector<7x14xf32>
    %103 = vector.multi_reduction <add>, %102, %cst_116 [2] : vector<7x14x80xf32> to vector<7x14xf32>
    %104 = vector.shape_cast %103 : vector<7x14xf32> to vector<7x14x1xf32>
    %105 = math.sqrt %104 : vector<7x14x1xf32>
    %cst_117 = arith.constant 9.99999996E-13 : f32
    %106 = vector.broadcast %cst_117 : f32 to vector<7x14x1xf32>
    %107 = arith.addf %105, %106 : vector<7x14x1xf32>
    %cst_118 = arith.constant 1.000000e+00 : f32
    %108 = vector.broadcast %cst_118 : f32 to vector<7x14x1xf32>
    %109 = arith.divf %108, %107 : vector<7x14x1xf32>
    %110 = vector.broadcast %109 : vector<7x14x1xf32> to vector<7x14x80xf32>
    %111 = arith.mulf %101, %110 : vector<7x14x80xf32>
    %112 = vector.extract_strided_slice %67 {offsets = [0, 0, 160], sizes = [7, 14, 160], strides = [1, 1, 1]} : vector<7x14x544xf32> to vector<7x14x160xf32>
    %113 = arith.mulf %112, %112 : vector<7x14x160xf32>
    %cst_119 = arith.constant dense<0.000000e+00> : vector<7x14xf32>
    %114 = vector.multi_reduction <add>, %113, %cst_119 [2] : vector<7x14x160xf32> to vector<7x14xf32>
    %115 = vector.shape_cast %114 : vector<7x14xf32> to vector<7x14x1xf32>
    %116 = math.sqrt %115 : vector<7x14x1xf32>
    %cst_120 = arith.constant 9.99999996E-13 : f32
    %117 = vector.broadcast %cst_120 : f32 to vector<7x14x1xf32>
    %118 = arith.addf %116, %117 : vector<7x14x1xf32>
    %cst_121 = arith.constant 1.000000e+00 : f32
    %119 = vector.broadcast %cst_121 : f32 to vector<7x14x1xf32>
    %120 = arith.divf %119, %118 : vector<7x14x1xf32>
    %121 = vector.broadcast %120 : vector<7x14x1xf32> to vector<7x14x160xf32>
    %122 = arith.mulf %112, %121 : vector<7x14x160xf32>
    %123 = vector.extract_strided_slice %67 {offsets = [0, 0, 320], sizes = [7, 14, 224], strides = [1, 1, 1]} : vector<7x14x544xf32> to vector<7x14x224xf32>
    %124 = arith.mulf %123, %123 : vector<7x14x224xf32>
    %cst_122 = arith.constant dense<0.000000e+00> : vector<7x14xf32>
    %125 = vector.multi_reduction <add>, %124, %cst_122 [2] : vector<7x14x224xf32> to vector<7x14xf32>
    %126 = vector.shape_cast %125 : vector<7x14xf32> to vector<7x14x1xf32>
    %127 = math.sqrt %126 : vector<7x14x1xf32>
    %cst_123 = arith.constant 9.99999996E-13 : f32
    %128 = vector.broadcast %cst_123 : f32 to vector<7x14x1xf32>
    %129 = arith.addf %127, %128 : vector<7x14x1xf32>
    %cst_124 = arith.constant 1.000000e+00 : f32
    %130 = vector.broadcast %cst_124 : f32 to vector<7x14x1xf32>
    %131 = arith.divf %130, %129 : vector<7x14x1xf32>
    %132 = vector.broadcast %131 : vector<7x14x1xf32> to vector<7x14x224xf32>
    %133 = arith.mulf %123, %132 : vector<7x14x224xf32>
    %134 = tpu.concatenate %89, %100, %111, %122, %133 in 2 : vector<7x14x32xf32>, vector<7x14x48xf32>, vector<7x14x80xf32>, vector<7x14x160xf32>, vector<7x14x224xf32> -> vector<7x14x544xf32>
    %c0_125 = arith.constant 0 : index
    %c0_126 = arith.constant 0 : index
    %c0_127 = arith.constant 0 : index
    %135 = vector.load %arg2[%c0_125, %c0_126, %c0_127] : memref<7x14x544xf32, #tpu.memory_space<vmem>>, vector<7x14x544xf32>
    tpu.vector_store %arg2[%c0_125, %c0_126, %c0_127], %134 {strides = array<i32>} : memref<7x14x544xf32, #tpu.memory_space<vmem>>, vector<7x14x544xf32>,
    return
  }
  func.func @transform_0(%arg0: i32) -> (i32, i32, i32, i32) {
    %c0_i32 = arith.constant 0 : i32
    %c0_i32_0 = arith.constant 0 : i32
    %c0_i32_1 = arith.constant 0 : i32
    %c0_i32_2 = arith.constant 0 : i32
    return %arg0, %c0_i32, %c0_i32_0, %c0_i32_1 : i32, i32, i32, i32
  }
  func.func @transform_1(%arg0: i32) -> (i32, i32, i32) {
    %c0_i32 = arith.constant 0 : i32
    %c0_i32_0 = arith.constant 0 : i32
    %c0_i32_1 = arith.constant 0 : i32
    return %arg0, %c0_i32, %c0_i32_0 : i32, i32, i32
  }
  func.func @transform_2(%arg0: i32) -> (i32, i32, i32) {
    %c0_i32 = arith.constant 0 : i32
    %c0_i32_0 = arith.constant 0 : i32
    %c0_i32_1 = arith.constant 0 : i32
    return %arg0, %c0_i32, %c0_i32_0 : i32, i32, i32
  }
}

</mosaic_0001>

<llo_original>
// kernel: apl_pallas.1
$region0: #{apl_pallas.1}
  #allocation0 [shape = 'u32[]', space=smem, size = 0x4, offset = 0x4, fixed_abs, tag = 'smem constant byte address 0x4 - core index']
  #allocation1 [shape = 'u32[144,128]{1,0:T(1,128)}', space=vmem, size = 0x12000, scoped, tag = 'internal scratch']
  #allocation2 [shape = 'f32[7,16,544]{2,1,0:T(8,128)}', space=vmem, size = 0x46000, scoped, tag = 'scratch operand']
  #allocation3 [shape = 'f32[7,16,544]{2,1,0:T(8,128)}', space=vmem, size = 0x46000, scoped, tag = 'scratch operand']
  #allocation4 [shape = 'f32[7,14,544]{2,1,0:T(8,128)}', space=vmem, size = 0x46000, scoped, tag = 'scratch operand']
  #allocation5 [shape = 'f32[7,14,544]{2,1,0:T(8,128)}', space=vmem, size = 0x46000, scoped, tag = 'scratch operand']
  %s0 = inlined_call_operand.vmem [shape: f32[2,9,16,544], index: 0, kind: input, shape index: {}]
  %s1 = inlined_call_operand.vmem [shape: f32[14,14,544], index: 1, kind: output, shape index: {0}]
  %s2 = inlined_call_operand.vmem [shape: f32[14,14,1], index: 2, kind: output, shape index: {1}]
  %3 = xla_tuple %s1, %s2
  %s4 = sld [smem:[#allocation0]]
  $region45: #{apl_pallas.1} parent=0
    _
  %s6 = ssub.s32 1, %s4
  %s7 = scalar_select 0, %s6, %s4
  loop: start=0, step=1, limit=4
  $region2: #{apl_pallas.1} parent=0 // loop_pre_header
    _
  $region3: #{apl_pallas.1} parent=0 // loop_header
    %s9 = sphi 0, %s13
    %p10 = scmp.ge.s32.totalorder %s9, 4
    %s19 = sphi 0, %s21
    %s22 = sphi 0, %s19
    %s23 = sphi 0, %s22
    %s39 = sphi 0, %s23
    %s45 = sphi 0, %s47
    %s48 = sphi 0, %s45
    %s49 = sphi 0, %s48
    %s65 = sphi 0, %s49
    %s71 = sphi 0, %s73
    %s74 = sphi 0, %s71
    %s75 = sphi 0, %s74
    %s91 = sphi 0, %s75
  $region4: #{apl_pallas.1} parent=0 // loop_header_branch
    %12 = sbr.rel (%p10) target = $region8
  $region5: #{apl_pallas.1} parent=0 // loop_body
    %s14 = ssub.s32 %s9, 1
    %s15 = ssub.s32 %s9, 2
    %s16 = sadd.s32 %s9, 1
    %s17 = ssub.s32 %s9, %s16
    %p18 = scmp.eq.s32.totalorder %s17, 0
    %s20 = sadd.s32 %s19, 1
    %s21 = scalar_select %p18, %s19, %s20
    %p24 = pneg %p18
    %p25 = scmp.eq.s32.totalorder %s9, 1
    %p26 = por %p24, %p25
    %p27 = scmp.ne.s32.totalorder %s19, %s22
    %p28 = scmp.eq.s32.totalorder %s9, 0
    %p29 = por %p27, %p28
    %p30 = scmp.ne.s32.totalorder %s19, %s22
    %p31 = scmp.eq.s32.totalorder %s14, 1
    %p32 = por %p30, %p31
    %p33 = scmp.ne.s32.totalorder %s22, %s23
    %p34 = scmp.eq.s32.totalorder %s14, 0
    %p35 = por %p33, %p34
    %p36 = scmp.ne.s32.totalorder %s22, %s23
    %p37 = scmp.eq.s32.totalorder %s15, 1
    %p38 = por %p36, %p37
    %p40 = scmp.ne.s32.totalorder %s23, %s39
    %p41 = scmp.eq.s32.totalorder %s15, 0
    %p42 = por %p40, %p41
    %s43 = ssub.s32 %s9, %s16
    %p44 = scmp.eq.s32.totalorder %s43, 0
    %s46 = sadd.s32 %s45, 1
    %s47 = scalar_select %p44, %s45, %s46
    %p50 = pneg %p44
    %p51 = scmp.eq.s32.totalorder %s9, 1
    %p52 = por %p50, %p51
    %p53 = scmp.ne.s32.totalorder %s45, %s48
    %p54 = scmp.eq.s32.totalorder %s9, 0
    %p55 = por %p53, %p54
    %p56 = scmp.ne.s32.totalorder %s45, %s48
    %p57 = scmp.eq.s32.totalorder %s14, 1
    %p58 = por %p56, %p57
    %p59 = scmp.ne.s32.totalorder %s48, %s49
    %p60 = scmp.eq.s32.totalorder %s14, 0
    %p61 = por %p59, %p60
    %p62 = scmp.ne.s32.totalorder %s48, %s49
    %p63 = scmp.eq.s32.totalorder %s15, 1
    %p64 = por %p62, %p63
    %p66 = scmp.ne.s32.totalorder %s49, %s65
    %p67 = scmp.eq.s32.totalorder %s15, 0
    %p68 = por %p66, %p67
    %s69 = ssub.s32 %s9, %s16
    %p70 = scmp.eq.s32.totalorder %s69, 0
    %s72 = sadd.s32 %s71, 1
    %s73 = scalar_select %p70, %s71, %s72
    %p76 = pneg %p70
    %p77 = scmp.eq.s32.totalorder %s9, 1
    %p78 = por %p76, %p77
    %p79 = scmp.ne.s32.totalorder %s71, %s74
    %p80 = scmp.eq.s32.totalorder %s9, 0
    %p81 = por %p79, %p80
    %p82 = scmp.ne.s32.totalorder %s71, %s74
    %p83 = scmp.eq.s32.totalorder %s14, 1
    %p84 = por %p82, %p83
    %p85 = scmp.ne.s32.totalorder %s74, %s75
    %p86 = scmp.eq.s32.totalorder %s14, 0
    %p87 = por %p85, %p86
    %p88 = scmp.ne.s32.totalorder %s74, %s75
    %p89 = scmp.eq.s32.totalorder %s15, 1
    %p90 = por %p88, %p89
    %p92 = scmp.ne.s32.totalorder %s75, %s91
    %p93 = scmp.eq.s32.totalorder %s15, 0
    %p94 = por %p92, %p93
    %p95 = scmp.le.s32.totalorder 1, %s9
    %p96 = scmp.lt.s32.totalorder %s9, 3
    %p97 = pnand %p95, %p96
    %p98 = pneg %p97
    // Predicated region
    $region9: #{apl_pallas.1} parent=5 // pred_check
      _
    $region10: #{apl_pallas.1} parent=5 // pred_check_branch
      %100 = sbr.rel (%p97) target = $region12
    $region11: #{apl_pallas.1} parent=5 // pred_region
      %s101 = ssub.s32 %s9, 1
    $region12: #{apl_pallas.1} parent=5 // pred_fallthru
      _
    %p102 = scmp.lt.s32.totalorder %s9, 2
    // Predicated region
    $region13: #{apl_pallas.1} parent=5 // pred_check
      %p103 = pneg %p102
    $region14: #{apl_pallas.1} parent=5 // pred_check_branch
      %105 = sbr.rel (%p103) target = $region16
    $region15: #{apl_pallas.1} parent=5 // pred_region
      // Predicated region
      $region17: #{apl_pallas.1} parent=15 // pred_check
        %p106 = pneg %p29
      $region18: #{apl_pallas.1} parent=15 // pred_check_branch
        %108 = sbr.rel (%p106) target = $region20
      $region19: #{apl_pallas.1} parent=15 // pred_region
        %p109 = scmp.lt.s32.totalorder %s9, 1
        %s110 = scalar_select %p109, %s9, 1
        %s111 = smul.addr %s110, 90
        %s112 = smul.addr %s111, 8
        %s113 = scalar_lea.vmem %s0, %s112
      $region20: #{apl_pallas.1} parent=15 // pred_fallthru
        _
    $region16: #{apl_pallas.1} parent=5 // pred_fallthru
      _
    %p114 = scmp.le.s32.totalorder 1, %s9
    %p115 = scmp.lt.s32.totalorder %s9, 3
    %p116 = pnand %p114, %p115
    %p117 = pneg %p116
    // Predicated region
    $region21: #{apl_pallas.1} parent=5 // pred_check
      _
    $region22: #{apl_pallas.1} parent=5 // pred_check_branch
      %119 = sbr.rel (%p116) target = $region24
    $region23: #{apl_pallas.1} parent=5 // pred_region
      %s120 = ssub.s32 %s9, 1
      %p121 = scmp.lt.s32.totalorder %s14, 1
      %s122 = scalar_select %p121, %s14, 1
      %s123 = smul.addr %s122, 90
      %s124 = smul.addr %s123, 8
      %s125 = scalar_lea.vmem %s0, %s124
      %p126 = pneg %p35
      %p127 = pneg %p32
      %p128 = pneg %p61
      %p129 = pneg %p58
      %s130 = smul.u32 7, %s14
      %p131 = scmp.lt.s32.totalorder %s130, 13
      %s132 = scalar_select %p131, %s130, 13
      %s133 = smul.addr %s132, 10
      %s134 = smul.addr %s133, 8
      %s135 = scalar_lea.vmem %s1, %s134
      %p136 = pneg %p87
      %p137 = pneg %p84
      %s138 = smul.u32 7, %s14
      %p139 = scmp.lt.s32.totalorder %s138, 13
      %s140 = scalar_select %p139, %s138, 13
      %s141 = smul.addr %s140, 2
      %s142 = smul.addr %s141, 8
      %s143 = scalar_lea.vmem %s2, %s142
      %p144 = scmp.lt.s32.totalorder %s14, 1
      %s145 = scalar_select %p144, %s14, 1
      %s146 = smul.addr %s145, 90
      %s147 = smul.addr %s146, 8
      %s148 = scalar_lea.vmem %s0, %s147
      %s149 = smul.u32 7, %s14
      %p150 = scmp.lt.s32.totalorder %s149, 13
      %s151 = scalar_select %p150, %s149, 13
      %s152 = smul.addr %s151, 10
      %s153 = smul.addr %s152, 8
      %s154 = scalar_lea.vmem %s1, %s153
      %s155 = smul.u32 7, %s14
      %s156 = smul.u32 7, %s14
      %p157 = scmp.lt.s32.totalorder %s156, 13
      %s158 = scalar_select %p157, %s156, 13
      %s159 = smul.addr %s158, 2
      %s160 = smul.addr %s159, 8
      %s161 = scalar_lea.vmem %s2, %s160
      %s162 = smul.u32 7, %s14
      %v163 = vld [vmem:[%s148] sm:$0xff]
      %v164 = vld [vmem:[%s148 + $0x8] sm:$0xff]
      %v165 = vld [vmem:[%s148 + $0x10] sm:$0xff]
      %v166 = vld [vmem:[%s148 + $0x18] sm:$0xff]
      %v167 = vld [vmem:[%s148 + $0x20] sm:$0xff]
      %v168 = vld [vmem:[%s148 + $0x28] sm:$0xff]
      %v169 = vld [vmem:[%s148 + $0x30] sm:$0xff]
      %v170 = vld [vmem:[%s148 + $0x38] sm:$0xff]
      %v171 = vld [vmem:[%s148 + $0x40] sm:$0xff]
      %v172 = vld [vmem:[%s148 + $0x48] sm:$0xff]
      %v173 = vld [vmem:[%s148 + $0x50] sm:$0xff]
      %v174 = vld [vmem:[%s148 + $0x58] sm:$0xff]
      %v175 = vld [vmem:[%s148 + $0x60] sm:$0xff]
      %v176 = vld [vmem:[%s148 + $0x68] sm:$0xff]
      %v177 = vld [vmem:[%s148 + $0x70] sm:$0xff]
      %v178 = vld [vmem:[%s148 + $0x78] sm:$0xff]
      %v179 = vld [vmem:[%s148 + $0x80] sm:$0xff]
      %v180 = vld [vmem:[%s148 + $0x88] sm:$0xff]
      %v181 = vld [vmem:[%s148 + $0x90] sm:$0xff]
      %v182 = vld [vmem:[%s148 + $0x98] sm:$0xff]
      %v183 = vld [vmem:[%s148 + $0xa0] sm:$0xff]
      %v184 = vld [vmem:[%s148 + $0xa8] sm:$0xff]
      %v185 = vld [vmem:[%s148 + $0xb0] sm:$0xff]
      %v186 = vld [vmem:[%s148 + $0xb8] sm:$0xff]
      %v187 = vld [vmem:[%s148 + $0xc0] sm:$0xff]
      %v188 = vld [vmem:[%s148 + $0xc8] sm:$0xff]
      %v189 = vld [vmem:[%s148 + $0xd0] sm:$0xff]
      %v190 = vld [vmem:[%s148 + $0xd8] sm:$0xff]
      %v191 = vld [vmem:[%s148 + $0xe0] sm:$0xff]
      %v192 = vld [vmem:[%s148 + $0xe8] sm:$0xff]
      %v193 = vld [vmem:[%s148 + $0xf0] sm:$0xff]
      %v194 = vld [vmem:[%s148 + $0xf8] sm:$0xff]
      %v195 = vld [vmem:[%s148 + $0x100] sm:$0xff]
      %v196 = vld [vmem:[%s148 + $0x108] sm:$0xff]
      %v197 = vld [vmem:[%s148 + $0x110] sm:$0xff]
      %v198 = vld [vmem:[%s148 + $0x118] sm:$0xff]
      %v199 = vld [vmem:[%s148 + $0x120] sm:$0xff]
      %v200 = vld [vmem:[%s148 + $0x128] sm:$0xff]
      %v201 = vld [vmem:[%s148 + $0x130] sm:$0xff]
      %v202 = vld [vmem:[%s148 + $0x138] sm:$0xff]
      %v203 = vld [vmem:[%s148 + $0x140] sm:$0xff]
      %v204 = vld [vmem:[%s148 + $0x148] sm:$0xff]
      %v205 = vld [vmem:[%s148 + $0x150] sm:$0xff]
      %v206 = vld [vmem:[%s148 + $0x158] sm:$0xff]
      %v207 = vld [vmem:[%s148 + $0x160] sm:$0xff]
      %v208 = vld [vmem:[%s148 + $0x168] sm:$0xff]
      %v209 = vld [vmem:[%s148 + $0x170] sm:$0xff]
      %v210 = vld [vmem:[%s148 + $0x178] sm:$0xff]
      %v211 = vld [vmem:[%s148 + $0x180] sm:$0xff]
      %v212 = vld [vmem:[%s148 + $0x188] sm:$0xff]
      %v213 = vld [vmem:[%s148 + $0x190] sm:$0xff]
      %v214 = vld [vmem:[%s148 + $0x198] sm:$0xff]
      %v215 = vld [vmem:[%s148 + $0x1a0] sm:$0xff]
      %v216 = vld [vmem:[%s148 + $0x1a8] sm:$0xff]
      %v217 = vld [vmem:[%s148 + $0x1b0] sm:$0xff]
      %v218 = vld [vmem:[%s148 + $0x1b8] sm:$0xff]
      %v219 = vld [vmem:[%s148 + $0x1c0] sm:$0xff]
      %v220 = vld [vmem:[%s148 + $0x1c8] sm:$0xff]
      %v221 = vld [vmem:[%s148 + $0x1d0] sm:$0xff]
      %v222 = vld [vmem:[%s148 + $0x1d8] sm:$0xff]
      %v223 = vld [vmem:[%s148 + $0x1e0] sm:$0xff]
      %v224 = vld [vmem:[%s148 + $0x1e8] sm:$0xff]
      %v225 = vld [vmem:[%s148 + $0x1f0] sm:$0xff]
      %v226 = vld [vmem:[%s148 + $0x1f8] sm:$0xff]
      %v227 = vld [vmem:[%s148 + $0x200] sm:$0xff]
      %v228 = vld [vmem:[%s148 + $0x208] sm:$0xff]
      %v229 = vld [vmem:[%s148 + $0x210] sm:$0xff]
      %v230 = vld [vmem:[%s148 + $0x218] sm:$0xff]
      %v231 = vld [vmem:[%s148 + $0x220] sm:$0xff]
      %v232 = vld [vmem:[%s148 + $0x228] sm:$0xff]
      %v233 = vmul.f32 %v163, 0.27406862
      %v234 = vmul.f32 %v164, 0.27406862
      %v235 = vmul.f32 %v165, 0.27406862
      %v236 = vmul.f32 %v166, 0.27406862
      %v237 = vmul.f32 %v167, 0.27406862
      %v238 = vmul.f32 %v168, 0.27406862
      %v239 = vmul.f32 %v169, 0.27406862
      %v240 = vmul.f32 %v170, 0.27406862
      %v241 = vmul.f32 %v171, 0.27406862
      %v242 = vmul.f32 %v172, 0.27406862
      %v243 = vmul.f32 %v173, 0.27406862
      %v244 = vmul.f32 %v174, 0.27406862
      %v245 = vmul.f32 %v175, 0.27406862
      %v246 = vmul.f32 %v176, 0.27406862
      %v247 = vmul.f32 %v177, 0.27406862
      %v248 = vmul.f32 %v178, 0.27406862
      %v249 = vmul.f32 %v179, 0.27406862
      %v250 = vmul.f32 %v180, 0.27406862
      %v251 = vmul.f32 %v181, 0.27406862
      %v252 = vmul.f32 %v182, 0.27406862
      %v253 = vmul.f32 %v183, 0.27406862
      %v254 = vmul.f32 %v184, 0.27406862
      %v255 = vmul.f32 %v185, 0.27406862
      %v256 = vmul.f32 %v186, 0.27406862
      %v257 = vmul.f32 %v187, 0.27406862
      %v258 = vmul.f32 %v188, 0.27406862
      %v259 = vmul.f32 %v189, 0.27406862
      %v260 = vmul.f32 %v190, 0.27406862
      %v261 = vmul.f32 %v191, 0.27406862
      %v262 = vmul.f32 %v192, 0.27406862
      %v263 = vmul.f32 %v193, 0.27406862
      %v264 = vmul.f32 %v194, 0.27406862
      %v265 = vmul.f32 %v195, 0.27406862
      %v266 = vmul.f32 %v196, 0.27406862
      %v267 = vmul.f32 %v197, 0.27406862
      %v268 = vmul.f32 %v198, 0.27406862
      %v269 = vmul.f32 %v199, 0.27406862
      %v270 = vmul.f32 %v200, 0.27406862
      %v271 = vmul.f32 %v201, 0.27406862
      %v272 = vmul.f32 %v202, 0.27406862
      %v273 = vmul.f32 %v203, 0.27406862
      %v274 = vmul.f32 %v204, 0.27406862
      %v275 = vmul.f32 %v205, 0.27406862
      %v276 = vmul.f32 %v206, 0.27406862
      %v277 = vmul.f32 %v207, 0.27406862
      %v278 = vmul.f32 %v208, 0.27406862
      %v279 = vmul.f32 %v209, 0.27406862
      %v280 = vmul.f32 %v210, 0.27406862
      %v281 = vmul.f32 %v211, 0.27406862
      %v282 = vmul.f32 %v212, 0.27406862
      %v283 = vmul.f32 %v213, 0.27406862
      %v284 = vmul.f32 %v214, 0.27406862
      %v285 = vmul.f32 %v215, 0.27406862
      %v286 = vmul.f32 %v216, 0.27406862
      %v287 = vmul.f32 %v217, 0.27406862
      %v288 = vmul.f32 %v218, 0.27406862
      %v289 = vmul.f32 %v219, 0.27406862
      %v290 = vmul.f32 %v220, 0.27406862
      %v291 = vmul.f32 %v221, 0.27406862
      %v292 = vmul.f32 %v222, 0.27406862
      %v293 = vmul.f32 %v223, 0.27406862
      %v294 = vmul.f32 %v224, 0.27406862
      %v295 = vmul.f32 %v225, 0.27406862
      %v296 = vmul.f32 %v226, 0.27406862
      %v297 = vmul.f32 %v227, 0.27406862
      %v298 = vmul.f32 %v228, 0.27406862
      %v299 = vmul.f32 %v229, 0.27406862
      %v300 = vmul.f32 %v230, 0.27406862
      %v301 = vmul.f32 %v231, 0.27406862
      %v302 = vmul.f32 %v232, 0.27406862
      %303 = vst [vmem:[#allocation2] sm:$0xff] %v233
      %304 = vst [vmem:[#allocation2 + $0x8] sm:$0xff] %v234
      %305 = vst [vmem:[#allocation2 + $0x10] sm:$0xff] %v235
      %306 = vst [vmem:[#allocation2 + $0x18] sm:$0xff] %v236
      %vm307 = vcmask 261120
      %308 = vst.msk [vmem:[#allocation2 + $0x20] sm:$0xff] %vm307, %v237
      %309 = vst [vmem:[#allocation2 + $0x28] sm:$0xff] %v238
      %310 = vst [vmem:[#allocation2 + $0x30] sm:$0xff] %v239
      %311 = vst [vmem:[#allocation2 + $0x38] sm:$0xff] %v240
      %312 = vst [vmem:[#allocation2 + $0x40] sm:$0xff] %v241
      %313 = vst.msk [vmem:[#allocation2 + $0x48] sm:$0xff] %vm307, %v242
      %314 = vst [vmem:[#allocation2 + $0x50] sm:$0xff] %v243
      %315 = vst [vmem:[#allocation2 + $0x58] sm:$0xff] %v244
      %316 = vst [vmem:[#allocation2 + $0x60] sm:$0xff] %v245
      %317 = vst [vmem:[#allocation2 + $0x68] sm:$0xff] %v246
      %318 = vst.msk [vmem:[#allocation2 + $0x70] sm:$0xff] %vm307, %v247
      %319 = vst [vmem:[#allocation2 + $0x78] sm:$0xff] %v248
      %320 = vst [vmem:[#allocation2 + $0x80] sm:$0xff] %v249
      %321 = vst [vmem:[#allocation2 + $0x88] sm:$0xff] %v250
      %322 = vst [vmem:[#allocation2 + $0x90] sm:$0xff] %v251
      %323 = vst.msk [vmem:[#allocation2 + $0x98] sm:$0xff] %vm307, %v252
      %324 = vst [vmem:[#allocation2 + $0xa0] sm:$0xff] %v253
      %325 = vst [vmem:[#allocation2 + $0xa8] sm:$0xff] %v254
      %326 = vst [vmem:[#allocation2 + $0xb0] sm:$0xff] %v255
      %327 = vst [vmem:[#allocation2 + $0xb8] sm:$0xff] %v256
      %328 = vst.msk [vmem:[#allocation2 + $0xc0] sm:$0xff] %vm307, %v257
      %329 = vst [vmem:[#allocation2 + $0xc8] sm:$0xff] %v258
      %330 = vst [vmem:[#allocation2 + $0xd0] sm:$0xff] %v259
      %331 = vst [vmem:[#allocation2 + $0xd8] sm:$0xff] %v260
      %332 = vst [vmem:[#allocation2 + $0xe0] sm:$0xff] %v261
      %333 = vst.msk [vmem:[#allocation2 + $0xe8] sm:$0xff] %vm307, %v262
      %334 = vst [vmem:[#allocation2 + $0xf0] sm:$0xff] %v263
      %335 = vst [vmem:[#allocation2 + $0xf8] sm:$0xff] %v264
      %336 = vst [vmem:[#allocation2 + $0x100] sm:$0xff] %v265
      %337 = vst [vmem:[#allocation2 + $0x108] sm:$0xff] %v266
      %338 = vst.msk [vmem:[#allocation2 + $0x110] sm:$0xff] %vm307, %v267
      %339 = vst [vmem:[#allocation2 + $0x118] sm:$0xff] %v268
      %340 = vst [vmem:[#allocation2 + $0x120] sm:$0xff] %v269
      %341 = vst [vmem:[#allocation2 + $0x128] sm:$0xff] %v270
      %342 = vst [vmem:[#allocation2 + $0x130] sm:$0xff] %v271
      %343 = vst.msk [vmem:[#allocation2 + $0x138] sm:$0xff] %vm307, %v272
      %344 = vst [vmem:[#allocation2 + $0x140] sm:$0xff] %v273
      %345 = vst [vmem:[#allocation2 + $0x148] sm:$0xff] %v274
      %346 = vst [vmem:[#allocation2 + $0x150] sm:$0xff] %v275
      %347 = vst [vmem:[#allocation2 + $0x158] sm:$0xff] %v276
      %348 = vst.msk [vmem:[#allocation2 + $0x160] sm:$0xff] %vm307, %v277
      %349 = vst [vmem:[#allocation2 + $0x168] sm:$0xff] %v278
      %350 = vst [vmem:[#allocation2 + $0x170] sm:$0xff] %v279
      %351 = vst [vmem:[#allocation2 + $0x178] sm:$0xff] %v280
      %352 = vst [vmem:[#allocation2 + $0x180] sm:$0xff] %v281
      %353 = vst.msk [vmem:[#allocation2 + $0x188] sm:$0xff] %vm307, %v282
      %354 = vst [vmem:[#allocation2 + $0x190] sm:$0xff] %v283
      %355 = vst [vmem:[#allocation2 + $0x198] sm:$0xff] %v284
      %356 = vst [vmem:[#allocation2 + $0x1a0] sm:$0xff] %v285
      %357 = vst [vmem:[#allocation2 + $0x1a8] sm:$0xff] %v286
      %358 = vst.msk [vmem:[#allocation2 + $0x1b0] sm:$0xff] %vm307, %v287
      %359 = vst [vmem:[#allocation2 + $0x1b8] sm:$0xff] %v288
      %360 = vst [vmem:[#allocation2 + $0x1c0] sm:$0xff] %v289
      %361 = vst [vmem:[#allocation2 + $0x1c8] sm:$0xff] %v290
      %362 = vst [vmem:[#allocation2 + $0x1d0] sm:$0xff] %v291
      %363 = vst.msk [vmem:[#allocation2 + $0x1d8] sm:$0xff] %vm307, %v292
      %364 = vst [vmem:[#allocation2 + $0x1e0] sm:$0xff] %v293
      %365 = vst [vmem:[#allocation2 + $0x1e8] sm:$0xff] %v294
      %366 = vst [vmem:[#allocation2 + $0x1f0] sm:$0xff] %v295
      %367 = vst [vmem:[#allocation2 + $0x1f8] sm:$0xff] %v296
      %368 = vst.msk [vmem:[#allocation2 + $0x200] sm:$0xff] %vm307, %v297
      %369 = vst [vmem:[#allocation2 + $0x208] sm:$0xff] %v298
      %370 = vst [vmem:[#allocation2 + $0x210] sm:$0xff] %v299
      %371 = vst [vmem:[#allocation2 + $0x218] sm:$0xff] %v300
      %372 = vst [vmem:[#allocation2 + $0x220] sm:$0xff] %v301
      %373 = vst.msk [vmem:[#allocation2 + $0x228] sm:$0xff] %vm307, %v302
      %v374 = vmul.f32 %v163, %v163
      %v375 = vmul.f32 %v164, %v164
      %v376 = vmul.f32 %v165, %v165
      %v377 = vmul.f32 %v166, %v166
      %v378 = vmul.f32 %v167, %v167
      %v379 = vmul.f32 %v168, %v168
      %v380 = vmul.f32 %v169, %v169
      %v381 = vmul.f32 %v170, %v170
      %v382 = vmul.f32 %v171, %v171
      %v383 = vmul.f32 %v172, %v172
      %v384 = vmul.f32 %v173, %v173
      %v385 = vmul.f32 %v174, %v174
      %v386 = vmul.f32 %v175, %v175
      %v387 = vmul.f32 %v176, %v176
      %v388 = vmul.f32 %v177, %v177
      %v389 = vmul.f32 %v178, %v178
      %v390 = vmul.f32 %v179, %v179
      %v391 = vmul.f32 %v180, %v180
      %v392 = vmul.f32 %v181, %v181
      %v393 = vmul.f32 %v182, %v182
      %v394 = vmul.f32 %v183, %v183
      %v395 = vmul.f32 %v184, %v184
      %v396 = vmul.f32 %v185, %v185
      %v397 = vmul.f32 %v186, %v186
      %v398 = vmul.f32 %v187, %v187
      %v399 = vmul.f32 %v188, %v188
      %v400 = vmul.f32 %v189, %v189
      %v401 = vmul.f32 %v190, %v190
      %v402 = vmul.f32 %v191, %v191
      %v403 = vmul.f32 %v192, %v192
      %v404 = vmul.f32 %v193, %v193
      %v405 = vmul.f32 %v194, %v194
      %v406 = vmul.f32 %v195, %v195
      %v407 = vmul.f32 %v196, %v196
      %v408 = vmul.f32 %v197, %v197
      %v409 = vmul.f32 %v198, %v198
      %v410 = vmul.f32 %v199, %v199
      %v411 = vmul.f32 %v200, %v200
      %v412 = vmul.f32 %v201, %v201
      %v413 = vmul.f32 %v202, %v202
      %v414 = vmul.f32 %v203, %v203
      %v415 = vmul.f32 %v204, %v204
      %v416 = vmul.f32 %v205, %v205
      %v417 = vmul.f32 %v206, %v206
      %v418 = vmul.f32 %v207, %v207
      %v419 = vmul.f32 %v208, %v208
      %v420 = vmul.f32 %v209, %v209
      %v421 = vmul.f32 %v210, %v210
      %v422 = vmul.f32 %v211, %v211
      %v423 = vmul.f32 %v212, %v212
      %v424 = vmul.f32 %v213, %v213
      %v425 = vmul.f32 %v214, %v214
      %v426 = vmul.f32 %v215, %v215
      %v427 = vmul.f32 %v216, %v216
      %v428 = vmul.f32 %v217, %v217
      %v429 = vmul.f32 %v218, %v218
      %v430 = vmul.f32 %v219, %v219
      %v431 = vmul.f32 %v220, %v220
      %v432 = vmul.f32 %v221, %v221
      %v433 = vmul.f32 %v222, %v222
      %v434 = vmul.f32 %v223, %v223
      %v435 = vmul.f32 %v224, %v224
      %v436 = vmul.f32 %v225, %v225
      %v437 = vmul.f32 %v226, %v226
      %v438 = vmul.f32 %v227, %v227
      %v439 = vmul.f32 %v228, %v228
      %v440 = vmul.f32 %v229, %v229
      %v441 = vmul.f32 %v230, %v230
      %v442 = vmul.f32 %v231, %v231
      %v443 = vmul.f32 %v232, %v232
      %v444 = vmul.f32 %v374, 0.27406862
      %v445 = vmul.f32 %v375, 0.27406862
      %v446 = vmul.f32 %v376, 0.27406862
      %v447 = vmul.f32 %v377, 0.27406862
      %v448 = vmul.f32 %v378, 0.27406862
      %v449 = vmul.f32 %v379, 0.27406862
      %v450 = vmul.f32 %v380, 0.27406862
      %v451 = vmul.f32 %v381, 0.27406862
      %v452 = vmul.f32 %v382, 0.27406862
      %v453 = vmul.f32 %v383, 0.27406862
      %v454 = vmul.f32 %v384, 0.27406862
      %v455 = vmul.f32 %v385, 0.27406862
      %v456 = vmul.f32 %v386, 0.27406862
      %v457 = vmul.f32 %v387, 0.27406862
      %v458 = vmul.f32 %v388, 0.27406862
      %v459 = vmul.f32 %v389, 0.27406862
      %v460 = vmul.f32 %v390, 0.27406862
      %v461 = vmul.f32 %v391, 0.27406862
      %v462 = vmul.f32 %v392, 0.27406862
      %v463 = vmul.f32 %v393, 0.27406862
      %v464 = vmul.f32 %v394, 0.27406862
      %v465 = vmul.f32 %v395, 0.27406862
      %v466 = vmul.f32 %v396, 0.27406862
      %v467 = vmul.f32 %v397, 0.27406862
      %v468 = vmul.f32 %v398, 0.27406862
      %v469 = vmul.f32 %v399, 0.27406862
      %v470 = vmul.f32 %v400, 0.27406862
      %v471 = vmul.f32 %v401, 0.27406862
      %v472 = vmul.f32 %v402, 0.27406862
      %v473 = vmul.f32 %v403, 0.27406862
      %v474 = vmul.f32 %v404, 0.27406862
      %v475 = vmul.f32 %v405, 0.27406862
      %v476 = vmul.f32 %v406, 0.27406862
      %v477 = vmul.f32 %v407, 0.27406862
      %v478 = vmul.f32 %v408, 0.27406862
      %v479 = vmul.f32 %v409, 0.27406862
      %v480 = vmul.f32 %v410, 0.27406862
      %v481 = vmul.f32 %v411, 0.27406862
      %v482 = vmul.f32 %v412, 0.27406862
      %v483 = vmul.f32 %v413, 0.27406862
      %v484 = vmul.f32 %v414, 0.27406862
      %v485 = vmul.f32 %v415, 0.27406862
      %v486 = vmul.f32 %v416, 0.27406862
      %v487 = vmul.f32 %v417, 0.27406862
      %v488 = vmul.f32 %v418, 0.27406862
      %v489 = vmul.f32 %v419, 0.27406862
      %v490 = vmul.f32 %v420, 0.27406862
      %v491 = vmul.f32 %v421, 0.27406862
      %v492 = vmul.f32 %v422, 0.27406862
      %v493 = vmul.f32 %v423, 0.27406862
      %v494 = vmul.f32 %v424, 0.27406862
      %v495 = vmul.f32 %v425, 0.27406862
      %v496 = vmul.f32 %v426, 0.27406862
      %v497 = vmul.f32 %v427, 0.27406862
      %v498 = vmul.f32 %v428, 0.27406862
      %v499 = vmul.f32 %v429, 0.27406862
      %v500 = vmul.f32 %v430, 0.27406862
      %v501 = vmul.f32 %v431, 0.27406862
      %v502 = vmul.f32 %v432, 0.27406862
      %v503 = vmul.f32 %v433, 0.27406862
      %v504 = vmul.f32 %v434, 0.27406862
      %v505 = vmul.f32 %v435, 0.27406862
      %v506 = vmul.f32 %v436, 0.27406862
      %v507 = vmul.f32 %v437, 0.27406862
      %v508 = vmul.f32 %v438, 0.27406862
      %v509 = vmul.f32 %v439, 0.27406862
      %v510 = vmul.f32 %v440, 0.27406862
      %v511 = vmul.f32 %v441, 0.27406862
      %v512 = vmul.f32 %v442, 0.27406862
      %v513 = vmul.f32 %v443, 0.27406862
      %514 = vst [vmem:[#allocation3] sm:$0xff] %v444
      %515 = vst [vmem:[#allocation3 + $0x8] sm:$0xff] %v445
      %516 = vst [vmem:[#allocation3 + $0x10] sm:$0xff] %v446
      %517 = vst [vmem:[#allocation3 + $0x18] sm:$0xff] %v447
      %518 = vst.msk [vmem:[#allocation3 + $0x20] sm:$0xff] %vm307, %v448
      %519 = vst [vmem:[#allocation3 + $0x28] sm:$0xff] %v449
      %520 = vst [vmem:[#allocation3 + $0x30] sm:$0xff] %v450
      %521 = vst [vmem:[#allocation3 + $0x38] sm:$0xff] %v451
      %522 = vst [vmem:[#allocation3 + $0x40] sm:$0xff] %v452
      %523 = vst.msk [vmem:[#allocation3 + $0x48] sm:$0xff] %vm307, %v453
      %524 = vst [vmem:[#allocation3 + $0x50] sm:$0xff] %v454
      %525 = vst [vmem:[#allocation3 + $0x58] sm:$0xff] %v455
      %526 = vst [vmem:[#allocation3 + $0x60] sm:$0xff] %v456
      %527 = vst [vmem:[#allocation3 + $0x68] sm:$0xff] %v457
      %528 = vst.msk [vmem:[#allocation3 + $0x70] sm:$0xff] %vm307, %v458
      %529 = vst [vmem:[#allocation3 + $0x78] sm:$0xff] %v459
      %530 = vst [vmem:[#allocation3 + $0x80] sm:$0xff] %v460
      %531 = vst [vmem:[#allocation3 + $0x88] sm:$0xff] %v461
      %532 = vst [vmem:[#allocation3 + $0x90] sm:$0xff] %v462
      %533 = vst.msk [vmem:[#allocation3 + $0x98] sm:$0xff] %vm307, %v463
      %534 = vst [vmem:[#allocation3 + $0xa0] sm:$0xff] %v464
      %535 = vst [vmem:[#allocation3 + $0xa8] sm:$0xff] %v465
      %536 = vst [vmem:[#allocation3 + $0xb0] sm:$0xff] %v466
      %537 = vst [vmem:[#allocation3 + $0xb8] sm:$0xff] %v467
      %538 = vst.msk [vmem:[#allocation3 + $0xc0] sm:$0xff] %vm307, %v468
      %539 = vst [vmem:[#allocation3 + $0xc8] sm:$0xff] %v469
      %540 = vst [vmem:[#allocation3 + $0xd0] sm:$0xff] %v470
      %541 = vst [vmem:[#allocation3 + $0xd8] sm:$0xff] %v471
      %542 = vst [vmem:[#allocation3 + $0xe0] sm:$0xff] %v472
      %543 = vst.msk [vmem:[#allocation3 + $0xe8] sm:$0xff] %vm307, %v473
      %544 = vst [vmem:[#allocation3 + $0xf0] sm:$0xff] %v474
      %545 = vst [vmem:[#allocation3 + $0xf8] sm:$0xff] %v475
      %546 = vst [vmem:[#allocation3 + $0x100] sm:$0xff] %v476
      %547 = vst [vmem:[#allocation3 + $0x108] sm:$0xff] %v477
      %548 = vst.msk [vmem:[#allocation3 + $0x110] sm:$0xff] %vm307, %v478
      %549 = vst [vmem:[#allocation3 + $0x118] sm:$0xff] %v479
      %550 = vst [vmem:[#allocation3 + $0x120] sm:$0xff] %v480
      %551 = vst [vmem:[#allocation3 + $0x128] sm:$0xff] %v481
      %552 = vst [vmem:[#allocation3 + $0x130] sm:$0xff] %v482
      %553 = vst.msk [vmem:[#allocation3 + $0x138] sm:$0xff] %vm307, %v483
      %554 = vst [vmem:[#allocation3 + $0x140] sm:$0xff] %v484
      %555 = vst [vmem:[#allocation3 + $0x148] sm:$0xff] %v485
      %556 = vst [vmem:[#allocation3 + $0x150] sm:$0xff] %v486
      %557 = vst [vmem:[#allocation3 + $0x158] sm:$0xff] %v487
      %558 = vst.msk [vmem:[#allocation3 + $0x160] sm:$0xff] %vm307, %v488
      %559 = vst [vmem:[#allocation3 + $0x168] sm:$0xff] %v489
      %560 = vst [vmem:[#allocation3 + $0x170] sm:$0xff] %v490
      %561 = vst [vmem:[#allocation3 + $0x178] sm:$0xff] %v491
      %562 = vst [vmem:[#allocation3 + $0x180] sm:$0xff] %v492
      %563 = vst.msk [vmem:[#allocation3 + $0x188] sm:$0xff] %vm307, %v493
      %564 = vst [vmem:[#allocation3 + $0x190] sm:$0xff] %v494
      %565 = vst [vmem:[#allocation3 + $0x198] sm:$0xff] %v495
      %566 = vst [vmem:[#allocation3 + $0x1a0] sm:$0xff] %v496
      %567 = vst [vmem:[#allocation3 + $0x1a8] sm:$0xff] %v497
      %568 = vst.msk [vmem:[#allocation3 + $0x1b0] sm:$0xff] %vm307, %v498
      %569 = vst [vmem:[#allocation3 + $0x1b8] sm:$0xff] %v499
      %570 = vst [vmem:[#allocation3 + $0x1c0] sm:$0xff] %v500
      %571 = vst [vmem:[#allocation3 + $0x1c8] sm:$0xff] %v501
      %572 = vst [vmem:[#allocation3 + $0x1d0] sm:$0xff] %v502
      %573 = vst.msk [vmem:[#allocation3 + $0x1d8] sm:$0xff] %vm307, %v503
      %574 = vst [vmem:[#allocation3 + $0x1e0] sm:$0xff] %v504
      %575 = vst [vmem:[#allocation3 + $0x1e8] sm:$0xff] %v505
      %576 = vst [vmem:[#allocation3 + $0x1f0] sm:$0xff] %v506
      %577 = vst [vmem:[#allocation3 + $0x1f8] sm:$0xff] %v507
      %578 = vst.msk [vmem:[#allocation3 + $0x200] sm:$0xff] %vm307, %v508
      %579 = vst [vmem:[#allocation3 + $0x208] sm:$0xff] %v509
      %580 = vst [vmem:[#allocation3 + $0x210] sm:$0xff] %v510
      %581 = vst [vmem:[#allocation3 + $0x218] sm:$0xff] %v511
      %582 = vst [vmem:[#allocation3 + $0x220] sm:$0xff] %v512
      %583 = vst.msk [vmem:[#allocation3 + $0x228] sm:$0xff] %vm307, %v513
      %s584 = scalar_lea.vmem %s148, 80
      %v585 = vld [vmem:[%s584] sm:$0xff]
      %v586 = vld [vmem:[%s584 + $0x8] sm:$0xff]
      %v587 = vld [vmem:[%s584 + $0x10] sm:$0xff]
      %v588 = vld [vmem:[%s584 + $0x18] sm:$0xff]
      %v589 = vld [vmem:[%s584 + $0x20] sm:$0xff]
      %v590 = vld [vmem:[%s584 + $0x28] sm:$0xff]
      %v591 = vld [vmem:[%s584 + $0x30] sm:$0xff]
      %v592 = vld [vmem:[%s584 + $0x38] sm:$0xff]
      %v593 = vld [vmem:[%s584 + $0x40] sm:$0xff]
      %v594 = vld [vmem:[%s584 + $0x48] sm:$0xff]
      %v595 = vld [vmem:[%s584 + $0x50] sm:$0xff]
      %v596 = vld [vmem:[%s584 + $0x58] sm:$0xff]
      %v597 = vld [vmem:[%s584 + $0x60] sm:$0xff]
      %v598 = vld [vmem:[%s584 + $0x68] sm:$0xff]
      %v599 = vld [vmem:[%s584 + $0x70] sm:$0xff]
      %v600 = vld [vmem:[%s584 + $0x78] sm:$0xff]
      %v601 = vld [vmem:[%s584 + $0x80] sm:$0xff]
      %v602 = vld [vmem:[%s584 + $0x88] sm:$0xff]
      %v603 = vld [vmem:[%s584 + $0x90] sm:$0xff]
      %v604 = vld [vmem:[%s584 + $0x98] sm:$0xff]
      %v605 = vld [vmem:[%s584 + $0xa0] sm:$0xff]
      %v606 = vld [vmem:[%s584 + $0xa8] sm:$0xff]
      %v607 = vld [vmem:[%s584 + $0xb0] sm:$0xff]
      %v608 = vld [vmem:[%s584 + $0xb8] sm:$0xff]
      %v609 = vld [vmem:[%s584 + $0xc0] sm:$0xff]
      %v610 = vld [vmem:[%s584 + $0xc8] sm:$0xff]
      %v611 = vld [vmem:[%s584 + $0xd0] sm:$0xff]
      %v612 = vld [vmem:[%s584 + $0xd8] sm:$0xff]
      %v613 = vld [vmem:[%s584 + $0xe0] sm:$0xff]
      %v614 = vld [vmem:[%s584 + $0xe8] sm:$0xff]
      %v615 = vld [vmem:[%s584 + $0xf0] sm:$0xff]
      %v616 = vld [vmem:[%s584 + $0xf8] sm:$0xff]
      %v617 = vld [vmem:[%s584 + $0x100] sm:$0xff]
      %v618 = vld [vmem:[%s584 + $0x108] sm:$0xff]
      %v619 = vld [vmem:[%s584 + $0x110] sm:$0xff]
      %v620 = vld [vmem:[%s584 + $0x118] sm:$0xff]
      %v621 = vld [vmem:[%s584 + $0x120] sm:$0xff]
      %v622 = vld [vmem:[%s584 + $0x128] sm:$0xff]
      %v623 = vld [vmem:[%s584 + $0x130] sm:$0xff]
      %v624 = vld [vmem:[%s584 + $0x138] sm:$0xff]
      %v625 = vld [vmem:[%s584 + $0x140] sm:$0xff]
      %v626 = vld [vmem:[%s584 + $0x148] sm:$0xff]
      %v627 = vld [vmem:[%s584 + $0x150] sm:$0xff]
      %v628 = vld [vmem:[%s584 + $0x158] sm:$0xff]
      %v629 = vld [vmem:[%s584 + $0x160] sm:$0xff]
      %v630 = vld [vmem:[%s584 + $0x168] sm:$0xff]
      %v631 = vld [vmem:[%s584 + $0x170] sm:$0xff]
      %v632 = vld [vmem:[%s584 + $0x178] sm:$0xff]
      %v633 = vld [vmem:[%s584 + $0x180] sm:$0xff]
      %v634 = vld [vmem:[%s584 + $0x188] sm:$0xff]
      %v635 = vld [vmem:[%s584 + $0x190] sm:$0xff]
      %v636 = vld [vmem:[%s584 + $0x198] sm:$0xff]
      %v637 = vld [vmem:[%s584 + $0x1a0] sm:$0xff]
      %v638 = vld [vmem:[%s584 + $0x1a8] sm:$0xff]
      %v639 = vld [vmem:[%s584 + $0x1b0] sm:$0xff]
      %v640 = vld [vmem:[%s584 + $0x1b8] sm:$0xff]
      %v641 = vld [vmem:[%s584 + $0x1c0] sm:$0xff]
      %v642 = vld [vmem:[%s584 + $0x1c8] sm:$0xff]
      %v643 = vld [vmem:[%s584 + $0x1d0] sm:$0xff]
      %v644 = vld [vmem:[%s584 + $0x1d8] sm:$0xff]
      %v645 = vld [vmem:[%s584 + $0x1e0] sm:$0xff]
      %v646 = vld [vmem:[%s584 + $0x1e8] sm:$0xff]
      %v647 = vld [vmem:[%s584 + $0x1f0] sm:$0xff]
      %v648 = vld [vmem:[%s584 + $0x1f8] sm:$0xff]
      %v649 = vld [vmem:[%s584 + $0x200] sm:$0xff]
      %v650 = vld [vmem:[%s584 + $0x208] sm:$0xff]
      %v651 = vld [vmem:[%s584 + $0x210] sm:$0xff]
      %v652 = vld [vmem:[%s584 + $0x218] sm:$0xff]
      %v653 = vld [vmem:[%s584 + $0x220] sm:$0xff]
      %v654 = vld [vmem:[%s584 + $0x228] sm:$0xff]
      %v655 = vld [vmem:[#allocation2] sm:$0xff]
      %v656 = vld [vmem:[#allocation2 + $0x8] sm:$0xff]
      %v657 = vld [vmem:[#allocation2 + $0x10] sm:$0xff]
      %v658 = vld [vmem:[#allocation2 + $0x18] sm:$0xff]
      %v659 = vld [vmem:[#allocation2 + $0x20] sm:$0xff]
      %v660 = vld [vmem:[#allocation2 + $0x28] sm:$0xff]
      %v661 = vld [vmem:[#allocation2 + $0x30] sm:$0xff]
      %v662 = vld [vmem:[#allocation2 + $0x38] sm:$0xff]
      %v663 = vld [vmem:[#allocation2 + $0x40] sm:$0xff]
      %v664 = vld [vmem:[#allocation2 + $0x48] sm:$0xff]
      %v665 = vld [vmem:[#allocation2 + $0x50] sm:$0xff]
      %v666 = vld [vmem:[#allocation2 + $0x58] sm:$0xff]
      %v667 = vld [vmem:[#allocation2 + $0x60] sm:$0xff]
      %v668 = vld [vmem:[#allocation2 + $0x68] sm:$0xff]
      %v669 = vld [vmem:[#allocation2 + $0x70] sm:$0xff]
      %v670 = vld [vmem:[#allocation2 + $0x78] sm:$0xff]
      %v671 = vld [vmem:[#allocation2 + $0x80] sm:$0xff]
      %v672 = vld [vmem:[#allocation2 + $0x88] sm:$0xff]
      %v673 = vld [vmem:[#allocation2 + $0x90] sm:$0xff]
      %v674 = vld [vmem:[#allocation2 + $0x98] sm:$0xff]
      %v675 = vld [vmem:[#allocation2 + $0xa0] sm:$0xff]
      %v676 = vld [vmem:[#allocation2 + $0xa8] sm:$0xff]
      %v677 = vld [vmem:[#allocation2 + $0xb0] sm:$0xff]
      %v678 = vld [vmem:[#allocation2 + $0xb8] sm:$0xff]
      %v679 = vld [vmem:[#allocation2 + $0xc0] sm:$0xff]
      %v680 = vld [vmem:[#allocation2 + $0xc8] sm:$0xff]
      %v681 = vld [vmem:[#allocation2 + $0xd0] sm:$0xff]
      %v682 = vld [vmem:[#allocation2 + $0xd8] sm:$0xff]
      %v683 = vld [vmem:[#allocation2 + $0xe0] sm:$0xff]
      %v684 = vld [vmem:[#allocation2 + $0xe8] sm:$0xff]
      %v685 = vld [vmem:[#allocation2 + $0xf0] sm:$0xff]
      %v686 = vld [vmem:[#allocation2 + $0xf8] sm:$0xff]
      %v687 = vld [vmem:[#allocation2 + $0x100] sm:$0xff]
      %v688 = vld [vmem:[#allocation2 + $0x108] sm:$0xff]
      %v689 = vld [vmem:[#allocation2 + $0x110] sm:$0xff]
      %v690 = vld [vmem:[#allocation2 + $0x118] sm:$0xff]
      %v691 = vld [vmem:[#allocation2 + $0x120] sm:$0xff]
      %v692 = vld [vmem:[#allocation2 + $0x128] sm:$0xff]
      %v693 = vld [vmem:[#allocation2 + $0x130] sm:$0xff]
      %v694 = vld [vmem:[#allocation2 + $0x138] sm:$0xff]
      %v695 = vld [vmem:[#allocation2 + $0x140] sm:$0xff]
      %v696 = vld [vmem:[#allocation2 + $0x148] sm:$0xff]
      %v697 = vld [vmem:[#allocation2 + $0x150] sm:$0xff]
      %v698 = vld [vmem:[#allocation2 + $0x158] sm:$0xff]
      %v699 = vld [vmem:[#allocation2 + $0x160] sm:$0xff]
      %v700 = vld [vmem:[#allocation2 + $0x168] sm:$0xff]
      %v701 = vld [vmem:[#allocation2 + $0x170] sm:$0xff]
      %v702 = vld [vmem:[#allocation2 + $0x178] sm:$0xff]
      %v703 = vld [vmem:[#allocation2 + $0x180] sm:$0xff]
      %v704 = vld [vmem:[#allocation2 + $0x188] sm:$0xff]
      %v705 = vld [vmem:[#allocation2 + $0x190] sm:$0xff]
      %v706 = vld [vmem:[#allocation2 + $0x198] sm:$0xff]
      %v707 = vld [vmem:[#allocation2 + $0x1a0] sm:$0xff]
      %v708 = vld [vmem:[#allocation2 + $0x1a8] sm:$0xff]
      %v709 = vld [vmem:[#allocation2 + $0x1b0] sm:$0xff]
      %v710 = vld [vmem:[#allocation2 + $0x1b8] sm:$0xff]
      %v711 = vld [vmem:[#allocation2 + $0x1c0] sm:$0xff]
      %v712 = vld [vmem:[#allocation2 + $0x1c8] sm:$0xff]
      %v713 = vld [vmem:[#allocation2 + $0x1d0] sm:$0xff]
      %v714 = vld [vmem:[#allocation2 + $0x1d8] sm:$0xff]
      %v715 = vld [vmem:[#allocation2 + $0x1e0] sm:$0xff]
      %v716 = vld [vmem:[#allocation2 + $0x1e8] sm:$0xff]
      %v717 = vld [vmem:[#allocation2 + $0x1f0] sm:$0xff]
      %v718 = vld [vmem:[#allocation2 + $0x1f8] sm:$0xff]
      %v719 = vld [vmem:[#allocation2 + $0x200] sm:$0xff]
      %v720 = vld [vmem:[#allocation2 + $0x208] sm:$0xff]
      %v721 = vld [vmem:[#allocation2 + $0x210] sm:$0xff]
      %v722 = vld [vmem:[#allocation2 + $0x218] sm:$0xff]
      %v723 = vld [vmem:[#allocation2 + $0x220] sm:$0xff]
      %v724 = vld [vmem:[#allocation2 + $0x228] sm:$0xff]
      %v725 = vmul.f32 %v585, 0.45186275
      %v726 = vmul.f32 %v586, 0.45186275
      %v727 = vmul.f32 %v587, 0.45186275
      %v728 = vmul.f32 %v588, 0.45186275
      %v729 = vmul.f32 %v589, 0.45186275
      %v730 = vmul.f32 %v590, 0.45186275
      %v731 = vmul.f32 %v591, 0.45186275
      %v732 = vmul.f32 %v592, 0.45186275
      %v733 = vmul.f32 %v593, 0.45186275
      %v734 = vmul.f32 %v594, 0.45186275
      %v735 = vmul.f32 %v595, 0.45186275
      %v736 = vmul.f32 %v596, 0.45186275
      %v737 = vmul.f32 %v597, 0.45186275
      %v738 = vmul.f32 %v598, 0.45186275
      %v739 = vmul.f32 %v599, 0.45186275
      %v740 = vmul.f32 %v600, 0.45186275
      %v741 = vmul.f32 %v601, 0.45186275
      %v742 = vmul.f32 %v602, 0.45186275
      %v743 = vmul.f32 %v603, 0.45186275
      %v744 = vmul.f32 %v604, 0.45186275
      %v745 = vmul.f32 %v605, 0.45186275
      %v746 = vmul.f32 %v606, 0.45186275
      %v747 = vmul.f32 %v607, 0.45186275
      %v748 = vmul.f32 %v608, 0.45186275
      %v749 = vmul.f32 %v609, 0.45186275
      %v750 = vmul.f32 %v610, 0.45186275
      %v751 = vmul.f32 %v611, 0.45186275
      %v752 = vmul.f32 %v612, 0.45186275
      %v753 = vmul.f32 %v613, 0.45186275
      %v754 = vmul.f32 %v614, 0.45186275
      %v755 = vmul.f32 %v615, 0.45186275
      %v756 = vmul.f32 %v616, 0.45186275
      %v757 = vmul.f32 %v617, 0.45186275
      %v758 = vmul.f32 %v618, 0.45186275
      %v759 = vmul.f32 %v619, 0.45186275
      %v760 = vmul.f32 %v620, 0.45186275
      %v761 = vmul.f32 %v621, 0.45186275
      %v762 = vmul.f32 %v622, 0.45186275
      %v763 = vmul.f32 %v623, 0.45186275
      %v764 = vmul.f32 %v624, 0.45186275
      %v765 = vmul.f32 %v625, 0.45186275
      %v766 = vmul.f32 %v626, 0.45186275
      %v767 = vmul.f32 %v627, 0.45186275
      %v768 = vmul.f32 %v628, 0.45186275
      %v769 = vmul.f32 %v629, 0.45186275
      %v770 = vmul.f32 %v630, 0.45186275
      %v771 = vmul.f32 %v631, 0.45186275
      %v772 = vmul.f32 %v632, 0.45186275
      %v773 = vmul.f32 %v633, 0.45186275
      %v774 = vmul.f32 %v634, 0.45186275
      %v775 = vmul.f32 %v635, 0.45186275
      %v776 = vmul.f32 %v636, 0.45186275
      %v777 = vmul.f32 %v637, 0.45186275
      %v778 = vmul.f32 %v638, 0.45186275
      %v779 = vmul.f32 %v639, 0.45186275
      %v780 = vmul.f32 %v640, 0.45186275
      %v781 = vmul.f32 %v641, 0.45186275
      %v782 = vmul.f32 %v642, 0.45186275
      %v783 = vmul.f32 %v643, 0.45186275
      %v784 = vmul.f32 %v644, 0.45186275
      %v785 = vmul.f32 %v645, 0.45186275
      %v786 = vmul.f32 %v646, 0.45186275
      %v787 = vmul.f32 %v647, 0.45186275
      %v788 = vmul.f32 %v648, 0.45186275
      %v789 = vmul.f32 %v649, 0.45186275
      %v790 = vmul.f32 %v650, 0.45186275
      %v791 = vmul.f32 %v651, 0.45186275
      %v792 = vmul.f32 %v652, 0.45186275
      %v793 = vmul.f32 %v653, 0.45186275
      %v794 = vmul.f32 %v654, 0.45186275
      %v795 = vadd.f32 %v655, %v725
      %v796 = vadd.f32 %v656, %v726
      %v797 = vadd.f32 %v657, %v727
      %v798 = vadd.f32 %v658, %v728
      %v799 = vadd.f32 %v659, %v729
      %v800 = vadd.f32 %v660, %v730
      %v801 = vadd.f32 %v661, %v731
      %v802 = vadd.f32 %v662, %v732
      %v803 = vadd.f32 %v663, %v733
      %v804 = vadd.f32 %v664, %v734
      %v805 = vadd.f32 %v665, %v735
      %v806 = vadd.f32 %v666, %v736
      %v807 = vadd.f32 %v667, %v737
      %v808 = vadd.f32 %v668, %v738
      %v809 = vadd.f32 %v669, %v739
      %v810 = vadd.f32 %v670, %v740
      %v811 = vadd.f32 %v671, %v741
      %v812 = vadd.f32 %v672, %v742
      %v813 = vadd.f32 %v673, %v743
      %v814 = vadd.f32 %v674, %v744
      %v815 = vadd.f32 %v675, %v745
      %v816 = vadd.f32 %v676, %v746
      %v817 = vadd.f32 %v677, %v747
      %v818 = vadd.f32 %v678, %v748
      %v819 = vadd.f32 %v679, %v749
      %v820 = vadd.f32 %v680, %v750
      %v821 = vadd.f32 %v681, %v751
      %v822 = vadd.f32 %v682, %v752
      %v823 = vadd.f32 %v683, %v753
      %v824 = vadd.f32 %v684, %v754
      %v825 = vadd.f32 %v685, %v755
      %v826 = vadd.f32 %v686, %v756
      %v827 = vadd.f32 %v687, %v757
      %v828 = vadd.f32 %v688, %v758
      %v829 = vadd.f32 %v689, %v759
      %v830 = vadd.f32 %v690, %v760
      %v831 = vadd.f32 %v691, %v761
      %v832 = vadd.f32 %v692, %v762
      %v833 = vadd.f32 %v693, %v763
      %v834 = vadd.f32 %v694, %v764
      %v835 = vadd.f32 %v695, %v765
      %v836 = vadd.f32 %v696, %v766
      %v837 = vadd.f32 %v697, %v767
      %v838 = vadd.f32 %v698, %v768
      %v839 = vadd.f32 %v699, %v769
      %v840 = vadd.f32 %v700, %v770
      %v841 = vadd.f32 %v701, %v771
      %v842 = vadd.f32 %v702, %v772
      %v843 = vadd.f32 %v703, %v773
      %v844 = vadd.f32 %v704, %v774
      %v845 = vadd.f32 %v705, %v775
      %v846 = vadd.f32 %v706, %v776
      %v847 = vadd.f32 %v707, %v777
      %v848 = vadd.f32 %v708, %v778
      %v849 = vadd.f32 %v709, %v779
      %v850 = vadd.f32 %v710, %v780
      %v851 = vadd.f32 %v711, %v781
      %v852 = vadd.f32 %v712, %v782
      %v853 = vadd.f32 %v713, %v783
      %v854 = vadd.f32 %v714, %v784
      %v855 = vadd.f32 %v715, %v785
      %v856 = vadd.f32 %v716, %v786
      %v857 = vadd.f32 %v717, %v787
      %v858 = vadd.f32 %v718, %v788
      %v859 = vadd.f32 %v719, %v789
      %v860 = vadd.f32 %v720, %v790
      %v861 = vadd.f32 %v721, %v791
      %v862 = vadd.f32 %v722, %v792
      %v863 = vadd.f32 %v723, %v793
      %v864 = vadd.f32 %v724, %v794
      %865 = vst [vmem:[#allocation2] sm:$0xff] %v795
      %866 = vst [vmem:[#allocation2 + $0x8] sm:$0xff] %v796
      %867 = vst [vmem:[#allocation2 + $0x10] sm:$0xff] %v797
      %868 = vst [vmem:[#allocation2 + $0x18] sm:$0xff] %v798
      %869 = vst.msk [vmem:[#allocation2 + $0x20] sm:$0xff] %vm307, %v799
      %870 = vst [vmem:[#allocation2 + $0x28] sm:$0xff] %v800
      %871 = vst [vmem:[#allocation2 + $0x30] sm:$0xff] %v801
      %872 = vst [vmem:[#allocation2 + $0x38] sm:$0xff] %v802
      %873 = vst [vmem:[#allocation2 + $0x40] sm:$0xff] %v803
      %874 = vst.msk [vmem:[#allocation2 + $0x48] sm:$0xff] %vm307, %v804
      %875 = vst [vmem:[#allocation2 + $0x50] sm:$0xff] %v805
      %876 = vst [vmem:[#allocation2 + $0x58] sm:$0xff] %v806
      %877 = vst [vmem:[#allocation2 + $0x60] sm:$0xff] %v807
      %878 = vst [vmem:[#allocation2 + $0x68] sm:$0xff] %v808
      %879 = vst.msk [vmem:[#allocation2 + $0x70] sm:$0xff] %vm307, %v809
      %880 = vst [vmem:[#allocation2 + $0x78] sm:$0xff] %v810
      %881 = vst [vmem:[#allocation2 + $0x80] sm:$0xff] %v811
      %882 = vst [vmem:[#allocation2 + $0x88] sm:$0xff] %v812
      %883 = vst [vmem:[#allocation2 + $0x90] sm:$0xff] %v813
      %884 = vst.msk [vmem:[#allocation2 + $0x98] sm:$0xff] %vm307, %v814
      %885 = vst [vmem:[#allocation2 + $0xa0] sm:$0xff] %v815
      %886 = vst [vmem:[#allocation2 + $0xa8] sm:$0xff] %v816
      %887 = vst [vmem:[#allocation2 + $0xb0] sm:$0xff] %v817
      %888 = vst [vmem:[#allocation2 + $0xb8] sm:$0xff] %v818
      %889 = vst.msk [vmem:[#allocation2 + $0xc0] sm:$0xff] %vm307, %v819
      %890 = vst [vmem:[#allocation2 + $0xc8] sm:$0xff] %v820
      %891 = vst [vmem:[#allocation2 + $0xd0] sm:$0xff] %v821
      %892 = vst [vmem:[#allocation2 + $0xd8] sm:$0xff] %v822
      %893 = vst [vmem:[#allocation2 + $0xe0] sm:$0xff] %v823
      %894 = vst.msk [vmem:[#allocation2 + $0xe8] sm:$0xff] %vm307, %v824
      %895 = vst [vmem:[#allocation2 + $0xf0] sm:$0xff] %v825
      %896 = vst [vmem:[#allocation2 + $0xf8] sm:$0xff] %v826
      %897 = vst [vmem:[#allocation2 + $0x100] sm:$0xff] %v827
      %898 = vst [vmem:[#allocation2 + $0x108] sm:$0xff] %v828
      %899 = vst.msk [vmem:[#allocation2 + $0x110] sm:$0xff] %vm307, %v829
      %900 = vst [vmem:[#allocation2 + $0x118] sm:$0xff] %v830
      %901 = vst [vmem:[#allocation2 + $0x120] sm:$0xff] %v831
      %902 = vst [vmem:[#allocation2 + $0x128] sm:$0xff] %v832
      %903 = vst [vmem:[#allocation2 + $0x130] sm:$0xff] %v833
      %904 = vst.msk [vmem:[#allocation2 + $0x138] sm:$0xff] %vm307, %v834
      %905 = vst [vmem:[#allocation2 + $0x140] sm:$0xff] %v835
      %906 = vst [vmem:[#allocation2 + $0x148] sm:$0xff] %v836
      %907 = vst [vmem:[#allocation2 + $0x150] sm:$0xff] %v837
      %908 = vst [vmem:[#allocation2 + $0x158] sm:$0xff] %v838
      %909 = vst.msk [vmem:[#allocation2 + $0x160] sm:$0xff] %vm307, %v839
      %910 = vst [vmem:[#allocation2 + $0x168] sm:$0xff] %v840
      %911 = vst [vmem:[#allocation2 + $0x170] sm:$0xff] %v841
      %912 = vst [vmem:[#allocation2 + $0x178] sm:$0xff] %v842
      %913 = vst [vmem:[#allocation2 + $0x180] sm:$0xff] %v843
      %914 = vst.msk [vmem:[#allocation2 + $0x188] sm:$0xff] %vm307, %v844
      %915 = vst [vmem:[#allocation2 + $0x190] sm:$0xff] %v845
      %916 = vst [vmem:[#allocation2 + $0x198] sm:$0xff] %v846
      %917 = vst [vmem:[#allocation2 + $0x1a0] sm:$0xff] %v847
      %918 = vst [vmem:[#allocation2 + $0x1a8] sm:$0xff] %v848
      %919 = vst.msk [vmem:[#allocation2 + $0x1b0] sm:$0xff] %vm307, %v849
      %920 = vst [vmem:[#allocation2 + $0x1b8] sm:$0xff] %v850
      %921 = vst [vmem:[#allocation2 + $0x1c0] sm:$0xff] %v851
      %922 = vst [vmem:[#allocation2 + $0x1c8] sm:$0xff] %v852
      %923 = vst [vmem:[#allocation2 + $0x1d0] sm:$0xff] %v853
      %924 = vst.msk [vmem:[#allocation2 + $0x1d8] sm:$0xff] %vm307, %v854
      %925 = vst [vmem:[#allocation2 + $0x1e0] sm:$0xff] %v855
      %926 = vst [vmem:[#allocation2 + $0x1e8] sm:$0xff] %v856
      %927 = vst [vmem:[#allocation2 + $0x1f0] sm:$0xff] %v857
      %928 = vst [vmem:[#allocation2 + $0x1f8] sm:$0xff] %v858
      %929 = vst.msk [vmem:[#allocation2 + $0x200] sm:$0xff] %vm307, %v859
      %930 = vst [vmem:[#allocation2 + $0x208] sm:$0xff] %v860
      %931 = vst [vmem:[#allocation2 + $0x210] sm:$0xff] %v861
      %932 = vst [vmem:[#allocation2 + $0x218] sm:$0xff] %v862
      %933 = vst [vmem:[#allocation2 + $0x220] sm:$0xff] %v863
      %934 = vst.msk [vmem:[#allocation2 + $0x228] sm:$0xff] %vm307, %v864
      %v935 = vld [vmem:[#allocation3] sm:$0xff]
      %v936 = vld [vmem:[#allocation3 + $0x8] sm:$0xff]
      %v937 = vld [vmem:[#allocation3 + $0x10] sm:$0xff]
      %v938 = vld [vmem:[#allocation3 + $0x18] sm:$0xff]
      %v939 = vld [vmem:[#allocation3 + $0x20] sm:$0xff]
      %v940 = vld [vmem:[#allocation3 + $0x28] sm:$0xff]
      %v941 = vld [vmem:[#allocation3 + $0x30] sm:$0xff]
      %v942 = vld [vmem:[#allocation3 + $0x38] sm:$0xff]
      %v943 = vld [vmem:[#allocation3 + $0x40] sm:$0xff]
      %v944 = vld [vmem:[#allocation3 + $0x48] sm:$0xff]
      %v945 = vld [vmem:[#allocation3 + $0x50] sm:$0xff]
      %v946 = vld [vmem:[#allocation3 + $0x58] sm:$0xff]
      %v947 = vld [vmem:[#allocation3 + $0x60] sm:$0xff]
      %v948 = vld [vmem:[#allocation3 + $0x68] sm:$0xff]
      %v949 = vld [vmem:[#allocation3 + $0x70] sm:$0xff]
      %v950 = vld [vmem:[#allocation3 + $0x78] sm:$0xff]
      %v951 = vld [vmem:[#allocation3 + $0x80] sm:$0xff]
      %v952 = vld [vmem:[#allocation3 + $0x88] sm:$0xff]
      %v953 = vld [vmem:[#allocation3 + $0x90] sm:$0xff]
      %v954 = vld [vmem:[#allocation3 + $0x98] sm:$0xff]
      %v955 = vld [vmem:[#allocation3 + $0xa0] sm:$0xff]
      %v956 = vld [vmem:[#allocation3 + $0xa8] sm:$0xff]
      %v957 = vld [vmem:[#allocation3 + $0xb0] sm:$0xff]
      %v958 = vld [vmem:[#allocation3 + $0xb8] sm:$0xff]
      %v959 = vld [vmem:[#allocation3 + $0xc0] sm:$0xff]
      %v960 = vld [vmem:[#allocation3 + $0xc8] sm:$0xff]
      %v961 = vld [vmem:[#allocation3 + $0xd0] sm:$0xff]
      %v962 = vld [vmem:[#allocation3 + $0xd8] sm:$0xff]
      %v963 = vld [vmem:[#allocation3 + $0xe0] sm:$0xff]
      %v964 = vld [vmem:[#allocation3 + $0xe8] sm:$0xff]
      %v965 = vld [vmem:[#allocation3 + $0xf0] sm:$0xff]
      %v966 = vld [vmem:[#allocation3 + $0xf8] sm:$0xff]
      %v967 = vld [vmem:[#allocation3 + $0x100] sm:$0xff]
      %v968 = vld [vmem:[#allocation3 + $0x108] sm:$0xff]
      %v969 = vld [vmem:[#allocation3 + $0x110] sm:$0xff]
      %v970 = vld [vmem:[#allocation3 + $0x118] sm:$0xff]
      %v971 = vld [vmem:[#allocation3 + $0x120] sm:$0xff]
      %v972 = vld [vmem:[#allocation3 + $0x128] sm:$0xff]
      %v973 = vld [vmem:[#allocation3 + $0x130] sm:$0xff]
      %v974 = vld [vmem:[#allocation3 + $0x138] sm:$0xff]
      %v975 = vld [vmem:[#allocation3 + $0x140] sm:$0xff]
      %v976 = vld [vmem:[#allocation3 + $0x148] sm:$0xff]
      %v977 = vld [vmem:[#allocation3 + $0x150] sm:$0xff]
      %v978 = vld [vmem:[#allocation3 + $0x158] sm:$0xff]
      %v979 = vld [vmem:[#allocation3 + $0x160] sm:$0xff]
      %v980 = vld [vmem:[#allocation3 + $0x168] sm:$0xff]
      %v981 = vld [vmem:[#allocation3 + $0x170] sm:$0xff]
      %v982 = vld [vmem:[#allocation3 + $0x178] sm:$0xff]
      %v983 = vld [vmem:[#allocation3 + $0x180] sm:$0xff]
      %v984 = vld [vmem:[#allocation3 + $0x188] sm:$0xff]
      %v985 = vld [vmem:[#allocation3 + $0x190] sm:$0xff]
      %v986 = vld [vmem:[#allocation3 + $0x198] sm:$0xff]
      %v987 = vld [vmem:[#allocation3 + $0x1a0] sm:$0xff]
      %v988 = vld [vmem:[#allocation3 + $0x1a8] sm:$0xff]
      %v989 = vld [vmem:[#allocation3 + $0x1b0] sm:$0xff]
      %v990 = vld [vmem:[#allocation3 + $0x1b8] sm:$0xff]
      %v991 = vld [vmem:[#allocation3 + $0x1c0] sm:$0xff]
      %v992 = vld [vmem:[#allocation3 + $0x1c8] sm:$0xff]
      %v993 = vld [vmem:[#allocation3 + $0x1d0] sm:$0xff]
      %v994 = vld [vmem:[#allocation3 + $0x1d8] sm:$0xff]
      %v995 = vld [vmem:[#allocation3 + $0x1e0] sm:$0xff]
      %v996 = vld [vmem:[#allocation3 + $0x1e8] sm:$0xff]
      %v997 = vld [vmem:[#allocation3 + $0x1f0] sm:$0xff]
      %v998 = vld [vmem:[#allocation3 + $0x1f8] sm:$0xff]
      %v999 = vld [vmem:[#allocation3 + $0x200] sm:$0xff]
      %v1000 = vld [vmem:[#allocation3 + $0x208] sm:$0xff]
      %v1001 = vld [vmem:[#allocation3 + $0x210] sm:$0xff]
      %v1002 = vld [vmem:[#allocation3 + $0x218] sm:$0xff]
      %v1003 = vld [vmem:[#allocation3 + $0x220] sm:$0xff]
      %v1004 = vld [vmem:[#allocation3 + $0x228] sm:$0xff]
      %v1005 = vmul.f32 %v585, %v585
      %v1006 = vmul.f32 %v586, %v586
      %v1007 = vmul.f32 %v587, %v587
      %v1008 = vmul.f32 %v588, %v588
      %v1009 = vmul.f32 %v589, %v589
      %v1010 = vmul.f32 %v590, %v590
      %v1011 = vmul.f32 %v591, %v591
      %v1012 = vmul.f32 %v592, %v592
      %v1013 = vmul.f32 %v593, %v593
      %v1014 = vmul.f32 %v594, %v594
      %v1015 = vmul.f32 %v595, %v595
      %v1016 = vmul.f32 %v596, %v596
      %v1017 = vmul.f32 %v597, %v597
      %v1018 = vmul.f32 %v598, %v598
      %v1019 = vmul.f32 %v599, %v599
      %v1020 = vmul.f32 %v600, %v600
      %v1021 = vmul.f32 %v601, %v601
      %v1022 = vmul.f32 %v602, %v602
      %v1023 = vmul.f32 %v603, %v603
      %v1024 = vmul.f32 %v604, %v604
      %v1025 = vmul.f32 %v605, %v605
      %v1026 = vmul.f32 %v606, %v606
      %v1027 = vmul.f32 %v607, %v607
      %v1028 = vmul.f32 %v608, %v608
      %v1029 = vmul.f32 %v609, %v609
      %v1030 = vmul.f32 %v610, %v610
      %v1031 = vmul.f32 %v611, %v611
      %v1032 = vmul.f32 %v612, %v612
      %v1033 = vmul.f32 %v613, %v613
      %v1034 = vmul.f32 %v614, %v614
      %v1035 = vmul.f32 %v615, %v615
      %v1036 = vmul.f32 %v616, %v616
      %v1037 = vmul.f32 %v617, %v617
      %v1038 = vmul.f32 %v618, %v618
      %v1039 = vmul.f32 %v619, %v619
      %v1040 = vmul.f32 %v620, %v620
      %v1041 = vmul.f32 %v621, %v621
      %v1042 = vmul.f32 %v622, %v622
      %v1043 = vmul.f32 %v623, %v623
      %v1044 = vmul.f32 %v624, %v624
      %v1045 = vmul.f32 %v625, %v625
      %v1046 = vmul.f32 %v626, %v626
      %v1047 = vmul.f32 %v627, %v627
      %v1048 = vmul.f32 %v628, %v628
      %v1049 = vmul.f32 %v629, %v629
      %v1050 = vmul.f32 %v630, %v630
      %v1051 = vmul.f32 %v631, %v631
      %v1052 = vmul.f32 %v632, %v632
      %v1053 = vmul.f32 %v633, %v633
      %v1054 = vmul.f32 %v634, %v634
      %v1055 = vmul.f32 %v635, %v635
      %v1056 = vmul.f32 %v636, %v636
      %v1057 = vmul.f32 %v637, %v637
      %v1058 = vmul.f32 %v638, %v638
      %v1059 = vmul.f32 %v639, %v639
      %v1060 = vmul.f32 %v640, %v640
      %v1061 = vmul.f32 %v641, %v641
      %v1062 = vmul.f32 %v642, %v642
      %v1063 = vmul.f32 %v643, %v643
      %v1064 = vmul.f32 %v644, %v644
      %v1065 = vmul.f32 %v645, %v645
      %v1066 = vmul.f32 %v646, %v646
      %v1067 = vmul.f32 %v647, %v647
      %v1068 = vmul.f32 %v648, %v648
      %v1069 = vmul.f32 %v649, %v649
      %v1070 = vmul.f32 %v650, %v650
      %v1071 = vmul.f32 %v651, %v651
      %v1072 = vmul.f32 %v652, %v652
      %v1073 = vmul.f32 %v653, %v653
      %v1074 = vmul.f32 %v654, %v654
      %v1075 = vmul.f32 %v1005, 0.45186275
      %v1076 = vmul.f32 %v1006, 0.45186275
      %v1077 = vmul.f32 %v1007, 0.45186275
      %v1078 = vmul.f32 %v1008, 0.45186275
      %v1079 = vmul.f32 %v1009, 0.45186275
      %v1080 = vmul.f32 %v1010, 0.45186275
      %v1081 = vmul.f32 %v1011, 0.45186275
      %v1082 = vmul.f32 %v1012, 0.45186275
      %v1083 = vmul.f32 %v1013, 0.45186275
      %v1084 = vmul.f32 %v1014, 0.45186275
      %v1085 = vmul.f32 %v1015, 0.45186275
      %v1086 = vmul.f32 %v1016, 0.45186275
      %v1087 = vmul.f32 %v1017, 0.45186275
      %v1088 = vmul.f32 %v1018, 0.45186275
      %v1089 = vmul.f32 %v1019, 0.45186275
      %v1090 = vmul.f32 %v1020, 0.45186275
      %v1091 = vmul.f32 %v1021, 0.45186275
      %v1092 = vmul.f32 %v1022, 0.45186275
      %v1093 = vmul.f32 %v1023, 0.45186275
      %v1094 = vmul.f32 %v1024, 0.45186275
      %v1095 = vmul.f32 %v1025, 0.45186275
      %v1096 = vmul.f32 %v1026, 0.45186275
      %v1097 = vmul.f32 %v1027, 0.45186275
      %v1098 = vmul.f32 %v1028, 0.45186275
      %v1099 = vmul.f32 %v1029, 0.45186275
      %v1100 = vmul.f32 %v1030, 0.45186275
      %v1101 = vmul.f32 %v1031, 0.45186275
      %v1102 = vmul.f32 %v1032, 0.45186275
      %v1103 = vmul.f32 %v1033, 0.45186275
      %v1104 = vmul.f32 %v1034, 0.45186275
      %v1105 = vmul.f32 %v1035, 0.45186275
      %v1106 = vmul.f32 %v1036, 0.45186275
      %v1107 = vmul.f32 %v1037, 0.45186275
      %v1108 = vmul.f32 %v1038, 0.45186275
      %v1109 = vmul.f32 %v1039, 0.45186275
      %v1110 = vmul.f32 %v1040, 0.45186275
      %v1111 = vmul.f32 %v1041, 0.45186275
      %v1112 = vmul.f32 %v1042, 0.45186275
      %v1113 = vmul.f32 %v1043, 0.45186275
      %v1114 = vmul.f32 %v1044, 0.45186275
      %v1115 = vmul.f32 %v1045, 0.45186275
      %v1116 = vmul.f32 %v1046, 0.45186275
      %v1117 = vmul.f32 %v1047, 0.45186275
      %v1118 = vmul.f32 %v1048, 0.45186275
      %v1119 = vmul.f32 %v1049, 0.45186275
      %v1120 = vmul.f32 %v1050, 0.45186275
      %v1121 = vmul.f32 %v1051, 0.45186275
      %v1122 = vmul.f32 %v1052, 0.45186275
      %v1123 = vmul.f32 %v1053, 0.45186275
      %v1124 = vmul.f32 %v1054, 0.45186275
      %v1125 = vmul.f32 %v1055, 0.45186275
      %v1126 = vmul.f32 %v1056, 0.45186275
      %v1127 = vmul.f32 %v1057, 0.45186275
      %v1128 = vmul.f32 %v1058, 0.45186275
      %v1129 = vmul.f32 %v1059, 0.45186275
      %v1130 = vmul.f32 %v1060, 0.45186275
      %v1131 = vmul.f32 %v1061, 0.45186275
      %v1132 = vmul.f32 %v1062, 0.45186275
      %v1133 = vmul.f32 %v1063, 0.45186275
      %v1134 = vmul.f32 %v1064, 0.45186275
      %v1135 = vmul.f32 %v1065, 0.45186275
      %v1136 = vmul.f32 %v1066, 0.45186275
      %v1137 = vmul.f32 %v1067, 0.45186275
      %v1138 = vmul.f32 %v1068, 0.45186275
      %v1139 = vmul.f32 %v1069, 0.45186275
      %v1140 = vmul.f32 %v1070, 0.45186275
      %v1141 = vmul.f32 %v1071, 0.45186275
      %v1142 = vmul.f32 %v1072, 0.45186275
      %v1143 = vmul.f32 %v1073, 0.45186275
      %v1144 = vmul.f32 %v1074, 0.45186275
      %v1145 = vadd.f32 %v935, %v1075
      %v1146 = vadd.f32 %v936, %v1076
      %v1147 = vadd.f32 %v937, %v1077
      %v1148 = vadd.f32 %v938, %v1078
      %v1149 = vadd.f32 %v939, %v1079
      %v1150 = vadd.f32 %v940, %v1080
      %v1151 = vadd.f32 %v941, %v1081
      %v1152 = vadd.f32 %v942, %v1082
      %v1153 = vadd.f32 %v943, %v1083
      %v1154 = vadd.f32 %v944, %v1084
      %v1155 = vadd.f32 %v945, %v1085
      %v1156 = vadd.f32 %v946, %v1086
      %v1157 = vadd.f32 %v947, %v1087
      %v1158 = vadd.f32 %v948, %v1088
      %v1159 = vadd.f32 %v949, %v1089
      %v1160 = vadd.f32 %v950, %v1090
      %v1161 = vadd.f32 %v951, %v1091
      %v1162 = vadd.f32 %v952, %v1092
      %v1163 = vadd.f32 %v953, %v1093
      %v1164 = vadd.f32 %v954, %v1094
      %v1165 = vadd.f32 %v955, %v1095
      %v1166 = vadd.f32 %v956, %v1096
      %v1167 = vadd.f32 %v957, %v1097
      %v1168 = vadd.f32 %v958, %v1098
      %v1169 = vadd.f32 %v959, %v1099
      %v1170 = vadd.f32 %v960, %v1100
      %v1171 = vadd.f32 %v961, %v1101
      %v1172 = vadd.f32 %v962, %v1102
      %v1173 = vadd.f32 %v963, %v1103
      %v1174 = vadd.f32 %v964, %v1104
      %v1175 = vadd.f32 %v965, %v1105
      %v1176 = vadd.f32 %v966, %v1106
      %v1177 = vadd.f32 %v967, %v1107
      %v1178 = vadd.f32 %v968, %v1108
      %v1179 = vadd.f32 %v969, %v1109
      %v1180 = vadd.f32 %v970, %v1110
      %v1181 = vadd.f32 %v971, %v1111
      %v1182 = vadd.f32 %v972, %v1112
      %v1183 = vadd.f32 %v973, %v1113
      %v1184 = vadd.f32 %v974, %v1114
      %v1185 = vadd.f32 %v975, %v1115
      %v1186 = vadd.f32 %v976, %v1116
      %v1187 = vadd.f32 %v977, %v1117
      %v1188 = vadd.f32 %v978, %v1118
      %v1189 = vadd.f32 %v979, %v1119
      %v1190 = vadd.f32 %v980, %v1120
      %v1191 = vadd.f32 %v981, %v1121
      %v1192 = vadd.f32 %v982, %v1122
      %v1193 = vadd.f32 %v983, %v1123
      %v1194 = vadd.f32 %v984, %v1124
      %v1195 = vadd.f32 %v985, %v1125
      %v1196 = vadd.f32 %v986, %v1126
      %v1197 = vadd.f32 %v987, %v1127
      %v1198 = vadd.f32 %v988, %v1128
      %v1199 = vadd.f32 %v989, %v1129
      %v1200 = vadd.f32 %v990, %v1130
      %v1201 = vadd.f32 %v991, %v1131
      %v1202 = vadd.f32 %v992, %v1132
      %v1203 = vadd.f32 %v993, %v1133
      %v1204 = vadd.f32 %v994, %v1134
      %v1205 = vadd.f32 %v995, %v1135
      %v1206 = vadd.f32 %v996, %v1136
      %v1207 = vadd.f32 %v997, %v1137
      %v1208 = vadd.f32 %v998, %v1138
      %v1209 = vadd.f32 %v999, %v1139
      %v1210 = vadd.f32 %v1000, %v1140
      %v1211 = vadd.f32 %v1001, %v1141
      %v1212 = vadd.f32 %v1002, %v1142
      %v1213 = vadd.f32 %v1003, %v1143
      %v1214 = vadd.f32 %v1004, %v1144
      %1215 = vst [vmem:[#allocation3] sm:$0xff] %v1145
      %1216 = vst [vmem:[#allocation3 + $0x8] sm:$0xff] %v1146
      %1217 = vst [vmem:[#allocation3 + $0x10] sm:$0xff] %v1147
      %1218 = vst [vmem:[#allocation3 + $0x18] sm:$0xff] %v1148
      %1219 = vst.msk [vmem:[#allocation3 + $0x20] sm:$0xff] %vm307, %v1149
      %1220 = vst [vmem:[#allocation3 + $0x28] sm:$0xff] %v1150
      %1221 = vst [vmem:[#allocation3 + $0x30] sm:$0xff] %v1151
      %1222 = vst [vmem:[#allocation3 + $0x38] sm:$0xff] %v1152
      %1223 = vst [vmem:[#allocation3 + $0x40] sm:$0xff] %v1153
      %1224 = vst.msk [vmem:[#allocation3 + $0x48] sm:$0xff] %vm307, %v1154
      %1225 = vst [vmem:[#allocation3 + $0x50] sm:$0xff] %v1155
      %1226 = vst [vmem:[#allocation3 + $0x58] sm:$0xff] %v1156
      %1227 = vst [vmem:[#allocation3 + $0x60] sm:$0xff] %v1157
      %1228 = vst [vmem:[#allocation3 + $0x68] sm:$0xff] %v1158
      %1229 = vst.msk [vmem:[#allocation3 + $0x70] sm:$0xff] %vm307, %v1159
      %1230 = vst [vmem:[#allocation3 + $0x78] sm:$0xff] %v1160
      %1231 = vst [vmem:[#allocation3 + $0x80] sm:$0xff] %v1161
      %1232 = vst [vmem:[#allocation3 + $0x88] sm:$0xff] %v1162
      %1233 = vst [vmem:[#allocation3 + $0x90] sm:$0xff] %v1163
      %1234 = vst.msk [vmem:[#allocation3 + $0x98] sm:$0xff] %vm307, %v1164
      %1235 = vst [vmem:[#allocation3 + $0xa0] sm:$0xff] %v1165
      %1236 = vst [vmem:[#allocation3 + $0xa8] sm:$0xff] %v1166
      %1237 = vst [vmem:[#allocation3 + $0xb0] sm:$0xff] %v1167
      %1238 = vst [vmem:[#allocation3 + $0xb8] sm:$0xff] %v1168
      %1239 = vst.msk [vmem:[#allocation3 + $0xc0] sm:$0xff] %vm307, %v1169
      %1240 = vst [vmem:[#allocation3 + $0xc8] sm:$0xff] %v1170
      %1241 = vst [vmem:[#allocation3 + $0xd0] sm:$0xff] %v1171
      %1242 = vst [vmem:[#allocation3 + $0xd8] sm:$0xff] %v1172
      %1243 = vst [vmem:[#allocation3 + $0xe0] sm:$0xff] %v1173
      %1244 = vst.msk [vmem:[#allocation3 + $0xe8] sm:$0xff] %vm307, %v1174
      %1245 = vst [vmem:[#allocation3 + $0xf0] sm:$0xff] %v1175
      %1246 = vst [vmem:[#allocation3 + $0xf8] sm:$0xff] %v1176
      %1247 = vst [vmem:[#allocation3 + $0x100] sm:$0xff] %v1177
      %1248 = vst [vmem:[#allocation3 + $0x108] sm:$0xff] %v1178
      %1249 = vst.msk [vmem:[#allocation3 + $0x110] sm:$0xff] %vm307, %v1179
      %1250 = vst [vmem:[#allocation3 + $0x118] sm:$0xff] %v1180
      %1251 = vst [vmem:[#allocation3 + $0x120] sm:$0xff] %v1181
      %1252 = vst [vmem:[#allocation3 + $0x128] sm:$0xff] %v1182
      %1253 = vst [vmem:[#allocation3 + $0x130] sm:$0xff] %v1183
      %1254 = vst.msk [vmem:[#allocation3 + $0x138] sm:$0xff] %vm307, %v1184
      %1255 = vst [vmem:[#allocation3 + $0x140] sm:$0xff] %v1185
      %1256 = vst [vmem:[#allocation3 + $0x148] sm:$0xff] %v1186
      %1257 = vst [vmem:[#allocation3 + $0x150] sm:$0xff] %v1187
      %1258 = vst [vmem:[#allocation3 + $0x158] sm:$0xff] %v1188
      %1259 = vst.msk [vmem:[#allocation3 + $0x160] sm:$0xff] %vm307, %v1189
      %1260 = vst [vmem:[#allocation3 + $0x168] sm:$0xff] %v1190
      %1261 = vst [vmem:[#allocation3 + $0x170] sm:$0xff] %v1191
      %1262 = vst [vmem:[#allocation3 + $0x178] sm:$0xff] %v1192
      %1263 = vst [vmem:[#allocation3 + $0x180] sm:$0xff] %v1193
      %1264 = vst.msk [vmem:[#allocation3 + $0x188] sm:$0xff] %vm307, %v1194
      %1265 = vst [vmem:[#allocation3 + $0x190] sm:$0xff] %v1195
      %1266 = vst [vmem:[#allocation3 + $0x198] sm:$0xff] %v1196
      %1267 = vst [vmem:[#allocation3 + $0x1a0] sm:$0xff] %v1197
      %1268 = vst [vmem:[#allocation3 + $0x1a8] sm:$0xff] %v1198
      %1269 = vst.msk [vmem:[#allocation3 + $0x1b0] sm:$0xff] %vm307, %v1199
      %1270 = vst [vmem:[#allocation3 + $0x1b8] sm:$0xff] %v1200
      %1271 = vst [vmem:[#allocation3 + $0x1c0] sm:$0xff] %v1201
      %1272 = vst [vmem:[#allocation3 + $0x1c8] sm:$0xff] %v1202
      %1273 = vst [vmem:[#allocation3 + $0x1d0] sm:$0xff] %v1203
      %1274 = vst.msk [vmem:[#allocation3 + $0x1d8] sm:$0xff] %vm307, %v1204
      %1275 = vst [vmem:[#allocation3 + $0x1e0] sm:$0xff] %v1205
      %1276 = vst [vmem:[#allocation3 + $0x1e8] sm:$0xff] %v1206
      %1277 = vst [vmem:[#allocation3 + $0x1f0] sm:$0xff] %v1207
      %1278 = vst [vmem:[#allocation3 + $0x1f8] sm:$0xff] %v1208
      %1279 = vst.msk [vmem:[#allocation3 + $0x200] sm:$0xff] %vm307, %v1209
      %1280 = vst [vmem:[#allocation3 + $0x208] sm:$0xff] %v1210
      %1281 = vst [vmem:[#allocation3 + $0x210] sm:$0xff] %v1211
      %1282 = vst [vmem:[#allocation3 + $0x218] sm:$0xff] %v1212
      %1283 = vst [vmem:[#allocation3 + $0x220] sm:$0xff] %v1213
      %1284 = vst.msk [vmem:[#allocation3 + $0x228] sm:$0xff] %vm307, %v1214
      %s1285 = scalar_lea.vmem %s148, 160
      %v1286 = vld [vmem:[%s1285] sm:$0xff]
      %v1287 = vld [vmem:[%s1285 + $0x8] sm:$0xff]
      %v1288 = vld [vmem:[%s1285 + $0x10] sm:$0xff]
      %v1289 = vld [vmem:[%s1285 + $0x18] sm:$0xff]
      %v1290 = vld [vmem:[%s1285 + $0x20] sm:$0xff]
      %v1291 = vld [vmem:[%s1285 + $0x28] sm:$0xff]
      %v1292 = vld [vmem:[%s1285 + $0x30] sm:$0xff]
      %v1293 = vld [vmem:[%s1285 + $0x38] sm:$0xff]
      %v1294 = vld [vmem:[%s1285 + $0x40] sm:$0xff]
      %v1295 = vld [vmem:[%s1285 + $0x48] sm:$0xff]
      %v1296 = vld [vmem:[%s1285 + $0x50] sm:$0xff]
      %v1297 = vld [vmem:[%s1285 + $0x58] sm:$0xff]
      %v1298 = vld [vmem:[%s1285 + $0x60] sm:$0xff]
      %v1299 = vld [vmem:[%s1285 + $0x68] sm:$0xff]
      %v1300 = vld [vmem:[%s1285 + $0x70] sm:$0xff]
      %v1301 = vld [vmem:[%s1285 + $0x78] sm:$0xff]
      %v1302 = vld [vmem:[%s1285 + $0x80] sm:$0xff]
      %v1303 = vld [vmem:[%s1285 + $0x88] sm:$0xff]
      %v1304 = vld [vmem:[%s1285 + $0x90] sm:$0xff]
      %v1305 = vld [vmem:[%s1285 + $0x98] sm:$0xff]
      %v1306 = vld [vmem:[%s1285 + $0xa0] sm:$0xff]
      %v1307 = vld [vmem:[%s1285 + $0xa8] sm:$0xff]
      %v1308 = vld [vmem:[%s1285 + $0xb0] sm:$0xff]
      %v1309 = vld [vmem:[%s1285 + $0xb8] sm:$0xff]
      %v1310 = vld [vmem:[%s1285 + $0xc0] sm:$0xff]
      %v1311 = vld [vmem:[%s1285 + $0xc8] sm:$0xff]
      %v1312 = vld [vmem:[%s1285 + $0xd0] sm:$0xff]
      %v1313 = vld [vmem:[%s1285 + $0xd8] sm:$0xff]
      %v1314 = vld [vmem:[%s1285 + $0xe0] sm:$0xff]
      %v1315 = vld [vmem:[%s1285 + $0xe8] sm:$0xff]
      %v1316 = vld [vmem:[%s1285 + $0xf0] sm:$0xff]
      %v1317 = vld [vmem:[%s1285 + $0xf8] sm:$0xff]
      %v1318 = vld [vmem:[%s1285 + $0x100] sm:$0xff]
      %v1319 = vld [vmem:[%s1285 + $0x108] sm:$0xff]
      %v1320 = vld [vmem:[%s1285 + $0x110] sm:$0xff]
      %v1321 = vld [vmem:[%s1285 + $0x118] sm:$0xff]
      %v1322 = vld [vmem:[%s1285 + $0x120] sm:$0xff]
      %v1323 = vld [vmem:[%s1285 + $0x128] sm:$0xff]
      %v1324 = vld [vmem:[%s1285 + $0x130] sm:$0xff]
      %v1325 = vld [vmem:[%s1285 + $0x138] sm:$0xff]
      %v1326 = vld [vmem:[%s1285 + $0x140] sm:$0xff]
      %v1327 = vld [vmem:[%s1285 + $0x148] sm:$0xff]
      %v1328 = vld [vmem:[%s1285 + $0x150] sm:$0xff]
      %v1329 = vld [vmem:[%s1285 + $0x158] sm:$0xff]
      %v1330 = vld [vmem:[%s1285 + $0x160] sm:$0xff]
      %v1331 = vld [vmem:[%s1285 + $0x168] sm:$0xff]
      %v1332 = vld [vmem:[%s1285 + $0x170] sm:$0xff]
      %v1333 = vld [vmem:[%s1285 + $0x178] sm:$0xff]
      %v1334 = vld [vmem:[%s1285 + $0x180] sm:$0xff]
      %v1335 = vld [vmem:[%s1285 + $0x188] sm:$0xff]
      %v1336 = vld [vmem:[%s1285 + $0x190] sm:$0xff]
      %v1337 = vld [vmem:[%s1285 + $0x198] sm:$0xff]
      %v1338 = vld [vmem:[%s1285 + $0x1a0] sm:$0xff]
      %v1339 = vld [vmem:[%s1285 + $0x1a8] sm:$0xff]
      %v1340 = vld [vmem:[%s1285 + $0x1b0] sm:$0xff]
      %v1341 = vld [vmem:[%s1285 + $0x1b8] sm:$0xff]
      %v1342 = vld [vmem:[%s1285 + $0x1c0] sm:$0xff]
      %v1343 = vld [vmem:[%s1285 + $0x1c8] sm:$0xff]
      %v1344 = vld [vmem:[%s1285 + $0x1d0] sm:$0xff]
      %v1345 = vld [vmem:[%s1285 + $0x1d8] sm:$0xff]
      %v1346 = vld [vmem:[%s1285 + $0x1e0] sm:$0xff]
      %v1347 = vld [vmem:[%s1285 + $0x1e8] sm:$0xff]
      %v1348 = vld [vmem:[%s1285 + $0x1f0] sm:$0xff]
      %v1349 = vld [vmem:[%s1285 + $0x1f8] sm:$0xff]
      %v1350 = vld [vmem:[%s1285 + $0x200] sm:$0xff]
      %v1351 = vld [vmem:[%s1285 + $0x208] sm:$0xff]
      %v1352 = vld [vmem:[%s1285 + $0x210] sm:$0xff]
      %v1353 = vld [vmem:[%s1285 + $0x218] sm:$0xff]
      %v1354 = vld [vmem:[%s1285 + $0x220] sm:$0xff]
      %v1355 = vld [vmem:[%s1285 + $0x228] sm:$0xff]
      %v1356 = vld [vmem:[#allocation2] sm:$0xff]
      %v1357 = vld [vmem:[#allocation2 + $0x8] sm:$0xff]
      %v1358 = vld [vmem:[#allocation2 + $0x10] sm:$0xff]
      %v1359 = vld [vmem:[#allocation2 + $0x18] sm:$0xff]
      %v1360 = vld [vmem:[#allocation2 + $0x20] sm:$0xff]
      %v1361 = vld [vmem:[#allocation2 + $0x28] sm:$0xff]
      %v1362 = vld [vmem:[#allocation2 + $0x30] sm:$0xff]
      %v1363 = vld [vmem:[#allocation2 + $0x38] sm:$0xff]
      %v1364 = vld [vmem:[#allocation2 + $0x40] sm:$0xff]
      %v1365 = vld [vmem:[#allocation2 + $0x48] sm:$0xff]
      %v1366 = vld [vmem:[#allocation2 + $0x50] sm:$0xff]
      %v1367 = vld [vmem:[#allocation2 + $0x58] sm:$0xff]
      %v1368 = vld [vmem:[#allocation2 + $0x60] sm:$0xff]
      %v1369 = vld [vmem:[#allocation2 + $0x68] sm:$0xff]
      %v1370 = vld [vmem:[#allocation2 + $0x70] sm:$0xff]
      %v1371 = vld [vmem:[#allocation2 + $0x78] sm:$0xff]
      %v1372 = vld [vmem:[#allocation2 + $0x80] sm:$0xff]
      %v1373 = vld [vmem:[#allocation2 + $0x88] sm:$0xff]
      %v1374 = vld [vmem:[#allocation2 + $0x90] sm:$0xff]
      %v1375 = vld [vmem:[#allocation2 + $0x98] sm:$0xff]
      %v1376 = vld [vmem:[#allocation2 + $0xa0] sm:$0xff]
      %v1377 = vld [vmem:[#allocation2 + $0xa8] sm:$0xff]
      %v1378 = vld [vmem:[#allocation2 + $0xb0] sm:$0xff]
      %v1379 = vld [vmem:[#allocation2 + $0xb8] sm:$0xff]
      %v1380 = vld [vmem:[#allocation2 + $0xc0] sm:$0xff]
      %v1381 = vld [vmem:[#allocation2 + $0xc8] sm:$0xff]
      %v1382 = vld [vmem:[#allocation2 + $0xd0] sm:$0xff]
      %v1383 = vld [vmem:[#allocation2 + $0xd8] sm:$0xff]
      %v1384 = vld [vmem:[#allocation2 + $0xe0] sm:$0xff]
      %v1385 = vld [vmem:[#allocation2 + $0xe8] sm:$0xff]
      %v1386 = vld [vmem:[#allocation2 + $0xf0] sm:$0xff]
      %v1387 = vld [vmem:[#allocation2 + $0xf8] sm:$0xff]
      %v1388 = vld [vmem:[#allocation2 + $0x100] sm:$0xff]
      %v1389 = vld [vmem:[#allocation2 + $0x108] sm:$0xff]
      %v1390 = vld [vmem:[#allocation2 + $0x110] sm:$0xff]
      %v1391 = vld [vmem:[#allocation2 + $0x118] sm:$0xff]
      %v1392 = vld [vmem:[#allocation2 + $0x120] sm:$0xff]
      %v1393 = vld [vmem:[#allocation2 + $0x128] sm:$0xff]
      %v1394 = vld [vmem:[#allocation2 + $0x130] sm:$0xff]
      %v1395 = vld [vmem:[#allocation2 + $0x138] sm:$0xff]
      %v1396 = vld [vmem:[#allocation2 + $0x140] sm:$0xff]
      %v1397 = vld [vmem:[#allocation2 + $0x148] sm:$0xff]
      %v1398 = vld [vmem:[#allocation2 + $0x150] sm:$0xff]
      %v1399 = vld [vmem:[#allocation2 + $0x158] sm:$0xff]
      %v1400 = vld [vmem:[#allocation2 + $0x160] sm:$0xff]
      %v1401 = vld [vmem:[#allocation2 + $0x168] sm:$0xff]
      %v1402 = vld [vmem:[#allocation2 + $0x170] sm:$0xff]
      %v1403 = vld [vmem:[#allocation2 + $0x178] sm:$0xff]
      %v1404 = vld [vmem:[#allocation2 + $0x180] sm:$0xff]
      %v1405 = vld [vmem:[#allocation2 + $0x188] sm:$0xff]
      %v1406 = vld [vmem:[#allocation2 + $0x190] sm:$0xff]
      %v1407 = vld [vmem:[#allocation2 + $0x198] sm:$0xff]
      %v1408 = vld [vmem:[#allocation2 + $0x1a0] sm:$0xff]
      %v1409 = vld [vmem:[#allocation2 + $0x1a8] sm:$0xff]
      %v1410 = vld [vmem:[#allocation2 + $0x1b0] sm:$0xff]
      %v1411 = vld [vmem:[#allocation2 + $0x1b8] sm:$0xff]
      %v1412 = vld [vmem:[#allocation2 + $0x1c0] sm:$0xff]
      %v1413 = vld [vmem:[#allocation2 + $0x1c8] sm:$0xff]
      %v1414 = vld [vmem:[#allocation2 + $0x1d0] sm:$0xff]
      %v1415 = vld [vmem:[#allocation2 + $0x1d8] sm:$0xff]
      %v1416 = vld [vmem:[#allocation2 + $0x1e0] sm:$0xff]
      %v1417 = vld [vmem:[#allocation2 + $0x1e8] sm:$0xff]
      %v1418 = vld [vmem:[#allocation2 + $0x1f0] sm:$0xff]
      %v1419 = vld [vmem:[#allocation2 + $0x1f8] sm:$0xff]
      %v1420 = vld [vmem:[#allocation2 + $0x200] sm:$0xff]
      %v1421 = vld [vmem:[#allocation2 + $0x208] sm:$0xff]
      %v1422 = vld [vmem:[#allocation2 + $0x210] sm:$0xff]
      %v1423 = vld [vmem:[#allocation2 + $0x218] sm:$0xff]
      %v1424 = vld [vmem:[#allocation2 + $0x220] sm:$0xff]
      %v1425 = vld [vmem:[#allocation2 + $0x228] sm:$0xff]
      %v1426 = vmul.f32 %v1286, 0.27406862
      %v1427 = vmul.f32 %v1287, 0.27406862
      %v1428 = vmul.f32 %v1288, 0.27406862
      %v1429 = vmul.f32 %v1289, 0.27406862
      %v1430 = vmul.f32 %v1290, 0.27406862
      %v1431 = vmul.f32 %v1291, 0.27406862
      %v1432 = vmul.f32 %v1292, 0.27406862
      %v1433 = vmul.f32 %v1293, 0.27406862
      %v1434 = vmul.f32 %v1294, 0.27406862
      %v1435 = vmul.f32 %v1295, 0.27406862
      %v1436 = vmul.f32 %v1296, 0.27406862
      %v1437 = vmul.f32 %v1297, 0.27406862
      %v1438 = vmul.f32 %v1298, 0.27406862
      %v1439 = vmul.f32 %v1299, 0.27406862
      %v1440 = vmul.f32 %v1300, 0.27406862
      %v1441 = vmul.f32 %v1301, 0.27406862
      %v1442 = vmul.f32 %v1302, 0.27406862
      %v1443 = vmul.f32 %v1303, 0.27406862
      %v1444 = vmul.f32 %v1304, 0.27406862
      %v1445 = vmul.f32 %v1305, 0.27406862
      %v1446 = vmul.f32 %v1306, 0.27406862
      %v1447 = vmul.f32 %v1307, 0.27406862
      %v1448 = vmul.f32 %v1308, 0.27406862
      %v1449 = vmul.f32 %v1309, 0.27406862
      %v1450 = vmul.f32 %v1310, 0.27406862
      %v1451 = vmul.f32 %v1311, 0.27406862
      %v1452 = vmul.f32 %v1312, 0.27406862
      %v1453 = vmul.f32 %v1313, 0.27406862
      %v1454 = vmul.f32 %v1314, 0.27406862
      %v1455 = vmul.f32 %v1315, 0.27406862
      %v1456 = vmul.f32 %v1316, 0.27406862
      %v1457 = vmul.f32 %v1317, 0.27406862
      %v1458 = vmul.f32 %v1318, 0.27406862
      %v1459 = vmul.f32 %v1319, 0.27406862
      %v1460 = vmul.f32 %v1320, 0.27406862
      %v1461 = vmul.f32 %v1321, 0.27406862
      %v1462 = vmul.f32 %v1322, 0.27406862
      %v1463 = vmul.f32 %v1323, 0.27406862
      %v1464 = vmul.f32 %v1324, 0.27406862
      %v1465 = vmul.f32 %v1325, 0.27406862
      %v1466 = vmul.f32 %v1326, 0.27406862
      %v1467 = vmul.f32 %v1327, 0.27406862
      %v1468 = vmul.f32 %v1328, 0.27406862
      %v1469 = vmul.f32 %v1329, 0.27406862
      %v1470 = vmul.f32 %v1330, 0.27406862
      %v1471 = vmul.f32 %v1331, 0.27406862
      %v1472 = vmul.f32 %v1332, 0.27406862
      %v1473 = vmul.f32 %v1333, 0.27406862
      %v1474 = vmul.f32 %v1334, 0.27406862
      %v1475 = vmul.f32 %v1335, 0.27406862
      %v1476 = vmul.f32 %v1336, 0.27406862
      %v1477 = vmul.f32 %v1337, 0.27406862
      %v1478 = vmul.f32 %v1338, 0.27406862
      %v1479 = vmul.f32 %v1339, 0.27406862
      %v1480 = vmul.f32 %v1340, 0.27406862
      %v1481 = vmul.f32 %v1341, 0.27406862
      %v1482 = vmul.f32 %v1342, 0.27406862
      %v1483 = vmul.f32 %v1343, 0.27406862
      %v1484 = vmul.f32 %v1344, 0.27406862
      %v1485 = vmul.f32 %v1345, 0.27406862
      %v1486 = vmul.f32 %v1346, 0.27406862
      %v1487 = vmul.f32 %v1347, 0.27406862
      %v1488 = vmul.f32 %v1348, 0.27406862
      %v1489 = vmul.f32 %v1349, 0.27406862
      %v1490 = vmul.f32 %v1350, 0.27406862
      %v1491 = vmul.f32 %v1351, 0.27406862
      %v1492 = vmul.f32 %v1352, 0.27406862
      %v1493 = vmul.f32 %v1353, 0.27406862
      %v1494 = vmul.f32 %v1354, 0.27406862
      %v1495 = vmul.f32 %v1355, 0.27406862
      %v1496 = vadd.f32 %v1356, %v1426
      %v1497 = vadd.f32 %v1357, %v1427
      %v1498 = vadd.f32 %v1358, %v1428
      %v1499 = vadd.f32 %v1359, %v1429
      %v1500 = vadd.f32 %v1360, %v1430
      %v1501 = vadd.f32 %v1361, %v1431
      %v1502 = vadd.f32 %v1362, %v1432
      %v1503 = vadd.f32 %v1363, %v1433
      %v1504 = vadd.f32 %v1364, %v1434
      %v1505 = vadd.f32 %v1365, %v1435
      %v1506 = vadd.f32 %v1366, %v1436
      %v1507 = vadd.f32 %v1367, %v1437
      %v1508 = vadd.f32 %v1368, %v1438
      %v1509 = vadd.f32 %v1369, %v1439
      %v1510 = vadd.f32 %v1370, %v1440
      %v1511 = vadd.f32 %v1371, %v1441
      %v1512 = vadd.f32 %v1372, %v1442
      %v1513 = vadd.f32 %v1373, %v1443
      %v1514 = vadd.f32 %v1374, %v1444
      %v1515 = vadd.f32 %v1375, %v1445
      %v1516 = vadd.f32 %v1376, %v1446
      %v1517 = vadd.f32 %v1377, %v1447
      %v1518 = vadd.f32 %v1378, %v1448
      %v1519 = vadd.f32 %v1379, %v1449
      %v1520 = vadd.f32 %v1380, %v1450
      %v1521 = vadd.f32 %v1381, %v1451
      %v1522 = vadd.f32 %v1382, %v1452
      %v1523 = vadd.f32 %v1383, %v1453
      %v1524 = vadd.f32 %v1384, %v1454
      %v1525 = vadd.f32 %v1385, %v1455
      %v1526 = vadd.f32 %v1386, %v1456
      %v1527 = vadd.f32 %v1387, %v1457
      %v1528 = vadd.f32 %v1388, %v1458
      %v1529 = vadd.f32 %v1389, %v1459
      %v1530 = vadd.f32 %v1390, %v1460
      %v1531 = vadd.f32 %v1391, %v1461
      %v1532 = vadd.f32 %v1392, %v1462
      %v1533 = vadd.f32 %v1393, %v1463
      %v1534 = vadd.f32 %v1394, %v1464
      %v1535 = vadd.f32 %v1395, %v1465
      %v1536 = vadd.f32 %v1396, %v1466
      %v1537 = vadd.f32 %v1397, %v1467
      %v1538 = vadd.f32 %v1398, %v1468
      %v1539 = vadd.f32 %v1399, %v1469
      %v1540 = vadd.f32 %v1400, %v1470
      %v1541 = vadd.f32 %v1401, %v1471
      %v1542 = vadd.f32 %v1402, %v1472
      %v1543 = vadd.f32 %v1403, %v1473
      %v1544 = vadd.f32 %v1404, %v1474
      %v1545 = vadd.f32 %v1405, %v1475
      %v1546 = vadd.f32 %v1406, %v1476
      %v1547 = vadd.f32 %v1407, %v1477
      %v1548 = vadd.f32 %v1408, %v1478
      %v1549 = vadd.f32 %v1409, %v1479
      %v1550 = vadd.f32 %v1410, %v1480
      %v1551 = vadd.f32 %v1411, %v1481
      %v1552 = vadd.f32 %v1412, %v1482
      %v1553 = vadd.f32 %v1413, %v1483
      %v1554 = vadd.f32 %v1414, %v1484
      %v1555 = vadd.f32 %v1415, %v1485
      %v1556 = vadd.f32 %v1416, %v1486
      %v1557 = vadd.f32 %v1417, %v1487
      %v1558 = vadd.f32 %v1418, %v1488
      %v1559 = vadd.f32 %v1419, %v1489
      %v1560 = vadd.f32 %v1420, %v1490
      %v1561 = vadd.f32 %v1421, %v1491
      %v1562 = vadd.f32 %v1422, %v1492
      %v1563 = vadd.f32 %v1423, %v1493
      %v1564 = vadd.f32 %v1424, %v1494
      %v1565 = vadd.f32 %v1425, %v1495
      %1566 = vst [vmem:[#allocation2] sm:$0xff] %v1496
      %1567 = vst [vmem:[#allocation2 + $0x8] sm:$0xff] %v1497
      %1568 = vst [vmem:[#allocation2 + $0x10] sm:$0xff] %v1498
      %1569 = vst [vmem:[#allocation2 + $0x18] sm:$0xff] %v1499
      %1570 = vst.msk [vmem:[#allocation2 + $0x20] sm:$0xff] %vm307, %v1500
      %1571 = vst [vmem:[#allocation2 + $0x28] sm:$0xff] %v1501
      %1572 = vst [vmem:[#allocation2 + $0x30] sm:$0xff] %v1502
      %1573 = vst [vmem:[#allocation2 + $0x38] sm:$0xff] %v1503
      %1574 = vst [vmem:[#allocation2 + $0x40] sm:$0xff] %v1504
      %1575 = vst.msk [vmem:[#allocation2 + $0x48] sm:$0xff] %vm307, %v1505
      %1576 = vst [vmem:[#allocation2 + $0x50] sm:$0xff] %v1506
      %1577 = vst [vmem:[#allocation2 + $0x58] sm:$0xff] %v1507
      %1578 = vst [vmem:[#allocation2 + $0x60] sm:$0xff] %v1508
      %1579 = vst [vmem:[#allocation2 + $0x68] sm:$0xff] %v1509
      %1580 = vst.msk [vmem:[#allocation2 + $0x70] sm:$0xff] %vm307, %v1510
      %1581 = vst [vmem:[#allocation2 + $0x78] sm:$0xff] %v1511
      %1582 = vst [vmem:[#allocation2 + $0x80] sm:$0xff] %v1512
      %1583 = vst [vmem:[#allocation2 + $0x88] sm:$0xff] %v1513
      %1584 = vst [vmem:[#allocation2 + $0x90] sm:$0xff] %v1514
      %1585 = vst.msk [vmem:[#allocation2 + $0x98] sm:$0xff] %vm307, %v1515
      %1586 = vst [vmem:[#allocation2 + $0xa0] sm:$0xff] %v1516
      %1587 = vst [vmem:[#allocation2 + $0xa8] sm:$0xff] %v1517
      %1588 = vst [vmem:[#allocation2 + $0xb0] sm:$0xff] %v1518
      %1589 = vst [vmem:[#allocation2 + $0xb8] sm:$0xff] %v1519
      %1590 = vst.msk [vmem:[#allocation2 + $0xc0] sm:$0xff] %vm307, %v1520
      %1591 = vst [vmem:[#allocation2 + $0xc8] sm:$0xff] %v1521
      %1592 = vst [vmem:[#allocation2 + $0xd0] sm:$0xff] %v1522
      %1593 = vst [vmem:[#allocation2 + $0xd8] sm:$0xff] %v1523
      %1594 = vst [vmem:[#allocation2 + $0xe0] sm:$0xff] %v1524
      %1595 = vst.msk [vmem:[#allocation2 + $0xe8] sm:$0xff] %vm307, %v1525
      %1596 = vst [vmem:[#allocation2 + $0xf0] sm:$0xff] %v1526
      %1597 = vst [vmem:[#allocation2 + $0xf8] sm:$0xff] %v1527
      %1598 = vst [vmem:[#allocation2 + $0x100] sm:$0xff] %v1528
      %1599 = vst [vmem:[#allocation2 + $0x108] sm:$0xff] %v1529
      %1600 = vst.msk [vmem:[#allocation2 + $0x110] sm:$0xff] %vm307, %v1530
      %1601 = vst [vmem:[#allocation2 + $0x118] sm:$0xff] %v1531
      %1602 = vst [vmem:[#allocation2 + $0x120] sm:$0xff] %v1532
      %1603 = vst [vmem:[#allocation2 + $0x128] sm:$0xff] %v1533
      %1604 = vst [vmem:[#allocation2 + $0x130] sm:$0xff] %v1534
      %1605 = vst.msk [vmem:[#allocation2 + $0x138] sm:$0xff] %vm307, %v1535
      %1606 = vst [vmem:[#allocation2 + $0x140] sm:$0xff] %v1536
      %1607 = vst [vmem:[#allocation2 + $0x148] sm:$0xff] %v1537
      %1608 = vst [vmem:[#allocation2 + $0x150] sm:$0xff] %v1538
      %1609 = vst [vmem:[#allocation2 + $0x158] sm:$0xff] %v1539
      %1610 = vst.msk [vmem:[#allocation2 + $0x160] sm:$0xff] %vm307, %v1540
      %1611 = vst [vmem:[#allocation2 + $0x168] sm:$0xff] %v1541
      %1612 = vst [vmem:[#allocation2 + $0x170] sm:$0xff] %v1542
      %1613 = vst [vmem:[#allocation2 + $0x178] sm:$0xff] %v1543
      %1614 = vst [vmem:[#allocation2 + $0x180] sm:$0xff] %v1544
      %1615 = vst.msk [vmem:[#allocation2 + $0x188] sm:$0xff] %vm307, %v1545
      %1616 = vst [vmem:[#allocation2 + $0x190] sm:$0xff] %v1546
      %1617 = vst [vmem:[#allocation2 + $0x198] sm:$0xff] %v1547
      %1618 = vst [vmem:[#allocation2 + $0x1a0] sm:$0xff] %v1548
      %1619 = vst [vmem:[#allocation2 + $0x1a8] sm:$0xff] %v1549
      %1620 = vst.msk [vmem:[#allocation2 + $0x1b0] sm:$0xff] %vm307, %v1550
      %1621 = vst [vmem:[#allocation2 + $0x1b8] sm:$0xff] %v1551
      %1622 = vst [vmem:[#allocation2 + $0x1c0] sm:$0xff] %v1552
      %1623 = vst [vmem:[#allocation2 + $0x1c8] sm:$0xff] %v1553
      %1624 = vst [vmem:[#allocation2 + $0x1d0] sm:$0xff] %v1554
      %1625 = vst.msk [vmem:[#allocation2 + $0x1d8] sm:$0xff] %vm307, %v1555
      %1626 = vst [vmem:[#allocation2 + $0x1e0] sm:$0xff] %v1556
      %1627 = vst [vmem:[#allocation2 + $0x1e8] sm:$0xff] %v1557
      %1628 = vst [vmem:[#allocation2 + $0x1f0] sm:$0xff] %v1558
      %1629 = vst [vmem:[#allocation2 + $0x1f8] sm:$0xff] %v1559
      %1630 = vst.msk [vmem:[#allocation2 + $0x200] sm:$0xff] %vm307, %v1560
      %1631 = vst [vmem:[#allocation2 + $0x208] sm:$0xff] %v1561
      %1632 = vst [vmem:[#allocation2 + $0x210] sm:$0xff] %v1562
      %1633 = vst [vmem:[#allocation2 + $0x218] sm:$0xff] %v1563
      %1634 = vst [vmem:[#allocation2 + $0x220] sm:$0xff] %v1564
      %1635 = vst.msk [vmem:[#allocation2 + $0x228] sm:$0xff] %vm307, %v1565
      %v1636 = vld [vmem:[#allocation3] sm:$0xff]
      %v1637 = vld [vmem:[#allocation3 + $0x8] sm:$0xff]
      %v1638 = vld [vmem:[#allocation3 + $0x10] sm:$0xff]
      %v1639 = vld [vmem:[#allocation3 + $0x18] sm:$0xff]
      %v1640 = vld [vmem:[#allocation3 + $0x20] sm:$0xff]
      %v1641 = vld [vmem:[#allocation3 + $0x28] sm:$0xff]
      %v1642 = vld [vmem:[#allocation3 + $0x30] sm:$0xff]
      %v1643 = vld [vmem:[#allocation3 + $0x38] sm:$0xff]
      %v1644 = vld [vmem:[#allocation3 + $0x40] sm:$0xff]
      %v1645 = vld [vmem:[#allocation3 + $0x48] sm:$0xff]
      %v1646 = vld [vmem:[#allocation3 + $0x50] sm:$0xff]
      %v1647 = vld [vmem:[#allocation3 + $0x58] sm:$0xff]
      %v1648 = vld [vmem:[#allocation3 + $0x60] sm:$0xff]
      %v1649 = vld [vmem:[#allocation3 + $0x68] sm:$0xff]
      %v1650 = vld [vmem:[#allocation3 + $0x70] sm:$0xff]
      %v1651 = vld [vmem:[#allocation3 + $0x78] sm:$0xff]
      %v1652 = vld [vmem:[#allocation3 + $0x80] sm:$0xff]
      %v1653 = vld [vmem:[#allocation3 + $0x88] sm:$0xff]
      %v1654 = vld [vmem:[#allocation3 + $0x90] sm:$0xff]
      %v1655 = vld [vmem:[#allocation3 + $0x98] sm:$0xff]
      %v1656 = vld [vmem:[#allocation3 + $0xa0] sm:$0xff]
      %v1657 = vld [vmem:[#allocation3 + $0xa8] sm:$0xff]
      %v1658 = vld [vmem:[#allocation3 + $0xb0] sm:$0xff]
      %v1659 = vld [vmem:[#allocation3 + $0xb8] sm:$0xff]
      %v1660 = vld [vmem:[#allocation3 + $0xc0] sm:$0xff]
      %v1661 = vld [vmem:[#allocation3 + $0xc8] sm:$0xff]
      %v1662 = vld [vmem:[#allocation3 + $0xd0] sm:$0xff]
      %v1663 = vld [vmem:[#allocation3 + $0xd8] sm:$0xff]
      %v1664 = vld [vmem:[#allocation3 + $0xe0] sm:$0xff]
      %v1665 = vld [vmem:[#allocation3 + $0xe8] sm:$0xff]
      %v1666 = vld [vmem:[#allocation3 + $0xf0] sm:$0xff]
      %v1667 = vld [vmem:[#allocation3 + $0xf8] sm:$0xff]
      %v1668 = vld [vmem:[#allocation3 + $0x100] sm:$0xff]
      %v1669 = vld [vmem:[#allocation3 + $0x108] sm:$0xff]
      %v1670 = vld [vmem:[#allocation3 + $0x110] sm:$0xff]
      %v1671 = vld [vmem:[#allocation3 + $0x118] sm:$0xff]
      %v1672 = vld [vmem:[#allocation3 + $0x120] sm:$0xff]
      %v1673 = vld [vmem:[#allocation3 + $0x128] sm:$0xff]
      %v1674 = vld [vmem:[#allocation3 + $0x130] sm:$0xff]
      %v1675 = vld [vmem:[#allocation3 + $0x138] sm:$0xff]
      %v1676 = vld [vmem:[#allocation3 + $0x140] sm:$0xff]
      %v1677 = vld [vmem:[#allocation3 + $0x148] sm:$0xff]
      %v1678 = vld [vmem:[#allocation3 + $0x150] sm:$0xff]
      %v1679 = vld [vmem:[#allocation3 + $0x158] sm:$0xff]
      %v1680 = vld [vmem:[#allocation3 + $0x160] sm:$0xff]
      %v1681 = vld [vmem:[#allocation3 + $0x168] sm:$0xff]
      %v1682 = vld [vmem:[#allocation3 + $0x170] sm:$0xff]
      %v1683 = vld [vmem:[#allocation3 + $0x178] sm:$0xff]
      %v1684 = vld [vmem:[#allocation3 + $0x180] sm:$0xff]
      %v1685 = vld [vmem:[#allocation3 + $0x188] sm:$0xff]
      %v1686 = vld [vmem:[#allocation3 + $0x190] sm:$0xff]
      %v1687 = vld [vmem:[#allocation3 + $0x198] sm:$0xff]
      %v1688 = vld [vmem:[#allocation3 + $0x1a0] sm:$0xff]
      %v1689 = vld [vmem:[#allocation3 + $0x1a8] sm:$0xff]
      %v1690 = vld [vmem:[#allocation3 + $0x1b0] sm:$0xff]
      %v1691 = vld [vmem:[#allocation3 + $0x1b8] sm:$0xff]
      %v1692 = vld [vmem:[#allocation3 + $0x1c0] sm:$0xff]
      %v1693 = vld [vmem:[#allocation3 + $0x1c8] sm:$0xff]
      %v1694 = vld [vmem:[#allocation3 + $0x1d0] sm:$0xff]
      %v1695 = vld [vmem:[#allocation3 + $0x1d8] sm:$0xff]
      %v1696 = vld [vmem:[#allocation3 + $0x1e0] sm:$0xff]
      %v1697 = vld [vmem:[#allocation3 + $0x1e8] sm:$0xff]
      %v1698 = vld [vmem:[#allocation3 + $0x1f0] sm:$0xff]
      %v1699 = vld [vmem:[#allocation3 + $0x1f8] sm:$0xff]
      %v1700 = vld [vmem:[#allocation3 + $0x200] sm:$0xff]
      %v1701 = vld [vmem:[#allocation3 + $0x208] sm:$0xff]
      %v1702 = vld [vmem:[#allocation3 + $0x210] sm:$0xff]
      %v1703 = vld [vmem:[#allocation3 + $0x218] sm:$0xff]
      %v1704 = vld [vmem:[#allocation3 + $0x220] sm:$0xff]
      %v1705 = vld [vmem:[#allocation3 + $0x228] sm:$0xff]
      %v1706 = vmul.f32 %v1286, %v1286
      %v1707 = vmul.f32 %v1287, %v1287
      %v1708 = vmul.f32 %v1288, %v1288
      %v1709 = vmul.f32 %v1289, %v1289
      %v1710 = vmul.f32 %v1290, %v1290
      %v1711 = vmul.f32 %v1291, %v1291
      %v1712 = vmul.f32 %v1292, %v1292
      %v1713 = vmul.f32 %v1293, %v1293
      %v1714 = vmul.f32 %v1294, %v1294
      %v1715 = vmul.f32 %v1295, %v1295
      %v1716 = vmul.f32 %v1296, %v1296
      %v1717 = vmul.f32 %v1297, %v1297
      %v1718 = vmul.f32 %v1298, %v1298
      %v1719 = vmul.f32 %v1299, %v1299
      %v1720 = vmul.f32 %v1300, %v1300
      %v1721 = vmul.f32 %v1301, %v1301
      %v1722 = vmul.f32 %v1302, %v1302
      %v1723 = vmul.f32 %v1303, %v1303
      %v1724 = vmul.f32 %v1304, %v1304
      %v1725 = vmul.f32 %v1305, %v1305
      %v1726 = vmul.f32 %v1306, %v1306
      %v1727 = vmul.f32 %v1307, %v1307
      %v1728 = vmul.f32 %v1308, %v1308
      %v1729 = vmul.f32 %v1309, %v1309
      %v1730 = vmul.f32 %v1310, %v1310
      %v1731 = vmul.f32 %v1311, %v1311
      %v1732 = vmul.f32 %v1312, %v1312
      %v1733 = vmul.f32 %v1313, %v1313
      %v1734 = vmul.f32 %v1314, %v1314
      %v1735 = vmul.f32 %v1315, %v1315
      %v1736 = vmul.f32 %v1316, %v1316
      %v1737 = vmul.f32 %v1317, %v1317
      %v1738 = vmul.f32 %v1318, %v1318
      %v1739 = vmul.f32 %v1319, %v1319
      %v1740 = vmul.f32 %v1320, %v1320
      %v1741 = vmul.f32 %v1321, %v1321
      %v1742 = vmul.f32 %v1322, %v1322
      %v1743 = vmul.f32 %v1323, %v1323
      %v1744 = vmul.f32 %v1324, %v1324
      %v1745 = vmul.f32 %v1325, %v1325
      %v1746 = vmul.f32 %v1326, %v1326
      %v1747 = vmul.f32 %v1327, %v1327
      %v1748 = vmul.f32 %v1328, %v1328
      %v1749 = vmul.f32 %v1329, %v1329
      %v1750 = vmul.f32 %v1330, %v1330
      %v1751 = vmul.f32 %v1331, %v1331
      %v1752 = vmul.f32 %v1332, %v1332
      %v1753 = vmul.f32 %v1333, %v1333
      %v1754 = vmul.f32 %v1334, %v1334
      %v1755 = vmul.f32 %v1335, %v1335
      %v1756 = vmul.f32 %v1336, %v1336
      %v1757 = vmul.f32 %v1337, %v1337
      %v1758 = vmul.f32 %v1338, %v1338
      %v1759 = vmul.f32 %v1339, %v1339
      %v1760 = vmul.f32 %v1340, %v1340
      %v1761 = vmul.f32 %v1341, %v1341
      %v1762 = vmul.f32 %v1342, %v1342
      %v1763 = vmul.f32 %v1343, %v1343
      %v1764 = vmul.f32 %v1344, %v1344
      %v1765 = vmul.f32 %v1345, %v1345
      %v1766 = vmul.f32 %v1346, %v1346
      %v1767 = vmul.f32 %v1347, %v1347
      %v1768 = vmul.f32 %v1348, %v1348
      %v1769 = vmul.f32 %v1349, %v1349
      %v1770 = vmul.f32 %v1350, %v1350
      %v1771 = vmul.f32 %v1351, %v1351
      %v1772 = vmul.f32 %v1352, %v1352
      %v1773 = vmul.f32 %v1353, %v1353
      %v1774 = vmul.f32 %v1354, %v1354
      %v1775 = vmul.f32 %v1355, %v1355
      %v1776 = vmul.f32 %v1706, 0.27406862
      %v1777 = vmul.f32 %v1707, 0.27406862
      %v1778 = vmul.f32 %v1708, 0.27406862
      %v1779 = vmul.f32 %v1709, 0.27406862
      %v1780 = vmul.f32 %v1710, 0.27406862
      %v1781 = vmul.f32 %v1711, 0.27406862
      %v1782 = vmul.f32 %v1712, 0.27406862
      %v1783 = vmul.f32 %v1713, 0.27406862
      %v1784 = vmul.f32 %v1714, 0.27406862
      %v1785 = vmul.f32 %v1715, 0.27406862
      %v1786 = vmul.f32 %v1716, 0.27406862
      %v1787 = vmul.f32 %v1717, 0.27406862
      %v1788 = vmul.f32 %v1718, 0.27406862
      %v1789 = vmul.f32 %v1719, 0.27406862
      %v1790 = vmul.f32 %v1720, 0.27406862
      %v1791 = vmul.f32 %v1721, 0.27406862
      %v1792 = vmul.f32 %v1722, 0.27406862
      %v1793 = vmul.f32 %v1723, 0.27406862
      %v1794 = vmul.f32 %v1724, 0.27406862
      %v1795 = vmul.f32 %v1725, 0.27406862
      %v1796 = vmul.f32 %v1726, 0.27406862
      %v1797 = vmul.f32 %v1727, 0.27406862
      %v1798 = vmul.f32 %v1728, 0.27406862
      %v1799 = vmul.f32 %v1729, 0.27406862
      %v1800 = vmul.f32 %v1730, 0.27406862
      %v1801 = vmul.f32 %v1731, 0.27406862
      %v1802 = vmul.f32 %v1732, 0.27406862
      %v1803 = vmul.f32 %v1733, 0.27406862
      %v1804 = vmul.f32 %v1734, 0.27406862
      %v1805 = vmul.f32 %v1735, 0.27406862
      %v1806 = vmul.f32 %v1736, 0.27406862
      %v1807 = vmul.f32 %v1737, 0.27406862
      %v1808 = vmul.f32 %v1738, 0.27406862
      %v1809 = vmul.f32 %v1739, 0.27406862
      %v1810 = vmul.f32 %v1740, 0.27406862
      %v1811 = vmul.f32 %v1741, 0.27406862
      %v1812 = vmul.f32 %v1742, 0.27406862
      %v1813 = vmul.f32 %v1743, 0.27406862
      %v1814 = vmul.f32 %v1744, 0.27406862
      %v1815 = vmul.f32 %v1745, 0.27406862
      %v1816 = vmul.f32 %v1746, 0.27406862
      %v1817 = vmul.f32 %v1747, 0.27406862
      %v1818 = vmul.f32 %v1748, 0.27406862
      %v1819 = vmul.f32 %v1749, 0.27406862
      %v1820 = vmul.f32 %v1750, 0.27406862
      %v1821 = vmul.f32 %v1751, 0.27406862
      %v1822 = vmul.f32 %v1752, 0.27406862
      %v1823 = vmul.f32 %v1753, 0.27406862
      %v1824 = vmul.f32 %v1754, 0.27406862
      %v1825 = vmul.f32 %v1755, 0.27406862
      %v1826 = vmul.f32 %v1756, 0.27406862
      %v1827 = vmul.f32 %v1757, 0.27406862
      %v1828 = vmul.f32 %v1758, 0.27406862
      %v1829 = vmul.f32 %v1759, 0.27406862
      %v1830 = vmul.f32 %v1760, 0.27406862
      %v1831 = vmul.f32 %v1761, 0.27406862
      %v1832 = vmul.f32 %v1762, 0.27406862
      %v1833 = vmul.f32 %v1763, 0.27406862
      %v1834 = vmul.f32 %v1764, 0.27406862
      %v1835 = vmul.f32 %v1765, 0.27406862
      %v1836 = vmul.f32 %v1766, 0.27406862
      %v1837 = vmul.f32 %v1767, 0.27406862
      %v1838 = vmul.f32 %v1768, 0.27406862
      %v1839 = vmul.f32 %v1769, 0.27406862
      %v1840 = vmul.f32 %v1770, 0.27406862
      %v1841 = vmul.f32 %v1771, 0.27406862
      %v1842 = vmul.f32 %v1772, 0.27406862
      %v1843 = vmul.f32 %v1773, 0.27406862
      %v1844 = vmul.f32 %v1774, 0.27406862
      %v1845 = vmul.f32 %v1775, 0.27406862
      %v1846 = vadd.f32 %v1636, %v1776
      %v1847 = vadd.f32 %v1637, %v1777
      %v1848 = vadd.f32 %v1638, %v1778
      %v1849 = vadd.f32 %v1639, %v1779
      %v1850 = vadd.f32 %v1640, %v1780
      %v1851 = vadd.f32 %v1641, %v1781
      %v1852 = vadd.f32 %v1642, %v1782
      %v1853 = vadd.f32 %v1643, %v1783
      %v1854 = vadd.f32 %v1644, %v1784
      %v1855 = vadd.f32 %v1645, %v1785
      %v1856 = vadd.f32 %v1646, %v1786
      %v1857 = vadd.f32 %v1647, %v1787
      %v1858 = vadd.f32 %v1648, %v1788
      %v1859 = vadd.f32 %v1649, %v1789
      %v1860 = vadd.f32 %v1650, %v1790
      %v1861 = vadd.f32 %v1651, %v1791
      %v1862 = vadd.f32 %v1652, %v1792
      %v1863 = vadd.f32 %v1653, %v1793
      %v1864 = vadd.f32 %v1654, %v1794
      %v1865 = vadd.f32 %v1655, %v1795
      %v1866 = vadd.f32 %v1656, %v1796
      %v1867 = vadd.f32 %v1657, %v1797
      %v1868 = vadd.f32 %v1658, %v1798
      %v1869 = vadd.f32 %v1659, %v1799
      %v1870 = vadd.f32 %v1660, %v1800
      %v1871 = vadd.f32 %v1661, %v1801
      %v1872 = vadd.f32 %v1662, %v1802
      %v1873 = vadd.f32 %v1663, %v1803
      %v1874 = vadd.f32 %v1664, %v1804
      %v1875 = vadd.f32 %v1665, %v1805
      %v1876 = vadd.f32 %v1666, %v1806
      %v1877 = vadd.f32 %v1667, %v1807
      %v1878 = vadd.f32 %v1668, %v1808
      %v1879 = vadd.f32 %v1669, %v1809
      %v1880 = vadd.f32 %v1670, %v1810
      %v1881 = vadd.f32 %v1671, %v1811
      %v1882 = vadd.f32 %v1672, %v1812
      %v1883 = vadd.f32 %v1673, %v1813
      %v1884 = vadd.f32 %v1674, %v1814
      %v1885 = vadd.f32 %v1675, %v1815
      %v1886 = vadd.f32 %v1676, %v1816
      %v1887 = vadd.f32 %v1677, %v1817
      %v1888 = vadd.f32 %v1678, %v1818
      %v1889 = vadd.f32 %v1679, %v1819
      %v1890 = vadd.f32 %v1680, %v1820
      %v1891 = vadd.f32 %v1681, %v1821
      %v1892 = vadd.f32 %v1682, %v1822
      %v1893 = vadd.f32 %v1683, %v1823
      %v1894 = vadd.f32 %v1684, %v1824
      %v1895 = vadd.f32 %v1685, %v1825
      %v1896 = vadd.f32 %v1686, %v1826
      %v1897 = vadd.f32 %v1687, %v1827
      %v1898 = vadd.f32 %v1688, %v1828
      %v1899 = vadd.f32 %v1689, %v1829
      %v1900 = vadd.f32 %v1690, %v1830
      %v1901 = vadd.f32 %v1691, %v1831
      %v1902 = vadd.f32 %v1692, %v1832
      %v1903 = vadd.f32 %v1693, %v1833
      %v1904 = vadd.f32 %v1694, %v1834
      %v1905 = vadd.f32 %v1695, %v1835
      %v1906 = vadd.f32 %v1696, %v1836
      %v1907 = vadd.f32 %v1697, %v1837
      %v1908 = vadd.f32 %v1698, %v1838
      %v1909 = vadd.f32 %v1699, %v1839
      %v1910 = vadd.f32 %v1700, %v1840
      %v1911 = vadd.f32 %v1701, %v1841
      %v1912 = vadd.f32 %v1702, %v1842
      %v1913 = vadd.f32 %v1703, %v1843
      %v1914 = vadd.f32 %v1704, %v1844
      %v1915 = vadd.f32 %v1705, %v1845
      %1916 = vst [vmem:[#allocation3] sm:$0xff] %v1846
      %1917 = vst [vmem:[#allocation3 + $0x8] sm:$0xff] %v1847
      %1918 = vst [vmem:[#allocation3 + $0x10] sm:$0xff] %v1848
      %1919 = vst [vmem:[#allocation3 + $0x18] sm:$0xff] %v1849
      %1920 = vst.msk [vmem:[#allocation3 + $0x20] sm:$0xff] %vm307, %v1850
      %1921 = vst [vmem:[#allocation3 + $0x28] sm:$0xff] %v1851
      %1922 = vst [vmem:[#allocation3 + $0x30] sm:$0xff] %v1852
      %1923 = vst [vmem:[#allocation3 + $0x38] sm:$0xff] %v1853
      %1924 = vst [vmem:[#allocation3 + $0x40] sm:$0xff] %v1854
      %1925 = vst.msk [vmem:[#allocation3 + $0x48] sm:$0xff] %vm307, %v1855
      %1926 = vst [vmem:[#allocation3 + $0x50] sm:$0xff] %v1856
      %1927 = vst [vmem:[#allocation3 + $0x58] sm:$0xff] %v1857
      %1928 = vst [vmem:[#allocation3 + $0x60] sm:$0xff] %v1858
      %1929 = vst [vmem:[#allocation3 + $0x68] sm:$0xff] %v1859
      %1930 = vst.msk [vmem:[#allocation3 + $0x70] sm:$0xff] %vm307, %v1860
      %1931 = vst [vmem:[#allocation3 + $0x78] sm:$0xff] %v1861
      %1932 = vst [vmem:[#allocation3 + $0x80] sm:$0xff] %v1862
      %1933 = vst [vmem:[#allocation3 + $0x88] sm:$0xff] %v1863
      %1934 = vst [vmem:[#allocation3 + $0x90] sm:$0xff] %v1864
      %1935 = vst.msk [vmem:[#allocation3 + $0x98] sm:$0xff] %vm307, %v1865
      %1936 = vst [vmem:[#allocation3 + $0xa0] sm:$0xff] %v1866
      %1937 = vst [vmem:[#allocation3 + $0xa8] sm:$0xff] %v1867
      %1938 = vst [vmem:[#allocation3 + $0xb0] sm:$0xff] %v1868
      %1939 = vst [vmem:[#allocation3 + $0xb8] sm:$0xff] %v1869
      %1940 = vst.msk [vmem:[#allocation3 + $0xc0] sm:$0xff] %vm307, %v1870
      %1941 = vst [vmem:[#allocation3 + $0xc8] sm:$0xff] %v1871
      %1942 = vst [vmem:[#allocation3 + $0xd0] sm:$0xff] %v1872
      %1943 = vst [vmem:[#allocation3 + $0xd8] sm:$0xff] %v1873
      %1944 = vst [vmem:[#allocation3 + $0xe0] sm:$0xff] %v1874
      %1945 = vst.msk [vmem:[#allocation3 + $0xe8] sm:$0xff] %vm307, %v1875
      %1946 = vst [vmem:[#allocation3 + $0xf0] sm:$0xff] %v1876
      %1947 = vst [vmem:[#allocation3 + $0xf8] sm:$0xff] %v1877
      %1948 = vst [vmem:[#allocation3 + $0x100] sm:$0xff] %v1878
      %1949 = vst [vmem:[#allocation3 + $0x108] sm:$0xff] %v1879
      %1950 = vst.msk [vmem:[#allocation3 + $0x110] sm:$0xff] %vm307, %v1880
      %1951 = vst [vmem:[#allocation3 + $0x118] sm:$0xff] %v1881
      %1952 = vst [vmem:[#allocation3 + $0x120] sm:$0xff] %v1882
      %1953 = vst [vmem:[#allocation3 + $0x128] sm:$0xff] %v1883
      %1954 = vst [vmem:[#allocation3 + $0x130] sm:$0xff] %v1884
      %1955 = vst.msk [vmem:[#allocation3 + $0x138] sm:$0xff] %vm307, %v1885
      %1956 = vst [vmem:[#allocation3 + $0x140] sm:$0xff] %v1886
      %1957 = vst [vmem:[#allocation3 + $0x148] sm:$0xff] %v1887
      %1958 = vst [vmem:[#allocation3 + $0x150] sm:$0xff] %v1888
      %1959 = vst [vmem:[#allocation3 + $0x158] sm:$0xff] %v1889
      %1960 = vst.msk [vmem:[#allocation3 + $0x160] sm:$0xff] %vm307, %v1890
      %1961 = vst [vmem:[#allocation3 + $0x168] sm:$0xff] %v1891
      %1962 = vst [vmem:[#allocation3 + $0x170] sm:$0xff] %v1892
      %1963 = vst [vmem:[#allocation3 + $0x178] sm:$0xff] %v1893
      %1964 = vst [vmem:[#allocation3 + $0x180] sm:$0xff] %v1894
      %1965 = vst.msk [vmem:[#allocation3 + $0x188] sm:$0xff] %vm307, %v1895
      %1966 = vst [vmem:[#allocation3 + $0x190] sm:$0xff] %v1896
      %1967 = vst [vmem:[#allocation3 + $0x198] sm:$0xff] %v1897
      %1968 = vst [vmem:[#allocation3 + $0x1a0] sm:$0xff] %v1898
      %1969 = vst [vmem:[#allocation3 + $0x1a8] sm:$0xff] %v1899
      %1970 = vst.msk [vmem:[#allocation3 + $0x1b0] sm:$0xff] %vm307, %v1900
      %1971 = vst [vmem:[#allocation3 + $0x1b8] sm:$0xff] %v1901
      %1972 = vst [vmem:[#allocation3 + $0x1c0] sm:$0xff] %v1902
      %1973 = vst [vmem:[#allocation3 + $0x1c8] sm:$0xff] %v1903
      %1974 = vst [vmem:[#allocation3 + $0x1d0] sm:$0xff] %v1904
      %1975 = vst.msk [vmem:[#allocation3 + $0x1d8] sm:$0xff] %vm307, %v1905
      %1976 = vst [vmem:[#allocation3 + $0x1e0] sm:$0xff] %v1906
      %1977 = vst [vmem:[#allocation3 + $0x1e8] sm:$0xff] %v1907
      %1978 = vst [vmem:[#allocation3 + $0x1f0] sm:$0xff] %v1908
      %1979 = vst [vmem:[#allocation3 + $0x1f8] sm:$0xff] %v1909
      %1980 = vst.msk [vmem:[#allocation3 + $0x200] sm:$0xff] %vm307, %v1910
      %1981 = vst [vmem:[#allocation3 + $0x208] sm:$0xff] %v1911
      %1982 = vst [vmem:[#allocation3 + $0x210] sm:$0xff] %v1912
      %1983 = vst [vmem:[#allocation3 + $0x218] sm:$0xff] %v1913
      %1984 = vst [vmem:[#allocation3 + $0x220] sm:$0xff] %v1914
      %1985 = vst.msk [vmem:[#allocation3 + $0x228] sm:$0xff] %vm307, %v1915
      %v1986 = vld [vmem:[#allocation2] sm:$0xff]
      %v1987 = vld [vmem:[#allocation2 + $0x8] sm:$0xff]
      %v1988 = vld [vmem:[#allocation2 + $0x10] sm:$0xff]
      %v1989 = vld [vmem:[#allocation2 + $0x18] sm:$0xff]
      %v1990 = vld [vmem:[#allocation2 + $0x20] sm:$0xff]
      %v1991 = vld [vmem:[#allocation2 + $0x28] sm:$0x3f]
      %v1992 = vld [vmem:[#allocation2 + $0x30] sm:$0x3f]
      %v1993 = vld [vmem:[#allocation2 + $0x38] sm:$0x3f]
      %v1994 = vld [vmem:[#allocation2 + $0x40] sm:$0x3f]
      %v1995 = vld [vmem:[#allocation2 + $0x48] sm:$0x3f]
      %v1996 = vld [vmem:[#allocation2 + $0x50] sm:$0xff]
      %v1997 = vld [vmem:[#allocation2 + $0x58] sm:$0xff]
      %v1998 = vld [vmem:[#allocation2 + $0x60] sm:$0xff]
      %v1999 = vld [vmem:[#allocation2 + $0x68] sm:$0xff]
      %v2000 = vld [vmem:[#allocation2 + $0x70] sm:$0xff]
      %v2001 = vld [vmem:[#allocation2 + $0x78] sm:$0x3f]
      %v2002 = vld [vmem:[#allocation2 + $0x80] sm:$0x3f]
      %v2003 = vld [vmem:[#allocation2 + $0x88] sm:$0x3f]
      %v2004 = vld [vmem:[#allocation2 + $0x90] sm:$0x3f]
      %v2005 = vld [vmem:[#allocation2 + $0x98] sm:$0x3f]
      %v2006 = vld [vmem:[#allocation2 + $0xa0] sm:$0xff]
      %v2007 = vld [vmem:[#allocation2 + $0xa8] sm:$0xff]
      %v2008 = vld [vmem:[#allocation2 + $0xb0] sm:$0xff]
      %v2009 = vld [vmem:[#allocation2 + $0xb8] sm:$0xff]
      %v2010 = vld [vmem:[#allocation2 + $0xc0] sm:$0xff]
      %v2011 = vld [vmem:[#allocation2 + $0xc8] sm:$0x3f]
      %v2012 = vld [vmem:[#allocation2 + $0xd0] sm:$0x3f]
      %v2013 = vld [vmem:[#allocation2 + $0xd8] sm:$0x3f]
      %v2014 = vld [vmem:[#allocation2 + $0xe0] sm:$0x3f]
      %v2015 = vld [vmem:[#allocation2 + $0xe8] sm:$0x3f]
      %v2016 = vld [vmem:[#allocation2 + $0xf0] sm:$0xff]
      %v2017 = vld [vmem:[#allocation2 + $0xf8] sm:$0xff]
      %v2018 = vld [vmem:[#allocation2 + $0x100] sm:$0xff]
      %v2019 = vld [vmem:[#allocation2 + $0x108] sm:$0xff]
      %v2020 = vld [vmem:[#allocation2 + $0x110] sm:$0xff]
      %v2021 = vld [vmem:[#allocation2 + $0x118] sm:$0x3f]
      %v2022 = vld [vmem:[#allocation2 + $0x120] sm:$0x3f]
      %v2023 = vld [vmem:[#allocation2 + $0x128] sm:$0x3f]
      %v2024 = vld [vmem:[#allocation2 + $0x130] sm:$0x3f]
      %v2025 = vld [vmem:[#allocation2 + $0x138] sm:$0x3f]
      %v2026 = vld [vmem:[#allocation2 + $0x140] sm:$0xff]
      %v2027 = vld [vmem:[#allocation2 + $0x148] sm:$0xff]
      %v2028 = vld [vmem:[#allocation2 + $0x150] sm:$0xff]
      %v2029 = vld [vmem:[#allocation2 + $0x158] sm:$0xff]
      %v2030 = vld [vmem:[#allocation2 + $0x160] sm:$0xff]
      %v2031 = vld [vmem:[#allocation2 + $0x168] sm:$0x3f]
      %v2032 = vld [vmem:[#allocation2 + $0x170] sm:$0x3f]
      %v2033 = vld [vmem:[#allocation2 + $0x178] sm:$0x3f]
      %v2034 = vld [vmem:[#allocation2 + $0x180] sm:$0x3f]
      %v2035 = vld [vmem:[#allocation2 + $0x188] sm:$0x3f]
      %v2036 = vld [vmem:[#allocation2 + $0x190] sm:$0xff]
      %v2037 = vld [vmem:[#allocation2 + $0x198] sm:$0xff]
      %v2038 = vld [vmem:[#allocation2 + $0x1a0] sm:$0xff]
      %v2039 = vld [vmem:[#allocation2 + $0x1a8] sm:$0xff]
      %v2040 = vld [vmem:[#allocation2 + $0x1b0] sm:$0xff]
      %v2041 = vld [vmem:[#allocation2 + $0x1b8] sm:$0x3f]
      %v2042 = vld [vmem:[#allocation2 + $0x1c0] sm:$0x3f]
      %v2043 = vld [vmem:[#allocation2 + $0x1c8] sm:$0x3f]
      %v2044 = vld [vmem:[#allocation2 + $0x1d0] sm:$0x3f]
      %v2045 = vld [vmem:[#allocation2 + $0x1d8] sm:$0x3f]
      %v2046 = vld [vmem:[#allocation2 + $0x1e0] sm:$0xff]
      %v2047 = vld [vmem:[#allocation2 + $0x1e8] sm:$0xff]
      %v2048 = vld [vmem:[#allocation2 + $0x1f0] sm:$0xff]
      %v2049 = vld [vmem:[#allocation2 + $0x1f8] sm:$0xff]
      %v2050 = vld [vmem:[#allocation2 + $0x200] sm:$0xff]
      %v2051 = vld [vmem:[#allocation2 + $0x208] sm:$0x3f]
      %v2052 = vld [vmem:[#allocation2 + $0x210] sm:$0x3f]
      %v2053 = vld [vmem:[#allocation2 + $0x218] sm:$0x3f]
      %v2054 = vld [vmem:[#allocation2 + $0x220] sm:$0x3f]
      %v2055 = vld [vmem:[#allocation2 + $0x228] sm:$0x3f]
      %v2056 = vld [vmem:[#allocation3] sm:$0xff]
      %v2057 = vld [vmem:[#allocation3 + $0x8] sm:$0xff]
      %v2058 = vld [vmem:[#allocation3 + $0x10] sm:$0xff]
      %v2059 = vld [vmem:[#allocation3 + $0x18] sm:$0xff]
      %v2060 = vld [vmem:[#allocation3 + $0x20] sm:$0xff]
      %v2061 = vld [vmem:[#allocation3 + $0x28] sm:$0x3f]
      %v2062 = vld [vmem:[#allocation3 + $0x30] sm:$0x3f]
      %v2063 = vld [vmem:[#allocation3 + $0x38] sm:$0x3f]
      %v2064 = vld [vmem:[#allocation3 + $0x40] sm:$0x3f]
      %v2065 = vld [vmem:[#allocation3 + $0x48] sm:$0x3f]
      %v2066 = vld [vmem:[#allocation3 + $0x50] sm:$0xff]
      %v2067 = vld [vmem:[#allocation3 + $0x58] sm:$0xff]
      %v2068 = vld [vmem:[#allocation3 + $0x60] sm:$0xff]
      %v2069 = vld [vmem:[#allocation3 + $0x68] sm:$0xff]
      %v2070 = vld [vmem:[#allocation3 + $0x70] sm:$0xff]
      %v2071 = vld [vmem:[#allocation3 + $0x78] sm:$0x3f]
      %v2072 = vld [vmem:[#allocation3 + $0x80] sm:$0x3f]
      %v2073 = vld [vmem:[#allocation3 + $0x88] sm:$0x3f]
      %v2074 = vld [vmem:[#allocation3 + $0x90] sm:$0x3f]
      %v2075 = vld [vmem:[#allocation3 + $0x98] sm:$0x3f]
      %v2076 = vld [vmem:[#allocation3 + $0xa0] sm:$0xff]
      %v2077 = vld [vmem:[#allocation3 + $0xa8] sm:$0xff]
      %v2078 = vld [vmem:[#allocation3 + $0xb0] sm:$0xff]
      %v2079 = vld [vmem:[#allocation3 + $0xb8] sm:$0xff]
      %v2080 = vld [vmem:[#allocation3 + $0xc0] sm:$0xff]
      %v2081 = vld [vmem:[#allocation3 + $0xc8] sm:$0x3f]
      %v2082 = vld [vmem:[#allocation3 + $0xd0] sm:$0x3f]
      %v2083 = vld [vmem:[#allocation3 + $0xd8] sm:$0x3f]
      %v2084 = vld [vmem:[#allocation3 + $0xe0] sm:$0x3f]
      %v2085 = vld [vmem:[#allocation3 + $0xe8] sm:$0x3f]
      %v2086 = vld [vmem:[#allocation3 + $0xf0] sm:$0xff]
      %v2087 = vld [vmem:[#allocation3 + $0xf8] sm:$0xff]
      %v2088 = vld [vmem:[#allocation3 + $0x100] sm:$0xff]
      %v2089 = vld [vmem:[#allocation3 + $0x108] sm:$0xff]
      %v2090 = vld [vmem:[#allocation3 + $0x110] sm:$0xff]
      %v2091 = vld [vmem:[#allocation3 + $0x118] sm:$0x3f]
      %v2092 = vld [vmem:[#allocation3 + $0x120] sm:$0x3f]
      %v2093 = vld [vmem:[#allocation3 + $0x128] sm:$0x3f]
      %v2094 = vld [vmem:[#allocation3 + $0x130] sm:$0x3f]
      %v2095 = vld [vmem:[#allocation3 + $0x138] sm:$0x3f]
      %v2096 = vld [vmem:[#allocation3 + $0x140] sm:$0xff]
      %v2097 = vld [vmem:[#allocation3 + $0x148] sm:$0xff]
      %v2098 = vld [vmem:[#allocation3 + $0x150] sm:$0xff]
      %v2099 = vld [vmem:[#allocation3 + $0x158] sm:$0xff]
      %v2100 = vld [vmem:[#allocation3 + $0x160] sm:$0xff]
      %v2101 = vld [vmem:[#allocation3 + $0x168] sm:$0x3f]
      %v2102 = vld [vmem:[#allocation3 + $0x170] sm:$0x3f]
      %v2103 = vld [vmem:[#allocation3 + $0x178] sm:$0x3f]
      %v2104 = vld [vmem:[#allocation3 + $0x180] sm:$0x3f]
      %v2105 = vld [vmem:[#allocation3 + $0x188] sm:$0x3f]
      %v2106 = vld [vmem:[#allocation3 + $0x190] sm:$0xff]
      %v2107 = vld [vmem:[#allocation3 + $0x198] sm:$0xff]
      %v2108 = vld [vmem:[#allocation3 + $0x1a0] sm:$0xff]
      %v2109 = vld [vmem:[#allocation3 + $0x1a8] sm:$0xff]
      %v2110 = vld [vmem:[#allocation3 + $0x1b0] sm:$0xff]
      %v2111 = vld [vmem:[#allocation3 + $0x1b8] sm:$0x3f]
      %v2112 = vld [vmem:[#allocation3 + $0x1c0] sm:$0x3f]
      %v2113 = vld [vmem:[#allocation3 + $0x1c8] sm:$0x3f]
      %v2114 = vld [vmem:[#allocation3 + $0x1d0] sm:$0x3f]
      %v2115 = vld [vmem:[#allocation3 + $0x1d8] sm:$0x3f]
      %v2116 = vld [vmem:[#allocation3 + $0x1e0] sm:$0xff]
      %v2117 = vld [vmem:[#allocation3 + $0x1e8] sm:$0xff]
      %v2118 = vld [vmem:[#allocation3 + $0x1f0] sm:$0xff]
      %v2119 = vld [vmem:[#allocation3 + $0x1f8] sm:$0xff]
      %v2120 = vld [vmem:[#allocation3 + $0x200] sm:$0xff]
      %v2121 = vld [vmem:[#allocation3 + $0x208] sm:$0x3f]
      %v2122 = vld [vmem:[#allocation3 + $0x210] sm:$0x3f]
      %v2123 = vld [vmem:[#allocation3 + $0x218] sm:$0x3f]
      %v2124 = vld [vmem:[#allocation3 + $0x220] sm:$0x3f]
      %v2125 = vld [vmem:[#allocation3 + $0x228] sm:$0x3f]
      %v2126 = vmul.f32 %v1986, 0.27406862
      %v2127 = vmul.f32 %v1987, 0.27406862
      %v2128 = vmul.f32 %v1988, 0.27406862
      %v2129 = vmul.f32 %v1989, 0.27406862
      %v2130 = vmul.f32 %v1990, 0.27406862
      %v2131 = vmul.f32 %v1991, 0.27406862
      %v2132 = vmul.f32 %v1992, 0.27406862
      %v2133 = vmul.f32 %v1993, 0.27406862
      %v2134 = vmul.f32 %v1994, 0.27406862
      %v2135 = vmul.f32 %v1995, 0.27406862
      %v2136 = vmul.f32 %v1996, 0.27406862
      %v2137 = vmul.f32 %v1997, 0.27406862
      %v2138 = vmul.f32 %v1998, 0.27406862
      %v2139 = vmul.f32 %v1999, 0.27406862
      %v2140 = vmul.f32 %v2000, 0.27406862
      %v2141 = vmul.f32 %v2001, 0.27406862
      %v2142 = vmul.f32 %v2002, 0.27406862
      %v2143 = vmul.f32 %v2003, 0.27406862
      %v2144 = vmul.f32 %v2004, 0.27406862
      %v2145 = vmul.f32 %v2005, 0.27406862
      %v2146 = vmul.f32 %v2006, 0.27406862
      %v2147 = vmul.f32 %v2007, 0.27406862
      %v2148 = vmul.f32 %v2008, 0.27406862
      %v2149 = vmul.f32 %v2009, 0.27406862
      %v2150 = vmul.f32 %v2010, 0.27406862
      %v2151 = vmul.f32 %v2011, 0.27406862
      %v2152 = vmul.f32 %v2012, 0.27406862
      %v2153 = vmul.f32 %v2013, 0.27406862
      %v2154 = vmul.f32 %v2014, 0.27406862
      %v2155 = vmul.f32 %v2015, 0.27406862
      %v2156 = vmul.f32 %v2016, 0.27406862
      %v2157 = vmul.f32 %v2017, 0.27406862
      %v2158 = vmul.f32 %v2018, 0.27406862
      %v2159 = vmul.f32 %v2019, 0.27406862
      %v2160 = vmul.f32 %v2020, 0.27406862
      %v2161 = vmul.f32 %v2021, 0.27406862
      %v2162 = vmul.f32 %v2022, 0.27406862
      %v2163 = vmul.f32 %v2023, 0.27406862
      %v2164 = vmul.f32 %v2024, 0.27406862
      %v2165 = vmul.f32 %v2025, 0.27406862
      %v2166 = vmul.f32 %v2026, 0.27406862
      %v2167 = vmul.f32 %v2027, 0.27406862
      %v2168 = vmul.f32 %v2028, 0.27406862
      %v2169 = vmul.f32 %v2029, 0.27406862
      %v2170 = vmul.f32 %v2030, 0.27406862
      %v2171 = vmul.f32 %v2031, 0.27406862
      %v2172 = vmul.f32 %v2032, 0.27406862
      %v2173 = vmul.f32 %v2033, 0.27406862
      %v2174 = vmul.f32 %v2034, 0.27406862
      %v2175 = vmul.f32 %v2035, 0.27406862
      %v2176 = vmul.f32 %v2036, 0.27406862
      %v2177 = vmul.f32 %v2037, 0.27406862
      %v2178 = vmul.f32 %v2038, 0.27406862
      %v2179 = vmul.f32 %v2039, 0.27406862
      %v2180 = vmul.f32 %v2040, 0.27406862
      %v2181 = vmul.f32 %v2041, 0.27406862
      %v2182 = vmul.f32 %v2042, 0.27406862
      %v2183 = vmul.f32 %v2043, 0.27406862
      %v2184 = vmul.f32 %v2044, 0.27406862
      %v2185 = vmul.f32 %v2045, 0.27406862
      %v2186 = vmul.f32 %v2046, 0.27406862
      %v2187 = vmul.f32 %v2047, 0.27406862
      %v2188 = vmul.f32 %v2048, 0.27406862
      %v2189 = vmul.f32 %v2049, 0.27406862
      %v2190 = vmul.f32 %v2050, 0.27406862
      %v2191 = vmul.f32 %v2051, 0.27406862
      %v2192 = vmul.f32 %v2052, 0.27406862
      %v2193 = vmul.f32 %v2053, 0.27406862
      %v2194 = vmul.f32 %v2054, 0.27406862
      %v2195 = vmul.f32 %v2055, 0.27406862
      %2196 = vst [vmem:[#allocation4] sm:$0xff] %v2126
      %2197 = vst [vmem:[#allocation4 + $0x8] sm:$0xff] %v2127
      %2198 = vst [vmem:[#allocation4 + $0x10] sm:$0xff] %v2128
      %2199 = vst [vmem:[#allocation4 + $0x18] sm:$0xff] %v2129
      %2200 = vst.msk [vmem:[#allocation4 + $0x20] sm:$0xff] %vm307, %v2130
      %2201 = vst [vmem:[#allocation4 + $0x28] sm:$0x3f] %v2131
      %2202 = vst [vmem:[#allocation4 + $0x30] sm:$0x3f] %v2132
      %2203 = vst [vmem:[#allocation4 + $0x38] sm:$0x3f] %v2133
      %2204 = vst [vmem:[#allocation4 + $0x40] sm:$0x3f] %v2134
      %vm2205 = vcmask 259072
      %2206 = vst.msk [vmem:[#allocation4 + $0x48] sm:$0x3f] %vm2205, %v2135
      %2207 = vst [vmem:[#allocation4 + $0x50] sm:$0xff] %v2136
      %2208 = vst [vmem:[#allocation4 + $0x58] sm:$0xff] %v2137
      %2209 = vst [vmem:[#allocation4 + $0x60] sm:$0xff] %v2138
      %2210 = vst [vmem:[#allocation4 + $0x68] sm:$0xff] %v2139
      %2211 = vst.msk [vmem:[#allocation4 + $0x70] sm:$0xff] %vm307, %v2140
      %2212 = vst [vmem:[#allocation4 + $0x78] sm:$0x3f] %v2141
      %2213 = vst [vmem:[#allocation4 + $0x80] sm:$0x3f] %v2142
      %2214 = vst [vmem:[#allocation4 + $0x88] sm:$0x3f] %v2143
      %2215 = vst [vmem:[#allocation4 + $0x90] sm:$0x3f] %v2144
      %2216 = vst.msk [vmem:[#allocation4 + $0x98] sm:$0x3f] %vm2205, %v2145
      %2217 = vst [vmem:[#allocation4 + $0xa0] sm:$0xff] %v2146
      %2218 = vst [vmem:[#allocation4 + $0xa8] sm:$0xff] %v2147
      %2219 = vst [vmem:[#allocation4 + $0xb0] sm:$0xff] %v2148
      %2220 = vst [vmem:[#allocation4 + $0xb8] sm:$0xff] %v2149
      %2221 = vst.msk [vmem:[#allocation4 + $0xc0] sm:$0xff] %vm307, %v2150
      %2222 = vst [vmem:[#allocation4 + $0xc8] sm:$0x3f] %v2151
      %2223 = vst [vmem:[#allocation4 + $0xd0] sm:$0x3f] %v2152
      %2224 = vst [vmem:[#allocation4 + $0xd8] sm:$0x3f] %v2153
      %2225 = vst [vmem:[#allocation4 + $0xe0] sm:$0x3f] %v2154
      %2226 = vst.msk [vmem:[#allocation4 + $0xe8] sm:$0x3f] %vm2205, %v2155
      %2227 = vst [vmem:[#allocation4 + $0xf0] sm:$0xff] %v2156
      %2228 = vst [vmem:[#allocation4 + $0xf8] sm:$0xff] %v2157
      %2229 = vst [vmem:[#allocation4 + $0x100] sm:$0xff] %v2158
      %2230 = vst [vmem:[#allocation4 + $0x108] sm:$0xff] %v2159
      %2231 = vst.msk [vmem:[#allocation4 + $0x110] sm:$0xff] %vm307, %v2160
      %2232 = vst [vmem:[#allocation4 + $0x118] sm:$0x3f] %v2161
      %2233 = vst [vmem:[#allocation4 + $0x120] sm:$0x3f] %v2162
      %2234 = vst [vmem:[#allocation4 + $0x128] sm:$0x3f] %v2163
      %2235 = vst [vmem:[#allocation4 + $0x130] sm:$0x3f] %v2164
      %2236 = vst.msk [vmem:[#allocation4 + $0x138] sm:$0x3f] %vm2205, %v2165
      %2237 = vst [vmem:[#allocation4 + $0x140] sm:$0xff] %v2166
      %2238 = vst [vmem:[#allocation4 + $0x148] sm:$0xff] %v2167
      %2239 = vst [vmem:[#allocation4 + $0x150] sm:$0xff] %v2168
      %2240 = vst [vmem:[#allocation4 + $0x158] sm:$0xff] %v2169
      %2241 = vst.msk [vmem:[#allocation4 + $0x160] sm:$0xff] %vm307, %v2170
      %2242 = vst [vmem:[#allocation4 + $0x168] sm:$0x3f] %v2171
      %2243 = vst [vmem:[#allocation4 + $0x170] sm:$0x3f] %v2172
      %2244 = vst [vmem:[#allocation4 + $0x178] sm:$0x3f] %v2173
      %2245 = vst [vmem:[#allocation4 + $0x180] sm:$0x3f] %v2174
      %2246 = vst.msk [vmem:[#allocation4 + $0x188] sm:$0x3f] %vm2205, %v2175
      %2247 = vst [vmem:[#allocation4 + $0x190] sm:$0xff] %v2176
      %2248 = vst [vmem:[#allocation4 + $0x198] sm:$0xff] %v2177
      %2249 = vst [vmem:[#allocation4 + $0x1a0] sm:$0xff] %v2178
      %2250 = vst [vmem:[#allocation4 + $0x1a8] sm:$0xff] %v2179
      %2251 = vst.msk [vmem:[#allocation4 + $0x1b0] sm:$0xff] %vm307, %v2180
      %2252 = vst [vmem:[#allocation4 + $0x1b8] sm:$0x3f] %v2181
      %2253 = vst [vmem:[#allocation4 + $0x1c0] sm:$0x3f] %v2182
      %2254 = vst [vmem:[#allocation4 + $0x1c8] sm:$0x3f] %v2183
      %2255 = vst [vmem:[#allocation4 + $0x1d0] sm:$0x3f] %v2184
      %2256 = vst.msk [vmem:[#allocation4 + $0x1d8] sm:$0x3f] %vm2205, %v2185
      %2257 = vst [vmem:[#allocation4 + $0x1e0] sm:$0xff] %v2186
      %2258 = vst [vmem:[#allocation4 + $0x1e8] sm:$0xff] %v2187
      %2259 = vst [vmem:[#allocation4 + $0x1f0] sm:$0xff] %v2188
      %2260 = vst [vmem:[#allocation4 + $0x1f8] sm:$0xff] %v2189
      %2261 = vst.msk [vmem:[#allocation4 + $0x200] sm:$0xff] %vm307, %v2190
      %2262 = vst [vmem:[#allocation4 + $0x208] sm:$0x3f] %v2191
      %2263 = vst [vmem:[#allocation4 + $0x210] sm:$0x3f] %v2192
      %2264 = vst [vmem:[#allocation4 + $0x218] sm:$0x3f] %v2193
      %2265 = vst [vmem:[#allocation4 + $0x220] sm:$0x3f] %v2194
      %2266 = vst.msk [vmem:[#allocation4 + $0x228] sm:$0x3f] %vm2205, %v2195
      %v2267 = vmul.f32 %v2056, 0.27406862
      %v2268 = vmul.f32 %v2057, 0.27406862
      %v2269 = vmul.f32 %v2058, 0.27406862
      %v2270 = vmul.f32 %v2059, 0.27406862
      %v2271 = vmul.f32 %v2060, 0.27406862
      %v2272 = vmul.f32 %v2061, 0.27406862
      %v2273 = vmul.f32 %v2062, 0.27406862
      %v2274 = vmul.f32 %v2063, 0.27406862
      %v2275 = vmul.f32 %v2064, 0.27406862
      %v2276 = vmul.f32 %v2065, 0.27406862
      %v2277 = vmul.f32 %v2066, 0.27406862
      %v2278 = vmul.f32 %v2067, 0.27406862
      %v2279 = vmul.f32 %v2068, 0.27406862
      %v2280 = vmul.f32 %v2069, 0.27406862
      %v2281 = vmul.f32 %v2070, 0.27406862
      %v2282 = vmul.f32 %v2071, 0.27406862
      %v2283 = vmul.f32 %v2072, 0.27406862
      %v2284 = vmul.f32 %v2073, 0.27406862
      %v2285 = vmul.f32 %v2074, 0.27406862
      %v2286 = vmul.f32 %v2075, 0.27406862
      %v2287 = vmul.f32 %v2076, 0.27406862
      %v2288 = vmul.f32 %v2077, 0.27406862
      %v2289 = vmul.f32 %v2078, 0.27406862
      %v2290 = vmul.f32 %v2079, 0.27406862
      %v2291 = vmul.f32 %v2080, 0.27406862
      %v2292 = vmul.f32 %v2081, 0.27406862
      %v2293 = vmul.f32 %v2082, 0.27406862
      %v2294 = vmul.f32 %v2083, 0.27406862
      %v2295 = vmul.f32 %v2084, 0.27406862
      %v2296 = vmul.f32 %v2085, 0.27406862
      %v2297 = vmul.f32 %v2086, 0.27406862
      %v2298 = vmul.f32 %v2087, 0.27406862
      %v2299 = vmul.f32 %v2088, 0.27406862
      %v2300 = vmul.f32 %v2089, 0.27406862
      %v2301 = vmul.f32 %v2090, 0.27406862
      %v2302 = vmul.f32 %v2091, 0.27406862
      %v2303 = vmul.f32 %v2092, 0.27406862
      %v2304 = vmul.f32 %v2093, 0.27406862
      %v2305 = vmul.f32 %v2094, 0.27406862
      %v2306 = vmul.f32 %v2095, 0.27406862
      %v2307 = vmul.f32 %v2096, 0.27406862
      %v2308 = vmul.f32 %v2097, 0.27406862
      %v2309 = vmul.f32 %v2098, 0.27406862
      %v2310 = vmul.f32 %v2099, 0.27406862
      %v2311 = vmul.f32 %v2100, 0.27406862
      %v2312 = vmul.f32 %v2101, 0.27406862
      %v2313 = vmul.f32 %v2102, 0.27406862
      %v2314 = vmul.f32 %v2103, 0.27406862
      %v2315 = vmul.f32 %v2104, 0.27406862
      %v2316 = vmul.f32 %v2105, 0.27406862
      %v2317 = vmul.f32 %v2106, 0.27406862
      %v2318 = vmul.f32 %v2107, 0.27406862
      %v2319 = vmul.f32 %v2108, 0.27406862
      %v2320 = vmul.f32 %v2109, 0.27406862
      %v2321 = vmul.f32 %v2110, 0.27406862
      %v2322 = vmul.f32 %v2111, 0.27406862
      %v2323 = vmul.f32 %v2112, 0.27406862
      %v2324 = vmul.f32 %v2113, 0.27406862
      %v2325 = vmul.f32 %v2114, 0.27406862
      %v2326 = vmul.f32 %v2115, 0.27406862
      %v2327 = vmul.f32 %v2116, 0.27406862
      %v2328 = vmul.f32 %v2117, 0.27406862
      %v2329 = vmul.f32 %v2118, 0.27406862
      %v2330 = vmul.f32 %v2119, 0.27406862
      %v2331 = vmul.f32 %v2120, 0.27406862
      %v2332 = vmul.f32 %v2121, 0.27406862
      %v2333 = vmul.f32 %v2122, 0.27406862
      %v2334 = vmul.f32 %v2123, 0.27406862
      %v2335 = vmul.f32 %v2124, 0.27406862
      %v2336 = vmul.f32 %v2125, 0.27406862
      %2337 = vst [vmem:[#allocation5] sm:$0xff] %v2267
      %2338 = vst [vmem:[#allocation5 + $0x8] sm:$0xff] %v2268
      %2339 = vst [vmem:[#allocation5 + $0x10] sm:$0xff] %v2269
      %2340 = vst [vmem:[#allocation5 + $0x18] sm:$0xff] %v2270
      %2341 = vst.msk [vmem:[#allocation5 + $0x20] sm:$0xff] %vm307, %v2271
      %2342 = vst [vmem:[#allocation5 + $0x28] sm:$0x3f] %v2272
      %2343 = vst [vmem:[#allocation5 + $0x30] sm:$0x3f] %v2273
      %2344 = vst [vmem:[#allocation5 + $0x38] sm:$0x3f] %v2274
      %2345 = vst [vmem:[#allocation5 + $0x40] sm:$0x3f] %v2275
      %2346 = vst.msk [vmem:[#allocation5 + $0x48] sm:$0x3f] %vm2205, %v2276
      %2347 = vst [vmem:[#allocation5 + $0x50] sm:$0xff] %v2277
      %2348 = vst [vmem:[#allocation5 + $0x58] sm:$0xff] %v2278
      %2349 = vst [vmem:[#allocation5 + $0x60] sm:$0xff] %v2279
      %2350 = vst [vmem:[#allocation5 + $0x68] sm:$0xff] %v2280
      %2351 = vst.msk [vmem:[#allocation5 + $0x70] sm:$0xff] %vm307, %v2281
      %2352 = vst [vmem:[#allocation5 + $0x78] sm:$0x3f] %v2282
      %2353 = vst [vmem:[#allocation5 + $0x80] sm:$0x3f] %v2283
      %2354 = vst [vmem:[#allocation5 + $0x88] sm:$0x3f] %v2284
      %2355 = vst [vmem:[#allocation5 + $0x90] sm:$0x3f] %v2285
      %2356 = vst.msk [vmem:[#allocation5 + $0x98] sm:$0x3f] %vm2205, %v2286
      %2357 = vst [vmem:[#allocation5 + $0xa0] sm:$0xff] %v2287
      %2358 = vst [vmem:[#allocation5 + $0xa8] sm:$0xff] %v2288
      %2359 = vst [vmem:[#allocation5 + $0xb0] sm:$0xff] %v2289
      %2360 = vst [vmem:[#allocation5 + $0xb8] sm:$0xff] %v2290
      %2361 = vst.msk [vmem:[#allocation5 + $0xc0] sm:$0xff] %vm307, %v2291
      %2362 = vst [vmem:[#allocation5 + $0xc8] sm:$0x3f] %v2292
      %2363 = vst [vmem:[#allocation5 + $0xd0] sm:$0x3f] %v2293
      %2364 = vst [vmem:[#allocation5 + $0xd8] sm:$0x3f] %v2294
      %2365 = vst [vmem:[#allocation5 + $0xe0] sm:$0x3f] %v2295
      %2366 = vst.msk [vmem:[#allocation5 + $0xe8] sm:$0x3f] %vm2205, %v2296
      %2367 = vst [vmem:[#allocation5 + $0xf0] sm:$0xff] %v2297
      %2368 = vst [vmem:[#allocation5 + $0xf8] sm:$0xff] %v2298
      %2369 = vst [vmem:[#allocation5 + $0x100] sm:$0xff] %v2299
      %2370 = vst [vmem:[#allocation5 + $0x108] sm:$0xff] %v2300
      %2371 = vst.msk [vmem:[#allocation5 + $0x110] sm:$0xff] %vm307, %v2301
      %2372 = vst [vmem:[#allocation5 + $0x118] sm:$0x3f] %v2302
      %2373 = vst [vmem:[#allocation5 + $0x120] sm:$0x3f] %v2303
      %2374 = vst [vmem:[#allocation5 + $0x128] sm:$0x3f] %v2304
      %2375 = vst [vmem:[#allocation5 + $0x130] sm:$0x3f] %v2305
      %2376 = vst.msk [vmem:[#allocation5 + $0x138] sm:$0x3f] %vm2205, %v2306
      %2377 = vst [vmem:[#allocation5 + $0x140] sm:$0xff] %v2307
      %2378 = vst [vmem:[#allocation5 + $0x148] sm:$0xff] %v2308
      %2379 = vst [vmem:[#allocation5 + $0x150] sm:$0xff] %v2309
      %2380 = vst [vmem:[#allocation5 + $0x158] sm:$0xff] %v2310
      %2381 = vst.msk [vmem:[#allocation5 + $0x160] sm:$0xff] %vm307, %v2311
      %2382 = vst [vmem:[#allocation5 + $0x168] sm:$0x3f] %v2312
      %2383 = vst [vmem:[#allocation5 + $0x170] sm:$0x3f] %v2313
      %2384 = vst [vmem:[#allocation5 + $0x178] sm:$0x3f] %v2314
      %2385 = vst [vmem:[#allocation5 + $0x180] sm:$0x3f] %v2315
      %2386 = vst.msk [vmem:[#allocation5 + $0x188] sm:$0x3f] %vm2205, %v2316
      %2387 = vst [vmem:[#allocation5 + $0x190] sm:$0xff] %v2317
      %2388 = vst [vmem:[#allocation5 + $0x198] sm:$0xff] %v2318
      %2389 = vst [vmem:[#allocation5 + $0x1a0] sm:$0xff] %v2319
      %2390 = vst [vmem:[#allocation5 + $0x1a8] sm:$0xff] %v2320
      %2391 = vst.msk [vmem:[#allocation5 + $0x1b0] sm:$0xff] %vm307, %v2321
      %2392 = vst [vmem:[#allocation5 + $0x1b8] sm:$0x3f] %v2322
      %2393 = vst [vmem:[#allocation5 + $0x1c0] sm:$0x3f] %v2323
      %2394 = vst [vmem:[#allocation5 + $0x1c8] sm:$0x3f] %v2324
      %2395 = vst [vmem:[#allocation5 + $0x1d0] sm:$0x3f] %v2325
      %2396 = vst.msk [vmem:[#allocation5 + $0x1d8] sm:$0x3f] %vm2205, %v2326
      %2397 = vst [vmem:[#allocation5 + $0x1e0] sm:$0xff] %v2327
      %2398 = vst [vmem:[#allocation5 + $0x1e8] sm:$0xff] %v2328
      %2399 = vst [vmem:[#allocation5 + $0x1f0] sm:$0xff] %v2329
      %2400 = vst [vmem:[#allocation5 + $0x1f8] sm:$0xff] %v2330
      %2401 = vst.msk [vmem:[#allocation5 + $0x200] sm:$0xff] %vm307, %v2331
      %2402 = vst [vmem:[#allocation5 + $0x208] sm:$0x3f] %v2332
      %2403 = vst [vmem:[#allocation5 + $0x210] sm:$0x3f] %v2333
      %2404 = vst [vmem:[#allocation5 + $0x218] sm:$0x3f] %v2334
      %2405 = vst [vmem:[#allocation5 + $0x220] sm:$0x3f] %v2335
      %2406 = vst.msk [vmem:[#allocation5 + $0x228] sm:$0x3f] %vm2205, %v2336
      %v2407 = vld [vmem:[#allocation2] sm:$0xfe]
      %v2408 = vld [vmem:[#allocation2 + $0x8] sm:$0xfe]
      %v2409 = vld [vmem:[#allocation2 + $0x10] sm:$0xfe]
      %v2410 = vld [vmem:[#allocation2 + $0x18] sm:$0xfe]
      %v2411 = vld [vmem:[#allocation2 + $0x20] sm:$0xfe]
      %v2412 = vld [vmem:[#allocation2 + $0x28] sm:$0x7f]
      %v2413 = vld [vmem:[#allocation2 + $0x30] sm:$0x7f]
      %v2414 = vld [vmem:[#allocation2 + $0x38] sm:$0x7f]
      %v2415 = vld [vmem:[#allocation2 + $0x40] sm:$0x7f]
      %v2416 = vld [vmem:[#allocation2 + $0x48] sm:$0x7f]
      %v2417 = vld [vmem:[#allocation2 + $0x50] sm:$0xfe]
      %v2418 = vld [vmem:[#allocation2 + $0x58] sm:$0xfe]
      %v2419 = vld [vmem:[#allocation2 + $0x60] sm:$0xfe]
      %v2420 = vld [vmem:[#allocation2 + $0x68] sm:$0xfe]
      %v2421 = vld [vmem:[#allocation2 + $0x70] sm:$0xfe]
      %v2422 = vld [vmem:[#allocation2 + $0x78] sm:$0x7f]
      %v2423 = vld [vmem:[#allocation2 + $0x80] sm:$0x7f]
      %v2424 = vld [vmem:[#allocation2 + $0x88] sm:$0x7f]
      %v2425 = vld [vmem:[#allocation2 + $0x90] sm:$0x7f]
      %v2426 = vld [vmem:[#allocation2 + $0x98] sm:$0x7f]
      %v2427 = vld [vmem:[#allocation2 + $0xa0] sm:$0xfe]
      %v2428 = vld [vmem:[#allocation2 + $0xa8] sm:$0xfe]
      %v2429 = vld [vmem:[#allocation2 + $0xb0] sm:$0xfe]
      %v2430 = vld [vmem:[#allocation2 + $0xb8] sm:$0xfe]
      %v2431 = vld [vmem:[#allocation2 + $0xc0] sm:$0xfe]
      %v2432 = vld [vmem:[#allocation2 + $0xc8] sm:$0x7f]
      %v2433 = vld [vmem:[#allocation2 + $0xd0] sm:$0x7f]
      %v2434 = vld [vmem:[#allocation2 + $0xd8] sm:$0x7f]
      %v2435 = vld [vmem:[#allocation2 + $0xe0] sm:$0x7f]
      %v2436 = vld [vmem:[#allocation2 + $0xe8] sm:$0x7f]
      %v2437 = vld [vmem:[#allocation2 + $0xf0] sm:$0xfe]
      %v2438 = vld [vmem:[#allocation2 + $0xf8] sm:$0xfe]
      %v2439 = vld [vmem:[#allocation2 + $0x100] sm:$0xfe]
      %v2440 = vld [vmem:[#allocation2 + $0x108] sm:$0xfe]
      %v2441 = vld [vmem:[#allocation2 + $0x110] sm:$0xfe]
      %v2442 = vld [vmem:[#allocation2 + $0x118] sm:$0x7f]
      %v2443 = vld [vmem:[#allocation2 + $0x120] sm:$0x7f]
      %v2444 = vld [vmem:[#allocation2 + $0x128] sm:$0x7f]
      %v2445 = vld [vmem:[#allocation2 + $0x130] sm:$0x7f]
      %v2446 = vld [vmem:[#allocation2 + $0x138] sm:$0x7f]
      %v2447 = vld [vmem:[#allocation2 + $0x140] sm:$0xfe]
      %v2448 = vld [vmem:[#allocation2 + $0x148] sm:$0xfe]
      %v2449 = vld [vmem:[#allocation2 + $0x150] sm:$0xfe]
      %v2450 = vld [vmem:[#allocation2 + $0x158] sm:$0xfe]
      %v2451 = vld [vmem:[#allocation2 + $0x160] sm:$0xfe]
      %v2452 = vld [vmem:[#allocation2 + $0x168] sm:$0x7f]
      %v2453 = vld [vmem:[#allocation2 + $0x170] sm:$0x7f]
      %v2454 = vld [vmem:[#allocation2 + $0x178] sm:$0x7f]
      %v2455 = vld [vmem:[#allocation2 + $0x180] sm:$0x7f]
      %v2456 = vld [vmem:[#allocation2 + $0x188] sm:$0x7f]
      %v2457 = vld [vmem:[#allocation2 + $0x190] sm:$0xfe]
      %v2458 = vld [vmem:[#allocation2 + $0x198] sm:$0xfe]
      %v2459 = vld [vmem:[#allocation2 + $0x1a0] sm:$0xfe]
      %v2460 = vld [vmem:[#allocation2 + $0x1a8] sm:$0xfe]
      %v2461 = vld [vmem:[#allocation2 + $0x1b0] sm:$0xfe]
      %v2462 = vld [vmem:[#allocation2 + $0x1b8] sm:$0x7f]
      %v2463 = vld [vmem:[#allocation2 + $0x1c0] sm:$0x7f]
      %v2464 = vld [vmem:[#allocation2 + $0x1c8] sm:$0x7f]
      %v2465 = vld [vmem:[#allocation2 + $0x1d0] sm:$0x7f]
      %v2466 = vld [vmem:[#allocation2 + $0x1d8] sm:$0x7f]
      %v2467 = vld [vmem:[#allocation2 + $0x1e0] sm:$0xfe]
      %v2468 = vld [vmem:[#allocation2 + $0x1e8] sm:$0xfe]
      %v2469 = vld [vmem:[#allocation2 + $0x1f0] sm:$0xfe]
      %v2470 = vld [vmem:[#allocation2 + $0x1f8] sm:$0xfe]
      %v2471 = vld [vmem:[#allocation2 + $0x200] sm:$0xfe]
      %v2472 = vld [vmem:[#allocation2 + $0x208] sm:$0x7f]
      %v2473 = vld [vmem:[#allocation2 + $0x210] sm:$0x7f]
      %v2474 = vld [vmem:[#allocation2 + $0x218] sm:$0x7f]
      %v2475 = vld [vmem:[#allocation2 + $0x220] sm:$0x7f]
      %v2476 = vld [vmem:[#allocation2 + $0x228] sm:$0x7f]
      %v2477 = vld [vmem:[#allocation3] sm:$0xfe]
      %v2478 = vld [vmem:[#allocation3 + $0x8] sm:$0xfe]
      %v2479 = vld [vmem:[#allocation3 + $0x10] sm:$0xfe]
      %v2480 = vld [vmem:[#allocation3 + $0x18] sm:$0xfe]
      %v2481 = vld [vmem:[#allocation3 + $0x20] sm:$0xfe]
      %v2482 = vld [vmem:[#allocation3 + $0x28] sm:$0x7f]
      %v2483 = vld [vmem:[#allocation3 + $0x30] sm:$0x7f]
      %v2484 = vld [vmem:[#allocation3 + $0x38] sm:$0x7f]
      %v2485 = vld [vmem:[#allocation3 + $0x40] sm:$0x7f]
      %v2486 = vld [vmem:[#allocation3 + $0x48] sm:$0x7f]
      %v2487 = vld [vmem:[#allocation3 + $0x50] sm:$0xfe]
      %v2488 = vld [vmem:[#allocation3 + $0x58] sm:$0xfe]
      %v2489 = vld [vmem:[#allocation3 + $0x60] sm:$0xfe]
      %v2490 = vld [vmem:[#allocation3 + $0x68] sm:$0xfe]
      %v2491 = vld [vmem:[#allocation3 + $0x70] sm:$0xfe]
      %v2492 = vld [vmem:[#allocation3 + $0x78] sm:$0x7f]
      %v2493 = vld [vmem:[#allocation3 + $0x80] sm:$0x7f]
      %v2494 = vld [vmem:[#allocation3 + $0x88] sm:$0x7f]
      %v2495 = vld [vmem:[#allocation3 + $0x90] sm:$0x7f]
      %v2496 = vld [vmem:[#allocation3 + $0x98] sm:$0x7f]
      %v2497 = vld [vmem:[#allocation3 + $0xa0] sm:$0xfe]
      %v2498 = vld [vmem:[#allocation3 + $0xa8] sm:$0xfe]
      %v2499 = vld [vmem:[#allocation3 + $0xb0] sm:$0xfe]
      %v2500 = vld [vmem:[#allocation3 + $0xb8] sm:$0xfe]
      %v2501 = vld [vmem:[#allocation3 + $0xc0] sm:$0xfe]
      %v2502 = vld [vmem:[#allocation3 + $0xc8] sm:$0x7f]
      %v2503 = vld [vmem:[#allocation3 + $0xd0] sm:$0x7f]
      %v2504 = vld [vmem:[#allocation3 + $0xd8] sm:$0x7f]
      %v2505 = vld [vmem:[#allocation3 + $0xe0] sm:$0x7f]
      %v2506 = vld [vmem:[#allocation3 + $0xe8] sm:$0x7f]
      %v2507 = vld [vmem:[#allocation3 + $0xf0] sm:$0xfe]
      %v2508 = vld [vmem:[#allocation3 + $0xf8] sm:$0xfe]
      %v2509 = vld [vmem:[#allocation3 + $0x100] sm:$0xfe]
      %v2510 = vld [vmem:[#allocation3 + $0x108] sm:$0xfe]
      %v2511 = vld [vmem:[#allocation3 + $0x110] sm:$0xfe]
      %v2512 = vld [vmem:[#allocation3 + $0x118] sm:$0x7f]
      %v2513 = vld [vmem:[#allocation3 + $0x120] sm:$0x7f]
      %v2514 = vld [vmem:[#allocation3 + $0x128] sm:$0x7f]
      %v2515 = vld [vmem:[#allocation3 + $0x130] sm:$0x7f]
      %v2516 = vld [vmem:[#allocation3 + $0x138] sm:$0x7f]
      %v2517 = vld [vmem:[#allocation3 + $0x140] sm:$0xfe]
      %v2518 = vld [vmem:[#allocation3 + $0x148] sm:$0xfe]
      %v2519 = vld [vmem:[#allocation3 + $0x150] sm:$0xfe]
      %v2520 = vld [vmem:[#allocation3 + $0x158] sm:$0xfe]
      %v2521 = vld [vmem:[#allocation3 + $0x160] sm:$0xfe]
      %v2522 = vld [vmem:[#allocation3 + $0x168] sm:$0x7f]
      %v2523 = vld [vmem:[#allocation3 + $0x170] sm:$0x7f]
      %v2524 = vld [vmem:[#allocation3 + $0x178] sm:$0x7f]
      %v2525 = vld [vmem:[#allocation3 + $0x180] sm:$0x7f]
      %v2526 = vld [vmem:[#allocation3 + $0x188] sm:$0x7f]
      %v2527 = vld [vmem:[#allocation3 + $0x190] sm:$0xfe]
      %v2528 = vld [vmem:[#allocation3 + $0x198] sm:$0xfe]
      %v2529 = vld [vmem:[#allocation3 + $0x1a0] sm:$0xfe]
      %v2530 = vld [vmem:[#allocation3 + $0x1a8] sm:$0xfe]
      %v2531 = vld [vmem:[#allocation3 + $0x1b0] sm:$0xfe]
      %v2532 = vld [vmem:[#allocation3 + $0x1b8] sm:$0x7f]
      %v2533 = vld [vmem:[#allocation3 + $0x1c0] sm:$0x7f]
      %v2534 = vld [vmem:[#allocation3 + $0x1c8] sm:$0x7f]
      %v2535 = vld [vmem:[#allocation3 + $0x1d0] sm:$0x7f]
      %v2536 = vld [vmem:[#allocation3 + $0x1d8] sm:$0x7f]
      %v2537 = vld [vmem:[#allocation3 + $0x1e0] sm:$0xfe]
      %v2538 = vld [vmem:[#allocation3 + $0x1e8] sm:$0xfe]
      %v2539 = vld [vmem:[#allocation3 + $0x1f0] sm:$0xfe]
      %v2540 = vld [vmem:[#allocation3 + $0x1f8] sm:$0xfe]
      %v2541 = vld [vmem:[#allocation3 + $0x200] sm:$0xfe]
      %v2542 = vld [vmem:[#allocation3 + $0x208] sm:$0x7f]
      %v2543 = vld [vmem:[#allocation3 + $0x210] sm:$0x7f]
      %v2544 = vld [vmem:[#allocation3 + $0x218] sm:$0x7f]
      %v2545 = vld [vmem:[#allocation3 + $0x220] sm:$0x7f]
      %v2546 = vld [vmem:[#allocation3 + $0x228] sm:$0x7f]
      %v2547 = vld [vmem:[#allocation4] sm:$0xff]
      %v2548 = vld [vmem:[#allocation4 + $0x8] sm:$0xff]
      %v2549 = vld [vmem:[#allocation4 + $0x10] sm:$0xff]
      %v2550 = vld [vmem:[#allocation4 + $0x18] sm:$0xff]
      %v2551 = vld [vmem:[#allocation4 + $0x20] sm:$0xff]
      %v2552 = vld [vmem:[#allocation4 + $0x28] sm:$0x3f]
      %v2553 = vld [vmem:[#allocation4 + $0x30] sm:$0x3f]
      %v2554 = vld [vmem:[#allocation4 + $0x38] sm:$0x3f]
      %v2555 = vld [vmem:[#allocation4 + $0x40] sm:$0x3f]
      %v2556 = vld [vmem:[#allocation4 + $0x48] sm:$0x3f]
      %v2557 = vld [vmem:[#allocation4 + $0x50] sm:$0xff]
      %v2558 = vld [vmem:[#allocation4 + $0x58] sm:$0xff]
      %v2559 = vld [vmem:[#allocation4 + $0x60] sm:$0xff]
      %v2560 = vld [vmem:[#allocation4 + $0x68] sm:$0xff]
      %v2561 = vld [vmem:[#allocation4 + $0x70] sm:$0xff]
      %v2562 = vld [vmem:[#allocation4 + $0x78] sm:$0x3f]
      %v2563 = vld [vmem:[#allocation4 + $0x80] sm:$0x3f]
      %v2564 = vld [vmem:[#allocation4 + $0x88] sm:$0x3f]
      %v2565 = vld [vmem:[#allocation4 + $0x90] sm:$0x3f]
      %v2566 = vld [vmem:[#allocation4 + $0x98] sm:$0x3f]
      %v2567 = vld [vmem:[#allocation4 + $0xa0] sm:$0xff]
      %v2568 = vld [vmem:[#allocation4 + $0xa8] sm:$0xff]
      %v2569 = vld [vmem:[#allocation4 + $0xb0] sm:$0xff]
      %v2570 = vld [vmem:[#allocation4 + $0xb8] sm:$0xff]
      %v2571 = vld [vmem:[#allocation4 + $0xc0] sm:$0xff]
      %v2572 = vld [vmem:[#allocation4 + $0xc8] sm:$0x3f]
      %v2573 = vld [vmem:[#allocation4 + $0xd0] sm:$0x3f]
      %v2574 = vld [vmem:[#allocation4 + $0xd8] sm:$0x3f]
      %v2575 = vld [vmem:[#allocation4 + $0xe0] sm:$0x3f]
      %v2576 = vld [vmem:[#allocation4 + $0xe8] sm:$0x3f]
      %v2577 = vld [vmem:[#allocation4 + $0xf0] sm:$0xff]
      %v2578 = vld [vmem:[#allocation4 + $0xf8] sm:$0xff]
      %v2579 = vld [vmem:[#allocation4 + $0x100] sm:$0xff]
      %v2580 = vld [vmem:[#allocation4 + $0x108] sm:$0xff]
      %v2581 = vld [vmem:[#allocation4 + $0x110] sm:$0xff]
      %v2582 = vld [vmem:[#allocation4 + $0x118] sm:$0x3f]
      %v2583 = vld [vmem:[#allocation4 + $0x120] sm:$0x3f]
      %v2584 = vld [vmem:[#allocation4 + $0x128] sm:$0x3f]
      %v2585 = vld [vmem:[#allocation4 + $0x130] sm:$0x3f]
      %v2586 = vld [vmem:[#allocation4 + $0x138] sm:$0x3f]
      %v2587 = vld [vmem:[#allocation4 + $0x140] sm:$0xff]
      %v2588 = vld [vmem:[#allocation4 + $0x148] sm:$0xff]
      %v2589 = vld [vmem:[#allocation4 + $0x150] sm:$0xff]
      %v2590 = vld [vmem:[#allocation4 + $0x158] sm:$0xff]
      %v2591 = vld [vmem:[#allocation4 + $0x160] sm:$0xff]
      %v2592 = vld [vmem:[#allocation4 + $0x168] sm:$0x3f]
      %v2593 = vld [vmem:[#allocation4 + $0x170] sm:$0x3f]
      %v2594 = vld [vmem:[#allocation4 + $0x178] sm:$0x3f]
      %v2595 = vld [vmem:[#allocation4 + $0x180] sm:$0x3f]
      %v2596 = vld [vmem:[#allocation4 + $0x188] sm:$0x3f]
      %v2597 = vld [vmem:[#allocation4 + $0x190] sm:$0xff]
      %v2598 = vld [vmem:[#allocation4 + $0x198] sm:$0xff]
      %v2599 = vld [vmem:[#allocation4 + $0x1a0] sm:$0xff]
      %v2600 = vld [vmem:[#allocation4 + $0x1a8] sm:$0xff]
      %v2601 = vld [vmem:[#allocation4 + $0x1b0] sm:$0xff]
      %v2602 = vld [vmem:[#allocation4 + $0x1b8] sm:$0x3f]
      %v2603 = vld [vmem:[#allocation4 + $0x1c0] sm:$0x3f]
      %v2604 = vld [vmem:[#allocation4 + $0x1c8] sm:$0x3f]
      %v2605 = vld [vmem:[#allocation4 + $0x1d0] sm:$0x3f]
      %v2606 = vld [vmem:[#allocation4 + $0x1d8] sm:$0x3f]
      %v2607 = vld [vmem:[#allocation4 + $0x1e0] sm:$0xff]
      %v2608 = vld [vmem:[#allocation4 + $0x1e8] sm:$0xff]
      %v2609 = vld [vmem:[#allocation4 + $0x1f0] sm:$0xff]
      %v2610 = vld [vmem:[#allocation4 + $0x1f8] sm:$0xff]
      %v2611 = vld [vmem:[#allocation4 + $0x200] sm:$0xff]
      %v2612 = vld [vmem:[#allocation4 + $0x208] sm:$0x3f]
      %v2613 = vld [vmem:[#allocation4 + $0x210] sm:$0x3f]
      %v2614 = vld [vmem:[#allocation4 + $0x218] sm:$0x3f]
      %v2615 = vld [vmem:[#allocation4 + $0x220] sm:$0x3f]
      %v2616 = vld [vmem:[#allocation4 + $0x228] sm:$0x3f]
      %v2617 = vmul.f32 %v2407, 0.45186275
      %v2618 = vmul.f32 %v2408, 0.45186275
      %v2619 = vmul.f32 %v2409, 0.45186275
      %v2620 = vmul.f32 %v2410, 0.45186275
      %v2621 = vmul.f32 %v2411, 0.45186275
      %v2622 = vmul.f32 %v2412, 0.45186275
      %v2623 = vmul.f32 %v2413, 0.45186275
      %v2624 = vmul.f32 %v2414, 0.45186275
      %v2625 = vmul.f32 %v2415, 0.45186275
      %v2626 = vmul.f32 %v2416, 0.45186275
      %v2627 = vmul.f32 %v2417, 0.45186275
      %v2628 = vmul.f32 %v2418, 0.45186275
      %v2629 = vmul.f32 %v2419, 0.45186275
      %v2630 = vmul.f32 %v2420, 0.45186275
      %v2631 = vmul.f32 %v2421, 0.45186275
      %v2632 = vmul.f32 %v2422, 0.45186275
      %v2633 = vmul.f32 %v2423, 0.45186275
      %v2634 = vmul.f32 %v2424, 0.45186275
      %v2635 = vmul.f32 %v2425, 0.45186275
      %v2636 = vmul.f32 %v2426, 0.45186275
      %v2637 = vmul.f32 %v2427, 0.45186275
      %v2638 = vmul.f32 %v2428, 0.45186275
      %v2639 = vmul.f32 %v2429, 0.45186275
      %v2640 = vmul.f32 %v2430, 0.45186275
      %v2641 = vmul.f32 %v2431, 0.45186275
      %v2642 = vmul.f32 %v2432, 0.45186275
      %v2643 = vmul.f32 %v2433, 0.45186275
      %v2644 = vmul.f32 %v2434, 0.45186275
      %v2645 = vmul.f32 %v2435, 0.45186275
      %v2646 = vmul.f32 %v2436, 0.45186275
      %v2647 = vmul.f32 %v2437, 0.45186275
      %v2648 = vmul.f32 %v2438, 0.45186275
      %v2649 = vmul.f32 %v2439, 0.45186275
      %v2650 = vmul.f32 %v2440, 0.45186275
      %v2651 = vmul.f32 %v2441, 0.45186275
      %v2652 = vmul.f32 %v2442, 0.45186275
      %v2653 = vmul.f32 %v2443, 0.45186275
      %v2654 = vmul.f32 %v2444, 0.45186275
      %v2655 = vmul.f32 %v2445, 0.45186275
      %v2656 = vmul.f32 %v2446, 0.45186275
      %v2657 = vmul.f32 %v2447, 0.45186275
      %v2658 = vmul.f32 %v2448, 0.45186275
      %v2659 = vmul.f32 %v2449, 0.45186275
      %v2660 = vmul.f32 %v2450, 0.45186275
      %v2661 = vmul.f32 %v2451, 0.45186275
      %v2662 = vmul.f32 %v2452, 0.45186275
      %v2663 = vmul.f32 %v2453, 0.45186275
      %v2664 = vmul.f32 %v2454, 0.45186275
      %v2665 = vmul.f32 %v2455, 0.45186275
      %v2666 = vmul.f32 %v2456, 0.45186275
      %v2667 = vmul.f32 %v2457, 0.45186275
      %v2668 = vmul.f32 %v2458, 0.45186275
      %v2669 = vmul.f32 %v2459, 0.45186275
      %v2670 = vmul.f32 %v2460, 0.45186275
      %v2671 = vmul.f32 %v2461, 0.45186275
      %v2672 = vmul.f32 %v2462, 0.45186275
      %v2673 = vmul.f32 %v2463, 0.45186275
      %v2674 = vmul.f32 %v2464, 0.45186275
      %v2675 = vmul.f32 %v2465, 0.45186275
      %v2676 = vmul.f32 %v2466, 0.45186275
      %v2677 = vmul.f32 %v2467, 0.45186275
      %v2678 = vmul.f32 %v2468, 0.45186275
      %v2679 = vmul.f32 %v2469, 0.45186275
      %v2680 = vmul.f32 %v2470, 0.45186275
      %v2681 = vmul.f32 %v2471, 0.45186275
      %v2682 = vmul.f32 %v2472, 0.45186275
      %v2683 = vmul.f32 %v2473, 0.45186275
      %v2684 = vmul.f32 %v2474, 0.45186275
      %v2685 = vmul.f32 %v2475, 0.45186275
      %v2686 = vmul.f32 %v2476, 0.45186275
      %vm2757 = vcmask 1046528
      %v2758 = vrot.slane %v2617, 1
      %v2759 = vrot.slane %v2622, 1
      %v2760 = vsel %vm2757, %v2758, %v2759
      %v2761 = vrot.slane %v2618, 1
      %v2762 = vrot.slane %v2623, 1
      %v2763 = vsel %vm2757, %v2761, %v2762
      %v2764 = vrot.slane %v2619, 1
      %v2765 = vrot.slane %v2624, 1
      %v2766 = vsel %vm2757, %v2764, %v2765
      %v2767 = vrot.slane %v2620, 1
      %v2768 = vrot.slane %v2625, 1
      %v2769 = vsel %vm2757, %v2767, %v2768
      %v2770 = vrot.slane %v2621, 1
      %v2771 = vrot.slane %v2626, 1
      %v2772 = vsel %vm2757, %v2770, %v2771
      %v2773 = vrot.slane %v2627, 1
      %v2774 = vrot.slane %v2632, 1
      %v2775 = vsel %vm2757, %v2773, %v2774
      %v2776 = vrot.slane %v2628, 1
      %v2777 = vrot.slane %v2633, 1
      %v2778 = vsel %vm2757, %v2776, %v2777
      %v2779 = vrot.slane %v2629, 1
      %v2780 = vrot.slane %v2634, 1
      %v2781 = vsel %vm2757, %v2779, %v2780
      %v2782 = vrot.slane %v2630, 1
      %v2783 = vrot.slane %v2635, 1
      %v2784 = vsel %vm2757, %v2782, %v2783
      %v2785 = vrot.slane %v2631, 1
      %v2786 = vrot.slane %v2636, 1
      %v2787 = vsel %vm2757, %v2785, %v2786
      %v2788 = vrot.slane %v2637, 1
      %v2789 = vrot.slane %v2642, 1
      %v2790 = vsel %vm2757, %v2788, %v2789
      %v2791 = vrot.slane %v2638, 1
      %v2792 = vrot.slane %v2643, 1
      %v2793 = vsel %vm2757, %v2791, %v2792
      %v2794 = vrot.slane %v2639, 1
      %v2795 = vrot.slane %v2644, 1
      %v2796 = vsel %vm2757, %v2794, %v2795
      %v2797 = vrot.slane %v2640, 1
      %v2798 = vrot.slane %v2645, 1
      %v2799 = vsel %vm2757, %v2797, %v2798
      %v2800 = vrot.slane %v2641, 1
      %v2801 = vrot.slane %v2646, 1
      %v2802 = vsel %vm2757, %v2800, %v2801
      %v2803 = vrot.slane %v2647, 1
      %v2804 = vrot.slane %v2652, 1
      %v2805 = vsel %vm2757, %v2803, %v2804
      %v2806 = vrot.slane %v2648, 1
      %v2807 = vrot.slane %v2653, 1
      %v2808 = vsel %vm2757, %v2806, %v2807
      %v2809 = vrot.slane %v2649, 1
      %v2810 = vrot.slane %v2654, 1
      %v2811 = vsel %vm2757, %v2809, %v2810
      %v2812 = vrot.slane %v2650, 1
      %v2813 = vrot.slane %v2655, 1
      %v2814 = vsel %vm2757, %v2812, %v2813
      %v2815 = vrot.slane %v2651, 1
      %v2816 = vrot.slane %v2656, 1
      %v2817 = vsel %vm2757, %v2815, %v2816
      %v2818 = vrot.slane %v2657, 1
      %v2819 = vrot.slane %v2662, 1
      %v2820 = vsel %vm2757, %v2818, %v2819
      %v2821 = vrot.slane %v2658, 1
      %v2822 = vrot.slane %v2663, 1
      %v2823 = vsel %vm2757, %v2821, %v2822
      %v2824 = vrot.slane %v2659, 1
      %v2825 = vrot.slane %v2664, 1
      %v2826 = vsel %vm2757, %v2824, %v2825
      %v2827 = vrot.slane %v2660, 1
      %v2828 = vrot.slane %v2665, 1
      %v2829 = vsel %vm2757, %v2827, %v2828
      %v2830 = vrot.slane %v2661, 1
      %v2831 = vrot.slane %v2666, 1
      %v2832 = vsel %vm2757, %v2830, %v2831
      %v2833 = vrot.slane %v2667, 1
      %v2834 = vrot.slane %v2672, 1
      %v2835 = vsel %vm2757, %v2833, %v2834
      %v2836 = vrot.slane %v2668, 1
      %v2837 = vrot.slane %v2673, 1
      %v2838 = vsel %vm2757, %v2836, %v2837
      %v2839 = vrot.slane %v2669, 1
      %v2840 = vrot.slane %v2674, 1
      %v2841 = vsel %vm2757, %v2839, %v2840
      %v2842 = vrot.slane %v2670, 1
      %v2843 = vrot.slane %v2675, 1
      %v2844 = vsel %vm2757, %v2842, %v2843
      %v2845 = vrot.slane %v2671, 1
      %v2846 = vrot.slane %v2676, 1
      %v2847 = vsel %vm2757, %v2845, %v2846
      %v2848 = vrot.slane %v2677, 1
      %v2849 = vrot.slane %v2682, 1
      %v2850 = vsel %vm2757, %v2848, %v2849
      %v2851 = vrot.slane %v2678, 1
      %v2852 = vrot.slane %v2683, 1
      %v2853 = vsel %vm2757, %v2851, %v2852
      %v2854 = vrot.slane %v2679, 1
      %v2855 = vrot.slane %v2684, 1
      %v2856 = vsel %vm2757, %v2854, %v2855
      %v2857 = vrot.slane %v2680, 1
      %v2858 = vrot.slane %v2685, 1
      %v2859 = vsel %vm2757, %v2857, %v2858
      %v2860 = vrot.slane %v2681, 1
      %v2861 = vrot.slane %v2686, 1
      %v2862 = vsel %vm2757, %v2860, %v2861
      %v2933 = vadd.f32 %v2547, %v2760
      %v2934 = vadd.f32 %v2548, %v2763
      %v2935 = vadd.f32 %v2549, %v2766
      %v2936 = vadd.f32 %v2550, %v2769
      %v2937 = vadd.f32 %v2551, %v2772
      %v2938 = vadd.f32 %v2552, %v2759
      %v2939 = vadd.f32 %v2553, %v2762
      %v2940 = vadd.f32 %v2554, %v2765
      %v2941 = vadd.f32 %v2555, %v2768
      %v2942 = vadd.f32 %v2556, %v2771
      %v2943 = vadd.f32 %v2557, %v2775
      %v2944 = vadd.f32 %v2558, %v2778
      %v2945 = vadd.f32 %v2559, %v2781
      %v2946 = vadd.f32 %v2560, %v2784
      %v2947 = vadd.f32 %v2561, %v2787
      %v2948 = vadd.f32 %v2562, %v2774
      %v2949 = vadd.f32 %v2563, %v2777
      %v2950 = vadd.f32 %v2564, %v2780
      %v2951 = vadd.f32 %v2565, %v2783
      %v2952 = vadd.f32 %v2566, %v2786
      %v2953 = vadd.f32 %v2567, %v2790
      %v2954 = vadd.f32 %v2568, %v2793
      %v2955 = vadd.f32 %v2569, %v2796
      %v2956 = vadd.f32 %v2570, %v2799
      %v2957 = vadd.f32 %v2571, %v2802
      %v2958 = vadd.f32 %v2572, %v2789
      %v2959 = vadd.f32 %v2573, %v2792
      %v2960 = vadd.f32 %v2574, %v2795
      %v2961 = vadd.f32 %v2575, %v2798
      %v2962 = vadd.f32 %v2576, %v2801
      %v2963 = vadd.f32 %v2577, %v2805
      %v2964 = vadd.f32 %v2578, %v2808
      %v2965 = vadd.f32 %v2579, %v2811
      %v2966 = vadd.f32 %v2580, %v2814
      %v2967 = vadd.f32 %v2581, %v2817
      %v2968 = vadd.f32 %v2582, %v2804
      %v2969 = vadd.f32 %v2583, %v2807
      %v2970 = vadd.f32 %v2584, %v2810
      %v2971 = vadd.f32 %v2585, %v2813
      %v2972 = vadd.f32 %v2586, %v2816
      %v2973 = vadd.f32 %v2587, %v2820
      %v2974 = vadd.f32 %v2588, %v2823
      %v2975 = vadd.f32 %v2589, %v2826
      %v2976 = vadd.f32 %v2590, %v2829
      %v2977 = vadd.f32 %v2591, %v2832
      %v2978 = vadd.f32 %v2592, %v2819
      %v2979 = vadd.f32 %v2593, %v2822
      %v2980 = vadd.f32 %v2594, %v2825
      %v2981 = vadd.f32 %v2595, %v2828
      %v2982 = vadd.f32 %v2596, %v2831
      %v2983 = vadd.f32 %v2597, %v2835
      %v2984 = vadd.f32 %v2598, %v2838
      %v2985 = vadd.f32 %v2599, %v2841
      %v2986 = vadd.f32 %v2600, %v2844
      %v2987 = vadd.f32 %v2601, %v2847
      %v2988 = vadd.f32 %v2602, %v2834
      %v2989 = vadd.f32 %v2603, %v2837
      %v2990 = vadd.f32 %v2604, %v2840
      %v2991 = vadd.f32 %v2605, %v2843
      %v2992 = vadd.f32 %v2606, %v2846
      %v2993 = vadd.f32 %v2607, %v2850
      %v2994 = vadd.f32 %v2608, %v2853
      %v2995 = vadd.f32 %v2609, %v2856
      %v2996 = vadd.f32 %v2610, %v2859
      %v2997 = vadd.f32 %v2611, %v2862
      %v2998 = vadd.f32 %v2612, %v2849
      %v2999 = vadd.f32 %v2613, %v2852
      %v3000 = vadd.f32 %v2614, %v2855
      %v3001 = vadd.f32 %v2615, %v2858
      %v3002 = vadd.f32 %v2616, %v2861
      %3003 = vst [vmem:[#allocation4] sm:$0xff] %v2933
      %3004 = vst [vmem:[#allocation4 + $0x8] sm:$0xff] %v2934
      %3005 = vst [vmem:[#allocation4 + $0x10] sm:$0xff] %v2935
      %3006 = vst [vmem:[#allocation4 + $0x18] sm:$0xff] %v2936
      %3007 = vst.msk [vmem:[#allocation4 + $0x20] sm:$0xff] %vm307, %v2937
      %3008 = vst [vmem:[#allocation4 + $0x28] sm:$0x3f] %v2938
      %3009 = vst [vmem:[#allocation4 + $0x30] sm:$0x3f] %v2939
      %3010 = vst [vmem:[#allocation4 + $0x38] sm:$0x3f] %v2940
      %3011 = vst [vmem:[#allocation4 + $0x40] sm:$0x3f] %v2941
      %3012 = vst.msk [vmem:[#allocation4 + $0x48] sm:$0x3f] %vm2205, %v2942
      %3013 = vst [vmem:[#allocation4 + $0x50] sm:$0xff] %v2943
      %3014 = vst [vmem:[#allocation4 + $0x58] sm:$0xff] %v2944
      %3015 = vst [vmem:[#allocation4 + $0x60] sm:$0xff] %v2945
      %3016 = vst [vmem:[#allocation4 + $0x68] sm:$0xff] %v2946
      %3017 = vst.msk [vmem:[#allocation4 + $0x70] sm:$0xff] %vm307, %v2947
      %3018 = vst [vmem:[#allocation4 + $0x78] sm:$0x3f] %v2948
      %3019 = vst [vmem:[#allocation4 + $0x80] sm:$0x3f] %v2949
      %3020 = vst [vmem:[#allocation4 + $0x88] sm:$0x3f] %v2950
      %3021 = vst [vmem:[#allocation4 + $0x90] sm:$0x3f] %v2951
      %3022 = vst.msk [vmem:[#allocation4 + $0x98] sm:$0x3f] %vm2205, %v2952
      %3023 = vst [vmem:[#allocation4 + $0xa0] sm:$0xff] %v2953
      %3024 = vst [vmem:[#allocation4 + $0xa8] sm:$0xff] %v2954
      %3025 = vst [vmem:[#allocation4 + $0xb0] sm:$0xff] %v2955
      %3026 = vst [vmem:[#allocation4 + $0xb8] sm:$0xff] %v2956
      %3027 = vst.msk [vmem:[#allocation4 + $0xc0] sm:$0xff] %vm307, %v2957
      %3028 = vst [vmem:[#allocation4 + $0xc8] sm:$0x3f] %v2958
      %3029 = vst [vmem:[#allocation4 + $0xd0] sm:$0x3f] %v2959
      %3030 = vst [vmem:[#allocation4 + $0xd8] sm:$0x3f] %v2960
      %3031 = vst [vmem:[#allocation4 + $0xe0] sm:$0x3f] %v2961
      %3032 = vst.msk [vmem:[#allocation4 + $0xe8] sm:$0x3f] %vm2205, %v2962
      %3033 = vst [vmem:[#allocation4 + $0xf0] sm:$0xff] %v2963
      %3034 = vst [vmem:[#allocation4 + $0xf8] sm:$0xff] %v2964
      %3035 = vst [vmem:[#allocation4 + $0x100] sm:$0xff] %v2965
      %3036 = vst [vmem:[#allocation4 + $0x108] sm:$0xff] %v2966
      %3037 = vst.msk [vmem:[#allocation4 + $0x110] sm:$0xff] %vm307, %v2967
      %3038 = vst [vmem:[#allocation4 + $0x118] sm:$0x3f] %v2968
      %3039 = vst [vmem:[#allocation4 + $0x120] sm:$0x3f] %v2969
      %3040 = vst [vmem:[#allocation4 + $0x128] sm:$0x3f] %v2970
      %3041 = vst [vmem:[#allocation4 + $0x130] sm:$0x3f] %v2971
      %3042 = vst.msk [vmem:[#allocation4 + $0x138] sm:$0x3f] %vm2205, %v2972
      %3043 = vst [vmem:[#allocation4 + $0x140] sm:$0xff] %v2973
      %3044 = vst [vmem:[#allocation4 + $0x148] sm:$0xff] %v2974
      %3045 = vst [vmem:[#allocation4 + $0x150] sm:$0xff] %v2975
      %3046 = vst [vmem:[#allocation4 + $0x158] sm:$0xff] %v2976
      %3047 = vst.msk [vmem:[#allocation4 + $0x160] sm:$0xff] %vm307, %v2977
      %3048 = vst [vmem:[#allocation4 + $0x168] sm:$0x3f] %v2978
      %3049 = vst [vmem:[#allocation4 + $0x170] sm:$0x3f] %v2979
      %3050 = vst [vmem:[#allocation4 + $0x178] sm:$0x3f] %v2980
      %3051 = vst [vmem:[#allocation4 + $0x180] sm:$0x3f] %v2981
      %3052 = vst.msk [vmem:[#allocation4 + $0x188] sm:$0x3f] %vm2205, %v2982
      %3053 = vst [vmem:[#allocation4 + $0x190] sm:$0xff] %v2983
      %3054 = vst [vmem:[#allocation4 + $0x198] sm:$0xff] %v2984
      %3055 = vst [vmem:[#allocation4 + $0x1a0] sm:$0xff] %v2985
      %3056 = vst [vmem:[#allocation4 + $0x1a8] sm:$0xff] %v2986
      %3057 = vst.msk [vmem:[#allocation4 + $0x1b0] sm:$0xff] %vm307, %v2987
      %3058 = vst [vmem:[#allocation4 + $0x1b8] sm:$0x3f] %v2988
      %3059 = vst [vmem:[#allocation4 + $0x1c0] sm:$0x3f] %v2989
      %3060 = vst [vmem:[#allocation4 + $0x1c8] sm:$0x3f] %v2990
      %3061 = vst [vmem:[#allocation4 + $0x1d0] sm:$0x3f] %v2991
      %3062 = vst.msk [vmem:[#allocation4 + $0x1d8] sm:$0x3f] %vm2205, %v2992
      %3063 = vst [vmem:[#allocation4 + $0x1e0] sm:$0xff] %v2993
      %3064 = vst [vmem:[#allocation4 + $0x1e8] sm:$0xff] %v2994
      %3065 = vst [vmem:[#allocation4 + $0x1f0] sm:$0xff] %v2995
      %3066 = vst [vmem:[#allocation4 + $0x1f8] sm:$0xff] %v2996
      %3067 = vst.msk [vmem:[#allocation4 + $0x200] sm:$0xff] %vm307, %v2997
      %3068 = vst [vmem:[#allocation4 + $0x208] sm:$0x3f] %v2998
      %3069 = vst [vmem:[#allocation4 + $0x210] sm:$0x3f] %v2999
      %3070 = vst [vmem:[#allocation4 + $0x218] sm:$0x3f] %v3000
      %3071 = vst [vmem:[#allocation4 + $0x220] sm:$0x3f] %v3001
      %3072 = vst.msk [vmem:[#allocation4 + $0x228] sm:$0x3f] %vm2205, %v3002
      %v3073 = vld [vmem:[#allocation5] sm:$0xff]
      %v3074 = vld [vmem:[#allocation5 + $0x8] sm:$0xff]
      %v3075 = vld [vmem:[#allocation5 + $0x10] sm:$0xff]
      %v3076 = vld [vmem:[#allocation5 + $0x18] sm:$0xff]
      %v3077 = vld [vmem:[#allocation5 + $0x20] sm:$0xff]
      %v3078 = vld [vmem:[#allocation5 + $0x28] sm:$0x3f]
      %v3079 = vld [vmem:[#allocation5 + $0x30] sm:$0x3f]
      %v3080 = vld [vmem:[#allocation5 + $0x38] sm:$0x3f]
      %v3081 = vld [vmem:[#allocation5 + $0x40] sm:$0x3f]
      %v3082 = vld [vmem:[#allocation5 + $0x48] sm:$0x3f]
      %v3083 = vld [vmem:[#allocation5 + $0x50] sm:$0xff]
      %v3084 = vld [vmem:[#allocation5 + $0x58] sm:$0xff]
      %v3085 = vld [vmem:[#allocation5 + $0x60] sm:$0xff]
      %v3086 = vld [vmem:[#allocation5 + $0x68] sm:$0xff]
      %v3087 = vld [vmem:[#allocation5 + $0x70] sm:$0xff]
      %v3088 = vld [vmem:[#allocation5 + $0x78] sm:$0x3f]
      %v3089 = vld [vmem:[#allocation5 + $0x80] sm:$0x3f]
      %v3090 = vld [vmem:[#allocation5 + $0x88] sm:$0x3f]
      %v3091 = vld [vmem:[#allocation5 + $0x90] sm:$0x3f]
      %v3092 = vld [vmem:[#allocation5 + $0x98] sm:$0x3f]
      %v3093 = vld [vmem:[#allocation5 + $0xa0] sm:$0xff]
      %v3094 = vld [vmem:[#allocation5 + $0xa8] sm:$0xff]
      %v3095 = vld [vmem:[#allocation5 + $0xb0] sm:$0xff]
      %v3096 = vld [vmem:[#allocation5 + $0xb8] sm:$0xff]
      %v3097 = vld [vmem:[#allocation5 + $0xc0] sm:$0xff]
      %v3098 = vld [vmem:[#allocation5 + $0xc8] sm:$0x3f]
      %v3099 = vld [vmem:[#allocation5 + $0xd0] sm:$0x3f]
      %v3100 = vld [vmem:[#allocation5 + $0xd8] sm:$0x3f]
      %v3101 = vld [vmem:[#allocation5 + $0xe0] sm:$0x3f]
      %v3102 = vld [vmem:[#allocation5 + $0xe8] sm:$0x3f]
      %v3103 = vld [vmem:[#allocation5 + $0xf0] sm:$0xff]
      %v3104 = vld [vmem:[#allocation5 + $0xf8] sm:$0xff]
      %v3105 = vld [vmem:[#allocation5 + $0x100] sm:$0xff]
      %v3106 = vld [vmem:[#allocation5 + $0x108] sm:$0xff]
      %v3107 = vld [vmem:[#allocation5 + $0x110] sm:$0xff]
      %v3108 = vld [vmem:[#allocation5 + $0x118] sm:$0x3f]
      %v3109 = vld [vmem:[#allocation5 + $0x120] sm:$0x3f]
      %v3110 = vld [vmem:[#allocation5 + $0x128] sm:$0x3f]
      %v3111 = vld [vmem:[#allocation5 + $0x130] sm:$0x3f]
      %v3112 = vld [vmem:[#allocation5 + $0x138] sm:$0x3f]
      %v3113 = vld [vmem:[#allocation5 + $0x140] sm:$0xff]
      %v3114 = vld [vmem:[#allocation5 + $0x148] sm:$0xff]
      %v3115 = vld [vmem:[#allocation5 + $0x150] sm:$0xff]
      %v3116 = vld [vmem:[#allocation5 + $0x158] sm:$0xff]
      %v3117 = vld [vmem:[#allocation5 + $0x160] sm:$0xff]
      %v3118 = vld [vmem:[#allocation5 + $0x168] sm:$0x3f]
      %v3119 = vld [vmem:[#allocation5 + $0x170] sm:$0x3f]
      %v3120 = vld [vmem:[#allocation5 + $0x178] sm:$0x3f]
      %v3121 = vld [vmem:[#allocation5 + $0x180] sm:$0x3f]
      %v3122 = vld [vmem:[#allocation5 + $0x188] sm:$0x3f]
      %v3123 = vld [vmem:[#allocation5 + $0x190] sm:$0xff]
      %v3124 = vld [vmem:[#allocation5 + $0x198] sm:$0xff]
      %v3125 = vld [vmem:[#allocation5 + $0x1a0] sm:$0xff]
      %v3126 = vld [vmem:[#allocation5 + $0x1a8] sm:$0xff]
      %v3127 = vld [vmem:[#allocation5 + $0x1b0] sm:$0xff]
      %v3128 = vld [vmem:[#allocation5 + $0x1b8] sm:$0x3f]
      %v3129 = vld [vmem:[#allocation5 + $0x1c0] sm:$0x3f]
      %v3130 = vld [vmem:[#allocation5 + $0x1c8] sm:$0x3f]
      %v3131 = vld [vmem:[#allocation5 + $0x1d0] sm:$0x3f]
      %v3132 = vld [vmem:[#allocation5 + $0x1d8] sm:$0x3f]
      %v3133 = vld [vmem:[#allocation5 + $0x1e0] sm:$0xff]
      %v3134 = vld [vmem:[#allocation5 + $0x1e8] sm:$0xff]
      %v3135 = vld [vmem:[#allocation5 + $0x1f0] sm:$0xff]
      %v3136 = vld [vmem:[#allocation5 + $0x1f8] sm:$0xff]
      %v3137 = vld [vmem:[#allocation5 + $0x200] sm:$0xff]
      %v3138 = vld [vmem:[#allocation5 + $0x208] sm:$0x3f]
      %v3139 = vld [vmem:[#allocation5 + $0x210] sm:$0x3f]
      %v3140 = vld [vmem:[#allocation5 + $0x218] sm:$0x3f]
      %v3141 = vld [vmem:[#allocation5 + $0x220] sm:$0x3f]
      %v3142 = vld [vmem:[#allocation5 + $0x228] sm:$0x3f]
      %v3143 = vmul.f32 %v2477, 0.45186275
      %v3144 = vmul.f32 %v2478, 0.45186275
      %v3145 = vmul.f32 %v2479, 0.45186275
      %v3146 = vmul.f32 %v2480, 0.45186275
      %v3147 = vmul.f32 %v2481, 0.45186275
      %v3148 = vmul.f32 %v2482, 0.45186275
      %v3149 = vmul.f32 %v2483, 0.45186275
      %v3150 = vmul.f32 %v2484, 0.45186275
      %v3151 = vmul.f32 %v2485, 0.45186275
      %v3152 = vmul.f32 %v2486, 0.45186275
      %v3153 = vmul.f32 %v2487, 0.45186275
      %v3154 = vmul.f32 %v2488, 0.45186275
      %v3155 = vmul.f32 %v2489, 0.45186275
      %v3156 = vmul.f32 %v2490, 0.45186275
      %v3157 = vmul.f32 %v2491, 0.45186275
      %v3158 = vmul.f32 %v2492, 0.45186275
      %v3159 = vmul.f32 %v2493, 0.45186275
      %v3160 = vmul.f32 %v2494, 0.45186275
      %v3161 = vmul.f32 %v2495, 0.45186275
      %v3162 = vmul.f32 %v2496, 0.45186275
      %v3163 = vmul.f32 %v2497, 0.45186275
      %v3164 = vmul.f32 %v2498, 0.45186275
      %v3165 = vmul.f32 %v2499, 0.45186275
      %v3166 = vmul.f32 %v2500, 0.45186275
      %v3167 = vmul.f32 %v2501, 0.45186275
      %v3168 = vmul.f32 %v2502, 0.45186275
      %v3169 = vmul.f32 %v2503, 0.45186275
      %v3170 = vmul.f32 %v2504, 0.45186275
      %v3171 = vmul.f32 %v2505, 0.45186275
      %v3172 = vmul.f32 %v2506, 0.45186275
      %v3173 = vmul.f32 %v2507, 0.45186275
      %v3174 = vmul.f32 %v2508, 0.45186275
      %v3175 = vmul.f32 %v2509, 0.45186275
      %v3176 = vmul.f32 %v2510, 0.45186275
      %v3177 = vmul.f32 %v2511, 0.45186275
      %v3178 = vmul.f32 %v2512, 0.45186275
      %v3179 = vmul.f32 %v2513, 0.45186275
      %v3180 = vmul.f32 %v2514, 0.45186275
      %v3181 = vmul.f32 %v2515, 0.45186275
      %v3182 = vmul.f32 %v2516, 0.45186275
      %v3183 = vmul.f32 %v2517, 0.45186275
      %v3184 = vmul.f32 %v2518, 0.45186275
      %v3185 = vmul.f32 %v2519, 0.45186275
      %v3186 = vmul.f32 %v2520, 0.45186275
      %v3187 = vmul.f32 %v2521, 0.45186275
      %v3188 = vmul.f32 %v2522, 0.45186275
      %v3189 = vmul.f32 %v2523, 0.45186275
      %v3190 = vmul.f32 %v2524, 0.45186275
      %v3191 = vmul.f32 %v2525, 0.45186275
      %v3192 = vmul.f32 %v2526, 0.45186275
      %v3193 = vmul.f32 %v2527, 0.45186275
      %v3194 = vmul.f32 %v2528, 0.45186275
      %v3195 = vmul.f32 %v2529, 0.45186275
      %v3196 = vmul.f32 %v2530, 0.45186275
      %v3197 = vmul.f32 %v2531, 0.45186275
      %v3198 = vmul.f32 %v2532, 0.45186275
      %v3199 = vmul.f32 %v2533, 0.45186275
      %v3200 = vmul.f32 %v2534, 0.45186275
      %v3201 = vmul.f32 %v2535, 0.45186275
      %v3202 = vmul.f32 %v2536, 0.45186275
      %v3203 = vmul.f32 %v2537, 0.45186275
      %v3204 = vmul.f32 %v2538, 0.45186275
      %v3205 = vmul.f32 %v2539, 0.45186275
      %v3206 = vmul.f32 %v2540, 0.45186275
      %v3207 = vmul.f32 %v2541, 0.45186275
      %v3208 = vmul.f32 %v2542, 0.45186275
      %v3209 = vmul.f32 %v2543, 0.45186275
      %v3210 = vmul.f32 %v2544, 0.45186275
      %v3211 = vmul.f32 %v2545, 0.45186275
      %v3212 = vmul.f32 %v2546, 0.45186275
      %v3283 = vrot.slane %v3143, 1
      %v3284 = vrot.slane %v3148, 1
      %v3285 = vsel %vm2757, %v3283, %v3284
      %v3286 = vrot.slane %v3144, 1
      %v3287 = vrot.slane %v3149, 1
      %v3288 = vsel %vm2757, %v3286, %v3287
      %v3289 = vrot.slane %v3145, 1
      %v3290 = vrot.slane %v3150, 1
      %v3291 = vsel %vm2757, %v3289, %v3290
      %v3292 = vrot.slane %v3146, 1
      %v3293 = vrot.slane %v3151, 1
      %v3294 = vsel %vm2757, %v3292, %v3293
      %v3295 = vrot.slane %v3147, 1
      %v3296 = vrot.slane %v3152, 1
      %v3297 = vsel %vm2757, %v3295, %v3296
      %v3298 = vrot.slane %v3153, 1
      %v3299 = vrot.slane %v3158, 1
      %v3300 = vsel %vm2757, %v3298, %v3299
      %v3301 = vrot.slane %v3154, 1
      %v3302 = vrot.slane %v3159, 1
      %v3303 = vsel %vm2757, %v3301, %v3302
      %v3304 = vrot.slane %v3155, 1
      %v3305 = vrot.slane %v3160, 1
      %v3306 = vsel %vm2757, %v3304, %v3305
      %v3307 = vrot.slane %v3156, 1
      %v3308 = vrot.slane %v3161, 1
      %v3309 = vsel %vm2757, %v3307, %v3308
      %v3310 = vrot.slane %v3157, 1
      %v3311 = vrot.slane %v3162, 1
      %v3312 = vsel %vm2757, %v3310, %v3311
      %v3313 = vrot.slane %v3163, 1
      %v3314 = vrot.slane %v3168, 1
      %v3315 = vsel %vm2757, %v3313, %v3314
      %v3316 = vrot.slane %v3164, 1
      %v3317 = vrot.slane %v3169, 1
      %v3318 = vsel %vm2757, %v3316, %v3317
      %v3319 = vrot.slane %v3165, 1
      %v3320 = vrot.slane %v3170, 1
      %v3321 = vsel %vm2757, %v3319, %v3320
      %v3322 = vrot.slane %v3166, 1
      %v3323 = vrot.slane %v3171, 1
      %v3324 = vsel %vm2757, %v3322, %v3323
      %v3325 = vrot.slane %v3167, 1
      %v3326 = vrot.slane %v3172, 1
      %v3327 = vsel %vm2757, %v3325, %v3326
      %v3328 = vrot.slane %v3173, 1
      %v3329 = vrot.slane %v3178, 1
      %v3330 = vsel %vm2757, %v3328, %v3329
      %v3331 = vrot.slane %v3174, 1
      %v3332 = vrot.slane %v3179, 1
      %v3333 = vsel %vm2757, %v3331, %v3332
      %v3334 = vrot.slane %v3175, 1
      %v3335 = vrot.slane %v3180, 1
      %v3336 = vsel %vm2757, %v3334, %v3335
      %v3337 = vrot.slane %v3176, 1
      %v3338 = vrot.slane %v3181, 1
      %v3339 = vsel %vm2757, %v3337, %v3338
      %v3340 = vrot.slane %v3177, 1
      %v3341 = vrot.slane %v3182, 1
      %v3342 = vsel %vm2757, %v3340, %v3341
      %v3343 = vrot.slane %v3183, 1
      %v3344 = vrot.slane %v3188, 1
      %v3345 = vsel %vm2757, %v3343, %v3344
      %v3346 = vrot.slane %v3184, 1
      %v3347 = vrot.slane %v3189, 1
      %v3348 = vsel %vm2757, %v3346, %v3347
      %v3349 = vrot.slane %v3185, 1
      %v3350 = vrot.slane %v3190, 1
      %v3351 = vsel %vm2757, %v3349, %v3350
      %v3352 = vrot.slane %v3186, 1
      %v3353 = vrot.slane %v3191, 1
      %v3354 = vsel %vm2757, %v3352, %v3353
      %v3355 = vrot.slane %v3187, 1
      %v3356 = vrot.slane %v3192, 1
      %v3357 = vsel %vm2757, %v3355, %v3356
      %v3358 = vrot.slane %v3193, 1
      %v3359 = vrot.slane %v3198, 1
      %v3360 = vsel %vm2757, %v3358, %v3359
      %v3361 = vrot.slane %v3194, 1
      %v3362 = vrot.slane %v3199, 1
      %v3363 = vsel %vm2757, %v3361, %v3362
      %v3364 = vrot.slane %v3195, 1
      %v3365 = vrot.slane %v3200, 1
      %v3366 = vsel %vm2757, %v3364, %v3365
      %v3367 = vrot.slane %v3196, 1
      %v3368 = vrot.slane %v3201, 1
      %v3369 = vsel %vm2757, %v3367, %v3368
      %v3370 = vrot.slane %v3197, 1
      %v3371 = vrot.slane %v3202, 1
      %v3372 = vsel %vm2757, %v3370, %v3371
      %v3373 = vrot.slane %v3203, 1
      %v3374 = vrot.slane %v3208, 1
      %v3375 = vsel %vm2757, %v3373, %v3374
      %v3376 = vrot.slane %v3204, 1
      %v3377 = vrot.slane %v3209, 1
      %v3378 = vsel %vm2757, %v3376, %v3377
      %v3379 = vrot.slane %v3205, 1
      %v3380 = vrot.slane %v3210, 1
      %v3381 = vsel %vm2757, %v3379, %v3380
      %v3382 = vrot.slane %v3206, 1
      %v3383 = vrot.slane %v3211, 1
      %v3384 = vsel %vm2757, %v3382, %v3383
      %v3385 = vrot.slane %v3207, 1
      %v3386 = vrot.slane %v3212, 1
      %v3387 = vsel %vm2757, %v3385, %v3386
      %v3458 = vadd.f32 %v3073, %v3285
      %v3459 = vadd.f32 %v3074, %v3288
      %v3460 = vadd.f32 %v3075, %v3291
      %v3461 = vadd.f32 %v3076, %v3294
      %v3462 = vadd.f32 %v3077, %v3297
      %v3463 = vadd.f32 %v3078, %v3284
      %v3464 = vadd.f32 %v3079, %v3287
      %v3465 = vadd.f32 %v3080, %v3290
      %v3466 = vadd.f32 %v3081, %v3293
      %v3467 = vadd.f32 %v3082, %v3296
      %v3468 = vadd.f32 %v3083, %v3300
      %v3469 = vadd.f32 %v3084, %v3303
      %v3470 = vadd.f32 %v3085, %v3306
      %v3471 = vadd.f32 %v3086, %v3309
      %v3472 = vadd.f32 %v3087, %v3312
      %v3473 = vadd.f32 %v3088, %v3299
      %v3474 = vadd.f32 %v3089, %v3302
      %v3475 = vadd.f32 %v3090, %v3305
      %v3476 = vadd.f32 %v3091, %v3308
      %v3477 = vadd.f32 %v3092, %v3311
      %v3478 = vadd.f32 %v3093, %v3315
      %v3479 = vadd.f32 %v3094, %v3318
      %v3480 = vadd.f32 %v3095, %v3321
      %v3481 = vadd.f32 %v3096, %v3324
      %v3482 = vadd.f32 %v3097, %v3327
      %v3483 = vadd.f32 %v3098, %v3314
      %v3484 = vadd.f32 %v3099, %v3317
      %v3485 = vadd.f32 %v3100, %v3320
      %v3486 = vadd.f32 %v3101, %v3323
      %v3487 = vadd.f32 %v3102, %v3326
      %v3488 = vadd.f32 %v3103, %v3330
      %v3489 = vadd.f32 %v3104, %v3333
      %v3490 = vadd.f32 %v3105, %v3336
      %v3491 = vadd.f32 %v3106, %v3339
      %v3492 = vadd.f32 %v3107, %v3342
      %v3493 = vadd.f32 %v3108, %v3329
      %v3494 = vadd.f32 %v3109, %v3332
      %v3495 = vadd.f32 %v3110, %v3335
      %v3496 = vadd.f32 %v3111, %v3338
      %v3497 = vadd.f32 %v3112, %v3341
      %v3498 = vadd.f32 %v3113, %v3345
      %v3499 = vadd.f32 %v3114, %v3348
      %v3500 = vadd.f32 %v3115, %v3351
      %v3501 = vadd.f32 %v3116, %v3354
      %v3502 = vadd.f32 %v3117, %v3357
      %v3503 = vadd.f32 %v3118, %v3344
      %v3504 = vadd.f32 %v3119, %v3347
      %v3505 = vadd.f32 %v3120, %v3350
      %v3506 = vadd.f32 %v3121, %v3353
      %v3507 = vadd.f32 %v3122, %v3356
      %v3508 = vadd.f32 %v3123, %v3360
      %v3509 = vadd.f32 %v3124, %v3363
      %v3510 = vadd.f32 %v3125, %v3366
      %v3511 = vadd.f32 %v3126, %v3369
      %v3512 = vadd.f32 %v3127, %v3372
      %v3513 = vadd.f32 %v3128, %v3359
      %v3514 = vadd.f32 %v3129, %v3362
      %v3515 = vadd.f32 %v3130, %v3365
      %v3516 = vadd.f32 %v3131, %v3368
      %v3517 = vadd.f32 %v3132, %v3371
      %v3518 = vadd.f32 %v3133, %v3375
      %v3519 = vadd.f32 %v3134, %v3378
      %v3520 = vadd.f32 %v3135, %v3381
      %v3521 = vadd.f32 %v3136, %v3384
      %v3522 = vadd.f32 %v3137, %v3387
      %v3523 = vadd.f32 %v3138, %v3374
      %v3524 = vadd.f32 %v3139, %v3377
      %v3525 = vadd.f32 %v3140, %v3380
      %v3526 = vadd.f32 %v3141, %v3383
      %v3527 = vadd.f32 %v3142, %v3386
      %3528 = vst [vmem:[#allocation5] sm:$0xff] %v3458
      %3529 = vst [vmem:[#allocation5 + $0x8] sm:$0xff] %v3459
      %3530 = vst [vmem:[#allocation5 + $0x10] sm:$0xff] %v3460
      %3531 = vst [vmem:[#allocation5 + $0x18] sm:$0xff] %v3461
      %3532 = vst.msk [vmem:[#allocation5 + $0x20] sm:$0xff] %vm307, %v3462
      %3533 = vst [vmem:[#allocation5 + $0x28] sm:$0x3f] %v3463
      %3534 = vst [vmem:[#allocation5 + $0x30] sm:$0x3f] %v3464
      %3535 = vst [vmem:[#allocation5 + $0x38] sm:$0x3f] %v3465
      %3536 = vst [vmem:[#allocation5 + $0x40] sm:$0x3f] %v3466
      %3537 = vst.msk [vmem:[#allocation5 + $0x48] sm:$0x3f] %vm2205, %v3467
      %3538 = vst [vmem:[#allocation5 + $0x50] sm:$0xff] %v3468
      %3539 = vst [vmem:[#allocation5 + $0x58] sm:$0xff] %v3469
      %3540 = vst [vmem:[#allocation5 + $0x60] sm:$0xff] %v3470
      %3541 = vst [vmem:[#allocation5 + $0x68] sm:$0xff] %v3471
      %3542 = vst.msk [vmem:[#allocation5 + $0x70] sm:$0xff] %vm307, %v3472
      %3543 = vst [vmem:[#allocation5 + $0x78] sm:$0x3f] %v3473
      %3544 = vst [vmem:[#allocation5 + $0x80] sm:$0x3f] %v3474
      %3545 = vst [vmem:[#allocation5 + $0x88] sm:$0x3f] %v3475
      %3546 = vst [vmem:[#allocation5 + $0x90] sm:$0x3f] %v3476
      %3547 = vst.msk [vmem:[#allocation5 + $0x98] sm:$0x3f] %vm2205, %v3477
      %3548 = vst [vmem:[#allocation5 + $0xa0] sm:$0xff] %v3478
      %3549 = vst [vmem:[#allocation5 + $0xa8] sm:$0xff] %v3479
      %3550 = vst [vmem:[#allocation5 + $0xb0] sm:$0xff] %v3480
      %3551 = vst [vmem:[#allocation5 + $0xb8] sm:$0xff] %v3481
      %3552 = vst.msk [vmem:[#allocation5 + $0xc0] sm:$0xff] %vm307, %v3482
      %3553 = vst [vmem:[#allocation5 + $0xc8] sm:$0x3f] %v3483
      %3554 = vst [vmem:[#allocation5 + $0xd0] sm:$0x3f] %v3484
      %3555 = vst [vmem:[#allocation5 + $0xd8] sm:$0x3f] %v3485
      %3556 = vst [vmem:[#allocation5 + $0xe0] sm:$0x3f] %v3486
      %3557 = vst.msk [vmem:[#allocation5 + $0xe8] sm:$0x3f] %vm2205, %v3487
      %3558 = vst [vmem:[#allocation5 + $0xf0] sm:$0xff] %v3488
      %3559 = vst [vmem:[#allocation5 + $0xf8] sm:$0xff] %v3489
      %3560 = vst [vmem:[#allocation5 + $0x100] sm:$0xff] %v3490
      %3561 = vst [vmem:[#allocation5 + $0x108] sm:$0xff] %v3491
      %3562 = vst.msk [vmem:[#allocation5 + $0x110] sm:$0xff] %vm307, %v3492
      %3563 = vst [vmem:[#allocation5 + $0x118] sm:$0x3f] %v3493
      %3564 = vst [vmem:[#allocation5 + $0x120] sm:$0x3f] %v3494
      %3565 = vst [vmem:[#allocation5 + $0x128] sm:$0x3f] %v3495
      %3566 = vst [vmem:[#allocation5 + $0x130] sm:$0x3f] %v3496
      %3567 = vst.msk [vmem:[#allocation5 + $0x138] sm:$0x3f] %vm2205, %v3497
      %3568 = vst [vmem:[#allocation5 + $0x140] sm:$0xff] %v3498
      %3569 = vst [vmem:[#allocation5 + $0x148] sm:$0xff] %v3499
      %3570 = vst [vmem:[#allocation5 + $0x150] sm:$0xff] %v3500
      %3571 = vst [vmem:[#allocation5 + $0x158] sm:$0xff] %v3501
      %3572 = vst.msk [vmem:[#allocation5 + $0x160] sm:$0xff] %vm307, %v3502
      %3573 = vst [vmem:[#allocation5 + $0x168] sm:$0x3f] %v3503
      %3574 = vst [vmem:[#allocation5 + $0x170] sm:$0x3f] %v3504
      %3575 = vst [vmem:[#allocation5 + $0x178] sm:$0x3f] %v3505
      %3576 = vst [vmem:[#allocation5 + $0x180] sm:$0x3f] %v3506
      %3577 = vst.msk [vmem:[#allocation5 + $0x188] sm:$0x3f] %vm2205, %v3507
      %3578 = vst [vmem:[#allocation5 + $0x190] sm:$0xff] %v3508
      %3579 = vst [vmem:[#allocation5 + $0x198] sm:$0xff] %v3509
      %3580 = vst [vmem:[#allocation5 + $0x1a0] sm:$0xff] %v3510
      %3581 = vst [vmem:[#allocation5 + $0x1a8] sm:$0xff] %v3511
      %3582 = vst.msk [vmem:[#allocation5 + $0x1b0] sm:$0xff] %vm307, %v3512
      %3583 = vst [vmem:[#allocation5 + $0x1b8] sm:$0x3f] %v3513
      %3584 = vst [vmem:[#allocation5 + $0x1c0] sm:$0x3f] %v3514
      %3585 = vst [vmem:[#allocation5 + $0x1c8] sm:$0x3f] %v3515
      %3586 = vst [vmem:[#allocation5 + $0x1d0] sm:$0x3f] %v3516
      %3587 = vst.msk [vmem:[#allocation5 + $0x1d8] sm:$0x3f] %vm2205, %v3517
      %3588 = vst [vmem:[#allocation5 + $0x1e0] sm:$0xff] %v3518
      %3589 = vst [vmem:[#allocation5 + $0x1e8] sm:$0xff] %v3519
      %3590 = vst [vmem:[#allocation5 + $0x1f0] sm:$0xff] %v3520
      %3591 = vst [vmem:[#allocation5 + $0x1f8] sm:$0xff] %v3521
      %3592 = vst.msk [vmem:[#allocation5 + $0x200] sm:$0xff] %vm307, %v3522
      %3593 = vst [vmem:[#allocation5 + $0x208] sm:$0x3f] %v3523
      %3594 = vst [vmem:[#allocation5 + $0x210] sm:$0x3f] %v3524
      %3595 = vst [vmem:[#allocation5 + $0x218] sm:$0x3f] %v3525
      %3596 = vst [vmem:[#allocation5 + $0x220] sm:$0x3f] %v3526
      %3597 = vst.msk [vmem:[#allocation5 + $0x228] sm:$0x3f] %vm2205, %v3527
      %v3598 = vld [vmem:[#allocation2] sm:$0xfc]
      %v3599 = vld [vmem:[#allocation2 + $0x8] sm:$0xfc]
      %v3600 = vld [vmem:[#allocation2 + $0x10] sm:$0xfc]
      %v3601 = vld [vmem:[#allocation2 + $0x18] sm:$0xfc]
      %v3602 = vld [vmem:[#allocation2 + $0x20] sm:$0xfc]
      %v3603 = vld [vmem:[#allocation2 + $0x28] sm:$0xff]
      %v3604 = vld [vmem:[#allocation2 + $0x30] sm:$0xff]
      %v3605 = vld [vmem:[#allocation2 + $0x38] sm:$0xff]
      %v3606 = vld [vmem:[#allocation2 + $0x40] sm:$0xff]
      %v3607 = vld [vmem:[#allocation2 + $0x48] sm:$0xff]
      %v3608 = vld [vmem:[#allocation2 + $0x50] sm:$0xfc]
      %v3609 = vld [vmem:[#allocation2 + $0x58] sm:$0xfc]
      %v3610 = vld [vmem:[#allocation2 + $0x60] sm:$0xfc]
      %v3611 = vld [vmem:[#allocation2 + $0x68] sm:$0xfc]
      %v3612 = vld [vmem:[#allocation2 + $0x70] sm:$0xfc]
      %v3613 = vld [vmem:[#allocation2 + $0x78] sm:$0xff]
      %v3614 = vld [vmem:[#allocation2 + $0x80] sm:$0xff]
      %v3615 = vld [vmem:[#allocation2 + $0x88] sm:$0xff]
      %v3616 = vld [vmem:[#allocation2 + $0x90] sm:$0xff]
      %v3617 = vld [vmem:[#allocation2 + $0x98] sm:$0xff]
      %v3618 = vld [vmem:[#allocation2 + $0xa0] sm:$0xfc]
      %v3619 = vld [vmem:[#allocation2 + $0xa8] sm:$0xfc]
      %v3620 = vld [vmem:[#allocation2 + $0xb0] sm:$0xfc]
      %v3621 = vld [vmem:[#allocation2 + $0xb8] sm:$0xfc]
      %v3622 = vld [vmem:[#allocation2 + $0xc0] sm:$0xfc]
      %v3623 = vld [vmem:[#allocation2 + $0xc8] sm:$0xff]
      %v3624 = vld [vmem:[#allocation2 + $0xd0] sm:$0xff]
      %v3625 = vld [vmem:[#allocation2 + $0xd8] sm:$0xff]
      %v3626 = vld [vmem:[#allocation2 + $0xe0] sm:$0xff]
      %v3627 = vld [vmem:[#allocation2 + $0xe8] sm:$0xff]
      %v3628 = vld [vmem:[#allocation2 + $0xf0] sm:$0xfc]
      %v3629 = vld [vmem:[#allocation2 + $0xf8] sm:$0xfc]
      %v3630 = vld [vmem:[#allocation2 + $0x100] sm:$0xfc]
      %v3631 = vld [vmem:[#allocation2 + $0x108] sm:$0xfc]
      %v3632 = vld [vmem:[#allocation2 + $0x110] sm:$0xfc]
      %v3633 = vld [vmem:[#allocation2 + $0x118] sm:$0xff]
      %v3634 = vld [vmem:[#allocation2 + $0x120] sm:$0xff]
      %v3635 = vld [vmem:[#allocation2 + $0x128] sm:$0xff]
      %v3636 = vld [vmem:[#allocation2 + $0x130] sm:$0xff]
      %v3637 = vld [vmem:[#allocation2 + $0x138] sm:$0xff]
      %v3638 = vld [vmem:[#allocation2 + $0x140] sm:$0xfc]
      %v3639 = vld [vmem:[#allocation2 + $0x148] sm:$0xfc]
      %v3640 = vld [vmem:[#allocation2 + $0x150] sm:$0xfc]
      %v3641 = vld [vmem:[#allocation2 + $0x158] sm:$0xfc]
      %v3642 = vld [vmem:[#allocation2 + $0x160] sm:$0xfc]
      %v3643 = vld [vmem:[#allocation2 + $0x168] sm:$0xff]
      %v3644 = vld [vmem:[#allocation2 + $0x170] sm:$0xff]
      %v3645 = vld [vmem:[#allocation2 + $0x178] sm:$0xff]
      %v3646 = vld [vmem:[#allocation2 + $0x180] sm:$0xff]
      %v3647 = vld [vmem:[#allocation2 + $0x188] sm:$0xff]
      %v3648 = vld [vmem:[#allocation2 + $0x190] sm:$0xfc]
      %v3649 = vld [vmem:[#allocation2 + $0x198] sm:$0xfc]
      %v3650 = vld [vmem:[#allocation2 + $0x1a0] sm:$0xfc]
      %v3651 = vld [vmem:[#allocation2 + $0x1a8] sm:$0xfc]
      %v3652 = vld [vmem:[#allocation2 + $0x1b0] sm:$0xfc]
      %v3653 = vld [vmem:[#allocation2 + $0x1b8] sm:$0xff]
      %v3654 = vld [vmem:[#allocation2 + $0x1c0] sm:$0xff]
      %v3655 = vld [vmem:[#allocation2 + $0x1c8] sm:$0xff]
      %v3656 = vld [vmem:[#allocation2 + $0x1d0] sm:$0xff]
      %v3657 = vld [vmem:[#allocation2 + $0x1d8] sm:$0xff]
      %v3658 = vld [vmem:[#allocation2 + $0x1e0] sm:$0xfc]
      %v3659 = vld [vmem:[#allocation2 + $0x1e8] sm:$0xfc]
      %v3660 = vld [vmem:[#allocation2 + $0x1f0] sm:$0xfc]
      %v3661 = vld [vmem:[#allocation2 + $0x1f8] sm:$0xfc]
      %v3662 = vld [vmem:[#allocation2 + $0x200] sm:$0xfc]
      %v3663 = vld [vmem:[#allocation2 + $0x208] sm:$0xff]
      %v3664 = vld [vmem:[#allocation2 + $0x210] sm:$0xff]
      %v3665 = vld [vmem:[#allocation2 + $0x218] sm:$0xff]
      %v3666 = vld [vmem:[#allocation2 + $0x220] sm:$0xff]
      %v3667 = vld [vmem:[#allocation2 + $0x228] sm:$0xff]
      %v3668 = vld [vmem:[#allocation3] sm:$0xfc]
      %v3669 = vld [vmem:[#allocation3 + $0x8] sm:$0xfc]
      %v3670 = vld [vmem:[#allocation3 + $0x10] sm:$0xfc]
      %v3671 = vld [vmem:[#allocation3 + $0x18] sm:$0xfc]
      %v3672 = vld [vmem:[#allocation3 + $0x20] sm:$0xfc]
      %v3673 = vld [vmem:[#allocation3 + $0x28] sm:$0xff]
      %v3674 = vld [vmem:[#allocation3 + $0x30] sm:$0xff]
      %v3675 = vld [vmem:[#allocation3 + $0x38] sm:$0xff]
      %v3676 = vld [vmem:[#allocation3 + $0x40] sm:$0xff]
      %v3677 = vld [vmem:[#allocation3 + $0x48] sm:$0xff]
      %v3678 = vld [vmem:[#allocation3 + $0x50] sm:$0xfc]
      %v3679 = vld [vmem:[#allocation3 + $0x58] sm:$0xfc]
      %v3680 = vld [vmem:[#allocation3 + $0x60] sm:$0xfc]
      %v3681 = vld [vmem:[#allocation3 + $0x68] sm:$0xfc]
      %v3682 = vld [vmem:[#allocation3 + $0x70] sm:$0xfc]
      %v3683 = vld [vmem:[#allocation3 + $0x78] sm:$0xff]
      %v3684 = vld [vmem:[#allocation3 + $0x80] sm:$0xff]
      %v3685 = vld [vmem:[#allocation3 + $0x88] sm:$0xff]
      %v3686 = vld [vmem:[#allocation3 + $0x90] sm:$0xff]
      %v3687 = vld [vmem:[#allocation3 + $0x98] sm:$0xff]
      %v3688 = vld [vmem:[#allocation3 + $0xa0] sm:$0xfc]
      %v3689 = vld [vmem:[#allocation3 + $0xa8] sm:$0xfc]
      %v3690 = vld [vmem:[#allocation3 + $0xb0] sm:$0xfc]
      %v3691 = vld [vmem:[#allocation3 + $0xb8] sm:$0xfc]
      %v3692 = vld [vmem:[#allocation3 + $0xc0] sm:$0xfc]
      %v3693 = vld [vmem:[#allocation3 + $0xc8] sm:$0xff]
      %v3694 = vld [vmem:[#allocation3 + $0xd0] sm:$0xff]
      %v3695 = vld [vmem:[#allocation3 + $0xd8] sm:$0xff]
      %v3696 = vld [vmem:[#allocation3 + $0xe0] sm:$0xff]
      %v3697 = vld [vmem:[#allocation3 + $0xe8] sm:$0xff]
      %v3698 = vld [vmem:[#allocation3 + $0xf0] sm:$0xfc]
      %v3699 = vld [vmem:[#allocation3 + $0xf8] sm:$0xfc]
      %v3700 = vld [vmem:[#allocation3 + $0x100] sm:$0xfc]
      %v3701 = vld [vmem:[#allocation3 + $0x108] sm:$0xfc]
      %v3702 = vld [vmem:[#allocation3 + $0x110] sm:$0xfc]
      %v3703 = vld [vmem:[#allocation3 + $0x118] sm:$0xff]
      %v3704 = vld [vmem:[#allocation3 + $0x120] sm:$0xff]
      %v3705 = vld [vmem:[#allocation3 + $0x128] sm:$0xff]
      %v3706 = vld [vmem:[#allocation3 + $0x130] sm:$0xff]
      %v3707 = vld [vmem:[#allocation3 + $0x138] sm:$0xff]
      %v3708 = vld [vmem:[#allocation3 + $0x140] sm:$0xfc]
      %v3709 = vld [vmem:[#allocation3 + $0x148] sm:$0xfc]
      %v3710 = vld [vmem:[#allocation3 + $0x150] sm:$0xfc]
      %v3711 = vld [vmem:[#allocation3 + $0x158] sm:$0xfc]
      %v3712 = vld [vmem:[#allocation3 + $0x160] sm:$0xfc]
      %v3713 = vld [vmem:[#allocation3 + $0x168] sm:$0xff]
      %v3714 = vld [vmem:[#allocation3 + $0x170] sm:$0xff]
      %v3715 = vld [vmem:[#allocation3 + $0x178] sm:$0xff]
      %v3716 = vld [vmem:[#allocation3 + $0x180] sm:$0xff]
      %v3717 = vld [vmem:[#allocation3 + $0x188] sm:$0xff]
      %v3718 = vld [vmem:[#allocation3 + $0x190] sm:$0xfc]
      %v3719 = vld [vmem:[#allocation3 + $0x198] sm:$0xfc]
      %v3720 = vld [vmem:[#allocation3 + $0x1a0] sm:$0xfc]
      %v3721 = vld [vmem:[#allocation3 + $0x1a8] sm:$0xfc]
      %v3722 = vld [vmem:[#allocation3 + $0x1b0] sm:$0xfc]
      %v3723 = vld [vmem:[#allocation3 + $0x1b8] sm:$0xff]
      %v3724 = vld [vmem:[#allocation3 + $0x1c0] sm:$0xff]
      %v3725 = vld [vmem:[#allocation3 + $0x1c8] sm:$0xff]
      %v3726 = vld [vmem:[#allocation3 + $0x1d0] sm:$0xff]
      %v3727 = vld [vmem:[#allocation3 + $0x1d8] sm:$0xff]
      %v3728 = vld [vmem:[#allocation3 + $0x1e0] sm:$0xfc]
      %v3729 = vld [vmem:[#allocation3 + $0x1e8] sm:$0xfc]
      %v3730 = vld [vmem:[#allocation3 + $0x1f0] sm:$0xfc]
      %v3731 = vld [vmem:[#allocation3 + $0x1f8] sm:$0xfc]
      %v3732 = vld [vmem:[#allocation3 + $0x200] sm:$0xfc]
      %v3733 = vld [vmem:[#allocation3 + $0x208] sm:$0xff]
      %v3734 = vld [vmem:[#allocation3 + $0x210] sm:$0xff]
      %v3735 = vld [vmem:[#allocation3 + $0x218] sm:$0xff]
      %v3736 = vld [vmem:[#allocation3 + $0x220] sm:$0xff]
      %v3737 = vld [vmem:[#allocation3 + $0x228] sm:$0xff]
      %v3738 = vld [vmem:[#allocation4] sm:$0xff]
      %v3739 = vld [vmem:[#allocation4 + $0x8] sm:$0xff]
      %v3740 = vld [vmem:[#allocation4 + $0x10] sm:$0xff]
      %v3741 = vld [vmem:[#allocation4 + $0x18] sm:$0xff]
      %v3742 = vld [vmem:[#allocation4 + $0x20] sm:$0xff]
      %v3743 = vld [vmem:[#allocation4 + $0x28] sm:$0x3f]
      %v3744 = vld [vmem:[#allocation4 + $0x30] sm:$0x3f]
      %v3745 = vld [vmem:[#allocation4 + $0x38] sm:$0x3f]
      %v3746 = vld [vmem:[#allocation4 + $0x40] sm:$0x3f]
      %v3747 = vld [vmem:[#allocation4 + $0x48] sm:$0x3f]
      %v3748 = vld [vmem:[#allocation4 + $0x50] sm:$0xff]
      %v3749 = vld [vmem:[#allocation4 + $0x58] sm:$0xff]
      %v3750 = vld [vmem:[#allocation4 + $0x60] sm:$0xff]
      %v3751 = vld [vmem:[#allocation4 + $0x68] sm:$0xff]
      %v3752 = vld [vmem:[#allocation4 + $0x70] sm:$0xff]
      %v3753 = vld [vmem:[#allocation4 + $0x78] sm:$0x3f]
      %v3754 = vld [vmem:[#allocation4 + $0x80] sm:$0x3f]
      %v3755 = vld [vmem:[#allocation4 + $0x88] sm:$0x3f]
      %v3756 = vld [vmem:[#allocation4 + $0x90] sm:$0x3f]
      %v3757 = vld [vmem:[#allocation4 + $0x98] sm:$0x3f]
      %v3758 = vld [vmem:[#allocation4 + $0xa0] sm:$0xff]
      %v3759 = vld [vmem:[#allocation4 + $0xa8] sm:$0xff]
      %v3760 = vld [vmem:[#allocation4 + $0xb0] sm:$0xff]
      %v3761 = vld [vmem:[#allocation4 + $0xb8] sm:$0xff]
      %v3762 = vld [vmem:[#allocation4 + $0xc0] sm:$0xff]
      %v3763 = vld [vmem:[#allocation4 + $0xc8] sm:$0x3f]
      %v3764 = vld [vmem:[#allocation4 + $0xd0] sm:$0x3f]
      %v3765 = vld [vmem:[#allocation4 + $0xd8] sm:$0x3f]
      %v3766 = vld [vmem:[#allocation4 + $0xe0] sm:$0x3f]
      %v3767 = vld [vmem:[#allocation4 + $0xe8] sm:$0x3f]
      %v3768 = vld [vmem:[#allocation4 + $0xf0] sm:$0xff]
      %v3769 = vld [vmem:[#allocation4 + $0xf8] sm:$0xff]
      %v3770 = vld [vmem:[#allocation4 + $0x100] sm:$0xff]
      %v3771 = vld [vmem:[#allocation4 + $0x108] sm:$0xff]
      %v3772 = vld [vmem:[#allocation4 + $0x110] sm:$0xff]
      %v3773 = vld [vmem:[#allocation4 + $0x118] sm:$0x3f]
      %v3774 = vld [vmem:[#allocation4 + $0x120] sm:$0x3f]
      %v3775 = vld [vmem:[#allocation4 + $0x128] sm:$0x3f]
      %v3776 = vld [vmem:[#allocation4 + $0x130] sm:$0x3f]
      %v3777 = vld [vmem:[#allocation4 + $0x138] sm:$0x3f]
      %v3778 = vld [vmem:[#allocation4 + $0x140] sm:$0xff]
      %v3779 = vld [vmem:[#allocation4 + $0x148] sm:$0xff]
      %v3780 = vld [vmem:[#allocation4 + $0x150] sm:$0xff]
      %v3781 = vld [vmem:[#allocation4 + $0x158] sm:$0xff]
      %v3782 = vld [vmem:[#allocation4 + $0x160] sm:$0xff]
      %v3783 = vld [vmem:[#allocation4 + $0x168] sm:$0x3f]
      %v3784 = vld [vmem:[#allocation4 + $0x170] sm:$0x3f]
      %v3785 = vld [vmem:[#allocation4 + $0x178] sm:$0x3f]
      %v3786 = vld [vmem:[#allocation4 + $0x180] sm:$0x3f]
      %v3787 = vld [vmem:[#allocation4 + $0x188] sm:$0x3f]
      %v3788 = vld [vmem:[#allocation4 + $0x190] sm:$0xff]
      %v3789 = vld [vmem:[#allocation4 + $0x198] sm:$0xff]
      %v3790 = vld [vmem:[#allocation4 + $0x1a0] sm:$0xff]
      %v3791 = vld [vmem:[#allocation4 + $0x1a8] sm:$0xff]
      %v3792 = vld [vmem:[#allocation4 + $0x1b0] sm:$0xff]
      %v3793 = vld [vmem:[#allocation4 + $0x1b8] sm:$0x3f]
      %v3794 = vld [vmem:[#allocation4 + $0x1c0] sm:$0x3f]
      %v3795 = vld [vmem:[#allocation4 + $0x1c8] sm:$0x3f]
      %v3796 = vld [vmem:[#allocation4 + $0x1d0] sm:$0x3f]
      %v3797 = vld [vmem:[#allocation4 + $0x1d8] sm:$0x3f]
      %v3798 = vld [vmem:[#allocation4 + $0x1e0] sm:$0xff]
      %v3799 = vld [vmem:[#allocation4 + $0x1e8] sm:$0xff]
      %v3800 = vld [vmem:[#allocation4 + $0x1f0] sm:$0xff]
      %v3801 = vld [vmem:[#allocation4 + $0x1f8] sm:$0xff]
      %v3802 = vld [vmem:[#allocation4 + $0x200] sm:$0xff]
      %v3803 = vld [vmem:[#allocation4 + $0x208] sm:$0x3f]
      %v3804 = vld [vmem:[#allocation4 + $0x210] sm:$0x3f]
      %v3805 = vld [vmem:[#allocation4 + $0x218] sm:$0x3f]
      %v3806 = vld [vmem:[#allocation4 + $0x220] sm:$0x3f]
      %v3807 = vld [vmem:[#allocation4 + $0x228] sm:$0x3f]
      %v3808 = vmul.f32 %v3598, 0.27406862
      %v3809 = vmul.f32 %v3599, 0.27406862
      %v3810 = vmul.f32 %v3600, 0.27406862
      %v3811 = vmul.f32 %v3601, 0.27406862
      %v3812 = vmul.f32 %v3602, 0.27406862
      %v3813 = vmul.f32 %v3603, 0.27406862
      %v3814 = vmul.f32 %v3604, 0.27406862
      %v3815 = vmul.f32 %v3605, 0.27406862
      %v3816 = vmul.f32 %v3606, 0.27406862
      %v3817 = vmul.f32 %v3607, 0.27406862
      %v3818 = vmul.f32 %v3608, 0.27406862
      %v3819 = vmul.f32 %v3609, 0.27406862
      %v3820 = vmul.f32 %v3610, 0.27406862
      %v3821 = vmul.f32 %v3611, 0.27406862
      %v3822 = vmul.f32 %v3612, 0.27406862
      %v3823 = vmul.f32 %v3613, 0.27406862
      %v3824 = vmul.f32 %v3614, 0.27406862
      %v3825 = vmul.f32 %v3615, 0.27406862
      %v3826 = vmul.f32 %v3616, 0.27406862
      %v3827 = vmul.f32 %v3617, 0.27406862
      %v3828 = vmul.f32 %v3618, 0.27406862
      %v3829 = vmul.f32 %v3619, 0.27406862
      %v3830 = vmul.f32 %v3620, 0.27406862
      %v3831 = vmul.f32 %v3621, 0.27406862
      %v3832 = vmul.f32 %v3622, 0.27406862
      %v3833 = vmul.f32 %v3623, 0.27406862
      %v3834 = vmul.f32 %v3624, 0.27406862
      %v3835 = vmul.f32 %v3625, 0.27406862
      %v3836 = vmul.f32 %v3626, 0.27406862
      %v3837 = vmul.f32 %v3627, 0.27406862
      %v3838 = vmul.f32 %v3628, 0.27406862
      %v3839 = vmul.f32 %v3629, 0.27406862
      %v3840 = vmul.f32 %v3630, 0.27406862
      %v3841 = vmul.f32 %v3631, 0.27406862
      %v3842 = vmul.f32 %v3632, 0.27406862
      %v3843 = vmul.f32 %v3633, 0.27406862
      %v3844 = vmul.f32 %v3634, 0.27406862
      %v3845 = vmul.f32 %v3635, 0.27406862
      %v3846 = vmul.f32 %v3636, 0.27406862
      %v3847 = vmul.f32 %v3637, 0.27406862
      %v3848 = vmul.f32 %v3638, 0.27406862
      %v3849 = vmul.f32 %v3639, 0.27406862
      %v3850 = vmul.f32 %v3640, 0.27406862
      %v3851 = vmul.f32 %v3641, 0.27406862
      %v3852 = vmul.f32 %v3642, 0.27406862
      %v3853 = vmul.f32 %v3643, 0.27406862
      %v3854 = vmul.f32 %v3644, 0.27406862
      %v3855 = vmul.f32 %v3645, 0.27406862
      %v3856 = vmul.f32 %v3646, 0.27406862
      %v3857 = vmul.f32 %v3647, 0.27406862
      %v3858 = vmul.f32 %v3648, 0.27406862
      %v3859 = vmul.f32 %v3649, 0.27406862
      %v3860 = vmul.f32 %v3650, 0.27406862
      %v3861 = vmul.f32 %v3651, 0.27406862
      %v3862 = vmul.f32 %v3652, 0.27406862
      %v3863 = vmul.f32 %v3653, 0.27406862
      %v3864 = vmul.f32 %v3654, 0.27406862
      %v3865 = vmul.f32 %v3655, 0.27406862
      %v3866 = vmul.f32 %v3656, 0.27406862
      %v3867 = vmul.f32 %v3657, 0.27406862
      %v3868 = vmul.f32 %v3658, 0.27406862
      %v3869 = vmul.f32 %v3659, 0.27406862
      %v3870 = vmul.f32 %v3660, 0.27406862
      %v3871 = vmul.f32 %v3661, 0.27406862
      %v3872 = vmul.f32 %v3662, 0.27406862
      %v3873 = vmul.f32 %v3663, 0.27406862
      %v3874 = vmul.f32 %v3664, 0.27406862
      %v3875 = vmul.f32 %v3665, 0.27406862
      %v3876 = vmul.f32 %v3666, 0.27406862
      %v3877 = vmul.f32 %v3667, 0.27406862
      %vm3948 = vcmask 1045504
      %v3949 = vrot.slane %v3808, 2
      %v3950 = vrot.slane %v3813, 2
      %v3951 = vsel %vm3948, %v3949, %v3950
      %v3952 = vrot.slane %v3809, 2
      %v3953 = vrot.slane %v3814, 2
      %v3954 = vsel %vm3948, %v3952, %v3953
      %v3955 = vrot.slane %v3810, 2
      %v3956 = vrot.slane %v3815, 2
      %v3957 = vsel %vm3948, %v3955, %v3956
      %v3958 = vrot.slane %v3811, 2
      %v3959 = vrot.slane %v3816, 2
      %v3960 = vsel %vm3948, %v3958, %v3959
      %v3961 = vrot.slane %v3812, 2
      %v3962 = vrot.slane %v3817, 2
      %v3963 = vsel %vm3948, %v3961, %v3962
      %v3964 = vrot.slane %v3818, 2
      %v3965 = vrot.slane %v3823, 2
      %v3966 = vsel %vm3948, %v3964, %v3965
      %v3967 = vrot.slane %v3819, 2
      %v3968 = vrot.slane %v3824, 2
      %v3969 = vsel %vm3948, %v3967, %v3968
      %v3970 = vrot.slane %v3820, 2
      %v3971 = vrot.slane %v3825, 2
      %v3972 = vsel %vm3948, %v3970, %v3971
      %v3973 = vrot.slane %v3821, 2
      %v3974 = vrot.slane %v3826, 2
      %v3975 = vsel %vm3948, %v3973, %v3974
      %v3976 = vrot.slane %v3822, 2
      %v3977 = vrot.slane %v3827, 2
      %v3978 = vsel %vm3948, %v3976, %v3977
      %v3979 = vrot.slane %v3828, 2
      %v3980 = vrot.slane %v3833, 2
      %v3981 = vsel %vm3948, %v3979, %v3980
      %v3982 = vrot.slane %v3829, 2
      %v3983 = vrot.slane %v3834, 2
      %v3984 = vsel %vm3948, %v3982, %v3983
      %v3985 = vrot.slane %v3830, 2
      %v3986 = vrot.slane %v3835, 2
      %v3987 = vsel %vm3948, %v3985, %v3986
      %v3988 = vrot.slane %v3831, 2
      %v3989 = vrot.slane %v3836, 2
      %v3990 = vsel %vm3948, %v3988, %v3989
      %v3991 = vrot.slane %v3832, 2
      %v3992 = vrot.slane %v3837, 2
      %v3993 = vsel %vm3948, %v3991, %v3992
      %v3994 = vrot.slane %v3838, 2
      %v3995 = vrot.slane %v3843, 2
      %v3996 = vsel %vm3948, %v3994, %v3995
      %v3997 = vrot.slane %v3839, 2
      %v3998 = vrot.slane %v3844, 2
      %v3999 = vsel %vm3948, %v3997, %v3998
      %v4000 = vrot.slane %v3840, 2
      %v4001 = vrot.slane %v3845, 2
      %v4002 = vsel %vm3948, %v4000, %v4001
      %v4003 = vrot.slane %v3841, 2
      %v4004 = vrot.slane %v3846, 2
      %v4005 = vsel %vm3948, %v4003, %v4004
      %v4006 = vrot.slane %v3842, 2
      %v4007 = vrot.slane %v3847, 2
      %v4008 = vsel %vm3948, %v4006, %v4007
      %v4009 = vrot.slane %v3848, 2
      %v4010 = vrot.slane %v3853, 2
      %v4011 = vsel %vm3948, %v4009, %v4010
      %v4012 = vrot.slane %v3849, 2
      %v4013 = vrot.slane %v3854, 2
      %v4014 = vsel %vm3948, %v4012, %v4013
      %v4015 = vrot.slane %v3850, 2
      %v4016 = vrot.slane %v3855, 2
      %v4017 = vsel %vm3948, %v4015, %v4016
      %v4018 = vrot.slane %v3851, 2
      %v4019 = vrot.slane %v3856, 2
      %v4020 = vsel %vm3948, %v4018, %v4019
      %v4021 = vrot.slane %v3852, 2
      %v4022 = vrot.slane %v3857, 2
      %v4023 = vsel %vm3948, %v4021, %v4022
      %v4024 = vrot.slane %v3858, 2
      %v4025 = vrot.slane %v3863, 2
      %v4026 = vsel %vm3948, %v4024, %v4025
      %v4027 = vrot.slane %v3859, 2
      %v4028 = vrot.slane %v3864, 2
      %v4029 = vsel %vm3948, %v4027, %v4028
      %v4030 = vrot.slane %v3860, 2
      %v4031 = vrot.slane %v3865, 2
      %v4032 = vsel %vm3948, %v4030, %v4031
      %v4033 = vrot.slane %v3861, 2
      %v4034 = vrot.slane %v3866, 2
      %v4035 = vsel %vm3948, %v4033, %v4034
      %v4036 = vrot.slane %v3862, 2
      %v4037 = vrot.slane %v3867, 2
      %v4038 = vsel %vm3948, %v4036, %v4037
      %v4039 = vrot.slane %v3868, 2
      %v4040 = vrot.slane %v3873, 2
      %v4041 = vsel %vm3948, %v4039, %v4040
      %v4042 = vrot.slane %v3869, 2
      %v4043 = vrot.slane %v3874, 2
      %v4044 = vsel %vm3948, %v4042, %v4043
      %v4045 = vrot.slane %v3870, 2
      %v4046 = vrot.slane %v3875, 2
      %v4047 = vsel %vm3948, %v4045, %v4046
      %v4048 = vrot.slane %v3871, 2
      %v4049 = vrot.slane %v3876, 2
      %v4050 = vsel %vm3948, %v4048, %v4049
      %v4051 = vrot.slane %v3872, 2
      %v4052 = vrot.slane %v3877, 2
      %v4053 = vsel %vm3948, %v4051, %v4052
      %v4124 = vadd.f32 %v3738, %v3951
      %v4125 = vadd.f32 %v3739, %v3954
      %v4126 = vadd.f32 %v3740, %v3957
      %v4127 = vadd.f32 %v3741, %v3960
      %v4128 = vadd.f32 %v3742, %v3963
      %v4129 = vadd.f32 %v3743, %v3950
      %v4130 = vadd.f32 %v3744, %v3953
      %v4131 = vadd.f32 %v3745, %v3956
      %v4132 = vadd.f32 %v3746, %v3959
      %v4133 = vadd.f32 %v3747, %v3962
      %v4134 = vadd.f32 %v3748, %v3966
      %v4135 = vadd.f32 %v3749, %v3969
      %v4136 = vadd.f32 %v3750, %v3972
      %v4137 = vadd.f32 %v3751, %v3975
      %v4138 = vadd.f32 %v3752, %v3978
      %v4139 = vadd.f32 %v3753, %v3965
      %v4140 = vadd.f32 %v3754, %v3968
      %v4141 = vadd.f32 %v3755, %v3971
      %v4142 = vadd.f32 %v3756, %v3974
      %v4143 = vadd.f32 %v3757, %v3977
      %v4144 = vadd.f32 %v3758, %v3981
      %v4145 = vadd.f32 %v3759, %v3984
      %v4146 = vadd.f32 %v3760, %v3987
      %v4147 = vadd.f32 %v3761, %v3990
      %v4148 = vadd.f32 %v3762, %v3993
      %v4149 = vadd.f32 %v3763, %v3980
      %v4150 = vadd.f32 %v3764, %v3983
      %v4151 = vadd.f32 %v3765, %v3986
      %v4152 = vadd.f32 %v3766, %v3989
      %v4153 = vadd.f32 %v3767, %v3992
      %v4154 = vadd.f32 %v3768, %v3996
      %v4155 = vadd.f32 %v3769, %v3999
      %v4156 = vadd.f32 %v3770, %v4002
      %v4157 = vadd.f32 %v3771, %v4005
      %v4158 = vadd.f32 %v3772, %v4008
      %v4159 = vadd.f32 %v3773, %v3995
      %v4160 = vadd.f32 %v3774, %v3998
      %v4161 = vadd.f32 %v3775, %v4001
      %v4162 = vadd.f32 %v3776, %v4004
      %v4163 = vadd.f32 %v3777, %v4007
      %v4164 = vadd.f32 %v3778, %v4011
      %v4165 = vadd.f32 %v3779, %v4014
      %v4166 = vadd.f32 %v3780, %v4017
      %v4167 = vadd.f32 %v3781, %v4020
      %v4168 = vadd.f32 %v3782, %v4023
      %v4169 = vadd.f32 %v3783, %v4010
      %v4170 = vadd.f32 %v3784, %v4013
      %v4171 = vadd.f32 %v3785, %v4016
      %v4172 = vadd.f32 %v3786, %v4019
      %v4173 = vadd.f32 %v3787, %v4022
      %v4174 = vadd.f32 %v3788, %v4026
      %v4175 = vadd.f32 %v3789, %v4029
      %v4176 = vadd.f32 %v3790, %v4032
      %v4177 = vadd.f32 %v3791, %v4035
      %v4178 = vadd.f32 %v3792, %v4038
      %v4179 = vadd.f32 %v3793, %v4025
      %v4180 = vadd.f32 %v3794, %v4028
      %v4181 = vadd.f32 %v3795, %v4031
      %v4182 = vadd.f32 %v3796, %v4034
      %v4183 = vadd.f32 %v3797, %v4037
      %v4184 = vadd.f32 %v3798, %v4041
      %v4185 = vadd.f32 %v3799, %v4044
      %v4186 = vadd.f32 %v3800, %v4047
      %v4187 = vadd.f32 %v3801, %v4050
      %v4188 = vadd.f32 %v3802, %v4053
      %v4189 = vadd.f32 %v3803, %v4040
      %v4190 = vadd.f32 %v3804, %v4043
      %v4191 = vadd.f32 %v3805, %v4046
      %v4192 = vadd.f32 %v3806, %v4049
      %v4193 = vadd.f32 %v3807, %v4052
      %4194 = vst [vmem:[#allocation4] sm:$0xff] %v4124
      %4195 = vst [vmem:[#allocation4 + $0x8] sm:$0xff] %v4125
      %4196 = vst [vmem:[#allocation4 + $0x10] sm:$0xff] %v4126
      %4197 = vst [vmem:[#allocation4 + $0x18] sm:$0xff] %v4127
      %4198 = vst.msk [vmem:[#allocation4 + $0x20] sm:$0xff] %vm307, %v4128
      %4199 = vst [vmem:[#allocation4 + $0x28] sm:$0x3f] %v4129
      %4200 = vst [vmem:[#allocation4 + $0x30] sm:$0x3f] %v4130
      %4201 = vst [vmem:[#allocation4 + $0x38] sm:$0x3f] %v4131
      %4202 = vst [vmem:[#allocation4 + $0x40] sm:$0x3f] %v4132
      %4203 = vst.msk [vmem:[#allocation4 + $0x48] sm:$0x3f] %vm2205, %v4133
      %4204 = vst [vmem:[#allocation4 + $0x50] sm:$0xff] %v4134
      %4205 = vst [vmem:[#allocation4 + $0x58] sm:$0xff] %v4135
      %4206 = vst [vmem:[#allocation4 + $0x60] sm:$0xff] %v4136
      %4207 = vst [vmem:[#allocation4 + $0x68] sm:$0xff] %v4137
      %4208 = vst.msk [vmem:[#allocation4 + $0x70] sm:$0xff] %vm307, %v4138
      %4209 = vst [vmem:[#allocation4 + $0x78] sm:$0x3f] %v4139
      %4210 = vst [vmem:[#allocation4 + $0x80] sm:$0x3f] %v4140
      %4211 = vst [vmem:[#allocation4 + $0x88] sm:$0x3f] %v4141
      %4212 = vst [vmem:[#allocation4 + $0x90] sm:$0x3f] %v4142
      %4213 = vst.msk [vmem:[#allocation4 + $0x98] sm:$0x3f] %vm2205, %v4143
      %4214 = vst [vmem:[#allocation4 + $0xa0] sm:$0xff] %v4144
      %4215 = vst [vmem:[#allocation4 + $0xa8] sm:$0xff] %v4145
      %4216 = vst [vmem:[#allocation4 + $0xb0] sm:$0xff] %v4146
      %4217 = vst [vmem:[#allocation4 + $0xb8] sm:$0xff] %v4147
      %4218 = vst.msk [vmem:[#allocation4 + $0xc0] sm:$0xff] %vm307, %v4148
      %4219 = vst [vmem:[#allocation4 + $0xc8] sm:$0x3f] %v4149
      %4220 = vst [vmem:[#allocation4 + $0xd0] sm:$0x3f] %v4150
      %4221 = vst [vmem:[#allocation4 + $0xd8] sm:$0x3f] %v4151
      %4222 = vst [vmem:[#allocation4 + $0xe0] sm:$0x3f] %v4152
      %4223 = vst.msk [vmem:[#allocation4 + $0xe8] sm:$0x3f] %vm2205, %v4153
      %4224 = vst [vmem:[#allocation4 + $0xf0] sm:$0xff] %v4154
      %4225 = vst [vmem:[#allocation4 + $0xf8] sm:$0xff] %v4155
      %4226 = vst [vmem:[#allocation4 + $0x100] sm:$0xff] %v4156
      %4227 = vst [vmem:[#allocation4 + $0x108] sm:$0xff] %v4157
      %4228 = vst.msk [vmem:[#allocation4 + $0x110] sm:$0xff] %vm307, %v4158
      %4229 = vst [vmem:[#allocation4 + $0x118] sm:$0x3f] %v4159
      %4230 = vst [vmem:[#allocation4 + $0x120] sm:$0x3f] %v4160
      %4231 = vst [vmem:[#allocation4 + $0x128] sm:$0x3f] %v4161
      %4232 = vst [vmem:[#allocation4 + $0x130] sm:$0x3f] %v4162
      %4233 = vst.msk [vmem:[#allocation4 + $0x138] sm:$0x3f] %vm2205, %v4163
      %4234 = vst [vmem:[#allocation4 + $0x140] sm:$0xff] %v4164
      %4235 = vst [vmem:[#allocation4 + $0x148] sm:$0xff] %v4165
      %4236 = vst [vmem:[#allocation4 + $0x150] sm:$0xff] %v4166
      %4237 = vst [vmem:[#allocation4 + $0x158] sm:$0xff] %v4167
      %4238 = vst.msk [vmem:[#allocation4 + $0x160] sm:$0xff] %vm307, %v4168
      %4239 = vst [vmem:[#allocation4 + $0x168] sm:$0x3f] %v4169
      %4240 = vst [vmem:[#allocation4 + $0x170] sm:$0x3f] %v4170
      %4241 = vst [vmem:[#allocation4 + $0x178] sm:$0x3f] %v4171
      %4242 = vst [vmem:[#allocation4 + $0x180] sm:$0x3f] %v4172
      %4243 = vst.msk [vmem:[#allocation4 + $0x188] sm:$0x3f] %vm2205, %v4173
      %4244 = vst [vmem:[#allocation4 + $0x190] sm:$0xff] %v4174
      %4245 = vst [vmem:[#allocation4 + $0x198] sm:$0xff] %v4175
      %4246 = vst [vmem:[#allocation4 + $0x1a0] sm:$0xff] %v4176
      %4247 = vst [vmem:[#allocation4 + $0x1a8] sm:$0xff] %v4177
      %4248 = vst.msk [vmem:[#allocation4 + $0x1b0] sm:$0xff] %vm307, %v4178
      %4249 = vst [vmem:[#allocation4 + $0x1b8] sm:$0x3f] %v4179
      %4250 = vst [vmem:[#allocation4 + $0x1c0] sm:$0x3f] %v4180
      %4251 = vst [vmem:[#allocation4 + $0x1c8] sm:$0x3f] %v4181
      %4252 = vst [vmem:[#allocation4 + $0x1d0] sm:$0x3f] %v4182
      %4253 = vst.msk [vmem:[#allocation4 + $0x1d8] sm:$0x3f] %vm2205, %v4183
      %4254 = vst [vmem:[#allocation4 + $0x1e0] sm:$0xff] %v4184
      %4255 = vst [vmem:[#allocation4 + $0x1e8] sm:$0xff] %v4185
      %4256 = vst [vmem:[#allocation4 + $0x1f0] sm:$0xff] %v4186
      %4257 = vst [vmem:[#allocation4 + $0x1f8] sm:$0xff] %v4187
      %4258 = vst.msk [vmem:[#allocation4 + $0x200] sm:$0xff] %vm307, %v4188
      %4259 = vst [vmem:[#allocation4 + $0x208] sm:$0x3f] %v4189
      %4260 = vst [vmem:[#allocation4 + $0x210] sm:$0x3f] %v4190
      %4261 = vst [vmem:[#allocation4 + $0x218] sm:$0x3f] %v4191
      %4262 = vst [vmem:[#allocation4 + $0x220] sm:$0x3f] %v4192
      %4263 = vst.msk [vmem:[#allocation4 + $0x228] sm:$0x3f] %vm2205, %v4193
      %v4264 = vld [vmem:[#allocation5] sm:$0xff]
      %v4265 = vld [vmem:[#allocation5 + $0x8] sm:$0xff]
      %v4266 = vld [vmem:[#allocation5 + $0x10] sm:$0xff]
      %v4267 = vld [vmem:[#allocation5 + $0x18] sm:$0xff]
      %v4268 = vld [vmem:[#allocation5 + $0x20] sm:$0xff]
      %v4269 = vld [vmem:[#allocation5 + $0x28] sm:$0x3f]
      %v4270 = vld [vmem:[#allocation5 + $0x30] sm:$0x3f]
      %v4271 = vld [vmem:[#allocation5 + $0x38] sm:$0x3f]
      %v4272 = vld [vmem:[#allocation5 + $0x40] sm:$0x3f]
      %v4273 = vld [vmem:[#allocation5 + $0x48] sm:$0x3f]
      %v4274 = vld [vmem:[#allocation5 + $0x50] sm:$0xff]
      %v4275 = vld [vmem:[#allocation5 + $0x58] sm:$0xff]
      %v4276 = vld [vmem:[#allocation5 + $0x60] sm:$0xff]
      %v4277 = vld [vmem:[#allocation5 + $0x68] sm:$0xff]
      %v4278 = vld [vmem:[#allocation5 + $0x70] sm:$0xff]
      %v4279 = vld [vmem:[#allocation5 + $0x78] sm:$0x3f]
      %v4280 = vld [vmem:[#allocation5 + $0x80] sm:$0x3f]
      %v4281 = vld [vmem:[#allocation5 + $0x88] sm:$0x3f]
      %v4282 = vld [vmem:[#allocation5 + $0x90] sm:$0x3f]
      %v4283 = vld [vmem:[#allocation5 + $0x98] sm:$0x3f]
      %v4284 = vld [vmem:[#allocation5 + $0xa0] sm:$0xff]
      %v4285 = vld [vmem:[#allocation5 + $0xa8] sm:$0xff]
      %v4286 = vld [vmem:[#allocation5 + $0xb0] sm:$0xff]
      %v4287 = vld [vmem:[#allocation5 + $0xb8] sm:$0xff]
      %v4288 = vld [vmem:[#allocation5 + $0xc0] sm:$0xff]
      %v4289 = vld [vmem:[#allocation5 + $0xc8] sm:$0x3f]
      %v4290 = vld [vmem:[#allocation5 + $0xd0] sm:$0x3f]
      %v4291 = vld [vmem:[#allocation5 + $0xd8] sm:$0x3f]
      %v4292 = vld [vmem:[#allocation5 + $0xe0] sm:$0x3f]
      %v4293 = vld [vmem:[#allocation5 + $0xe8] sm:$0x3f]
      %v4294 = vld [vmem:[#allocation5 + $0xf0] sm:$0xff]
      %v4295 = vld [vmem:[#allocation5 + $0xf8] sm:$0xff]
      %v4296 = vld [vmem:[#allocation5 + $0x100] sm:$0xff]
      %v4297 = vld [vmem:[#allocation5 + $0x108] sm:$0xff]
      %v4298 = vld [vmem:[#allocation5 + $0x110] sm:$0xff]
      %v4299 = vld [vmem:[#allocation5 + $0x118] sm:$0x3f]
      %v4300 = vld [vmem:[#allocation5 + $0x120] sm:$0x3f]
      %v4301 = vld [vmem:[#allocation5 + $0x128] sm:$0x3f]
      %v4302 = vld [vmem:[#allocation5 + $0x130] sm:$0x3f]
      %v4303 = vld [vmem:[#allocation5 + $0x138] sm:$0x3f]
      %v4304 = vld [vmem:[#allocation5 + $0x140] sm:$0xff]
      %v4305 = vld [vmem:[#allocation5 + $0x148] sm:$0xff]
      %v4306 = vld [vmem:[#allocation5 + $0x150] sm:$0xff]
      %v4307 = vld [vmem:[#allocation5 + $0x158] sm:$0xff]
      %v4308 = vld [vmem:[#allocation5 + $0x160] sm:$0xff]
      %v4309 = vld [vmem:[#allocation5 + $0x168] sm:$0x3f]
      %v4310 = vld [vmem:[#allocation5 + $0x170] sm:$0x3f]
      %v4311 = vld [vmem:[#allocation5 + $0x178] sm:$0x3f]
      %v4312 = vld [vmem:[#allocation5 + $0x180] sm:$0x3f]
      %v4313 = vld [vmem:[#allocation5 + $0x188] sm:$0x3f]
      %v4314 = vld [vmem:[#allocation5 + $0x190] sm:$0xff]
      %v4315 = vld [vmem:[#allocation5 + $0x198] sm:$0xff]
      %v4316 = vld [vmem:[#allocation5 + $0x1a0] sm:$0xff]
      %v4317 = vld [vmem:[#allocation5 + $0x1a8] sm:$0xff]
      %v4318 = vld [vmem:[#allocation5 + $0x1b0] sm:$0xff]
      %v4319 = vld [vmem:[#allocation5 + $0x1b8] sm:$0x3f]
      %v4320 = vld [vmem:[#allocation5 + $0x1c0] sm:$0x3f]
      %v4321 = vld [vmem:[#allocation5 + $0x1c8] sm:$0x3f]
      %v4322 = vld [vmem:[#allocation5 + $0x1d0] sm:$0x3f]
      %v4323 = vld [vmem:[#allocation5 + $0x1d8] sm:$0x3f]
      %v4324 = vld [vmem:[#allocation5 + $0x1e0] sm:$0xff]
      %v4325 = vld [vmem:[#allocation5 + $0x1e8] sm:$0xff]
      %v4326 = vld [vmem:[#allocation5 + $0x1f0] sm:$0xff]
      %v4327 = vld [vmem:[#allocation5 + $0x1f8] sm:$0xff]
      %v4328 = vld [vmem:[#allocation5 + $0x200] sm:$0xff]
      %v4329 = vld [vmem:[#allocation5 + $0x208] sm:$0x3f]
      %v4330 = vld [vmem:[#allocation5 + $0x210] sm:$0x3f]
      %v4331 = vld [vmem:[#allocation5 + $0x218] sm:$0x3f]
      %v4332 = vld [vmem:[#allocation5 + $0x220] sm:$0x3f]
      %v4333 = vld [vmem:[#allocation5 + $0x228] sm:$0x3f]
      %v4334 = vmul.f32 %v3668, 0.27406862
      %v4335 = vmul.f32 %v3669, 0.27406862
      %v4336 = vmul.f32 %v3670, 0.27406862
      %v4337 = vmul.f32 %v3671, 0.27406862
      %v4338 = vmul.f32 %v3672, 0.27406862
      %v4339 = vmul.f32 %v3673, 0.27406862
      %v4340 = vmul.f32 %v3674, 0.27406862
      %v4341 = vmul.f32 %v3675, 0.27406862
      %v4342 = vmul.f32 %v3676, 0.27406862
      %v4343 = vmul.f32 %v3677, 0.27406862
      %v4344 = vmul.f32 %v3678, 0.27406862
      %v4345 = vmul.f32 %v3679, 0.27406862
      %v4346 = vmul.f32 %v3680, 0.27406862
      %v4347 = vmul.f32 %v3681, 0.27406862
      %v4348 = vmul.f32 %v3682, 0.27406862
      %v4349 = vmul.f32 %v3683, 0.27406862
      %v4350 = vmul.f32 %v3684, 0.27406862
      %v4351 = vmul.f32 %v3685, 0.27406862
      %v4352 = vmul.f32 %v3686, 0.27406862
      %v4353 = vmul.f32 %v3687, 0.27406862
      %v4354 = vmul.f32 %v3688, 0.27406862
      %v4355 = vmul.f32 %v3689, 0.27406862
      %v4356 = vmul.f32 %v3690, 0.27406862
      %v4357 = vmul.f32 %v3691, 0.27406862
      %v4358 = vmul.f32 %v3692, 0.27406862
      %v4359 = vmul.f32 %v3693, 0.27406862
      %v4360 = vmul.f32 %v3694, 0.27406862
      %v4361 = vmul.f32 %v3695, 0.27406862
      %v4362 = vmul.f32 %v3696, 0.27406862
      %v4363 = vmul.f32 %v3697, 0.27406862
      %v4364 = vmul.f32 %v3698, 0.27406862
      %v4365 = vmul.f32 %v3699, 0.27406862
      %v4366 = vmul.f32 %v3700, 0.27406862
      %v4367 = vmul.f32 %v3701, 0.27406862
      %v4368 = vmul.f32 %v3702, 0.27406862
      %v4369 = vmul.f32 %v3703, 0.27406862
      %v4370 = vmul.f32 %v3704, 0.27406862
      %v4371 = vmul.f32 %v3705, 0.27406862
      %v4372 = vmul.f32 %v3706, 0.27406862
      %v4373 = vmul.f32 %v3707, 0.27406862
      %v4374 = vmul.f32 %v3708, 0.27406862
      %v4375 = vmul.f32 %v3709, 0.27406862
      %v4376 = vmul.f32 %v3710, 0.27406862
      %v4377 = vmul.f32 %v3711, 0.27406862
      %v4378 = vmul.f32 %v3712, 0.27406862
      %v4379 = vmul.f32 %v3713, 0.27406862
      %v4380 = vmul.f32 %v3714, 0.27406862
      %v4381 = vmul.f32 %v3715, 0.27406862
      %v4382 = vmul.f32 %v3716, 0.27406862
      %v4383 = vmul.f32 %v3717, 0.27406862
      %v4384 = vmul.f32 %v3718, 0.27406862
      %v4385 = vmul.f32 %v3719, 0.27406862
      %v4386 = vmul.f32 %v3720, 0.27406862
      %v4387 = vmul.f32 %v3721, 0.27406862
      %v4388 = vmul.f32 %v3722, 0.27406862
      %v4389 = vmul.f32 %v3723, 0.27406862
      %v4390 = vmul.f32 %v3724, 0.27406862
      %v4391 = vmul.f32 %v3725, 0.27406862
      %v4392 = vmul.f32 %v3726, 0.27406862
      %v4393 = vmul.f32 %v3727, 0.27406862
      %v4394 = vmul.f32 %v3728, 0.27406862
      %v4395 = vmul.f32 %v3729, 0.27406862
      %v4396 = vmul.f32 %v3730, 0.27406862
      %v4397 = vmul.f32 %v3731, 0.27406862
      %v4398 = vmul.f32 %v3732, 0.27406862
      %v4399 = vmul.f32 %v3733, 0.27406862
      %v4400 = vmul.f32 %v3734, 0.27406862
      %v4401 = vmul.f32 %v3735, 0.27406862
      %v4402 = vmul.f32 %v3736, 0.27406862
      %v4403 = vmul.f32 %v3737, 0.27406862
      %v4474 = vrot.slane %v4334, 2
      %v4475 = vrot.slane %v4339, 2
      %v4476 = vsel %vm3948, %v4474, %v4475
      %v4477 = vrot.slane %v4335, 2
      %v4478 = vrot.slane %v4340, 2
      %v4479 = vsel %vm3948, %v4477, %v4478
      %v4480 = vrot.slane %v4336, 2
      %v4481 = vrot.slane %v4341, 2
      %v4482 = vsel %vm3948, %v4480, %v4481
      %v4483 = vrot.slane %v4337, 2
      %v4484 = vrot.slane %v4342, 2
      %v4485 = vsel %vm3948, %v4483, %v4484
      %v4486 = vrot.slane %v4338, 2
      %v4487 = vrot.slane %v4343, 2
      %v4488 = vsel %vm3948, %v4486, %v4487
      %v4489 = vrot.slane %v4344, 2
      %v4490 = vrot.slane %v4349, 2
      %v4491 = vsel %vm3948, %v4489, %v4490
      %v4492 = vrot.slane %v4345, 2
      %v4493 = vrot.slane %v4350, 2
      %v4494 = vsel %vm3948, %v4492, %v4493
      %v4495 = vrot.slane %v4346, 2
      %v4496 = vrot.slane %v4351, 2
      %v4497 = vsel %vm3948, %v4495, %v4496
      %v4498 = vrot.slane %v4347, 2
      %v4499 = vrot.slane %v4352, 2
      %v4500 = vsel %vm3948, %v4498, %v4499
      %v4501 = vrot.slane %v4348, 2
      %v4502 = vrot.slane %v4353, 2
      %v4503 = vsel %vm3948, %v4501, %v4502
      %v4504 = vrot.slane %v4354, 2
      %v4505 = vrot.slane %v4359, 2
      %v4506 = vsel %vm3948, %v4504, %v4505
      %v4507 = vrot.slane %v4355, 2
      %v4508 = vrot.slane %v4360, 2
      %v4509 = vsel %vm3948, %v4507, %v4508
      %v4510 = vrot.slane %v4356, 2
      %v4511 = vrot.slane %v4361, 2
      %v4512 = vsel %vm3948, %v4510, %v4511
      %v4513 = vrot.slane %v4357, 2
      %v4514 = vrot.slane %v4362, 2
      %v4515 = vsel %vm3948, %v4513, %v4514
      %v4516 = vrot.slane %v4358, 2
      %v4517 = vrot.slane %v4363, 2
      %v4518 = vsel %vm3948, %v4516, %v4517
      %v4519 = vrot.slane %v4364, 2
      %v4520 = vrot.slane %v4369, 2
      %v4521 = vsel %vm3948, %v4519, %v4520
      %v4522 = vrot.slane %v4365, 2
      %v4523 = vrot.slane %v4370, 2
      %v4524 = vsel %vm3948, %v4522, %v4523
      %v4525 = vrot.slane %v4366, 2
      %v4526 = vrot.slane %v4371, 2
      %v4527 = vsel %vm3948, %v4525, %v4526
      %v4528 = vrot.slane %v4367, 2
      %v4529 = vrot.slane %v4372, 2
      %v4530 = vsel %vm3948, %v4528, %v4529
      %v4531 = vrot.slane %v4368, 2
      %v4532 = vrot.slane %v4373, 2
      %v4533 = vsel %vm3948, %v4531, %v4532
      %v4534 = vrot.slane %v4374, 2
      %v4535 = vrot.slane %v4379, 2
      %v4536 = vsel %vm3948, %v4534, %v4535
      %v4537 = vrot.slane %v4375, 2
      %v4538 = vrot.slane %v4380, 2
      %v4539 = vsel %vm3948, %v4537, %v4538
      %v4540 = vrot.slane %v4376, 2
      %v4541 = vrot.slane %v4381, 2
      %v4542 = vsel %vm3948, %v4540, %v4541
      %v4543 = vrot.slane %v4377, 2
      %v4544 = vrot.slane %v4382, 2
      %v4545 = vsel %vm3948, %v4543, %v4544
      %v4546 = vrot.slane %v4378, 2
      %v4547 = vrot.slane %v4383, 2
      %v4548 = vsel %vm3948, %v4546, %v4547
      %v4549 = vrot.slane %v4384, 2
      %v4550 = vrot.slane %v4389, 2
      %v4551 = vsel %vm3948, %v4549, %v4550
      %v4552 = vrot.slane %v4385, 2
      %v4553 = vrot.slane %v4390, 2
      %v4554 = vsel %vm3948, %v4552, %v4553
      %v4555 = vrot.slane %v4386, 2
      %v4556 = vrot.slane %v4391, 2
      %v4557 = vsel %vm3948, %v4555, %v4556
      %v4558 = vrot.slane %v4387, 2
      %v4559 = vrot.slane %v4392, 2
      %v4560 = vsel %vm3948, %v4558, %v4559
      %v4561 = vrot.slane %v4388, 2
      %v4562 = vrot.slane %v4393, 2
      %v4563 = vsel %vm3948, %v4561, %v4562
      %v4564 = vrot.slane %v4394, 2
      %v4565 = vrot.slane %v4399, 2
      %v4566 = vsel %vm3948, %v4564, %v4565
      %v4567 = vrot.slane %v4395, 2
      %v4568 = vrot.slane %v4400, 2
      %v4569 = vsel %vm3948, %v4567, %v4568
      %v4570 = vrot.slane %v4396, 2
      %v4571 = vrot.slane %v4401, 2
      %v4572 = vsel %vm3948, %v4570, %v4571
      %v4573 = vrot.slane %v4397, 2
      %v4574 = vrot.slane %v4402, 2
      %v4575 = vsel %vm3948, %v4573, %v4574
      %v4576 = vrot.slane %v4398, 2
      %v4577 = vrot.slane %v4403, 2
      %v4578 = vsel %vm3948, %v4576, %v4577
      %v4649 = vadd.f32 %v4264, %v4476
      %v4650 = vadd.f32 %v4265, %v4479
      %v4651 = vadd.f32 %v4266, %v4482
      %v4652 = vadd.f32 %v4267, %v4485
      %v4653 = vadd.f32 %v4268, %v4488
      %v4654 = vadd.f32 %v4269, %v4475
      %v4655 = vadd.f32 %v4270, %v4478
      %v4656 = vadd.f32 %v4271, %v4481
      %v4657 = vadd.f32 %v4272, %v4484
      %v4658 = vadd.f32 %v4273, %v4487
      %v4659 = vadd.f32 %v4274, %v4491
      %v4660 = vadd.f32 %v4275, %v4494
      %v4661 = vadd.f32 %v4276, %v4497
      %v4662 = vadd.f32 %v4277, %v4500
      %v4663 = vadd.f32 %v4278, %v4503
      %v4664 = vadd.f32 %v4279, %v4490
      %v4665 = vadd.f32 %v4280, %v4493
      %v4666 = vadd.f32 %v4281, %v4496
      %v4667 = vadd.f32 %v4282, %v4499
      %v4668 = vadd.f32 %v4283, %v4502
      %v4669 = vadd.f32 %v4284, %v4506
      %v4670 = vadd.f32 %v4285, %v4509
      %v4671 = vadd.f32 %v4286, %v4512
      %v4672 = vadd.f32 %v4287, %v4515
      %v4673 = vadd.f32 %v4288, %v4518
      %v4674 = vadd.f32 %v4289, %v4505
      %v4675 = vadd.f32 %v4290, %v4508
      %v4676 = vadd.f32 %v4291, %v4511
      %v4677 = vadd.f32 %v4292, %v4514
      %v4678 = vadd.f32 %v4293, %v4517
      %v4679 = vadd.f32 %v4294, %v4521
      %v4680 = vadd.f32 %v4295, %v4524
      %v4681 = vadd.f32 %v4296, %v4527
      %v4682 = vadd.f32 %v4297, %v4530
      %v4683 = vadd.f32 %v4298, %v4533
      %v4684 = vadd.f32 %v4299, %v4520
      %v4685 = vadd.f32 %v4300, %v4523
      %v4686 = vadd.f32 %v4301, %v4526
      %v4687 = vadd.f32 %v4302, %v4529
      %v4688 = vadd.f32 %v4303, %v4532
      %v4689 = vadd.f32 %v4304, %v4536
      %v4690 = vadd.f32 %v4305, %v4539
      %v4691 = vadd.f32 %v4306, %v4542
      %v4692 = vadd.f32 %v4307, %v4545
      %v4693 = vadd.f32 %v4308, %v4548
      %v4694 = vadd.f32 %v4309, %v4535
      %v4695 = vadd.f32 %v4310, %v4538
      %v4696 = vadd.f32 %v4311, %v4541
      %v4697 = vadd.f32 %v4312, %v4544
      %v4698 = vadd.f32 %v4313, %v4547
      %v4699 = vadd.f32 %v4314, %v4551
      %v4700 = vadd.f32 %v4315, %v4554
      %v4701 = vadd.f32 %v4316, %v4557
      %v4702 = vadd.f32 %v4317, %v4560
      %v4703 = vadd.f32 %v4318, %v4563
      %v4704 = vadd.f32 %v4319, %v4550
      %v4705 = vadd.f32 %v4320, %v4553
      %v4706 = vadd.f32 %v4321, %v4556
      %v4707 = vadd.f32 %v4322, %v4559
      %v4708 = vadd.f32 %v4323, %v4562
      %v4709 = vadd.f32 %v4324, %v4566
      %v4710 = vadd.f32 %v4325, %v4569
      %v4711 = vadd.f32 %v4326, %v4572
      %v4712 = vadd.f32 %v4327, %v4575
      %v4713 = vadd.f32 %v4328, %v4578
      %v4714 = vadd.f32 %v4329, %v4565
      %v4715 = vadd.f32 %v4330, %v4568
      %v4716 = vadd.f32 %v4331, %v4571
      %v4717 = vadd.f32 %v4332, %v4574
      %v4718 = vadd.f32 %v4333, %v4577
      %4719 = vst [vmem:[#allocation5] sm:$0xff] %v4649
      %4720 = vst [vmem:[#allocation5 + $0x8] sm:$0xff] %v4650
      %4721 = vst [vmem:[#allocation5 + $0x10] sm:$0xff] %v4651
      %4722 = vst [vmem:[#allocation5 + $0x18] sm:$0xff] %v4652
      %4723 = vst.msk [vmem:[#allocation5 + $0x20] sm:$0xff] %vm307, %v4653
      %4724 = vst [vmem:[#allocation5 + $0x28] sm:$0x3f] %v4654
      %4725 = vst [vmem:[#allocation5 + $0x30] sm:$0x3f] %v4655
      %4726 = vst [vmem:[#allocation5 + $0x38] sm:$0x3f] %v4656
      %4727 = vst [vmem:[#allocation5 + $0x40] sm:$0x3f] %v4657
      %4728 = vst.msk [vmem:[#allocation5 + $0x48] sm:$0x3f] %vm2205, %v4658
      %4729 = vst [vmem:[#allocation5 + $0x50] sm:$0xff] %v4659
      %4730 = vst [vmem:[#allocation5 + $0x58] sm:$0xff] %v4660
      %4731 = vst [vmem:[#allocation5 + $0x60] sm:$0xff] %v4661
      %4732 = vst [vmem:[#allocation5 + $0x68] sm:$0xff] %v4662
      %4733 = vst.msk [vmem:[#allocation5 + $0x70] sm:$0xff] %vm307, %v4663
      %4734 = vst [vmem:[#allocation5 + $0x78] sm:$0x3f] %v4664
      %4735 = vst [vmem:[#allocation5 + $0x80] sm:$0x3f] %v4665
      %4736 = vst [vmem:[#allocation5 + $0x88] sm:$0x3f] %v4666
      %4737 = vst [vmem:[#allocation5 + $0x90] sm:$0x3f] %v4667
      %4738 = vst.msk [vmem:[#allocation5 + $0x98] sm:$0x3f] %vm2205, %v4668
      %4739 = vst [vmem:[#allocation5 + $0xa0] sm:$0xff] %v4669
      %4740 = vst [vmem:[#allocation5 + $0xa8] sm:$0xff] %v4670
      %4741 = vst [vmem:[#allocation5 + $0xb0] sm:$0xff] %v4671
      %4742 = vst [vmem:[#allocation5 + $0xb8] sm:$0xff] %v4672
      %4743 = vst.msk [vmem:[#allocation5 + $0xc0] sm:$0xff] %vm307, %v4673
      %4744 = vst [vmem:[#allocation5 + $0xc8] sm:$0x3f] %v4674
      %4745 = vst [vmem:[#allocation5 + $0xd0] sm:$0x3f] %v4675
      %4746 = vst [vmem:[#allocation5 + $0xd8] sm:$0x3f] %v4676
      %4747 = vst [vmem:[#allocation5 + $0xe0] sm:$0x3f] %v4677
      %4748 = vst.msk [vmem:[#allocation5 + $0xe8] sm:$0x3f] %vm2205, %v4678
      %4749 = vst [vmem:[#allocation5 + $0xf0] sm:$0xff] %v4679
      %4750 = vst [vmem:[#allocation5 + $0xf8] sm:$0xff] %v4680
      %4751 = vst [vmem:[#allocation5 + $0x100] sm:$0xff] %v4681
      %4752 = vst [vmem:[#allocation5 + $0x108] sm:$0xff] %v4682
      %4753 = vst.msk [vmem:[#allocation5 + $0x110] sm:$0xff] %vm307, %v4683
      %4754 = vst [vmem:[#allocation5 + $0x118] sm:$0x3f] %v4684
      %4755 = vst [vmem:[#allocation5 + $0x120] sm:$0x3f] %v4685
      %4756 = vst [vmem:[#allocation5 + $0x128] sm:$0x3f] %v4686
      %4757 = vst [vmem:[#allocation5 + $0x130] sm:$0x3f] %v4687
      %4758 = vst.msk [vmem:[#allocation5 + $0x138] sm:$0x3f] %vm2205, %v4688
      %4759 = vst [vmem:[#allocation5 + $0x140] sm:$0xff] %v4689
      %4760 = vst [vmem:[#allocation5 + $0x148] sm:$0xff] %v4690
      %4761 = vst [vmem:[#allocation5 + $0x150] sm:$0xff] %v4691
      %4762 = vst [vmem:[#allocation5 + $0x158] sm:$0xff] %v4692
      %4763 = vst.msk [vmem:[#allocation5 + $0x160] sm:$0xff] %vm307, %v4693
      %4764 = vst [vmem:[#allocation5 + $0x168] sm:$0x3f] %v4694
      %4765 = vst [vmem:[#allocation5 + $0x170] sm:$0x3f] %v4695
      %4766 = vst [vmem:[#allocation5 + $0x178] sm:$0x3f] %v4696
      %4767 = vst [vmem:[#allocation5 + $0x180] sm:$0x3f] %v4697
      %4768 = vst.msk [vmem:[#allocation5 + $0x188] sm:$0x3f] %vm2205, %v4698
      %4769 = vst [vmem:[#allocation5 + $0x190] sm:$0xff] %v4699
      %4770 = vst [vmem:[#allocation5 + $0x198] sm:$0xff] %v4700
      %4771 = vst [vmem:[#allocation5 + $0x1a0] sm:$0xff] %v4701
      %4772 = vst [vmem:[#allocation5 + $0x1a8] sm:$0xff] %v4702
      %4773 = vst.msk [vmem:[#allocation5 + $0x1b0] sm:$0xff] %vm307, %v4703
      %4774 = vst [vmem:[#allocation5 + $0x1b8] sm:$0x3f] %v4704
      %4775 = vst [vmem:[#allocation5 + $0x1c0] sm:$0x3f] %v4705
      %4776 = vst [vmem:[#allocation5 + $0x1c8] sm:$0x3f] %v4706
      %4777 = vst [vmem:[#allocation5 + $0x1d0] sm:$0x3f] %v4707
      %4778 = vst.msk [vmem:[#allocation5 + $0x1d8] sm:$0x3f] %vm2205, %v4708
      %4779 = vst [vmem:[#allocation5 + $0x1e0] sm:$0xff] %v4709
      %4780 = vst [vmem:[#allocation5 + $0x1e8] sm:$0xff] %v4710
      %4781 = vst [vmem:[#allocation5 + $0x1f0] sm:$0xff] %v4711
      %4782 = vst [vmem:[#allocation5 + $0x1f8] sm:$0xff] %v4712
      %4783 = vst.msk [vmem:[#allocation5 + $0x200] sm:$0xff] %vm307, %v4713
      %4784 = vst [vmem:[#allocation5 + $0x208] sm:$0x3f] %v4714
      %4785 = vst [vmem:[#allocation5 + $0x210] sm:$0x3f] %v4715
      %4786 = vst [vmem:[#allocation5 + $0x218] sm:$0x3f] %v4716
      %4787 = vst [vmem:[#allocation5 + $0x220] sm:$0x3f] %v4717
      %4788 = vst.msk [vmem:[#allocation5 + $0x228] sm:$0x3f] %vm2205, %v4718
      %v4789 = vld [vmem:[#allocation4] sm:$0xff]
      %v4790 = vld [vmem:[#allocation4 + $0x8] sm:$0xff]
      %v4791 = vld [vmem:[#allocation4 + $0x10] sm:$0xff]
      %v4792 = vld [vmem:[#allocation4 + $0x18] sm:$0xff]
      %v4793 = vld [vmem:[#allocation4 + $0x20] sm:$0xff]
      %v4794 = vld [vmem:[#allocation4 + $0x28] sm:$0x3f]
      %v4795 = vld [vmem:[#allocation4 + $0x30] sm:$0x3f]
      %v4796 = vld [vmem:[#allocation4 + $0x38] sm:$0x3f]
      %v4797 = vld [vmem:[#allocation4 + $0x40] sm:$0x3f]
      %v4798 = vld [vmem:[#allocation4 + $0x48] sm:$0x3f]
      %v4799 = vld [vmem:[#allocation4 + $0x50] sm:$0xff]
      %v4800 = vld [vmem:[#allocation4 + $0x58] sm:$0xff]
      %v4801 = vld [vmem:[#allocation4 + $0x60] sm:$0xff]
      %v4802 = vld [vmem:[#allocation4 + $0x68] sm:$0xff]
      %v4803 = vld [vmem:[#allocation4 + $0x70] sm:$0xff]
      %v4804 = vld [vmem:[#allocation4 + $0x78] sm:$0x3f]
      %v4805 = vld [vmem:[#allocation4 + $0x80] sm:$0x3f]
      %v4806 = vld [vmem:[#allocation4 + $0x88] sm:$0x3f]
      %v4807 = vld [vmem:[#allocation4 + $0x90] sm:$0x3f]
      %v4808 = vld [vmem:[#allocation4 + $0x98] sm:$0x3f]
      %v4809 = vld [vmem:[#allocation4 + $0xa0] sm:$0xff]
      %v4810 = vld [vmem:[#allocation4 + $0xa8] sm:$0xff]
      %v4811 = vld [vmem:[#allocation4 + $0xb0] sm:$0xff]
      %v4812 = vld [vmem:[#allocation4 + $0xb8] sm:$0xff]
      %v4813 = vld [vmem:[#allocation4 + $0xc0] sm:$0xff]
      %v4814 = vld [vmem:[#allocation4 + $0xc8] sm:$0x3f]
      %v4815 = vld [vmem:[#allocation4 + $0xd0] sm:$0x3f]
      %v4816 = vld [vmem:[#allocation4 + $0xd8] sm:$0x3f]
      %v4817 = vld [vmem:[#allocation4 + $0xe0] sm:$0x3f]
      %v4818 = vld [vmem:[#allocation4 + $0xe8] sm:$0x3f]
      %v4819 = vld [vmem:[#allocation4 + $0xf0] sm:$0xff]
      %v4820 = vld [vmem:[#allocation4 + $0xf8] sm:$0xff]
      %v4821 = vld [vmem:[#allocation4 + $0x100] sm:$0xff]
      %v4822 = vld [vmem:[#allocation4 + $0x108] sm:$0xff]
      %v4823 = vld [vmem:[#allocation4 + $0x110] sm:$0xff]
      %v4824 = vld [vmem:[#allocation4 + $0x118] sm:$0x3f]
      %v4825 = vld [vmem:[#allocation4 + $0x120] sm:$0x3f]
      %v4826 = vld [vmem:[#allocation4 + $0x128] sm:$0x3f]
      %v4827 = vld [vmem:[#allocation4 + $0x130] sm:$0x3f]
      %v4828 = vld [vmem:[#allocation4 + $0x138] sm:$0x3f]
      %v4829 = vld [vmem:[#allocation4 + $0x140] sm:$0xff]
      %v4830 = vld [vmem:[#allocation4 + $0x148] sm:$0xff]
      %v4831 = vld [vmem:[#allocation4 + $0x150] sm:$0xff]
      %v4832 = vld [vmem:[#allocation4 + $0x158] sm:$0xff]
      %v4833 = vld [vmem:[#allocation4 + $0x160] sm:$0xff]
      %v4834 = vld [vmem:[#allocation4 + $0x168] sm:$0x3f]
      %v4835 = vld [vmem:[#allocation4 + $0x170] sm:$0x3f]
      %v4836 = vld [vmem:[#allocation4 + $0x178] sm:$0x3f]
      %v4837 = vld [vmem:[#allocation4 + $0x180] sm:$0x3f]
      %v4838 = vld [vmem:[#allocation4 + $0x188] sm:$0x3f]
      %v4839 = vld [vmem:[#allocation4 + $0x190] sm:$0xff]
      %v4840 = vld [vmem:[#allocation4 + $0x198] sm:$0xff]
      %v4841 = vld [vmem:[#allocation4 + $0x1a0] sm:$0xff]
      %v4842 = vld [vmem:[#allocation4 + $0x1a8] sm:$0xff]
      %v4843 = vld [vmem:[#allocation4 + $0x1b0] sm:$0xff]
      %v4844 = vld [vmem:[#allocation4 + $0x1b8] sm:$0x3f]
      %v4845 = vld [vmem:[#allocation4 + $0x1c0] sm:$0x3f]
      %v4846 = vld [vmem:[#allocation4 + $0x1c8] sm:$0x3f]
      %v4847 = vld [vmem:[#allocation4 + $0x1d0] sm:$0x3f]
      %v4848 = vld [vmem:[#allocation4 + $0x1d8] sm:$0x3f]
      %v4849 = vld [vmem:[#allocation4 + $0x1e0] sm:$0xff]
      %v4850 = vld [vmem:[#allocation4 + $0x1e8] sm:$0xff]
      %v4851 = vld [vmem:[#allocation4 + $0x1f0] sm:$0xff]
      %v4852 = vld [vmem:[#allocation4 + $0x1f8] sm:$0xff]
      %v4853 = vld [vmem:[#allocation4 + $0x200] sm:$0xff]
      %v4854 = vld [vmem:[#allocation4 + $0x208] sm:$0x3f]
      %v4855 = vld [vmem:[#allocation4 + $0x210] sm:$0x3f]
      %v4856 = vld [vmem:[#allocation4 + $0x218] sm:$0x3f]
      %v4857 = vld [vmem:[#allocation4 + $0x220] sm:$0x3f]
      %v4858 = vld [vmem:[#allocation4 + $0x228] sm:$0x3f]
      %v4859 = vld [vmem:[#allocation5] sm:$0xff]
      %v4860 = vld [vmem:[#allocation5 + $0x8] sm:$0xff]
      %v4861 = vld [vmem:[#allocation5 + $0x10] sm:$0xff]
      %v4862 = vld [vmem:[#allocation5 + $0x18] sm:$0xff]
      %v4863 = vld [vmem:[#allocation5 + $0x20] sm:$0xff]
      %v4864 = vld [vmem:[#allocation5 + $0x28] sm:$0x3f]
      %v4865 = vld [vmem:[#allocation5 + $0x30] sm:$0x3f]
      %v4866 = vld [vmem:[#allocation5 + $0x38] sm:$0x3f]
      %v4867 = vld [vmem:[#allocation5 + $0x40] sm:$0x3f]
      %v4868 = vld [vmem:[#allocation5 + $0x48] sm:$0x3f]
      %v4869 = vld [vmem:[#allocation5 + $0x50] sm:$0xff]
      %v4870 = vld [vmem:[#allocation5 + $0x58] sm:$0xff]
      %v4871 = vld [vmem:[#allocation5 + $0x60] sm:$0xff]
      %v4872 = vld [vmem:[#allocation5 + $0x68] sm:$0xff]
      %v4873 = vld [vmem:[#allocation5 + $0x70] sm:$0xff]
      %v4874 = vld [vmem:[#allocation5 + $0x78] sm:$0x3f]
      %v4875 = vld [vmem:[#allocation5 + $0x80] sm:$0x3f]
      %v4876 = vld [vmem:[#allocation5 + $0x88] sm:$0x3f]
      %v4877 = vld [vmem:[#allocation5 + $0x90] sm:$0x3f]
      %v4878 = vld [vmem:[#allocation5 + $0x98] sm:$0x3f]
      %v4879 = vld [vmem:[#allocation5 + $0xa0] sm:$0xff]
      %v4880 = vld [vmem:[#allocation5 + $0xa8] sm:$0xff]
      %v4881 = vld [vmem:[#allocation5 + $0xb0] sm:$0xff]
      %v4882 = vld [vmem:[#allocation5 + $0xb8] sm:$0xff]
      %v4883 = vld [vmem:[#allocation5 + $0xc0] sm:$0xff]
      %v4884 = vld [vmem:[#allocation5 + $0xc8] sm:$0x3f]
      %v4885 = vld [vmem:[#allocation5 + $0xd0] sm:$0x3f]
      %v4886 = vld [vmem:[#allocation5 + $0xd8] sm:$0x3f]
      %v4887 = vld [vmem:[#allocation5 + $0xe0] sm:$0x3f]
      %v4888 = vld [vmem:[#allocation5 + $0xe8] sm:$0x3f]
      %v4889 = vld [vmem:[#allocation5 + $0xf0] sm:$0xff]
      %v4890 = vld [vmem:[#allocation5 + $0xf8] sm:$0xff]
      %v4891 = vld [vmem:[#allocation5 + $0x100] sm:$0xff]
      %v4892 = vld [vmem:[#allocation5 + $0x108] sm:$0xff]
      %v4893 = vld [vmem:[#allocation5 + $0x110] sm:$0xff]
      %v4894 = vld [vmem:[#allocation5 + $0x118] sm:$0x3f]
      %v4895 = vld [vmem:[#allocation5 + $0x120] sm:$0x3f]
      %v4896 = vld [vmem:[#allocation5 + $0x128] sm:$0x3f]
      %v4897 = vld [vmem:[#allocation5 + $0x130] sm:$0x3f]
      %v4898 = vld [vmem:[#allocation5 + $0x138] sm:$0x3f]
      %v4899 = vld [vmem:[#allocation5 + $0x140] sm:$0xff]
      %v4900 = vld [vmem:[#allocation5 + $0x148] sm:$0xff]
      %v4901 = vld [vmem:[#allocation5 + $0x150] sm:$0xff]
      %v4902 = vld [vmem:[#allocation5 + $0x158] sm:$0xff]
      %v4903 = vld [vmem:[#allocation5 + $0x160] sm:$0xff]
      %v4904 = vld [vmem:[#allocation5 + $0x168] sm:$0x3f]
      %v4905 = vld [vmem:[#allocation5 + $0x170] sm:$0x3f]
      %v4906 = vld [vmem:[#allocation5 + $0x178] sm:$0x3f]
      %v4907 = vld [vmem:[#allocation5 + $0x180] sm:$0x3f]
      %v4908 = vld [vmem:[#allocation5 + $0x188] sm:$0x3f]
      %v4909 = vld [vmem:[#allocation5 + $0x190] sm:$0xff]
      %v4910 = vld [vmem:[#allocation5 + $0x198] sm:$0xff]
      %v4911 = vld [vmem:[#allocation5 + $0x1a0] sm:$0xff]
      %v4912 = vld [vmem:[#allocation5 + $0x1a8] sm:$0xff]
      %v4913 = vld [vmem:[#allocation5 + $0x1b0] sm:$0xff]
      %v4914 = vld [vmem:[#allocation5 + $0x1b8] sm:$0x3f]
      %v4915 = vld [vmem:[#allocation5 + $0x1c0] sm:$0x3f]
      %v4916 = vld [vmem:[#allocation5 + $0x1c8] sm:$0x3f]
      %v4917 = vld [vmem:[#allocation5 + $0x1d0] sm:$0x3f]
      %v4918 = vld [vmem:[#allocation5 + $0x1d8] sm:$0x3f]
      %v4919 = vld [vmem:[#allocation5 + $0x1e0] sm:$0xff]
      %v4920 = vld [vmem:[#allocation5 + $0x1e8] sm:$0xff]
      %v4921 = vld [vmem:[#allocation5 + $0x1f0] sm:$0xff]
      %v4922 = vld [vmem:[#allocation5 + $0x1f8] sm:$0xff]
      %v4923 = vld [vmem:[#allocation5 + $0x200] sm:$0xff]
      %v4924 = vld [vmem:[#allocation5 + $0x208] sm:$0x3f]
      %v4925 = vld [vmem:[#allocation5 + $0x210] sm:$0x3f]
      %v4926 = vld [vmem:[#allocation5 + $0x218] sm:$0x3f]
      %v4927 = vld [vmem:[#allocation5 + $0x220] sm:$0x3f]
      %v4928 = vld [vmem:[#allocation5 + $0x228] sm:$0x3f]
      %v4929 = vmul.f32 %v4789, %v4789
      %v4930 = vmul.f32 %v4790, %v4790
      %v4931 = vmul.f32 %v4791, %v4791
      %v4932 = vmul.f32 %v4792, %v4792
      %v4933 = vmul.f32 %v4793, %v4793
      %v4934 = vmul.f32 %v4794, %v4794
      %v4935 = vmul.f32 %v4795, %v4795
      %v4936 = vmul.f32 %v4796, %v4796
      %v4937 = vmul.f32 %v4797, %v4797
      %v4938 = vmul.f32 %v4798, %v4798
      %v4939 = vmul.f32 %v4799, %v4799
      %v4940 = vmul.f32 %v4800, %v4800
      %v4941 = vmul.f32 %v4801, %v4801
      %v4942 = vmul.f32 %v4802, %v4802
      %v4943 = vmul.f32 %v4803, %v4803
      %v4944 = vmul.f32 %v4804, %v4804
      %v4945 = vmul.f32 %v4805, %v4805
      %v4946 = vmul.f32 %v4806, %v4806
      %v4947 = vmul.f32 %v4807, %v4807
      %v4948 = vmul.f32 %v4808, %v4808
      %v4949 = vmul.f32 %v4809, %v4809
      %v4950 = vmul.f32 %v4810, %v4810
      %v4951 = vmul.f32 %v4811, %v4811
      %v4952 = vmul.f32 %v4812, %v4812
      %v4953 = vmul.f32 %v4813, %v4813
      %v4954 = vmul.f32 %v4814, %v4814
      %v4955 = vmul.f32 %v4815, %v4815
      %v4956 = vmul.f32 %v4816, %v4816
      %v4957 = vmul.f32 %v4817, %v4817
      %v4958 = vmul.f32 %v4818, %v4818
      %v4959 = vmul.f32 %v4819, %v4819
      %v4960 = vmul.f32 %v4820, %v4820
      %v4961 = vmul.f32 %v4821, %v4821
      %v4962 = vmul.f32 %v4822, %v4822
      %v4963 = vmul.f32 %v4823, %v4823
      %v4964 = vmul.f32 %v4824, %v4824
      %v4965 = vmul.f32 %v4825, %v4825
      %v4966 = vmul.f32 %v4826, %v4826
      %v4967 = vmul.f32 %v4827, %v4827
      %v4968 = vmul.f32 %v4828, %v4828
      %v4969 = vmul.f32 %v4829, %v4829
      %v4970 = vmul.f32 %v4830, %v4830
      %v4971 = vmul.f32 %v4831, %v4831
      %v4972 = vmul.f32 %v4832, %v4832
      %v4973 = vmul.f32 %v4833, %v4833
      %v4974 = vmul.f32 %v4834, %v4834
      %v4975 = vmul.f32 %v4835, %v4835
      %v4976 = vmul.f32 %v4836, %v4836
      %v4977 = vmul.f32 %v4837, %v4837
      %v4978 = vmul.f32 %v4838, %v4838
      %v4979 = vmul.f32 %v4839, %v4839
      %v4980 = vmul.f32 %v4840, %v4840
      %v4981 = vmul.f32 %v4841, %v4841
      %v4982 = vmul.f32 %v4842, %v4842
      %v4983 = vmul.f32 %v4843, %v4843
      %v4984 = vmul.f32 %v4844, %v4844
      %v4985 = vmul.f32 %v4845, %v4845
      %v4986 = vmul.f32 %v4846, %v4846
      %v4987 = vmul.f32 %v4847, %v4847
      %v4988 = vmul.f32 %v4848, %v4848
      %v4989 = vmul.f32 %v4849, %v4849
      %v4990 = vmul.f32 %v4850, %v4850
      %v4991 = vmul.f32 %v4851, %v4851
      %v4992 = vmul.f32 %v4852, %v4852
      %v4993 = vmul.f32 %v4853, %v4853
      %v4994 = vmul.f32 %v4854, %v4854
      %v4995 = vmul.f32 %v4855, %v4855
      %v4996 = vmul.f32 %v4856, %v4856
      %v4997 = vmul.f32 %v4857, %v4857
      %v4998 = vmul.f32 %v4858, %v4858
      %v4999 = vsub.f32 %v4859, %v4929
      %v5000 = vsub.f32 %v4860, %v4930
      %v5001 = vsub.f32 %v4861, %v4931
      %v5002 = vsub.f32 %v4862, %v4932
      %v5003 = vsub.f32 %v4863, %v4933
      %v5004 = vsub.f32 %v4864, %v4934
      %v5005 = vsub.f32 %v4865, %v4935
      %v5006 = vsub.f32 %v4866, %v4936
      %v5007 = vsub.f32 %v4867, %v4937
      %v5008 = vsub.f32 %v4868, %v4938
      %v5009 = vsub.f32 %v4869, %v4939
      %v5010 = vsub.f32 %v4870, %v4940
      %v5011 = vsub.f32 %v4871, %v4941
      %v5012 = vsub.f32 %v4872, %v4942
      %v5013 = vsub.f32 %v4873, %v4943
      %v5014 = vsub.f32 %v4874, %v4944
      %v5015 = vsub.f32 %v4875, %v4945
      %v5016 = vsub.f32 %v4876, %v4946
      %v5017 = vsub.f32 %v4877, %v4947
      %v5018 = vsub.f32 %v4878, %v4948
      %v5019 = vsub.f32 %v4879, %v4949
      %v5020 = vsub.f32 %v4880, %v4950
      %v5021 = vsub.f32 %v4881, %v4951
      %v5022 = vsub.f32 %v4882, %v4952
      %v5023 = vsub.f32 %v4883, %v4953
      %v5024 = vsub.f32 %v4884, %v4954
      %v5025 = vsub.f32 %v4885, %v4955
      %v5026 = vsub.f32 %v4886, %v4956
      %v5027 = vsub.f32 %v4887, %v4957
      %v5028 = vsub.f32 %v4888, %v4958
      %v5029 = vsub.f32 %v4889, %v4959
      %v5030 = vsub.f32 %v4890, %v4960
      %v5031 = vsub.f32 %v4891, %v4961
      %v5032 = vsub.f32 %v4892, %v4962
      %v5033 = vsub.f32 %v4893, %v4963
      %v5034 = vsub.f32 %v4894, %v4964
      %v5035 = vsub.f32 %v4895, %v4965
      %v5036 = vsub.f32 %v4896, %v4966
      %v5037 = vsub.f32 %v4897, %v4967
      %v5038 = vsub.f32 %v4898, %v4968
      %v5039 = vsub.f32 %v4899, %v4969
      %v5040 = vsub.f32 %v4900, %v4970
      %v5041 = vsub.f32 %v4901, %v4971
      %v5042 = vsub.f32 %v4902, %v4972
      %v5043 = vsub.f32 %v4903, %v4973
      %v5044 = vsub.f32 %v4904, %v4974
      %v5045 = vsub.f32 %v4905, %v4975
      %v5046 = vsub.f32 %v4906, %v4976
      %v5047 = vsub.f32 %v4907, %v4977
      %v5048 = vsub.f32 %v4908, %v4978
      %v5049 = vsub.f32 %v4909, %v4979
      %v5050 = vsub.f32 %v4910, %v4980
      %v5051 = vsub.f32 %v4911, %v4981
      %v5052 = vsub.f32 %v4912, %v4982
      %v5053 = vsub.f32 %v4913, %v4983
      %v5054 = vsub.f32 %v4914, %v4984
      %v5055 = vsub.f32 %v4915, %v4985
      %v5056 = vsub.f32 %v4916, %v4986
      %v5057 = vsub.f32 %v4917, %v4987
      %v5058 = vsub.f32 %v4918, %v4988
      %v5059 = vsub.f32 %v4919, %v4989
      %v5060 = vsub.f32 %v4920, %v4990
      %v5061 = vsub.f32 %v4921, %v4991
      %v5062 = vsub.f32 %v4922, %v4992
      %v5063 = vsub.f32 %v4923, %v4993
      %v5064 = vsub.f32 %v4924, %v4994
      %v5065 = vsub.f32 %v4925, %v4995
      %v5066 = vsub.f32 %v4926, %v4996
      %v5067 = vsub.f32 %v4927, %v4997
      %v5068 = vsub.f32 %v4928, %v4998
      %v5069 = vmax.f32 %v4999, 0.0
      %v5070 = vmax.f32 %v5000, 0.0
      %v5071 = vmax.f32 %v5001, 0.0
      %v5072 = vmax.f32 %v5002, 0.0
      %v5073 = vmax.f32 %v5003, 0.0
      %v5074 = vmax.f32 %v5004, 0.0
      %v5075 = vmax.f32 %v5005, 0.0
      %v5076 = vmax.f32 %v5006, 0.0
      %v5077 = vmax.f32 %v5007, 0.0
      %v5078 = vmax.f32 %v5008, 0.0
      %v5079 = vmax.f32 %v5009, 0.0
      %v5080 = vmax.f32 %v5010, 0.0
      %v5081 = vmax.f32 %v5011, 0.0
      %v5082 = vmax.f32 %v5012, 0.0
      %v5083 = vmax.f32 %v5013, 0.0
      %v5084 = vmax.f32 %v5014, 0.0
      %v5085 = vmax.f32 %v5015, 0.0
      %v5086 = vmax.f32 %v5016, 0.0
      %v5087 = vmax.f32 %v5017, 0.0
      %v5088 = vmax.f32 %v5018, 0.0
      %v5089 = vmax.f32 %v5019, 0.0
      %v5090 = vmax.f32 %v5020, 0.0
      %v5091 = vmax.f32 %v5021, 0.0
      %v5092 = vmax.f32 %v5022, 0.0
      %v5093 = vmax.f32 %v5023, 0.0
      %v5094 = vmax.f32 %v5024, 0.0
      %v5095 = vmax.f32 %v5025, 0.0
      %v5096 = vmax.f32 %v5026, 0.0
      %v5097 = vmax.f32 %v5027, 0.0
      %v5098 = vmax.f32 %v5028, 0.0
      %v5099 = vmax.f32 %v5029, 0.0
      %v5100 = vmax.f32 %v5030, 0.0
      %v5101 = vmax.f32 %v5031, 0.0
      %v5102 = vmax.f32 %v5032, 0.0
      %v5103 = vmax.f32 %v5033, 0.0
      %v5104 = vmax.f32 %v5034, 0.0
      %v5105 = vmax.f32 %v5035, 0.0
      %v5106 = vmax.f32 %v5036, 0.0
      %v5107 = vmax.f32 %v5037, 0.0
      %v5108 = vmax.f32 %v5038, 0.0
      %v5109 = vmax.f32 %v5039, 0.0
      %v5110 = vmax.f32 %v5040, 0.0
      %v5111 = vmax.f32 %v5041, 0.0
      %v5112 = vmax.f32 %v5042, 0.0
      %v5113 = vmax.f32 %v5043, 0.0
      %v5114 = vmax.f32 %v5044, 0.0
      %v5115 = vmax.f32 %v5045, 0.0
      %v5116 = vmax.f32 %v5046, 0.0
      %v5117 = vmax.f32 %v5047, 0.0
      %v5118 = vmax.f32 %v5048, 0.0
      %v5119 = vmax.f32 %v5049, 0.0
      %v5120 = vmax.f32 %v5050, 0.0
      %v5121 = vmax.f32 %v5051, 0.0
      %v5122 = vmax.f32 %v5052, 0.0
      %v5123 = vmax.f32 %v5053, 0.0
      %v5124 = vmax.f32 %v5054, 0.0
      %v5125 = vmax.f32 %v5055, 0.0
      %v5126 = vmax.f32 %v5056, 0.0
      %v5127 = vmax.f32 %v5057, 0.0
      %v5128 = vmax.f32 %v5058, 0.0
      %v5129 = vmax.f32 %v5059, 0.0
      %v5130 = vmax.f32 %v5060, 0.0
      %v5131 = vmax.f32 %v5061, 0.0
      %v5132 = vmax.f32 %v5062, 0.0
      %v5133 = vmax.f32 %v5063, 0.0
      %v5134 = vmax.f32 %v5064, 0.0
      %v5135 = vmax.f32 %v5065, 0.0
      %v5136 = vmax.f32 %v5066, 0.0
      %v5137 = vmax.f32 %v5067, 0.0
      %v5138 = vmax.f32 %v5068, 0.0
      %v5139 = vrsqrt.pop %v5069
      %v5140 = vmul.f32 %v5069, %v5139
      %vm5141 = vcmp.eq.f32.partialorder %v5069, inf
      %v5142 = vsel %vm5141, %v5069, %v5140
      %vm5143 = vcmp.eq.f32.partialorder %v5069, 0.0
      %v5144 = vand.u32 %v5069, 2147483648
      %v5145 = vsel %vm5143, %v5144, %v5142
      %v5146 = vrsqrt.pop %v5070
      %v5147 = vmul.f32 %v5070, %v5146
      %vm5148 = vcmp.eq.f32.partialorder %v5070, inf
      %v5149 = vsel %vm5148, %v5070, %v5147
      %vm5150 = vcmp.eq.f32.partialorder %v5070, 0.0
      %v5151 = vand.u32 %v5070, 2147483648
      %v5152 = vsel %vm5150, %v5151, %v5149
      %v5153 = vrsqrt.pop %v5071
      %v5154 = vmul.f32 %v5071, %v5153
      %vm5155 = vcmp.eq.f32.partialorder %v5071, inf
      %v5156 = vsel %vm5155, %v5071, %v5154
      %vm5157 = vcmp.eq.f32.partialorder %v5071, 0.0
      %v5158 = vand.u32 %v5071, 2147483648
      %v5159 = vsel %vm5157, %v5158, %v5156
      %v5160 = vrsqrt.pop %v5072
      %v5161 = vmul.f32 %v5072, %v5160
      %vm5162 = vcmp.eq.f32.partialorder %v5072, inf
      %v5163 = vsel %vm5162, %v5072, %v5161
      %vm5164 = vcmp.eq.f32.partialorder %v5072, 0.0
      %v5165 = vand.u32 %v5072, 2147483648
      %v5166 = vsel %vm5164, %v5165, %v5163
      %v5167 = vrsqrt.pop %v5073
      %v5168 = vmul.f32 %v5073, %v5167
      %vm5169 = vcmp.eq.f32.partialorder %v5073, inf
      %v5170 = vsel %vm5169, %v5073, %v5168
      %vm5171 = vcmp.eq.f32.partialorder %v5073, 0.0
      %v5172 = vand.u32 %v5073, 2147483648
      %v5173 = vsel %vm5171, %v5172, %v5170
      %v5174 = vrsqrt.pop %v5074
      %v5175 = vmul.f32 %v5074, %v5174
      %vm5176 = vcmp.eq.f32.partialorder %v5074, inf
      %v5177 = vsel %vm5176, %v5074, %v5175
      %vm5178 = vcmp.eq.f32.partialorder %v5074, 0.0
      %v5179 = vand.u32 %v5074, 2147483648
      %v5180 = vsel %vm5178, %v5179, %v5177
      %v5181 = vrsqrt.pop %v5075
      %v5182 = vmul.f32 %v5075, %v5181
      %vm5183 = vcmp.eq.f32.partialorder %v5075, inf
      %v5184 = vsel %vm5183, %v5075, %v5182
      %vm5185 = vcmp.eq.f32.partialorder %v5075, 0.0
      %v5186 = vand.u32 %v5075, 2147483648
      %v5187 = vsel %vm5185, %v5186, %v5184
      %v5188 = vrsqrt.pop %v5076
      %v5189 = vmul.f32 %v5076, %v5188
      %vm5190 = vcmp.eq.f32.partialorder %v5076, inf
      %v5191 = vsel %vm5190, %v5076, %v5189
      %vm5192 = vcmp.eq.f32.partialorder %v5076, 0.0
      %v5193 = vand.u32 %v5076, 2147483648
      %v5194 = vsel %vm5192, %v5193, %v5191
      %v5195 = vrsqrt.pop %v5077
      %v5196 = vmul.f32 %v5077, %v5195
      %vm5197 = vcmp.eq.f32.partialorder %v5077, inf
      %v5198 = vsel %vm5197, %v5077, %v5196
      %vm5199 = vcmp.eq.f32.partialorder %v5077, 0.0
      %v5200 = vand.u32 %v5077, 2147483648
      %v5201 = vsel %vm5199, %v5200, %v5198
      %v5202 = vrsqrt.pop %v5078
      %v5203 = vmul.f32 %v5078, %v5202
      %vm5204 = vcmp.eq.f32.partialorder %v5078, inf
      %v5205 = vsel %vm5204, %v5078, %v5203
      %vm5206 = vcmp.eq.f32.partialorder %v5078, 0.0
      %v5207 = vand.u32 %v5078, 2147483648
      %v5208 = vsel %vm5206, %v5207, %v5205
      %v5209 = vrsqrt.pop %v5079
      %v5210 = vmul.f32 %v5079, %v5209
      %vm5211 = vcmp.eq.f32.partialorder %v5079, inf
      %v5212 = vsel %vm5211, %v5079, %v5210
      %vm5213 = vcmp.eq.f32.partialorder %v5079, 0.0
      %v5214 = vand.u32 %v5079, 2147483648
      %v5215 = vsel %vm5213, %v5214, %v5212
      %v5216 = vrsqrt.pop %v5080
      %v5217 = vmul.f32 %v5080, %v5216
      %vm5218 = vcmp.eq.f32.partialorder %v5080, inf
      %v5219 = vsel %vm5218, %v5080, %v5217
      %vm5220 = vcmp.eq.f32.partialorder %v5080, 0.0
      %v5221 = vand.u32 %v5080, 2147483648
      %v5222 = vsel %vm5220, %v5221, %v5219
      %v5223 = vrsqrt.pop %v5081
      %v5224 = vmul.f32 %v5081, %v5223
      %vm5225 = vcmp.eq.f32.partialorder %v5081, inf
      %v5226 = vsel %vm5225, %v5081, %v5224
      %vm5227 = vcmp.eq.f32.partialorder %v5081, 0.0
      %v5228 = vand.u32 %v5081, 2147483648
      %v5229 = vsel %vm5227, %v5228, %v5226
      %v5230 = vrsqrt.pop %v5082
      %v5231 = vmul.f32 %v5082, %v5230
      %vm5232 = vcmp.eq.f32.partialorder %v5082, inf
      %v5233 = vsel %vm5232, %v5082, %v5231
      %vm5234 = vcmp.eq.f32.partialorder %v5082, 0.0
      %v5235 = vand.u32 %v5082, 2147483648
      %v5236 = vsel %vm5234, %v5235, %v5233
      %v5237 = vrsqrt.pop %v5083
      %v5238 = vmul.f32 %v5083, %v5237
      %vm5239 = vcmp.eq.f32.partialorder %v5083, inf
      %v5240 = vsel %vm5239, %v5083, %v5238
      %vm5241 = vcmp.eq.f32.partialorder %v5083, 0.0
      %v5242 = vand.u32 %v5083, 2147483648
      %v5243 = vsel %vm5241, %v5242, %v5240
      %v5244 = vrsqrt.pop %v5084
      %v5245 = vmul.f32 %v5084, %v5244
      %vm5246 = vcmp.eq.f32.partialorder %v5084, inf
      %v5247 = vsel %vm5246, %v5084, %v5245
      %vm5248 = vcmp.eq.f32.partialorder %v5084, 0.0
      %v5249 = vand.u32 %v5084, 2147483648
      %v5250 = vsel %vm5248, %v5249, %v5247
      %v5251 = vrsqrt.pop %v5085
      %v5252 = vmul.f32 %v5085, %v5251
      %vm5253 = vcmp.eq.f32.partialorder %v5085, inf
      %v5254 = vsel %vm5253, %v5085, %v5252
      %vm5255 = vcmp.eq.f32.partialorder %v5085, 0.0
      %v5256 = vand.u32 %v5085, 2147483648
      %v5257 = vsel %vm5255, %v5256, %v5254
      %v5258 = vrsqrt.pop %v5086
      %v5259 = vmul.f32 %v5086, %v5258
      %vm5260 = vcmp.eq.f32.partialorder %v5086, inf
      %v5261 = vsel %vm5260, %v5086, %v5259
      %vm5262 = vcmp.eq.f32.partialorder %v5086, 0.0
      %v5263 = vand.u32 %v5086, 2147483648
      %v5264 = vsel %vm5262, %v5263, %v5261
      %v5265 = vrsqrt.pop %v5087
      %v5266 = vmul.f32 %v5087, %v5265
      %vm5267 = vcmp.eq.f32.partialorder %v5087, inf
      %v5268 = vsel %vm5267, %v5087, %v5266
      %vm5269 = vcmp.eq.f32.partialorder %v5087, 0.0
      %v5270 = vand.u32 %v5087, 2147483648
      %v5271 = vsel %vm5269, %v5270, %v5268
      %v5272 = vrsqrt.pop %v5088
      %v5273 = vmul.f32 %v5088, %v5272
      %vm5274 = vcmp.eq.f32.partialorder %v5088, inf
      %v5275 = vsel %vm5274, %v5088, %v5273
      %vm5276 = vcmp.eq.f32.partialorder %v5088, 0.0
      %v5277 = vand.u32 %v5088, 2147483648
      %v5278 = vsel %vm5276, %v5277, %v5275
      %v5279 = vrsqrt.pop %v5089
      %v5280 = vmul.f32 %v5089, %v5279
      %vm5281 = vcmp.eq.f32.partialorder %v5089, inf
      %v5282 = vsel %vm5281, %v5089, %v5280
      %vm5283 = vcmp.eq.f32.partialorder %v5089, 0.0
      %v5284 = vand.u32 %v5089, 2147483648
      %v5285 = vsel %vm5283, %v5284, %v5282
      %v5286 = vrsqrt.pop %v5090
      %v5287 = vmul.f32 %v5090, %v5286
      %vm5288 = vcmp.eq.f32.partialorder %v5090, inf
      %v5289 = vsel %vm5288, %v5090, %v5287
      %vm5290 = vcmp.eq.f32.partialorder %v5090, 0.0
      %v5291 = vand.u32 %v5090, 2147483648
      %v5292 = vsel %vm5290, %v5291, %v5289
      %v5293 = vrsqrt.pop %v5091
      %v5294 = vmul.f32 %v5091, %v5293
      %vm5295 = vcmp.eq.f32.partialorder %v5091, inf
      %v5296 = vsel %vm5295, %v5091, %v5294
      %vm5297 = vcmp.eq.f32.partialorder %v5091, 0.0
      %v5298 = vand.u32 %v5091, 2147483648
      %v5299 = vsel %vm5297, %v5298, %v5296
      %v5300 = vrsqrt.pop %v5092
      %v5301 = vmul.f32 %v5092, %v5300
      %vm5302 = vcmp.eq.f32.partialorder %v5092, inf
      %v5303 = vsel %vm5302, %v5092, %v5301
      %vm5304 = vcmp.eq.f32.partialorder %v5092, 0.0
      %v5305 = vand.u32 %v5092, 2147483648
      %v5306 = vsel %vm5304, %v5305, %v5303
      %v5307 = vrsqrt.pop %v5093
      %v5308 = vmul.f32 %v5093, %v5307
      %vm5309 = vcmp.eq.f32.partialorder %v5093, inf
      %v5310 = vsel %vm5309, %v5093, %v5308
      %vm5311 = vcmp.eq.f32.partialorder %v5093, 0.0
      %v5312 = vand.u32 %v5093, 2147483648
      %v5313 = vsel %vm5311, %v5312, %v5310
      %v5314 = vrsqrt.pop %v5094
      %v5315 = vmul.f32 %v5094, %v5314
      %vm5316 = vcmp.eq.f32.partialorder %v5094, inf
      %v5317 = vsel %vm5316, %v5094, %v5315
      %vm5318 = vcmp.eq.f32.partialorder %v5094, 0.0
      %v5319 = vand.u32 %v5094, 2147483648
      %v5320 = vsel %vm5318, %v5319, %v5317
      %v5321 = vrsqrt.pop %v5095
      %v5322 = vmul.f32 %v5095, %v5321
      %vm5323 = vcmp.eq.f32.partialorder %v5095, inf
      %v5324 = vsel %vm5323, %v5095, %v5322
      %vm5325 = vcmp.eq.f32.partialorder %v5095, 0.0
      %v5326 = vand.u32 %v5095, 2147483648
      %v5327 = vsel %vm5325, %v5326, %v5324
      %v5328 = vrsqrt.pop %v5096
      %v5329 = vmul.f32 %v5096, %v5328
      %vm5330 = vcmp.eq.f32.partialorder %v5096, inf
      %v5331 = vsel %vm5330, %v5096, %v5329
      %vm5332 = vcmp.eq.f32.partialorder %v5096, 0.0
      %v5333 = vand.u32 %v5096, 2147483648
      %v5334 = vsel %vm5332, %v5333, %v5331
      %v5335 = vrsqrt.pop %v5097
      %v5336 = vmul.f32 %v5097, %v5335
      %vm5337 = vcmp.eq.f32.partialorder %v5097, inf
      %v5338 = vsel %vm5337, %v5097, %v5336
      %vm5339 = vcmp.eq.f32.partialorder %v5097, 0.0
      %v5340 = vand.u32 %v5097, 2147483648
      %v5341 = vsel %vm5339, %v5340, %v5338
      %v5342 = vrsqrt.pop %v5098
      %v5343 = vmul.f32 %v5098, %v5342
      %vm5344 = vcmp.eq.f32.partialorder %v5098, inf
      %v5345 = vsel %vm5344, %v5098, %v5343
      %vm5346 = vcmp.eq.f32.partialorder %v5098, 0.0
      %v5347 = vand.u32 %v5098, 2147483648
      %v5348 = vsel %vm5346, %v5347, %v5345
      %v5349 = vrsqrt.pop %v5099
      %v5350 = vmul.f32 %v5099, %v5349
      %vm5351 = vcmp.eq.f32.partialorder %v5099, inf
      %v5352 = vsel %vm5351, %v5099, %v5350
      %vm5353 = vcmp.eq.f32.partialorder %v5099, 0.0
      %v5354 = vand.u32 %v5099, 2147483648
      %v5355 = vsel %vm5353, %v5354, %v5352
      %v5356 = vrsqrt.pop %v5100
      %v5357 = vmul.f32 %v5100, %v5356
      %vm5358 = vcmp.eq.f32.partialorder %v5100, inf
      %v5359 = vsel %vm5358, %v5100, %v5357
      %vm5360 = vcmp.eq.f32.partialorder %v5100, 0.0
      %v5361 = vand.u32 %v5100, 2147483648
      %v5362 = vsel %vm5360, %v5361, %v5359
      %v5363 = vrsqrt.pop %v5101
      %v5364 = vmul.f32 %v5101, %v5363
      %vm5365 = vcmp.eq.f32.partialorder %v5101, inf
      %v5366 = vsel %vm5365, %v5101, %v5364
      %vm5367 = vcmp.eq.f32.partialorder %v5101, 0.0
      %v5368 = vand.u32 %v5101, 2147483648
      %v5369 = vsel %vm5367, %v5368, %v5366
      %v5370 = vrsqrt.pop %v5102
      %v5371 = vmul.f32 %v5102, %v5370
      %vm5372 = vcmp.eq.f32.partialorder %v5102, inf
      %v5373 = vsel %vm5372, %v5102, %v5371
      %vm5374 = vcmp.eq.f32.partialorder %v5102, 0.0
      %v5375 = vand.u32 %v5102, 2147483648
      %v5376 = vsel %vm5374, %v5375, %v5373
      %v5377 = vrsqrt.pop %v5103
      %v5378 = vmul.f32 %v5103, %v5377
      %vm5379 = vcmp.eq.f32.partialorder %v5103, inf
      %v5380 = vsel %vm5379, %v5103, %v5378
      %vm5381 = vcmp.eq.f32.partialorder %v5103, 0.0
      %v5382 = vand.u32 %v5103, 2147483648
      %v5383 = vsel %vm5381, %v5382, %v5380
      %v5384 = vrsqrt.pop %v5104
      %v5385 = vmul.f32 %v5104, %v5384
      %vm5386 = vcmp.eq.f32.partialorder %v5104, inf
      %v5387 = vsel %vm5386, %v5104, %v5385
      %vm5388 = vcmp.eq.f32.partialorder %v5104, 0.0
      %v5389 = vand.u32 %v5104, 2147483648
      %v5390 = vsel %vm5388, %v5389, %v5387
      %v5391 = vrsqrt.pop %v5105
      %v5392 = vmul.f32 %v5105, %v5391
      %vm5393 = vcmp.eq.f32.partialorder %v5105, inf
      %v5394 = vsel %vm5393, %v5105, %v5392
      %vm5395 = vcmp.eq.f32.partialorder %v5105, 0.0
      %v5396 = vand.u32 %v5105, 2147483648
      %v5397 = vsel %vm5395, %v5396, %v5394
      %v5398 = vrsqrt.pop %v5106
      %v5399 = vmul.f32 %v5106, %v5398
      %vm5400 = vcmp.eq.f32.partialorder %v5106, inf
      %v5401 = vsel %vm5400, %v5106, %v5399
      %vm5402 = vcmp.eq.f32.partialorder %v5106, 0.0
      %v5403 = vand.u32 %v5106, 2147483648
      %v5404 = vsel %vm5402, %v5403, %v5401
      %v5405 = vrsqrt.pop %v5107
      %v5406 = vmul.f32 %v5107, %v5405
      %vm5407 = vcmp.eq.f32.partialorder %v5107, inf
      %v5408 = vsel %vm5407, %v5107, %v5406
      %vm5409 = vcmp.eq.f32.partialorder %v5107, 0.0
      %v5410 = vand.u32 %v5107, 2147483648
      %v5411 = vsel %vm5409, %v5410, %v5408
      %v5412 = vrsqrt.pop %v5108
      %v5413 = vmul.f32 %v5108, %v5412
      %vm5414 = vcmp.eq.f32.partialorder %v5108, inf
      %v5415 = vsel %vm5414, %v5108, %v5413
      %vm5416 = vcmp.eq.f32.partialorder %v5108, 0.0
      %v5417 = vand.u32 %v5108, 2147483648
      %v5418 = vsel %vm5416, %v5417, %v5415
      %v5419 = vrsqrt.pop %v5109
      %v5420 = vmul.f32 %v5109, %v5419
      %vm5421 = vcmp.eq.f32.partialorder %v5109, inf
      %v5422 = vsel %vm5421, %v5109, %v5420
      %vm5423 = vcmp.eq.f32.partialorder %v5109, 0.0
      %v5424 = vand.u32 %v5109, 2147483648
      %v5425 = vsel %vm5423, %v5424, %v5422
      %v5426 = vrsqrt.pop %v5110
      %v5427 = vmul.f32 %v5110, %v5426
      %vm5428 = vcmp.eq.f32.partialorder %v5110, inf
      %v5429 = vsel %vm5428, %v5110, %v5427
      %vm5430 = vcmp.eq.f32.partialorder %v5110, 0.0
      %v5431 = vand.u32 %v5110, 2147483648
      %v5432 = vsel %vm5430, %v5431, %v5429
      %v5433 = vrsqrt.pop %v5111
      %v5434 = vmul.f32 %v5111, %v5433
      %vm5435 = vcmp.eq.f32.partialorder %v5111, inf
      %v5436 = vsel %vm5435, %v5111, %v5434
      %vm5437 = vcmp.eq.f32.partialorder %v5111, 0.0
      %v5438 = vand.u32 %v5111, 2147483648
      %v5439 = vsel %vm5437, %v5438, %v5436
      %v5440 = vrsqrt.pop %v5112
      %v5441 = vmul.f32 %v5112, %v5440
      %vm5442 = vcmp.eq.f32.partialorder %v5112, inf
      %v5443 = vsel %vm5442, %v5112, %v5441
      %vm5444 = vcmp.eq.f32.partialorder %v5112, 0.0
      %v5445 = vand.u32 %v5112, 2147483648
      %v5446 = vsel %vm5444, %v5445, %v5443
      %v5447 = vrsqrt.pop %v5113
      %v5448 = vmul.f32 %v5113, %v5447
      %vm5449 = vcmp.eq.f32.partialorder %v5113, inf
      %v5450 = vsel %vm5449, %v5113, %v5448
      %vm5451 = vcmp.eq.f32.partialorder %v5113, 0.0
      %v5452 = vand.u32 %v5113, 2147483648
      %v5453 = vsel %vm5451, %v5452, %v5450
      %v5454 = vrsqrt.pop %v5114
      %v5455 = vmul.f32 %v5114, %v5454
      %vm5456 = vcmp.eq.f32.partialorder %v5114, inf
      %v5457 = vsel %vm5456, %v5114, %v5455
      %vm5458 = vcmp.eq.f32.partialorder %v5114, 0.0
      %v5459 = vand.u32 %v5114, 2147483648
      %v5460 = vsel %vm5458, %v5459, %v5457
      %v5461 = vrsqrt.pop %v5115
      %v5462 = vmul.f32 %v5115, %v5461
      %vm5463 = vcmp.eq.f32.partialorder %v5115, inf
      %v5464 = vsel %vm5463, %v5115, %v5462
      %vm5465 = vcmp.eq.f32.partialorder %v5115, 0.0
      %v5466 = vand.u32 %v5115, 2147483648
      %v5467 = vsel %vm5465, %v5466, %v5464
      %v5468 = vrsqrt.pop %v5116
      %v5469 = vmul.f32 %v5116, %v5468
      %vm5470 = vcmp.eq.f32.partialorder %v5116, inf
      %v5471 = vsel %vm5470, %v5116, %v5469
      %vm5472 = vcmp.eq.f32.partialorder %v5116, 0.0
      %v5473 = vand.u32 %v5116, 2147483648
      %v5474 = vsel %vm5472, %v5473, %v5471
      %v5475 = vrsqrt.pop %v5117
      %v5476 = vmul.f32 %v5117, %v5475
      %vm5477 = vcmp.eq.f32.partialorder %v5117, inf
      %v5478 = vsel %vm5477, %v5117, %v5476
      %vm5479 = vcmp.eq.f32.partialorder %v5117, 0.0
      %v5480 = vand.u32 %v5117, 2147483648
      %v5481 = vsel %vm5479, %v5480, %v5478
      %v5482 = vrsqrt.pop %v5118
      %v5483 = vmul.f32 %v5118, %v5482
      %vm5484 = vcmp.eq.f32.partialorder %v5118, inf
      %v5485 = vsel %vm5484, %v5118, %v5483
      %vm5486 = vcmp.eq.f32.partialorder %v5118, 0.0
      %v5487 = vand.u32 %v5118, 2147483648
      %v5488 = vsel %vm5486, %v5487, %v5485
      %v5489 = vrsqrt.pop %v5119
      %v5490 = vmul.f32 %v5119, %v5489
      %vm5491 = vcmp.eq.f32.partialorder %v5119, inf
      %v5492 = vsel %vm5491, %v5119, %v5490
      %vm5493 = vcmp.eq.f32.partialorder %v5119, 0.0
      %v5494 = vand.u32 %v5119, 2147483648
      %v5495 = vsel %vm5493, %v5494, %v5492
      %v5496 = vrsqrt.pop %v5120
      %v5497 = vmul.f32 %v5120, %v5496
      %vm5498 = vcmp.eq.f32.partialorder %v5120, inf
      %v5499 = vsel %vm5498, %v5120, %v5497
      %vm5500 = vcmp.eq.f32.partialorder %v5120, 0.0
      %v5501 = vand.u32 %v5120, 2147483648
      %v5502 = vsel %vm5500, %v5501, %v5499
      %v5503 = vrsqrt.pop %v5121
      %v5504 = vmul.f32 %v5121, %v5503
      %vm5505 = vcmp.eq.f32.partialorder %v5121, inf
      %v5506 = vsel %vm5505, %v5121, %v5504
      %vm5507 = vcmp.eq.f32.partialorder %v5121, 0.0
      %v5508 = vand.u32 %v5121, 2147483648
      %v5509 = vsel %vm5507, %v5508, %v5506
      %v5510 = vrsqrt.pop %v5122
      %v5511 = vmul.f32 %v5122, %v5510
      %vm5512 = vcmp.eq.f32.partialorder %v5122, inf
      %v5513 = vsel %vm5512, %v5122, %v5511
      %vm5514 = vcmp.eq.f32.partialorder %v5122, 0.0
      %v5515 = vand.u32 %v5122, 2147483648
      %v5516 = vsel %vm5514, %v5515, %v5513
      %v5517 = vrsqrt.pop %v5123
      %v5518 = vmul.f32 %v5123, %v5517
      %vm5519 = vcmp.eq.f32.partialorder %v5123, inf
      %v5520 = vsel %vm5519, %v5123, %v5518
      %vm5521 = vcmp.eq.f32.partialorder %v5123, 0.0
      %v5522 = vand.u32 %v5123, 2147483648
      %v5523 = vsel %vm5521, %v5522, %v5520
      %v5524 = vrsqrt.pop %v5124
      %v5525 = vmul.f32 %v5124, %v5524
      %vm5526 = vcmp.eq.f32.partialorder %v5124, inf
      %v5527 = vsel %vm5526, %v5124, %v5525
      %vm5528 = vcmp.eq.f32.partialorder %v5124, 0.0
      %v5529 = vand.u32 %v5124, 2147483648
      %v5530 = vsel %vm5528, %v5529, %v5527
      %v5531 = vrsqrt.pop %v5125
      %v5532 = vmul.f32 %v5125, %v5531
      %vm5533 = vcmp.eq.f32.partialorder %v5125, inf
      %v5534 = vsel %vm5533, %v5125, %v5532
      %vm5535 = vcmp.eq.f32.partialorder %v5125, 0.0
      %v5536 = vand.u32 %v5125, 2147483648
      %v5537 = vsel %vm5535, %v5536, %v5534
      %v5538 = vrsqrt.pop %v5126
      %v5539 = vmul.f32 %v5126, %v5538
      %vm5540 = vcmp.eq.f32.partialorder %v5126, inf
      %v5541 = vsel %vm5540, %v5126, %v5539
      %vm5542 = vcmp.eq.f32.partialorder %v5126, 0.0
      %v5543 = vand.u32 %v5126, 2147483648
      %v5544 = vsel %vm5542, %v5543, %v5541
      %v5545 = vrsqrt.pop %v5127
      %v5546 = vmul.f32 %v5127, %v5545
      %vm5547 = vcmp.eq.f32.partialorder %v5127, inf
      %v5548 = vsel %vm5547, %v5127, %v5546
      %vm5549 = vcmp.eq.f32.partialorder %v5127, 0.0
      %v5550 = vand.u32 %v5127, 2147483648
      %v5551 = vsel %vm5549, %v5550, %v5548
      %v5552 = vrsqrt.pop %v5128
      %v5553 = vmul.f32 %v5128, %v5552
      %vm5554 = vcmp.eq.f32.partialorder %v5128, inf
      %v5555 = vsel %vm5554, %v5128, %v5553
      %vm5556 = vcmp.eq.f32.partialorder %v5128, 0.0
      %v5557 = vand.u32 %v5128, 2147483648
      %v5558 = vsel %vm5556, %v5557, %v5555
      %v5559 = vrsqrt.pop %v5129
      %v5560 = vmul.f32 %v5129, %v5559
      %vm5561 = vcmp.eq.f32.partialorder %v5129, inf
      %v5562 = vsel %vm5561, %v5129, %v5560
      %vm5563 = vcmp.eq.f32.partialorder %v5129, 0.0
      %v5564 = vand.u32 %v5129, 2147483648
      %v5565 = vsel %vm5563, %v5564, %v5562
      %v5566 = vrsqrt.pop %v5130
      %v5567 = vmul.f32 %v5130, %v5566
      %vm5568 = vcmp.eq.f32.partialorder %v5130, inf
      %v5569 = vsel %vm5568, %v5130, %v5567
      %vm5570 = vcmp.eq.f32.partialorder %v5130, 0.0
      %v5571 = vand.u32 %v5130, 2147483648
      %v5572 = vsel %vm5570, %v5571, %v5569
      %v5573 = vrsqrt.pop %v5131
      %v5574 = vmul.f32 %v5131, %v5573
      %vm5575 = vcmp.eq.f32.partialorder %v5131, inf
      %v5576 = vsel %vm5575, %v5131, %v5574
      %vm5577 = vcmp.eq.f32.partialorder %v5131, 0.0
      %v5578 = vand.u32 %v5131, 2147483648
      %v5579 = vsel %vm5577, %v5578, %v5576
      %v5580 = vrsqrt.pop %v5132
      %v5581 = vmul.f32 %v5132, %v5580
      %vm5582 = vcmp.eq.f32.partialorder %v5132, inf
      %v5583 = vsel %vm5582, %v5132, %v5581
      %vm5584 = vcmp.eq.f32.partialorder %v5132, 0.0
      %v5585 = vand.u32 %v5132, 2147483648
      %v5586 = vsel %vm5584, %v5585, %v5583
      %v5587 = vrsqrt.pop %v5133
      %v5588 = vmul.f32 %v5133, %v5587
      %vm5589 = vcmp.eq.f32.partialorder %v5133, inf
      %v5590 = vsel %vm5589, %v5133, %v5588
      %vm5591 = vcmp.eq.f32.partialorder %v5133, 0.0
      %v5592 = vand.u32 %v5133, 2147483648
      %v5593 = vsel %vm5591, %v5592, %v5590
      %v5594 = vrsqrt.pop %v5134
      %v5595 = vmul.f32 %v5134, %v5594
      %vm5596 = vcmp.eq.f32.partialorder %v5134, inf
      %v5597 = vsel %vm5596, %v5134, %v5595
      %vm5598 = vcmp.eq.f32.partialorder %v5134, 0.0
      %v5599 = vand.u32 %v5134, 2147483648
      %v5600 = vsel %vm5598, %v5599, %v5597
      %v5601 = vrsqrt.pop %v5135
      %v5602 = vmul.f32 %v5135, %v5601
      %vm5603 = vcmp.eq.f32.partialorder %v5135, inf
      %v5604 = vsel %vm5603, %v5135, %v5602
      %vm5605 = vcmp.eq.f32.partialorder %v5135, 0.0
      %v5606 = vand.u32 %v5135, 2147483648
      %v5607 = vsel %vm5605, %v5606, %v5604
      %v5608 = vrsqrt.pop %v5136
      %v5609 = vmul.f32 %v5136, %v5608
      %vm5610 = vcmp.eq.f32.partialorder %v5136, inf
      %v5611 = vsel %vm5610, %v5136, %v5609
      %vm5612 = vcmp.eq.f32.partialorder %v5136, 0.0
      %v5613 = vand.u32 %v5136, 2147483648
      %v5614 = vsel %vm5612, %v5613, %v5611
      %v5615 = vrsqrt.pop %v5137
      %v5616 = vmul.f32 %v5137, %v5615
      %vm5617 = vcmp.eq.f32.partialorder %v5137, inf
      %v5618 = vsel %vm5617, %v5137, %v5616
      %vm5619 = vcmp.eq.f32.partialorder %v5137, 0.0
      %v5620 = vand.u32 %v5137, 2147483648
      %v5621 = vsel %vm5619, %v5620, %v5618
      %v5622 = vrsqrt.pop %v5138
      %v5623 = vmul.f32 %v5138, %v5622
      %vm5624 = vcmp.eq.f32.partialorder %v5138, inf
      %v5625 = vsel %vm5624, %v5138, %v5623
      %vm5626 = vcmp.eq.f32.partialorder %v5138, 0.0
      %v5627 = vand.u32 %v5138, 2147483648
      %v5628 = vsel %vm5626, %v5627, %v5625
      %v5629 = vadd.f32 %v5145, %v5152
      %v5630 = vadd.f32 %v5629, %v5159
      %v5631 = vadd.f32 %v5630, %v5166
      %v5632 = vsel %vm307, %v5173, 0.0
      %v5633 = vadd.f32 %v5631, %v5632
      %5634 = vadd.xlane.f32.xlu0 %v5633
      %v5635 = vpop.xlane.xlu0 %5634
      %v5636 = vsel %vm3948, %v5180, 0.0
      %v5637 = vsel %vm3948, %v5187, 0.0
      %v5638 = vadd.f32 %v5636, %v5637
      %v5639 = vsel %vm3948, %v5194, 0.0
      %v5640 = vadd.f32 %v5638, %v5639
      %v5641 = vsel %vm3948, %v5201, 0.0
      %v5642 = vadd.f32 %v5640, %v5641
      %v5643 = vsel %vm2205, %v5208, 0.0
      %v5644 = vadd.f32 %v5642, %v5643
      %5645 = vadd.xlane.f32.xlu0 %v5644
      %v5646 = vpop.xlane.xlu0 %5645
      %v5647 = vadd.f32 %v5215, %v5222
      %v5648 = vadd.f32 %v5647, %v5229
      %v5649 = vadd.f32 %v5648, %v5236
      %v5650 = vsel %vm307, %v5243, 0.0
      %v5651 = vadd.f32 %v5649, %v5650
      %5652 = vadd.xlane.f32.xlu0 %v5651
      %v5653 = vpop.xlane.xlu0 %5652
      %v5654 = vsel %vm3948, %v5250, 0.0
      %v5655 = vsel %vm3948, %v5257, 0.0
      %v5656 = vadd.f32 %v5654, %v5655
      %v5657 = vsel %vm3948, %v5264, 0.0
      %v5658 = vadd.f32 %v5656, %v5657
      %v5659 = vsel %vm3948, %v5271, 0.0
      %v5660 = vadd.f32 %v5658, %v5659
      %v5661 = vsel %vm2205, %v5278, 0.0
      %v5662 = vadd.f32 %v5660, %v5661
      %5663 = vadd.xlane.f32.xlu0 %v5662
      %v5664 = vpop.xlane.xlu0 %5663
      %v5665 = vadd.f32 %v5285, %v5292
      %v5666 = vadd.f32 %v5665, %v5299
      %v5667 = vadd.f32 %v5666, %v5306
      %v5668 = vsel %vm307, %v5313, 0.0
      %v5669 = vadd.f32 %v5667, %v5668
      %5670 = vadd.xlane.f32.xlu0 %v5669
      %v5671 = vpop.xlane.xlu0 %5670
      %v5672 = vsel %vm3948, %v5320, 0.0
      %v5673 = vsel %vm3948, %v5327, 0.0
      %v5674 = vadd.f32 %v5672, %v5673
      %v5675 = vsel %vm3948, %v5334, 0.0
      %v5676 = vadd.f32 %v5674, %v5675
      %v5677 = vsel %vm3948, %v5341, 0.0
      %v5678 = vadd.f32 %v5676, %v5677
      %v5679 = vsel %vm2205, %v5348, 0.0
      %v5680 = vadd.f32 %v5678, %v5679
      %5681 = vadd.xlane.f32.xlu0 %v5680
      %v5682 = vpop.xlane.xlu0 %5681
      %v5683 = vadd.f32 %v5355, %v5362
      %v5684 = vadd.f32 %v5683, %v5369
      %v5685 = vadd.f32 %v5684, %v5376
      %v5686 = vsel %vm307, %v5383, 0.0
      %v5687 = vadd.f32 %v5685, %v5686
      %5688 = vadd.xlane.f32.xlu0 %v5687
      %v5689 = vpop.xlane.xlu0 %5688
      %v5690 = vsel %vm3948, %v5390, 0.0
      %v5691 = vsel %vm3948, %v5397, 0.0
      %v5692 = vadd.f32 %v5690, %v5691
      %v5693 = vsel %vm3948, %v5404, 0.0
      %v5694 = vadd.f32 %v5692, %v5693
      %v5695 = vsel %vm3948, %v5411, 0.0
      %v5696 = vadd.f32 %v5694, %v5695
      %v5697 = vsel %vm2205, %v5418, 0.0
      %v5698 = vadd.f32 %v5696, %v5697
      %5699 = vadd.xlane.f32.xlu0 %v5698
      %v5700 = vpop.xlane.xlu0 %5699
      %v5701 = vadd.f32 %v5425, %v5432
      %v5702 = vadd.f32 %v5701, %v5439
      %v5703 = vadd.f32 %v5702, %v5446
      %v5704 = vsel %vm307, %v5453, 0.0
      %v5705 = vadd.f32 %v5703, %v5704
      %5706 = vadd.xlane.f32.xlu0 %v5705
      %v5707 = vpop.xlane.xlu0 %5706
      %v5708 = vsel %vm3948, %v5460, 0.0
      %v5709 = vsel %vm3948, %v5467, 0.0
      %v5710 = vadd.f32 %v5708, %v5709
      %v5711 = vsel %vm3948, %v5474, 0.0
      %v5712 = vadd.f32 %v5710, %v5711
      %v5713 = vsel %vm3948, %v5481, 0.0
      %v5714 = vadd.f32 %v5712, %v5713
      %v5715 = vsel %vm2205, %v5488, 0.0
      %v5716 = vadd.f32 %v5714, %v5715
      %5717 = vadd.xlane.f32.xlu0 %v5716
      %v5718 = vpop.xlane.xlu0 %5717
      %v5719 = vadd.f32 %v5495, %v5502
      %v5720 = vadd.f32 %v5719, %v5509
      %v5721 = vadd.f32 %v5720, %v5516
      %v5722 = vsel %vm307, %v5523, 0.0
      %v5723 = vadd.f32 %v5721, %v5722
      %5724 = vadd.xlane.f32.xlu0 %v5723
      %v5725 = vpop.xlane.xlu0 %5724
      %v5726 = vsel %vm3948, %v5530, 0.0
      %v5727 = vsel %vm3948, %v5537, 0.0
      %v5728 = vadd.f32 %v5726, %v5727
      %v5729 = vsel %vm3948, %v5544, 0.0
      %v5730 = vadd.f32 %v5728, %v5729
      %v5731 = vsel %vm3948, %v5551, 0.0
      %v5732 = vadd.f32 %v5730, %v5731
      %v5733 = vsel %vm2205, %v5558, 0.0
      %v5734 = vadd.f32 %v5732, %v5733
      %5735 = vadd.xlane.f32.xlu0 %v5734
      %v5736 = vpop.xlane.xlu0 %5735
      %v5737 = vadd.f32 %v5565, %v5572
      %v5738 = vadd.f32 %v5737, %v5579
      %v5739 = vadd.f32 %v5738, %v5586
      %v5740 = vsel %vm307, %v5593, 0.0
      %v5741 = vadd.f32 %v5739, %v5740
      %5742 = vadd.xlane.f32.xlu0 %v5741
      %v5743 = vpop.xlane.xlu0 %5742
      %v5744 = vsel %vm3948, %v5600, 0.0
      %v5745 = vsel %vm3948, %v5607, 0.0
      %v5746 = vadd.f32 %v5744, %v5745
      %v5747 = vsel %vm3948, %v5614, 0.0
      %v5748 = vadd.f32 %v5746, %v5747
      %v5749 = vsel %vm3948, %v5621, 0.0
      %v5750 = vadd.f32 %v5748, %v5749
      %v5751 = vsel %vm2205, %v5628, 0.0
      %v5752 = vadd.f32 %v5750, %v5751
      %5753 = vadd.xlane.f32.xlu0 %v5752
      %v5754 = vpop.xlane.xlu0 %5753
      %v5755 = vrcp.pop 544.0
      %v5756 = vmul.f32 %v5635, %v5755
      %v5757 = vmul.f32 %v5646, %v5755
      %v5758 = vmul.f32 %v5653, %v5755
      %v5759 = vmul.f32 %v5664, %v5755
      %v5760 = vmul.f32 %v5671, %v5755
      %v5761 = vmul.f32 %v5682, %v5755
      %v5762 = vmul.f32 %v5689, %v5755
      %v5763 = vmul.f32 %v5700, %v5755
      %v5764 = vmul.f32 %v5707, %v5755
      %v5765 = vmul.f32 %v5718, %v5755
      %v5766 = vmul.f32 %v5725, %v5755
      %v5767 = vmul.f32 %v5736, %v5755
      %v5768 = vmul.f32 %v5743, %v5755
      %v5769 = vmul.f32 %v5754, %v5755
      %vm5770 = vcmask 7168
      %5771 = vst.msk [vmem:[%s161] sm:$0xff] %vm5770, %v5756
      %vm5772 = vcmask 5120
      %5773 = vst.msk [vmem:[%s161 + $0x8] sm:$0x3f] %vm5772, %v5757
      %5774 = vst.msk [vmem:[%s161 + $0x10] sm:$0xff] %vm5770, %v5758
      %5775 = vst.msk [vmem:[%s161 + $0x18] sm:$0x3f] %vm5772, %v5759
      %5776 = vst.msk [vmem:[%s161 + $0x20] sm:$0xff] %vm5770, %v5760
      %5777 = vst.msk [vmem:[%s161 + $0x28] sm:$0x3f] %vm5772, %v5761
      %5778 = vst.msk [vmem:[%s161 + $0x30] sm:$0xff] %vm5770, %v5762
      %5779 = vst.msk [vmem:[%s161 + $0x38] sm:$0x3f] %vm5772, %v5763
      %5780 = vst.msk [vmem:[%s161 + $0x40] sm:$0xff] %vm5770, %v5764
      %5781 = vst.msk [vmem:[%s161 + $0x48] sm:$0x3f] %vm5772, %v5765
      %5782 = vst.msk [vmem:[%s161 + $0x50] sm:$0xff] %vm5770, %v5766
      %5783 = vst.msk [vmem:[%s161 + $0x58] sm:$0x3f] %vm5772, %v5767
      %5784 = vst.msk [vmem:[%s161 + $0x60] sm:$0xff] %vm5770, %v5768
      %5785 = vst.msk [vmem:[%s161 + $0x68] sm:$0x3f] %vm5772, %v5769
      %v5786 = vsel %vm307, %v4929, 0.0
      %5787 = vadd.xlane.f32.xlu0 %v5786
      %v5788 = vpop.xlane.xlu0 %5787
      %v5789 = vsel %vm2205, %v4934, 0.0
      %5790 = vadd.xlane.f32.xlu0 %v5789
      %v5791 = vpop.xlane.xlu0 %5790
      %v5792 = vsel %vm307, %v4939, 0.0
      %5793 = vadd.xlane.f32.xlu0 %v5792
      %v5794 = vpop.xlane.xlu0 %5793
      %v5795 = vsel %vm2205, %v4944, 0.0
      %5796 = vadd.xlane.f32.xlu0 %v5795
      %v5797 = vpop.xlane.xlu0 %5796
      %v5798 = vsel %vm307, %v4949, 0.0
      %5799 = vadd.xlane.f32.xlu0 %v5798
      %v5800 = vpop.xlane.xlu0 %5799
      %v5801 = vsel %vm2205, %v4954, 0.0
      %5802 = vadd.xlane.f32.xlu0 %v5801
      %v5803 = vpop.xlane.xlu0 %5802
      %v5804 = vsel %vm307, %v4959, 0.0
      %5805 = vadd.xlane.f32.xlu0 %v5804
      %v5806 = vpop.xlane.xlu0 %5805
      %v5807 = vsel %vm2205, %v4964, 0.0
      %5808 = vadd.xlane.f32.xlu0 %v5807
      %v5809 = vpop.xlane.xlu0 %5808
      %v5810 = vsel %vm307, %v4969, 0.0
      %5811 = vadd.xlane.f32.xlu0 %v5810
      %v5812 = vpop.xlane.xlu0 %5811
      %v5813 = vsel %vm2205, %v4974, 0.0
      %5814 = vadd.xlane.f32.xlu0 %v5813
      %v5815 = vpop.xlane.xlu0 %5814
      %v5816 = vsel %vm307, %v4979, 0.0
      %5817 = vadd.xlane.f32.xlu0 %v5816
      %v5818 = vpop.xlane.xlu0 %5817
      %v5819 = vsel %vm2205, %v4984, 0.0
      %5820 = vadd.xlane.f32.xlu0 %v5819
      %v5821 = vpop.xlane.xlu0 %5820
      %v5822 = vsel %vm307, %v4989, 0.0
      %5823 = vadd.xlane.f32.xlu0 %v5822
      %v5824 = vpop.xlane.xlu0 %5823
      %v5825 = vsel %vm2205, %v4994, 0.0
      %5826 = vadd.xlane.f32.xlu0 %v5825
      %v5827 = vpop.xlane.xlu0 %5826
      %v5828 = vrsqrt.pop %v5788
      %v5829 = vmul.f32 %v5788, %v5828
      %vm5830 = vcmp.eq.f32.partialorder %v5788, inf
      %v5831 = vsel %vm5830, %v5788, %v5829
      %vm5832 = vcmp.eq.f32.partialorder %v5788, 0.0
      %v5833 = vand.u32 %v5788, 2147483648
      %v5834 = vsel %vm5832, %v5833, %v5831
      %v5835 = vrsqrt.pop %v5791
      %v5836 = vmul.f32 %v5791, %v5835
      %vm5837 = vcmp.eq.f32.partialorder %v5791, inf
      %v5838 = vsel %vm5837, %v5791, %v5836
      %vm5839 = vcmp.eq.f32.partialorder %v5791, 0.0
      %v5840 = vand.u32 %v5791, 2147483648
      %v5841 = vsel %vm5839, %v5840, %v5838
      %v5842 = vrsqrt.pop %v5794
      %v5843 = vmul.f32 %v5794, %v5842
      %vm5844 = vcmp.eq.f32.partialorder %v5794, inf
      %v5845 = vsel %vm5844, %v5794, %v5843
      %vm5846 = vcmp.eq.f32.partialorder %v5794, 0.0
      %v5847 = vand.u32 %v5794, 2147483648
      %v5848 = vsel %vm5846, %v5847, %v5845
      %v5849 = vrsqrt.pop %v5797
      %v5850 = vmul.f32 %v5797, %v5849
      %vm5851 = vcmp.eq.f32.partialorder %v5797, inf
      %v5852 = vsel %vm5851, %v5797, %v5850
      %vm5853 = vcmp.eq.f32.partialorder %v5797, 0.0
      %v5854 = vand.u32 %v5797, 2147483648
      %v5855 = vsel %vm5853, %v5854, %v5852
      %v5856 = vrsqrt.pop %v5800
      %v5857 = vmul.f32 %v5800, %v5856
      %vm5858 = vcmp.eq.f32.partialorder %v5800, inf
      %v5859 = vsel %vm5858, %v5800, %v5857
      %vm5860 = vcmp.eq.f32.partialorder %v5800, 0.0
      %v5861 = vand.u32 %v5800, 2147483648
      %v5862 = vsel %vm5860, %v5861, %v5859
      %v5863 = vrsqrt.pop %v5803
      %v5864 = vmul.f32 %v5803, %v5863
      %vm5865 = vcmp.eq.f32.partialorder %v5803, inf
      %v5866 = vsel %vm5865, %v5803, %v5864
      %vm5867 = vcmp.eq.f32.partialorder %v5803, 0.0
      %v5868 = vand.u32 %v5803, 2147483648
      %v5869 = vsel %vm5867, %v5868, %v5866
      %v5870 = vrsqrt.pop %v5806
      %v5871 = vmul.f32 %v5806, %v5870
      %vm5872 = vcmp.eq.f32.partialorder %v5806, inf
      %v5873 = vsel %vm5872, %v5806, %v5871
      %vm5874 = vcmp.eq.f32.partialorder %v5806, 0.0
      %v5875 = vand.u32 %v5806, 2147483648
      %v5876 = vsel %vm5874, %v5875, %v5873
      %v5877 = vrsqrt.pop %v5809
      %v5878 = vmul.f32 %v5809, %v5877
      %vm5879 = vcmp.eq.f32.partialorder %v5809, inf
      %v5880 = vsel %vm5879, %v5809, %v5878
      %vm5881 = vcmp.eq.f32.partialorder %v5809, 0.0
      %v5882 = vand.u32 %v5809, 2147483648
      %v5883 = vsel %vm5881, %v5882, %v5880
      %v5884 = vrsqrt.pop %v5812
      %v5885 = vmul.f32 %v5812, %v5884
      %vm5886 = vcmp.eq.f32.partialorder %v5812, inf
      %v5887 = vsel %vm5886, %v5812, %v5885
      %vm5888 = vcmp.eq.f32.partialorder %v5812, 0.0
      %v5889 = vand.u32 %v5812, 2147483648
      %v5890 = vsel %vm5888, %v5889, %v5887
      %v5891 = vrsqrt.pop %v5815
      %v5892 = vmul.f32 %v5815, %v5891
      %vm5893 = vcmp.eq.f32.partialorder %v5815, inf
      %v5894 = vsel %vm5893, %v5815, %v5892
      %vm5895 = vcmp.eq.f32.partialorder %v5815, 0.0
      %v5896 = vand.u32 %v5815, 2147483648
      %v5897 = vsel %vm5895, %v5896, %v5894
      %v5898 = vrsqrt.pop %v5818
      %v5899 = vmul.f32 %v5818, %v5898
      %vm5900 = vcmp.eq.f32.partialorder %v5818, inf
      %v5901 = vsel %vm5900, %v5818, %v5899
      %vm5902 = vcmp.eq.f32.partialorder %v5818, 0.0
      %v5903 = vand.u32 %v5818, 2147483648
      %v5904 = vsel %vm5902, %v5903, %v5901
      %v5905 = vrsqrt.pop %v5821
      %v5906 = vmul.f32 %v5821, %v5905
      %vm5907 = vcmp.eq.f32.partialorder %v5821, inf
      %v5908 = vsel %vm5907, %v5821, %v5906
      %vm5909 = vcmp.eq.f32.partialorder %v5821, 0.0
      %v5910 = vand.u32 %v5821, 2147483648
      %v5911 = vsel %vm5909, %v5910, %v5908
      %v5912 = vrsqrt.pop %v5824
      %v5913 = vmul.f32 %v5824, %v5912
      %vm5914 = vcmp.eq.f32.partialorder %v5824, inf
      %v5915 = vsel %vm5914, %v5824, %v5913
      %vm5916 = vcmp.eq.f32.partialorder %v5824, 0.0
      %v5917 = vand.u32 %v5824, 2147483648
      %v5918 = vsel %vm5916, %v5917, %v5915
      %v5919 = vrsqrt.pop %v5827
      %v5920 = vmul.f32 %v5827, %v5919
      %vm5921 = vcmp.eq.f32.partialorder %v5827, inf
      %v5922 = vsel %vm5921, %v5827, %v5920
      %vm5923 = vcmp.eq.f32.partialorder %v5827, 0.0
      %v5924 = vand.u32 %v5827, 2147483648
      %v5925 = vsel %vm5923, %v5924, %v5922
      %v5926 = vadd.f32 %v5834, 1e-12
      %v5927 = vadd.f32 %v5841, 1e-12
      %v5928 = vadd.f32 %v5848, 1e-12
      %v5929 = vadd.f32 %v5855, 1e-12
      %v5930 = vadd.f32 %v5862, 1e-12
      %v5931 = vadd.f32 %v5869, 1e-12
      %v5932 = vadd.f32 %v5876, 1e-12
      %v5933 = vadd.f32 %v5883, 1e-12
      %v5934 = vadd.f32 %v5890, 1e-12
      %v5935 = vadd.f32 %v5897, 1e-12
      %v5936 = vadd.f32 %v5904, 1e-12
      %v5937 = vadd.f32 %v5911, 1e-12
      %v5938 = vadd.f32 %v5918, 1e-12
      %v5939 = vadd.f32 %v5925, 1e-12
      %v5940 = vrcp.pop %v5926
      %v5941 = vmul.f32 1.0, %v5940
      %v5942 = vrcp.pop %v5927
      %v5943 = vmul.f32 1.0, %v5942
      %v5944 = vrcp.pop %v5928
      %v5945 = vmul.f32 1.0, %v5944
      %v5946 = vrcp.pop %v5929
      %v5947 = vmul.f32 1.0, %v5946
      %v5948 = vrcp.pop %v5930
      %v5949 = vmul.f32 1.0, %v5948
      %v5950 = vrcp.pop %v5931
      %v5951 = vmul.f32 1.0, %v5950
      %v5952 = vrcp.pop %v5932
      %v5953 = vmul.f32 1.0, %v5952
      %v5954 = vrcp.pop %v5933
      %v5955 = vmul.f32 1.0, %v5954
      %v5956 = vrcp.pop %v5934
      %v5957 = vmul.f32 1.0, %v5956
      %v5958 = vrcp.pop %v5935
      %v5959 = vmul.f32 1.0, %v5958
      %v5960 = vrcp.pop %v5936
      %v5961 = vmul.f32 1.0, %v5960
      %v5962 = vrcp.pop %v5937
      %v5963 = vmul.f32 1.0, %v5962
      %v5964 = vrcp.pop %v5938
      %v5965 = vmul.f32 1.0, %v5964
      %v5966 = vrcp.pop %v5939
      %v5967 = vmul.f32 1.0, %v5966
      %v5968 = vmul.f32 %v4789, %v5941
      %v5969 = vmul.f32 %v4794, %v5943
      %v5970 = vmul.f32 %v4799, %v5945
      %v5971 = vmul.f32 %v4804, %v5947
      %v5972 = vmul.f32 %v4809, %v5949
      %v5973 = vmul.f32 %v4814, %v5951
      %v5974 = vmul.f32 %v4819, %v5953
      %v5975 = vmul.f32 %v4824, %v5955
      %v5976 = vmul.f32 %v4829, %v5957
      %v5977 = vmul.f32 %v4834, %v5959
      %v5978 = vmul.f32 %v4839, %v5961
      %v5979 = vmul.f32 %v4844, %v5963
      %v5980 = vmul.f32 %v4849, %v5965
      %v5981 = vmul.f32 %v4854, %v5967
      %5996 = vrot.lane.b32.xlu0 %v4929, 96
      %v5997 = vpop.permute.xlu0 %5996
      %5998 = vrot.lane.b32.xlu0 %v4934, 96
      %v5999 = vpop.permute.xlu0 %5998
      %6000 = vrot.lane.b32.xlu0 %v4939, 96
      %v6001 = vpop.permute.xlu0 %6000
      %6002 = vrot.lane.b32.xlu0 %v4944, 96
      %v6003 = vpop.permute.xlu0 %6002
      %6004 = vrot.lane.b32.xlu0 %v4949, 96
      %v6005 = vpop.permute.xlu0 %6004
      %6006 = vrot.lane.b32.xlu0 %v4954, 96
      %v6007 = vpop.permute.xlu0 %6006
      %6008 = vrot.lane.b32.xlu0 %v4959, 96
      %v6009 = vpop.permute.xlu0 %6008
      %6010 = vrot.lane.b32.xlu0 %v4964, 96
      %v6011 = vpop.permute.xlu0 %6010
      %6012 = vrot.lane.b32.xlu0 %v4969, 96
      %v6013 = vpop.permute.xlu0 %6012
      %6014 = vrot.lane.b32.xlu0 %v4974, 96
      %v6015 = vpop.permute.xlu0 %6014
      %6016 = vrot.lane.b32.xlu0 %v4979, 96
      %v6017 = vpop.permute.xlu0 %6016
      %6018 = vrot.lane.b32.xlu0 %v4984, 96
      %v6019 = vpop.permute.xlu0 %6018
      %6020 = vrot.lane.b32.xlu0 %v4989, 96
      %v6021 = vpop.permute.xlu0 %6020
      %6022 = vrot.lane.b32.xlu0 %v4994, 96
      %v6023 = vpop.permute.xlu0 %6022
      %vm6038 = vcmask 392192
      %v6039 = vsel %vm6038, %v5997, 0.0
      %6040 = vadd.xlane.f32.xlu0 %v6039
      %v6041 = vpop.xlane.xlu0 %6040
      %vm6042 = vcmask 390144
      %v6043 = vsel %vm6042, %v5999, 0.0
      %6044 = vadd.xlane.f32.xlu0 %v6043
      %v6045 = vpop.xlane.xlu0 %6044
      %v6046 = vsel %vm6038, %v6001, 0.0
      %6047 = vadd.xlane.f32.xlu0 %v6046
      %v6048 = vpop.xlane.xlu0 %6047
      %v6049 = vsel %vm6042, %v6003, 0.0
      %6050 = vadd.xlane.f32.xlu0 %v6049
      %v6051 = vpop.xlane.xlu0 %6050
      %v6052 = vsel %vm6038, %v6005, 0.0
      %6053 = vadd.xlane.f32.xlu0 %v6052
      %v6054 = vpop.xlane.xlu0 %6053
      %v6055 = vsel %vm6042, %v6007, 0.0
      %6056 = vadd.xlane.f32.xlu0 %v6055
      %v6057 = vpop.xlane.xlu0 %6056
      %v6058 = vsel %vm6038, %v6009, 0.0
      %6059 = vadd.xlane.f32.xlu0 %v6058
      %v6060 = vpop.xlane.xlu0 %6059
      %v6061 = vsel %vm6042, %v6011, 0.0
      %6062 = vadd.xlane.f32.xlu0 %v6061
      %v6063 = vpop.xlane.xlu0 %6062
      %v6064 = vsel %vm6038, %v6013, 0.0
      %6065 = vadd.xlane.f32.xlu0 %v6064
      %v6066 = vpop.xlane.xlu0 %6065
      %v6067 = vsel %vm6042, %v6015, 0.0
      %6068 = vadd.xlane.f32.xlu0 %v6067
      %v6069 = vpop.xlane.xlu0 %6068
      %v6070 = vsel %vm6038, %v6017, 0.0
      %6071 = vadd.xlane.f32.xlu0 %v6070
      %v6072 = vpop.xlane.xlu0 %6071
      %v6073 = vsel %vm6042, %v6019, 0.0
      %6074 = vadd.xlane.f32.xlu0 %v6073
      %v6075 = vpop.xlane.xlu0 %6074
      %v6076 = vsel %vm6038, %v6021, 0.0
      %6077 = vadd.xlane.f32.xlu0 %v6076
      %v6078 = vpop.xlane.xlu0 %6077
      %v6079 = vsel %vm6042, %v6023, 0.0
      %6080 = vadd.xlane.f32.xlu0 %v6079
      %v6081 = vpop.xlane.xlu0 %6080
      %v6082 = vrsqrt.pop %v6041
      %v6083 = vmul.f32 %v6041, %v6082
      %vm6084 = vcmp.eq.f32.partialorder %v6041, inf
      %v6085 = vsel %vm6084, %v6041, %v6083
      %vm6086 = vcmp.eq.f32.partialorder %v6041, 0.0
      %v6087 = vand.u32 %v6041, 2147483648
      %v6088 = vsel %vm6086, %v6087, %v6085
      %v6089 = vrsqrt.pop %v6045
      %v6090 = vmul.f32 %v6045, %v6089
      %vm6091 = vcmp.eq.f32.partialorder %v6045, inf
      %v6092 = vsel %vm6091, %v6045, %v6090
      %vm6093 = vcmp.eq.f32.partialorder %v6045, 0.0
      %v6094 = vand.u32 %v6045, 2147483648
      %v6095 = vsel %vm6093, %v6094, %v6092
      %v6096 = vrsqrt.pop %v6048
      %v6097 = vmul.f32 %v6048, %v6096
      %vm6098 = vcmp.eq.f32.partialorder %v6048, inf
      %v6099 = vsel %vm6098, %v6048, %v6097
      %vm6100 = vcmp.eq.f32.partialorder %v6048, 0.0
      %v6101 = vand.u32 %v6048, 2147483648
      %v6102 = vsel %vm6100, %v6101, %v6099
      %v6103 = vrsqrt.pop %v6051
      %v6104 = vmul.f32 %v6051, %v6103
      %vm6105 = vcmp.eq.f32.partialorder %v6051, inf
      %v6106 = vsel %vm6105, %v6051, %v6104
      %vm6107 = vcmp.eq.f32.partialorder %v6051, 0.0
      %v6108 = vand.u32 %v6051, 2147483648
      %v6109 = vsel %vm6107, %v6108, %v6106
      %v6110 = vrsqrt.pop %v6054
      %v6111 = vmul.f32 %v6054, %v6110
      %vm6112 = vcmp.eq.f32.partialorder %v6054, inf
      %v6113 = vsel %vm6112, %v6054, %v6111
      %vm6114 = vcmp.eq.f32.partialorder %v6054, 0.0
      %v6115 = vand.u32 %v6054, 2147483648
      %v6116 = vsel %vm6114, %v6115, %v6113
      %v6117 = vrsqrt.pop %v6057
      %v6118 = vmul.f32 %v6057, %v6117
      %vm6119 = vcmp.eq.f32.partialorder %v6057, inf
      %v6120 = vsel %vm6119, %v6057, %v6118
      %vm6121 = vcmp.eq.f32.partialorder %v6057, 0.0
      %v6122 = vand.u32 %v6057, 2147483648
      %v6123 = vsel %vm6121, %v6122, %v6120
      %v6124 = vrsqrt.pop %v6060
      %v6125 = vmul.f32 %v6060, %v6124
      %vm6126 = vcmp.eq.f32.partialorder %v6060, inf
      %v6127 = vsel %vm6126, %v6060, %v6125
      %vm6128 = vcmp.eq.f32.partialorder %v6060, 0.0
      %v6129 = vand.u32 %v6060, 2147483648
      %v6130 = vsel %vm6128, %v6129, %v6127
      %v6131 = vrsqrt.pop %v6063
      %v6132 = vmul.f32 %v6063, %v6131
      %vm6133 = vcmp.eq.f32.partialorder %v6063, inf
      %v6134 = vsel %vm6133, %v6063, %v6132
      %vm6135 = vcmp.eq.f32.partialorder %v6063, 0.0
      %v6136 = vand.u32 %v6063, 2147483648
      %v6137 = vsel %vm6135, %v6136, %v6134
      %v6138 = vrsqrt.pop %v6066
      %v6139 = vmul.f32 %v6066, %v6138
      %vm6140 = vcmp.eq.f32.partialorder %v6066, inf
      %v6141 = vsel %vm6140, %v6066, %v6139
      %vm6142 = vcmp.eq.f32.partialorder %v6066, 0.0
      %v6143 = vand.u32 %v6066, 2147483648
      %v6144 = vsel %vm6142, %v6143, %v6141
      %v6145 = vrsqrt.pop %v6069
      %v6146 = vmul.f32 %v6069, %v6145
      %vm6147 = vcmp.eq.f32.partialorder %v6069, inf
      %v6148 = vsel %vm6147, %v6069, %v6146
      %vm6149 = vcmp.eq.f32.partialorder %v6069, 0.0
      %v6150 = vand.u32 %v6069, 2147483648
      %v6151 = vsel %vm6149, %v6150, %v6148
      %v6152 = vrsqrt.pop %v6072
      %v6153 = vmul.f32 %v6072, %v6152
      %vm6154 = vcmp.eq.f32.partialorder %v6072, inf
      %v6155 = vsel %vm6154, %v6072, %v6153
      %vm6156 = vcmp.eq.f32.partialorder %v6072, 0.0
      %v6157 = vand.u32 %v6072, 2147483648
      %v6158 = vsel %vm6156, %v6157, %v6155
      %v6159 = vrsqrt.pop %v6075
      %v6160 = vmul.f32 %v6075, %v6159
      %vm6161 = vcmp.eq.f32.partialorder %v6075, inf
      %v6162 = vsel %vm6161, %v6075, %v6160
      %vm6163 = vcmp.eq.f32.partialorder %v6075, 0.0
      %v6164 = vand.u32 %v6075, 2147483648
      %v6165 = vsel %vm6163, %v6164, %v6162
      %v6166 = vrsqrt.pop %v6078
      %v6167 = vmul.f32 %v6078, %v6166
      %vm6168 = vcmp.eq.f32.partialorder %v6078, inf
      %v6169 = vsel %vm6168, %v6078, %v6167
      %vm6170 = vcmp.eq.f32.partialorder %v6078, 0.0
      %v6171 = vand.u32 %v6078, 2147483648
      %v6172 = vsel %vm6170, %v6171, %v6169
      %v6173 = vrsqrt.pop %v6081
      %v6174 = vmul.f32 %v6081, %v6173
      %vm6175 = vcmp.eq.f32.partialorder %v6081, inf
      %v6176 = vsel %vm6175, %v6081, %v6174
      %vm6177 = vcmp.eq.f32.partialorder %v6081, 0.0
      %v6178 = vand.u32 %v6081, 2147483648
      %v6179 = vsel %vm6177, %v6178, %v6176
      %v6180 = vadd.f32 %v6088, 1e-12
      %v6181 = vadd.f32 %v6095, 1e-12
      %v6182 = vadd.f32 %v6102, 1e-12
      %v6183 = vadd.f32 %v6109, 1e-12
      %v6184 = vadd.f32 %v6116, 1e-12
      %v6185 = vadd.f32 %v6123, 1e-12
      %v6186 = vadd.f32 %v6130, 1e-12
      %v6187 = vadd.f32 %v6137, 1e-12
      %v6188 = vadd.f32 %v6144, 1e-12
      %v6189 = vadd.f32 %v6151, 1e-12
      %v6190 = vadd.f32 %v6158, 1e-12
      %v6191 = vadd.f32 %v6165, 1e-12
      %v6192 = vadd.f32 %v6172, 1e-12
      %v6193 = vadd.f32 %v6179, 1e-12
      %v6194 = vrcp.pop %v6180
      %v6195 = vmul.f32 1.0, %v6194
      %v6196 = vrcp.pop %v6181
      %v6197 = vmul.f32 1.0, %v6196
      %v6198 = vrcp.pop %v6182
      %v6199 = vmul.f32 1.0, %v6198
      %v6200 = vrcp.pop %v6183
      %v6201 = vmul.f32 1.0, %v6200
      %v6202 = vrcp.pop %v6184
      %v6203 = vmul.f32 1.0, %v6202
      %v6204 = vrcp.pop %v6185
      %v6205 = vmul.f32 1.0, %v6204
      %v6206 = vrcp.pop %v6186
      %v6207 = vmul.f32 1.0, %v6206
      %v6208 = vrcp.pop %v6187
      %v6209 = vmul.f32 1.0, %v6208
      %v6210 = vrcp.pop %v6188
      %v6211 = vmul.f32 1.0, %v6210
      %v6212 = vrcp.pop %v6189
      %v6213 = vmul.f32 1.0, %v6212
      %v6214 = vrcp.pop %v6190
      %v6215 = vmul.f32 1.0, %v6214
      %v6216 = vrcp.pop %v6191
      %v6217 = vmul.f32 1.0, %v6216
      %v6218 = vrcp.pop %v6192
      %v6219 = vmul.f32 1.0, %v6218
      %v6220 = vrcp.pop %v6193
      %v6221 = vmul.f32 1.0, %v6220
      %v6222 = vmul.f32 %v4789, %v6195
      %v6223 = vmul.f32 %v4794, %v6197
      %v6224 = vmul.f32 %v4799, %v6199
      %v6225 = vmul.f32 %v4804, %v6201
      %v6226 = vmul.f32 %v4809, %v6203
      %v6227 = vmul.f32 %v4814, %v6205
      %v6228 = vmul.f32 %v4819, %v6207
      %v6229 = vmul.f32 %v4824, %v6209
      %v6230 = vmul.f32 %v4829, %v6211
      %v6231 = vmul.f32 %v4834, %v6213
      %v6232 = vmul.f32 %v4839, %v6215
      %v6233 = vmul.f32 %v4844, %v6217
      %v6234 = vmul.f32 %v4849, %v6219
      %v6235 = vmul.f32 %v4854, %v6221
      %6250 = vrot.lane.b32.xlu0 %v4929, 48
      %v6251 = vpop.permute.xlu0 %6250
      %6252 = vrot.lane.b32.xlu0 %v4930, 48
      %v6253 = vpop.permute.xlu0 %6252
      %6254 = vrot.lane.b32.xlu0 %v4934, 48
      %v6255 = vpop.permute.xlu0 %6254
      %6256 = vrot.lane.b32.xlu0 %v4935, 48
      %v6257 = vpop.permute.xlu0 %6256
      %6258 = vrot.lane.b32.xlu0 %v4939, 48
      %v6259 = vpop.permute.xlu0 %6258
      %6260 = vrot.lane.b32.xlu0 %v4940, 48
      %v6261 = vpop.permute.xlu0 %6260
      %6262 = vrot.lane.b32.xlu0 %v4944, 48
      %v6263 = vpop.permute.xlu0 %6262
      %6264 = vrot.lane.b32.xlu0 %v4945, 48
      %v6265 = vpop.permute.xlu0 %6264
      %6266 = vrot.lane.b32.xlu0 %v4949, 48
      %v6267 = vpop.permute.xlu0 %6266
      %6268 = vrot.lane.b32.xlu0 %v4950, 48
      %v6269 = vpop.permute.xlu0 %6268
      %6270 = vrot.lane.b32.xlu0 %v4954, 48
      %v6271 = vpop.permute.xlu0 %6270
      %6272 = vrot.lane.b32.xlu0 %v4955, 48
      %v6273 = vpop.permute.xlu0 %6272
      %6274 = vrot.lane.b32.xlu0 %v4959, 48
      %v6275 = vpop.permute.xlu0 %6274
      %6276 = vrot.lane.b32.xlu0 %v4960, 48
      %v6277 = vpop.permute.xlu0 %6276
      %6278 = vrot.lane.b32.xlu0 %v4964, 48
      %v6279 = vpop.permute.xlu0 %6278
      %6280 = vrot.lane.b32.xlu0 %v4965, 48
      %v6281 = vpop.permute.xlu0 %6280
      %6282 = vrot.lane.b32.xlu0 %v4969, 48
      %v6283 = vpop.permute.xlu0 %6282
      %6284 = vrot.lane.b32.xlu0 %v4970, 48
      %v6285 = vpop.permute.xlu0 %6284
      %6286 = vrot.lane.b32.xlu0 %v4974, 48
      %v6287 = vpop.permute.xlu0 %6286
      %6288 = vrot.lane.b32.xlu0 %v4975, 48
      %v6289 = vpop.permute.xlu0 %6288
      %6290 = vrot.lane.b32.xlu0 %v4979, 48
      %v6291 = vpop.permute.xlu0 %6290
      %6292 = vrot.lane.b32.xlu0 %v4980, 48
      %v6293 = vpop.permute.xlu0 %6292
      %6294 = vrot.lane.b32.xlu0 %v4984, 48
      %v6295 = vpop.permute.xlu0 %6294
      %6296 = vrot.lane.b32.xlu0 %v4985, 48
      %v6297 = vpop.permute.xlu0 %6296
      %6298 = vrot.lane.b32.xlu0 %v4989, 48
      %v6299 = vpop.permute.xlu0 %6298
      %6300 = vrot.lane.b32.xlu0 %v4990, 48
      %v6301 = vpop.permute.xlu0 %6300
      %6302 = vrot.lane.b32.xlu0 %v4994, 48
      %v6303 = vpop.permute.xlu0 %6302
      %6304 = vrot.lane.b32.xlu0 %v4995, 48
      %v6305 = vpop.permute.xlu0 %6304
      %v6306 = vsel %vm6038, %v6251, %v6253
      %v6307 = vsel %vm6038, %v6255, %v6257
      %v6308 = vsel %vm6038, %v6259, %v6261
      %v6309 = vsel %vm6038, %v6263, %v6265
      %v6310 = vsel %vm6038, %v6267, %v6269
      %v6311 = vsel %vm6038, %v6271, %v6273
      %v6312 = vsel %vm6038, %v6275, %v6277
      %v6313 = vsel %vm6038, %v6279, %v6281
      %v6314 = vsel %vm6038, %v6283, %v6285
      %v6315 = vsel %vm6038, %v6287, %v6289
      %v6316 = vsel %vm6038, %v6291, %v6293
      %v6317 = vsel %vm6038, %v6295, %v6297
      %v6318 = vsel %vm6038, %v6299, %v6301
      %v6319 = vsel %vm6038, %v6303, %v6305
      %vm6334 = vcmask 654336
      %v6335 = vsel %vm6334, %v6306, 0.0
      %6336 = vadd.xlane.f32.xlu0 %v6335
      %v6337 = vpop.xlane.xlu0 %6336
      %vm6338 = vcmask 652288
      %v6339 = vsel %vm6338, %v6307, 0.0
      %6340 = vadd.xlane.f32.xlu0 %v6339
      %v6341 = vpop.xlane.xlu0 %6340
      %v6342 = vsel %vm6334, %v6308, 0.0
      %6343 = vadd.xlane.f32.xlu0 %v6342
      %v6344 = vpop.xlane.xlu0 %6343
      %v6345 = vsel %vm6338, %v6309, 0.0
      %6346 = vadd.xlane.f32.xlu0 %v6345
      %v6347 = vpop.xlane.xlu0 %6346
      %v6348 = vsel %vm6334, %v6310, 0.0
      %6349 = vadd.xlane.f32.xlu0 %v6348
      %v6350 = vpop.xlane.xlu0 %6349
      %v6351 = vsel %vm6338, %v6311, 0.0
      %6352 = vadd.xlane.f32.xlu0 %v6351
      %v6353 = vpop.xlane.xlu0 %6352
      %v6354 = vsel %vm6334, %v6312, 0.0
      %6355 = vadd.xlane.f32.xlu0 %v6354
      %v6356 = vpop.xlane.xlu0 %6355
      %v6357 = vsel %vm6338, %v6313, 0.0
      %6358 = vadd.xlane.f32.xlu0 %v6357
      %v6359 = vpop.xlane.xlu0 %6358
      %v6360 = vsel %vm6334, %v6314, 0.0
      %6361 = vadd.xlane.f32.xlu0 %v6360
      %v6362 = vpop.xlane.xlu0 %6361
      %v6363 = vsel %vm6338, %v6315, 0.0
      %6364 = vadd.xlane.f32.xlu0 %v6363
      %v6365 = vpop.xlane.xlu0 %6364
      %v6366 = vsel %vm6334, %v6316, 0.0
      %6367 = vadd.xlane.f32.xlu0 %v6366
      %v6368 = vpop.xlane.xlu0 %6367
      %v6369 = vsel %vm6338, %v6317, 0.0
      %6370 = vadd.xlane.f32.xlu0 %v6369
      %v6371 = vpop.xlane.xlu0 %6370
      %v6372 = vsel %vm6334, %v6318, 0.0
      %6373 = vadd.xlane.f32.xlu0 %v6372
      %v6374 = vpop.xlane.xlu0 %6373
      %v6375 = vsel %vm6338, %v6319, 0.0
      %6376 = vadd.xlane.f32.xlu0 %v6375
      %v6377 = vpop.xlane.xlu0 %6376
      %v6378 = vrsqrt.pop %v6337
      %v6379 = vmul.f32 %v6337, %v6378
      %vm6380 = vcmp.eq.f32.partialorder %v6337, inf
      %v6381 = vsel %vm6380, %v6337, %v6379
      %vm6382 = vcmp.eq.f32.partialorder %v6337, 0.0
      %v6383 = vand.u32 %v6337, 2147483648
      %v6384 = vsel %vm6382, %v6383, %v6381
      %v6385 = vrsqrt.pop %v6341
      %v6386 = vmul.f32 %v6341, %v6385
      %vm6387 = vcmp.eq.f32.partialorder %v6341, inf
      %v6388 = vsel %vm6387, %v6341, %v6386
      %vm6389 = vcmp.eq.f32.partialorder %v6341, 0.0
      %v6390 = vand.u32 %v6341, 2147483648
      %v6391 = vsel %vm6389, %v6390, %v6388
      %v6392 = vrsqrt.pop %v6344
      %v6393 = vmul.f32 %v6344, %v6392
      %vm6394 = vcmp.eq.f32.partialorder %v6344, inf
      %v6395 = vsel %vm6394, %v6344, %v6393
      %vm6396 = vcmp.eq.f32.partialorder %v6344, 0.0
      %v6397 = vand.u32 %v6344, 2147483648
      %v6398 = vsel %vm6396, %v6397, %v6395
      %v6399 = vrsqrt.pop %v6347
      %v6400 = vmul.f32 %v6347, %v6399
      %vm6401 = vcmp.eq.f32.partialorder %v6347, inf
      %v6402 = vsel %vm6401, %v6347, %v6400
      %vm6403 = vcmp.eq.f32.partialorder %v6347, 0.0
      %v6404 = vand.u32 %v6347, 2147483648
      %v6405 = vsel %vm6403, %v6404, %v6402
      %v6406 = vrsqrt.pop %v6350
      %v6407 = vmul.f32 %v6350, %v6406
      %vm6408 = vcmp.eq.f32.partialorder %v6350, inf
      %v6409 = vsel %vm6408, %v6350, %v6407
      %vm6410 = vcmp.eq.f32.partialorder %v6350, 0.0
      %v6411 = vand.u32 %v6350, 2147483648
      %v6412 = vsel %vm6410, %v6411, %v6409
      %v6413 = vrsqrt.pop %v6353
      %v6414 = vmul.f32 %v6353, %v6413
      %vm6415 = vcmp.eq.f32.partialorder %v6353, inf
      %v6416 = vsel %vm6415, %v6353, %v6414
      %vm6417 = vcmp.eq.f32.partialorder %v6353, 0.0
      %v6418 = vand.u32 %v6353, 2147483648
      %v6419 = vsel %vm6417, %v6418, %v6416
      %v6420 = vrsqrt.pop %v6356
      %v6421 = vmul.f32 %v6356, %v6420
      %vm6422 = vcmp.eq.f32.partialorder %v6356, inf
      %v6423 = vsel %vm6422, %v6356, %v6421
      %vm6424 = vcmp.eq.f32.partialorder %v6356, 0.0
      %v6425 = vand.u32 %v6356, 2147483648
      %v6426 = vsel %vm6424, %v6425, %v6423
      %v6427 = vrsqrt.pop %v6359
      %v6428 = vmul.f32 %v6359, %v6427
      %vm6429 = vcmp.eq.f32.partialorder %v6359, inf
      %v6430 = vsel %vm6429, %v6359, %v6428
      %vm6431 = vcmp.eq.f32.partialorder %v6359, 0.0
      %v6432 = vand.u32 %v6359, 2147483648
      %v6433 = vsel %vm6431, %v6432, %v6430
      %v6434 = vrsqrt.pop %v6362
      %v6435 = vmul.f32 %v6362, %v6434
      %vm6436 = vcmp.eq.f32.partialorder %v6362, inf
      %v6437 = vsel %vm6436, %v6362, %v6435
      %vm6438 = vcmp.eq.f32.partialorder %v6362, 0.0
      %v6439 = vand.u32 %v6362, 2147483648
      %v6440 = vsel %vm6438, %v6439, %v6437
      %v6441 = vrsqrt.pop %v6365
      %v6442 = vmul.f32 %v6365, %v6441
      %vm6443 = vcmp.eq.f32.partialorder %v6365, inf
      %v6444 = vsel %vm6443, %v6365, %v6442
      %vm6445 = vcmp.eq.f32.partialorder %v6365, 0.0
      %v6446 = vand.u32 %v6365, 2147483648
      %v6447 = vsel %vm6445, %v6446, %v6444
      %v6448 = vrsqrt.pop %v6368
      %v6449 = vmul.f32 %v6368, %v6448
      %vm6450 = vcmp.eq.f32.partialorder %v6368, inf
      %v6451 = vsel %vm6450, %v6368, %v6449
      %vm6452 = vcmp.eq.f32.partialorder %v6368, 0.0
      %v6453 = vand.u32 %v6368, 2147483648
      %v6454 = vsel %vm6452, %v6453, %v6451
      %v6455 = vrsqrt.pop %v6371
      %v6456 = vmul.f32 %v6371, %v6455
      %vm6457 = vcmp.eq.f32.partialorder %v6371, inf
      %v6458 = vsel %vm6457, %v6371, %v6456
      %vm6459 = vcmp.eq.f32.partialorder %v6371, 0.0
      %v6460 = vand.u32 %v6371, 2147483648
      %v6461 = vsel %vm6459, %v6460, %v6458
      %v6462 = vrsqrt.pop %v6374
      %v6463 = vmul.f32 %v6374, %v6462
      %vm6464 = vcmp.eq.f32.partialorder %v6374, inf
      %v6465 = vsel %vm6464, %v6374, %v6463
      %vm6466 = vcmp.eq.f32.partialorder %v6374, 0.0
      %v6467 = vand.u32 %v6374, 2147483648
      %v6468 = vsel %vm6466, %v6467, %v6465
      %v6469 = vrsqrt.pop %v6377
      %v6470 = vmul.f32 %v6377, %v6469
      %vm6471 = vcmp.eq.f32.partialorder %v6377, inf
      %v6472 = vsel %vm6471, %v6377, %v6470
      %vm6473 = vcmp.eq.f32.partialorder %v6377, 0.0
      %v6474 = vand.u32 %v6377, 2147483648
      %v6475 = vsel %vm6473, %v6474, %v6472
      %v6476 = vadd.f32 %v6384, 1e-12
      %v6477 = vadd.f32 %v6391, 1e-12
      %v6478 = vadd.f32 %v6398, 1e-12
      %v6479 = vadd.f32 %v6405, 1e-12
      %v6480 = vadd.f32 %v6412, 1e-12
      %v6481 = vadd.f32 %v6419, 1e-12
      %v6482 = vadd.f32 %v6426, 1e-12
      %v6483 = vadd.f32 %v6433, 1e-12
      %v6484 = vadd.f32 %v6440, 1e-12
      %v6485 = vadd.f32 %v6447, 1e-12
      %v6486 = vadd.f32 %v6454, 1e-12
      %v6487 = vadd.f32 %v6461, 1e-12
      %v6488 = vadd.f32 %v6468, 1e-12
      %v6489 = vadd.f32 %v6475, 1e-12
      %v6490 = vrcp.pop %v6476
      %v6491 = vmul.f32 1.0, %v6490
      %v6492 = vrcp.pop %v6477
      %v6493 = vmul.f32 1.0, %v6492
      %v6494 = vrcp.pop %v6478
      %v6495 = vmul.f32 1.0, %v6494
      %v6496 = vrcp.pop %v6479
      %v6497 = vmul.f32 1.0, %v6496
      %v6498 = vrcp.pop %v6480
      %v6499 = vmul.f32 1.0, %v6498
      %v6500 = vrcp.pop %v6481
      %v6501 = vmul.f32 1.0, %v6500
      %v6502 = vrcp.pop %v6482
      %v6503 = vmul.f32 1.0, %v6502
      %v6504 = vrcp.pop %v6483
      %v6505 = vmul.f32 1.0, %v6504
      %v6506 = vrcp.pop %v6484
      %v6507 = vmul.f32 1.0, %v6506
      %v6508 = vrcp.pop %v6485
      %v6509 = vmul.f32 1.0, %v6508
      %v6510 = vrcp.pop %v6486
      %v6511 = vmul.f32 1.0, %v6510
      %v6512 = vrcp.pop %v6487
      %v6513 = vmul.f32 1.0, %v6512
      %v6514 = vrcp.pop %v6488
      %v6515 = vmul.f32 1.0, %v6514
      %v6516 = vrcp.pop %v6489
      %v6517 = vmul.f32 1.0, %v6516
      %v6518 = vmul.f32 %v4789, %v6491
      %v6519 = vmul.f32 %v4790, %v6491
      %v6520 = vmul.f32 %v4794, %v6493
      %v6521 = vmul.f32 %v4795, %v6493
      %v6522 = vmul.f32 %v4799, %v6495
      %v6523 = vmul.f32 %v4800, %v6495
      %v6524 = vmul.f32 %v4804, %v6497
      %v6525 = vmul.f32 %v4805, %v6497
      %v6526 = vmul.f32 %v4809, %v6499
      %v6527 = vmul.f32 %v4810, %v6499
      %v6528 = vmul.f32 %v4814, %v6501
      %v6529 = vmul.f32 %v4815, %v6501
      %v6530 = vmul.f32 %v4819, %v6503
      %v6531 = vmul.f32 %v4820, %v6503
      %v6532 = vmul.f32 %v4824, %v6505
      %v6533 = vmul.f32 %v4825, %v6505
      %v6534 = vmul.f32 %v4829, %v6507
      %v6535 = vmul.f32 %v4830, %v6507
      %v6536 = vmul.f32 %v4834, %v6509
      %v6537 = vmul.f32 %v4835, %v6509
      %v6538 = vmul.f32 %v4839, %v6511
      %v6539 = vmul.f32 %v4840, %v6511
      %v6540 = vmul.f32 %v4844, %v6513
      %v6541 = vmul.f32 %v4845, %v6513
      %v6542 = vmul.f32 %v4849, %v6515
      %v6543 = vmul.f32 %v4850, %v6515
      %v6544 = vmul.f32 %v4854, %v6517
      %v6545 = vmul.f32 %v4855, %v6517
      %6560 = vrot.lane.b32.xlu0 %v4930, 96
      %v6561 = vpop.permute.xlu0 %6560
      %6562 = vrot.lane.b32.xlu0 %v4931, 96
      %v6563 = vpop.permute.xlu0 %6562
      %6564 = vrot.lane.b32.xlu0 %v4935, 96
      %v6565 = vpop.permute.xlu0 %6564
      %6566 = vrot.lane.b32.xlu0 %v4936, 96
      %v6567 = vpop.permute.xlu0 %6566
      %6568 = vrot.lane.b32.xlu0 %v4940, 96
      %v6569 = vpop.permute.xlu0 %6568
      %6570 = vrot.lane.b32.xlu0 %v4941, 96
      %v6571 = vpop.permute.xlu0 %6570
      %6572 = vrot.lane.b32.xlu0 %v4945, 96
      %v6573 = vpop.permute.xlu0 %6572
      %6574 = vrot.lane.b32.xlu0 %v4946, 96
      %v6575 = vpop.permute.xlu0 %6574
      %6576 = vrot.lane.b32.xlu0 %v4950, 96
      %v6577 = vpop.permute.xlu0 %6576
      %6578 = vrot.lane.b32.xlu0 %v4951, 96
      %v6579 = vpop.permute.xlu0 %6578
      %6580 = vrot.lane.b32.xlu0 %v4955, 96
      %v6581 = vpop.permute.xlu0 %6580
      %6582 = vrot.lane.b32.xlu0 %v4956, 96
      %v6583 = vpop.permute.xlu0 %6582
      %6584 = vrot.lane.b32.xlu0 %v4960, 96
      %v6585 = vpop.permute.xlu0 %6584
      %6586 = vrot.lane.b32.xlu0 %v4961, 96
      %v6587 = vpop.permute.xlu0 %6586
      %6588 = vrot.lane.b32.xlu0 %v4965, 96
      %v6589 = vpop.permute.xlu0 %6588
      %6590 = vrot.lane.b32.xlu0 %v4966, 96
      %v6591 = vpop.permute.xlu0 %6590
      %6592 = vrot.lane.b32.xlu0 %v4970, 96
      %v6593 = vpop.permute.xlu0 %6592
      %6594 = vrot.lane.b32.xlu0 %v4971, 96
      %v6595 = vpop.permute.xlu0 %6594
      %6596 = vrot.lane.b32.xlu0 %v4975, 96
      %v6597 = vpop.permute.xlu0 %6596
      %6598 = vrot.lane.b32.xlu0 %v4976, 96
      %v6599 = vpop.permute.xlu0 %6598
      %6600 = vrot.lane.b32.xlu0 %v4980, 96
      %v6601 = vpop.permute.xlu0 %6600
      %6602 = vrot.lane.b32.xlu0 %v4981, 96
      %v6603 = vpop.permute.xlu0 %6602
      %6604 = vrot.lane.b32.xlu0 %v4985, 96
      %v6605 = vpop.permute.xlu0 %6604
      %6606 = vrot.lane.b32.xlu0 %v4986, 96
      %v6607 = vpop.permute.xlu0 %6606
      %6608 = vrot.lane.b32.xlu0 %v4990, 96
      %v6609 = vpop.permute.xlu0 %6608
      %6610 = vrot.lane.b32.xlu0 %v4991, 96
      %v6611 = vpop.permute.xlu0 %6610
      %6612 = vrot.lane.b32.xlu0 %v4995, 96
      %v6613 = vpop.permute.xlu0 %6612
      %6614 = vrot.lane.b32.xlu0 %v4996, 96
      %v6615 = vpop.permute.xlu0 %6614
      %vm6616 = vcmask 785408
      %v6617 = vsel %vm6616, %v6561, %v6563
      %v6618 = vsel %vm6616, %v6565, %v6567
      %v6619 = vsel %vm6616, %v6569, %v6571
      %v6620 = vsel %vm6616, %v6573, %v6575
      %v6621 = vsel %vm6616, %v6577, %v6579
      %v6622 = vsel %vm6616, %v6581, %v6583
      %v6623 = vsel %vm6616, %v6585, %v6587
      %v6624 = vsel %vm6616, %v6589, %v6591
      %v6625 = vsel %vm6616, %v6593, %v6595
      %v6626 = vsel %vm6616, %v6597, %v6599
      %v6627 = vsel %vm6616, %v6601, %v6603
      %v6628 = vsel %vm6616, %v6605, %v6607
      %v6629 = vsel %vm6616, %v6609, %v6611
      %v6630 = vsel %vm6616, %v6613, %v6615
      %v6659 = vsel %vm307, %v6563, 0.0
      %v6660 = vadd.f32 %v6617, %v6659
      %6661 = vadd.xlane.f32.xlu0 %v6660
      %v6662 = vpop.xlane.xlu0 %6661
      %v6663 = vsel %vm3948, %v6618, 0.0
      %v6664 = vsel %vm2205, %v6567, 0.0
      %v6665 = vadd.f32 %v6663, %v6664
      %6666 = vadd.xlane.f32.xlu0 %v6665
      %v6667 = vpop.xlane.xlu0 %6666
      %v6668 = vsel %vm307, %v6571, 0.0
      %v6669 = vadd.f32 %v6619, %v6668
      %6670 = vadd.xlane.f32.xlu0 %v6669
      %v6671 = vpop.xlane.xlu0 %6670
      %v6672 = vsel %vm3948, %v6620, 0.0
      %v6673 = vsel %vm2205, %v6575, 0.0
      %v6674 = vadd.f32 %v6672, %v6673
      %6675 = vadd.xlane.f32.xlu0 %v6674
      %v6676 = vpop.xlane.xlu0 %6675
      %v6677 = vsel %vm307, %v6579, 0.0
      %v6678 = vadd.f32 %v6621, %v6677
      %6679 = vadd.xlane.f32.xlu0 %v6678
      %v6680 = vpop.xlane.xlu0 %6679
      %v6681 = vsel %vm3948, %v6622, 0.0
      %v6682 = vsel %vm2205, %v6583, 0.0
      %v6683 = vadd.f32 %v6681, %v6682
      %6684 = vadd.xlane.f32.xlu0 %v6683
      %v6685 = vpop.xlane.xlu0 %6684
      %v6686 = vsel %vm307, %v6587, 0.0
      %v6687 = vadd.f32 %v6623, %v6686
      %6688 = vadd.xlane.f32.xlu0 %v6687
      %v6689 = vpop.xlane.xlu0 %6688
      %v6690 = vsel %vm3948, %v6624, 0.0
      %v6691 = vsel %vm2205, %v6591, 0.0
      %v6692 = vadd.f32 %v6690, %v6691
      %6693 = vadd.xlane.f32.xlu0 %v6692
      %v6694 = vpop.xlane.xlu0 %6693
      %v6695 = vsel %vm307, %v6595, 0.0
      %v6696 = vadd.f32 %v6625, %v6695
      %6697 = vadd.xlane.f32.xlu0 %v6696
      %v6698 = vpop.xlane.xlu0 %6697
      %v6699 = vsel %vm3948, %v6626, 0.0
      %v6700 = vsel %vm2205, %v6599, 0.0
      %v6701 = vadd.f32 %v6699, %v6700
      %6702 = vadd.xlane.f32.xlu0 %v6701
      %v6703 = vpop.xlane.xlu0 %6702
      %v6704 = vsel %vm307, %v6603, 0.0
      %v6705 = vadd.f32 %v6627, %v6704
      %6706 = vadd.xlane.f32.xlu0 %v6705
      %v6707 = vpop.xlane.xlu0 %6706
      %v6708 = vsel %vm3948, %v6628, 0.0
      %v6709 = vsel %vm2205, %v6607, 0.0
      %v6710 = vadd.f32 %v6708, %v6709
      %6711 = vadd.xlane.f32.xlu0 %v6710
      %v6712 = vpop.xlane.xlu0 %6711
      %v6713 = vsel %vm307, %v6611, 0.0
      %v6714 = vadd.f32 %v6629, %v6713
      %6715 = vadd.xlane.f32.xlu0 %v6714
      %v6716 = vpop.xlane.xlu0 %6715
      %v6717 = vsel %vm3948, %v6630, 0.0
      %v6718 = vsel %vm2205, %v6615, 0.0
      %v6719 = vadd.f32 %v6717, %v6718
      %6720 = vadd.xlane.f32.xlu0 %v6719
      %v6721 = vpop.xlane.xlu0 %6720
      %v6722 = vrsqrt.pop %v6662
      %v6723 = vmul.f32 %v6662, %v6722
      %vm6724 = vcmp.eq.f32.partialorder %v6662, inf
      %v6725 = vsel %vm6724, %v6662, %v6723
      %vm6726 = vcmp.eq.f32.partialorder %v6662, 0.0
      %v6727 = vand.u32 %v6662, 2147483648
      %v6728 = vsel %vm6726, %v6727, %v6725
      %v6729 = vrsqrt.pop %v6667
      %v6730 = vmul.f32 %v6667, %v6729
      %vm6731 = vcmp.eq.f32.partialorder %v6667, inf
      %v6732 = vsel %vm6731, %v6667, %v6730
      %vm6733 = vcmp.eq.f32.partialorder %v6667, 0.0
      %v6734 = vand.u32 %v6667, 2147483648
      %v6735 = vsel %vm6733, %v6734, %v6732
      %v6736 = vrsqrt.pop %v6671
      %v6737 = vmul.f32 %v6671, %v6736
      %vm6738 = vcmp.eq.f32.partialorder %v6671, inf
      %v6739 = vsel %vm6738, %v6671, %v6737
      %vm6740 = vcmp.eq.f32.partialorder %v6671, 0.0
      %v6741 = vand.u32 %v6671, 2147483648
      %v6742 = vsel %vm6740, %v6741, %v6739
      %v6743 = vrsqrt.pop %v6676
      %v6744 = vmul.f32 %v6676, %v6743
      %vm6745 = vcmp.eq.f32.partialorder %v6676, inf
      %v6746 = vsel %vm6745, %v6676, %v6744
      %vm6747 = vcmp.eq.f32.partialorder %v6676, 0.0
      %v6748 = vand.u32 %v6676, 2147483648
      %v6749 = vsel %vm6747, %v6748, %v6746
      %v6750 = vrsqrt.pop %v6680
      %v6751 = vmul.f32 %v6680, %v6750
      %vm6752 = vcmp.eq.f32.partialorder %v6680, inf
      %v6753 = vsel %vm6752, %v6680, %v6751
      %vm6754 = vcmp.eq.f32.partialorder %v6680, 0.0
      %v6755 = vand.u32 %v6680, 2147483648
      %v6756 = vsel %vm6754, %v6755, %v6753
      %v6757 = vrsqrt.pop %v6685
      %v6758 = vmul.f32 %v6685, %v6757
      %vm6759 = vcmp.eq.f32.partialorder %v6685, inf
      %v6760 = vsel %vm6759, %v6685, %v6758
      %vm6761 = vcmp.eq.f32.partialorder %v6685, 0.0
      %v6762 = vand.u32 %v6685, 2147483648
      %v6763 = vsel %vm6761, %v6762, %v6760
      %v6764 = vrsqrt.pop %v6689
      %v6765 = vmul.f32 %v6689, %v6764
      %vm6766 = vcmp.eq.f32.partialorder %v6689, inf
      %v6767 = vsel %vm6766, %v6689, %v6765
      %vm6768 = vcmp.eq.f32.partialorder %v6689, 0.0
      %v6769 = vand.u32 %v6689, 2147483648
      %v6770 = vsel %vm6768, %v6769, %v6767
      %v6771 = vrsqrt.pop %v6694
      %v6772 = vmul.f32 %v6694, %v6771
      %vm6773 = vcmp.eq.f32.partialorder %v6694, inf
      %v6774 = vsel %vm6773, %v6694, %v6772
      %vm6775 = vcmp.eq.f32.partialorder %v6694, 0.0
      %v6776 = vand.u32 %v6694, 2147483648
      %v6777 = vsel %vm6775, %v6776, %v6774
      %v6778 = vrsqrt.pop %v6698
      %v6779 = vmul.f32 %v6698, %v6778
      %vm6780 = vcmp.eq.f32.partialorder %v6698, inf
      %v6781 = vsel %vm6780, %v6698, %v6779
      %vm6782 = vcmp.eq.f32.partialorder %v6698, 0.0
      %v6783 = vand.u32 %v6698, 2147483648
      %v6784 = vsel %vm6782, %v6783, %v6781
      %v6785 = vrsqrt.pop %v6703
      %v6786 = vmul.f32 %v6703, %v6785
      %vm6787 = vcmp.eq.f32.partialorder %v6703, inf
      %v6788 = vsel %vm6787, %v6703, %v6786
      %vm6789 = vcmp.eq.f32.partialorder %v6703, 0.0
      %v6790 = vand.u32 %v6703, 2147483648
      %v6791 = vsel %vm6789, %v6790, %v6788
      %v6792 = vrsqrt.pop %v6707
      %v6793 = vmul.f32 %v6707, %v6792
      %vm6794 = vcmp.eq.f32.partialorder %v6707, inf
      %v6795 = vsel %vm6794, %v6707, %v6793
      %vm6796 = vcmp.eq.f32.partialorder %v6707, 0.0
      %v6797 = vand.u32 %v6707, 2147483648
      %v6798 = vsel %vm6796, %v6797, %v6795
      %v6799 = vrsqrt.pop %v6712
      %v6800 = vmul.f32 %v6712, %v6799
      %vm6801 = vcmp.eq.f32.partialorder %v6712, inf
      %v6802 = vsel %vm6801, %v6712, %v6800
      %vm6803 = vcmp.eq.f32.partialorder %v6712, 0.0
      %v6804 = vand.u32 %v6712, 2147483648
      %v6805 = vsel %vm6803, %v6804, %v6802
      %v6806 = vrsqrt.pop %v6716
      %v6807 = vmul.f32 %v6716, %v6806
      %vm6808 = vcmp.eq.f32.partialorder %v6716, inf
      %v6809 = vsel %vm6808, %v6716, %v6807
      %vm6810 = vcmp.eq.f32.partialorder %v6716, 0.0
      %v6811 = vand.u32 %v6716, 2147483648
      %v6812 = vsel %vm6810, %v6811, %v6809
      %v6813 = vrsqrt.pop %v6721
      %v6814 = vmul.f32 %v6721, %v6813
      %vm6815 = vcmp.eq.f32.partialorder %v6721, inf
      %v6816 = vsel %vm6815, %v6721, %v6814
      %vm6817 = vcmp.eq.f32.partialorder %v6721, 0.0
      %v6818 = vand.u32 %v6721, 2147483648
      %v6819 = vsel %vm6817, %v6818, %v6816
      %v6820 = vadd.f32 %v6728, 1e-12
      %v6821 = vadd.f32 %v6735, 1e-12
      %v6822 = vadd.f32 %v6742, 1e-12
      %v6823 = vadd.f32 %v6749, 1e-12
      %v6824 = vadd.f32 %v6756, 1e-12
      %v6825 = vadd.f32 %v6763, 1e-12
      %v6826 = vadd.f32 %v6770, 1e-12
      %v6827 = vadd.f32 %v6777, 1e-12
      %v6828 = vadd.f32 %v6784, 1e-12
      %v6829 = vadd.f32 %v6791, 1e-12
      %v6830 = vadd.f32 %v6798, 1e-12
      %v6831 = vadd.f32 %v6805, 1e-12
      %v6832 = vadd.f32 %v6812, 1e-12
      %v6833 = vadd.f32 %v6819, 1e-12
      %v6834 = vrcp.pop %v6820
      %v6835 = vmul.f32 1.0, %v6834
      %v6836 = vrcp.pop %v6821
      %v6837 = vmul.f32 1.0, %v6836
      %v6838 = vrcp.pop %v6822
      %v6839 = vmul.f32 1.0, %v6838
      %v6840 = vrcp.pop %v6823
      %v6841 = vmul.f32 1.0, %v6840
      %v6842 = vrcp.pop %v6824
      %v6843 = vmul.f32 1.0, %v6842
      %v6844 = vrcp.pop %v6825
      %v6845 = vmul.f32 1.0, %v6844
      %v6846 = vrcp.pop %v6826
      %v6847 = vmul.f32 1.0, %v6846
      %v6848 = vrcp.pop %v6827
      %v6849 = vmul.f32 1.0, %v6848
      %v6850 = vrcp.pop %v6828
      %v6851 = vmul.f32 1.0, %v6850
      %v6852 = vrcp.pop %v6829
      %v6853 = vmul.f32 1.0, %v6852
      %v6854 = vrcp.pop %v6830
      %v6855 = vmul.f32 1.0, %v6854
      %v6856 = vrcp.pop %v6831
      %v6857 = vmul.f32 1.0, %v6856
      %v6858 = vrcp.pop %v6832
      %v6859 = vmul.f32 1.0, %v6858
      %v6860 = vrcp.pop %v6833
      %v6861 = vmul.f32 1.0, %v6860
      %v6862 = vmul.f32 %v4790, %v6835
      %v6863 = vmul.f32 %v4791, %v6835
      %v6864 = vmul.f32 %v4795, %v6837
      %v6865 = vmul.f32 %v4796, %v6837
      %v6866 = vmul.f32 %v4800, %v6839
      %v6867 = vmul.f32 %v4801, %v6839
      %v6868 = vmul.f32 %v4805, %v6841
      %v6869 = vmul.f32 %v4806, %v6841
      %v6870 = vmul.f32 %v4810, %v6843
      %v6871 = vmul.f32 %v4811, %v6843
      %v6872 = vmul.f32 %v4815, %v6845
      %v6873 = vmul.f32 %v4816, %v6845
      %v6874 = vmul.f32 %v4820, %v6847
      %v6875 = vmul.f32 %v4821, %v6847
      %v6876 = vmul.f32 %v4825, %v6849
      %v6877 = vmul.f32 %v4826, %v6849
      %v6878 = vmul.f32 %v4830, %v6851
      %v6879 = vmul.f32 %v4831, %v6851
      %v6880 = vmul.f32 %v4835, %v6853
      %v6881 = vmul.f32 %v4836, %v6853
      %v6882 = vmul.f32 %v4840, %v6855
      %v6883 = vmul.f32 %v4841, %v6855
      %v6884 = vmul.f32 %v4845, %v6857
      %v6885 = vmul.f32 %v4846, %v6857
      %v6886 = vmul.f32 %v4850, %v6859
      %v6887 = vmul.f32 %v4851, %v6859
      %v6888 = vmul.f32 %v4855, %v6861
      %v6889 = vmul.f32 %v4856, %v6861
      %6918 = vrot.lane.b32.xlu0 %v4931, 64
      %v6919 = vpop.permute.xlu0 %6918
      %6920 = vrot.lane.b32.xlu0 %v4932, 64
      %v6921 = vpop.permute.xlu0 %6920
      %6922 = vrot.lane.b32.xlu0 %v4933, 64
      %v6923 = vpop.permute.xlu0 %6922
      %6924 = vrot.lane.b32.xlu0 %v4936, 64
      %v6925 = vpop.permute.xlu0 %6924
      %6926 = vrot.lane.b32.xlu0 %v4937, 64
      %v6927 = vpop.permute.xlu0 %6926
      %6928 = vrot.lane.b32.xlu0 %v4938, 64
      %v6929 = vpop.permute.xlu0 %6928
      %6930 = vrot.lane.b32.xlu0 %v4941, 64
      %v6931 = vpop.permute.xlu0 %6930
      %6932 = vrot.lane.b32.xlu0 %v4942, 64
      %v6933 = vpop.permute.xlu0 %6932
      %6934 = vrot.lane.b32.xlu0 %v4943, 64
      %v6935 = vpop.permute.xlu0 %6934
      %6936 = vrot.lane.b32.xlu0 %v4946, 64
      %v6937 = vpop.permute.xlu0 %6936
      %6938 = vrot.lane.b32.xlu0 %v4947, 64
      %v6939 = vpop.permute.xlu0 %6938
      %6940 = vrot.lane.b32.xlu0 %v4948, 64
      %v6941 = vpop.permute.xlu0 %6940
      %6942 = vrot.lane.b32.xlu0 %v4951, 64
      %v6943 = vpop.permute.xlu0 %6942
      %6944 = vrot.lane.b32.xlu0 %v4952, 64
      %v6945 = vpop.permute.xlu0 %6944
      %6946 = vrot.lane.b32.xlu0 %v4953, 64
      %v6947 = vpop.permute.xlu0 %6946
      %6948 = vrot.lane.b32.xlu0 %v4956, 64
      %v6949 = vpop.permute.xlu0 %6948
      %6950 = vrot.lane.b32.xlu0 %v4957, 64
      %v6951 = vpop.permute.xlu0 %6950
      %6952 = vrot.lane.b32.xlu0 %v4958, 64
      %v6953 = vpop.permute.xlu0 %6952
      %6954 = vrot.lane.b32.xlu0 %v4961, 64
      %v6955 = vpop.permute.xlu0 %6954
      %6956 = vrot.lane.b32.xlu0 %v4962, 64
      %v6957 = vpop.permute.xlu0 %6956
      %6958 = vrot.lane.b32.xlu0 %v4963, 64
      %v6959 = vpop.permute.xlu0 %6958
      %6960 = vrot.lane.b32.xlu0 %v4966, 64
      %v6961 = vpop.permute.xlu0 %6960
      %6962 = vrot.lane.b32.xlu0 %v4967, 64
      %v6963 = vpop.permute.xlu0 %6962
      %6964 = vrot.lane.b32.xlu0 %v4968, 64
      %v6965 = vpop.permute.xlu0 %6964
      %6966 = vrot.lane.b32.xlu0 %v4971, 64
      %v6967 = vpop.permute.xlu0 %6966
      %6968 = vrot.lane.b32.xlu0 %v4972, 64
      %v6969 = vpop.permute.xlu0 %6968
      %6970 = vrot.lane.b32.xlu0 %v4973, 64
      %v6971 = vpop.permute.xlu0 %6970
      %6972 = vrot.lane.b32.xlu0 %v4976, 64
      %v6973 = vpop.permute.xlu0 %6972
      %6974 = vrot.lane.b32.xlu0 %v4977, 64
      %v6975 = vpop.permute.xlu0 %6974
      %6976 = vrot.lane.b32.xlu0 %v4978, 64
      %v6977 = vpop.permute.xlu0 %6976
      %6978 = vrot.lane.b32.xlu0 %v4981, 64
      %v6979 = vpop.permute.xlu0 %6978
      %6980 = vrot.lane.b32.xlu0 %v4982, 64
      %v6981 = vpop.permute.xlu0 %6980
      %6982 = vrot.lane.b32.xlu0 %v4983, 64
      %v6983 = vpop.permute.xlu0 %6982
      %6984 = vrot.lane.b32.xlu0 %v4986, 64
      %v6985 = vpop.permute.xlu0 %6984
      %6986 = vrot.lane.b32.xlu0 %v4987, 64
      %v6987 = vpop.permute.xlu0 %6986
      %6988 = vrot.lane.b32.xlu0 %v4988, 64
      %v6989 = vpop.permute.xlu0 %6988
      %6990 = vrot.lane.b32.xlu0 %v4991, 64
      %v6991 = vpop.permute.xlu0 %6990
      %6992 = vrot.lane.b32.xlu0 %v4992, 64
      %v6993 = vpop.permute.xlu0 %6992
      %6994 = vrot.lane.b32.xlu0 %v4993, 64
      %v6995 = vpop.permute.xlu0 %6994
      %6996 = vrot.lane.b32.xlu0 %v4996, 64
      %v6997 = vpop.permute.xlu0 %6996
      %6998 = vrot.lane.b32.xlu0 %v4997, 64
      %v6999 = vpop.permute.xlu0 %6998
      %7000 = vrot.lane.b32.xlu0 %v4998, 64
      %v7001 = vpop.permute.xlu0 %7000
      %vm7002 = vcmask 523264
      %v7003 = vsel %vm7002, %v6919, %v6921
      %v7004 = vsel %vm7002, %v6921, %v6923
      %v7005 = vsel %vm7002, %v6925, %v6927
      %v7006 = vsel %vm7002, %v6927, %v6929
      %v7007 = vsel %vm7002, %v6931, %v6933
      %v7008 = vsel %vm7002, %v6933, %v6935
      %v7009 = vsel %vm7002, %v6937, %v6939
      %v7010 = vsel %vm7002, %v6939, %v6941
      %v7011 = vsel %vm7002, %v6943, %v6945
      %v7012 = vsel %vm7002, %v6945, %v6947
      %v7013 = vsel %vm7002, %v6949, %v6951
      %v7014 = vsel %vm7002, %v6951, %v6953
      %v7015 = vsel %vm7002, %v6955, %v6957
      %v7016 = vsel %vm7002, %v6957, %v6959
      %v7017 = vsel %vm7002, %v6961, %v6963
      %v7018 = vsel %vm7002, %v6963, %v6965
      %v7019 = vsel %vm7002, %v6967, %v6969
      %v7020 = vsel %vm7002, %v6969, %v6971
      %v7021 = vsel %vm7002, %v6973, %v6975
      %v7022 = vsel %vm7002, %v6975, %v6977
      %v7023 = vsel %vm7002, %v6979, %v6981
      %v7024 = vsel %vm7002, %v6981, %v6983
      %v7025 = vsel %vm7002, %v6985, %v6987
      %v7026 = vsel %vm7002, %v6987, %v6989
      %v7027 = vsel %vm7002, %v6991, %v6993
      %v7028 = vsel %vm7002, %v6993, %v6995
      %v7029 = vsel %vm7002, %v6997, %v6999
      %v7030 = vsel %vm7002, %v6999, %v7001
      %v7059 = vsel %vm6616, %v7004, 0.0
      %v7060 = vadd.f32 %v7003, %v7059
      %7061 = vadd.xlane.f32.xlu0 %v7060
      %v7062 = vpop.xlane.xlu0 %7061
      %v7063 = vsel %vm3948, %v7005, 0.0
      %vm7064 = vcmask 783360
      %v7065 = vsel %vm7064, %v7006, 0.0
      %v7066 = vadd.f32 %v7063, %v7065
      %7067 = vadd.xlane.f32.xlu0 %v7066
      %v7068 = vpop.xlane.xlu0 %7067
      %v7069 = vsel %vm6616, %v7008, 0.0
      %v7070 = vadd.f32 %v7007, %v7069
      %7071 = vadd.xlane.f32.xlu0 %v7070
      %v7072 = vpop.xlane.xlu0 %7071
      %v7073 = vsel %vm3948, %v7009, 0.0
      %v7074 = vsel %vm7064, %v7010, 0.0
      %v7075 = vadd.f32 %v7073, %v7074
      %7076 = vadd.xlane.f32.xlu0 %v7075
      %v7077 = vpop.xlane.xlu0 %7076
      %v7078 = vsel %vm6616, %v7012, 0.0
      %v7079 = vadd.f32 %v7011, %v7078
      %7080 = vadd.xlane.f32.xlu0 %v7079
      %v7081 = vpop.xlane.xlu0 %7080
      %v7082 = vsel %vm3948, %v7013, 0.0
      %v7083 = vsel %vm7064, %v7014, 0.0
      %v7084 = vadd.f32 %v7082, %v7083
      %7085 = vadd.xlane.f32.xlu0 %v7084
      %v7086 = vpop.xlane.xlu0 %7085
      %v7087 = vsel %vm6616, %v7016, 0.0
      %v7088 = vadd.f32 %v7015, %v7087
      %7089 = vadd.xlane.f32.xlu0 %v7088
      %v7090 = vpop.xlane.xlu0 %7089
      %v7091 = vsel %vm3948, %v7017, 0.0
      %v7092 = vsel %vm7064, %v7018, 0.0
      %v7093 = vadd.f32 %v7091, %v7092
      %7094 = vadd.xlane.f32.xlu0 %v7093
      %v7095 = vpop.xlane.xlu0 %7094
      %v7096 = vsel %vm6616, %v7020, 0.0
      %v7097 = vadd.f32 %v7019, %v7096
      %7098 = vadd.xlane.f32.xlu0 %v7097
      %v7099 = vpop.xlane.xlu0 %7098
      %v7100 = vsel %vm3948, %v7021, 0.0
      %v7101 = vsel %vm7064, %v7022, 0.0
      %v7102 = vadd.f32 %v7100, %v7101
      %7103 = vadd.xlane.f32.xlu0 %v7102
      %v7104 = vpop.xlane.xlu0 %7103
      %v7105 = vsel %vm6616, %v7024, 0.0
      %v7106 = vadd.f32 %v7023, %v7105
      %7107 = vadd.xlane.f32.xlu0 %v7106
      %v7108 = vpop.xlane.xlu0 %7107
      %v7109 = vsel %vm3948, %v7025, 0.0
      %v7110 = vsel %vm7064, %v7026, 0.0
      %v7111 = vadd.f32 %v7109, %v7110
      %7112 = vadd.xlane.f32.xlu0 %v7111
      %v7113 = vpop.xlane.xlu0 %7112
      %v7114 = vsel %vm6616, %v7028, 0.0
      %v7115 = vadd.f32 %v7027, %v7114
      %7116 = vadd.xlane.f32.xlu0 %v7115
      %v7117 = vpop.xlane.xlu0 %7116
      %v7118 = vsel %vm3948, %v7029, 0.0
      %v7119 = vsel %vm7064, %v7030, 0.0
      %v7120 = vadd.f32 %v7118, %v7119
      %7121 = vadd.xlane.f32.xlu0 %v7120
      %v7122 = vpop.xlane.xlu0 %7121
      %v7123 = vrsqrt.pop %v7062
      %v7124 = vmul.f32 %v7062, %v7123
      %vm7125 = vcmp.eq.f32.partialorder %v7062, inf
      %v7126 = vsel %vm7125, %v7062, %v7124
      %vm7127 = vcmp.eq.f32.partialorder %v7062, 0.0
      %v7128 = vand.u32 %v7062, 2147483648
      %v7129 = vsel %vm7127, %v7128, %v7126
      %v7130 = vrsqrt.pop %v7068
      %v7131 = vmul.f32 %v7068, %v7130
      %vm7132 = vcmp.eq.f32.partialorder %v7068, inf
      %v7133 = vsel %vm7132, %v7068, %v7131
      %vm7134 = vcmp.eq.f32.partialorder %v7068, 0.0
      %v7135 = vand.u32 %v7068, 2147483648
      %v7136 = vsel %vm7134, %v7135, %v7133
      %v7137 = vrsqrt.pop %v7072
      %v7138 = vmul.f32 %v7072, %v7137
      %vm7139 = vcmp.eq.f32.partialorder %v7072, inf
      %v7140 = vsel %vm7139, %v7072, %v7138
      %vm7141 = vcmp.eq.f32.partialorder %v7072, 0.0
      %v7142 = vand.u32 %v7072, 2147483648
      %v7143 = vsel %vm7141, %v7142, %v7140
      %v7144 = vrsqrt.pop %v7077
      %v7145 = vmul.f32 %v7077, %v7144
      %vm7146 = vcmp.eq.f32.partialorder %v7077, inf
      %v7147 = vsel %vm7146, %v7077, %v7145
      %vm7148 = vcmp.eq.f32.partialorder %v7077, 0.0
      %v7149 = vand.u32 %v7077, 2147483648
      %v7150 = vsel %vm7148, %v7149, %v7147
      %v7151 = vrsqrt.pop %v7081
      %v7152 = vmul.f32 %v7081, %v7151
      %vm7153 = vcmp.eq.f32.partialorder %v7081, inf
      %v7154 = vsel %vm7153, %v7081, %v7152
      %vm7155 = vcmp.eq.f32.partialorder %v7081, 0.0
      %v7156 = vand.u32 %v7081, 2147483648
      %v7157 = vsel %vm7155, %v7156, %v7154
      %v7158 = vrsqrt.pop %v7086
      %v7159 = vmul.f32 %v7086, %v7158
      %vm7160 = vcmp.eq.f32.partialorder %v7086, inf
      %v7161 = vsel %vm7160, %v7086, %v7159
      %vm7162 = vcmp.eq.f32.partialorder %v7086, 0.0
      %v7163 = vand.u32 %v7086, 2147483648
      %v7164 = vsel %vm7162, %v7163, %v7161
      %v7165 = vrsqrt.pop %v7090
      %v7166 = vmul.f32 %v7090, %v7165
      %vm7167 = vcmp.eq.f32.partialorder %v7090, inf
      %v7168 = vsel %vm7167, %v7090, %v7166
      %vm7169 = vcmp.eq.f32.partialorder %v7090, 0.0
      %v7170 = vand.u32 %v7090, 2147483648
      %v7171 = vsel %vm7169, %v7170, %v7168
      %v7172 = vrsqrt.pop %v7095
      %v7173 = vmul.f32 %v7095, %v7172
      %vm7174 = vcmp.eq.f32.partialorder %v7095, inf
      %v7175 = vsel %vm7174, %v7095, %v7173
      %vm7176 = vcmp.eq.f32.partialorder %v7095, 0.0
      %v7177 = vand.u32 %v7095, 2147483648
      %v7178 = vsel %vm7176, %v7177, %v7175
      %v7179 = vrsqrt.pop %v7099
      %v7180 = vmul.f32 %v7099, %v7179
      %vm7181 = vcmp.eq.f32.partialorder %v7099, inf
      %v7182 = vsel %vm7181, %v7099, %v7180
      %vm7183 = vcmp.eq.f32.partialorder %v7099, 0.0
      %v7184 = vand.u32 %v7099, 2147483648
      %v7185 = vsel %vm7183, %v7184, %v7182
      %v7186 = vrsqrt.pop %v7104
      %v7187 = vmul.f32 %v7104, %v7186
      %vm7188 = vcmp.eq.f32.partialorder %v7104, inf
      %v7189 = vsel %vm7188, %v7104, %v7187
      %vm7190 = vcmp.eq.f32.partialorder %v7104, 0.0
      %v7191 = vand.u32 %v7104, 2147483648
      %v7192 = vsel %vm7190, %v7191, %v7189
      %v7193 = vrsqrt.pop %v7108
      %v7194 = vmul.f32 %v7108, %v7193
      %vm7195 = vcmp.eq.f32.partialorder %v7108, inf
      %v7196 = vsel %vm7195, %v7108, %v7194
      %vm7197 = vcmp.eq.f32.partialorder %v7108, 0.0
      %v7198 = vand.u32 %v7108, 2147483648
      %v7199 = vsel %vm7197, %v7198, %v7196
      %v7200 = vrsqrt.pop %v7113
      %v7201 = vmul.f32 %v7113, %v7200
      %vm7202 = vcmp.eq.f32.partialorder %v7113, inf
      %v7203 = vsel %vm7202, %v7113, %v7201
      %vm7204 = vcmp.eq.f32.partialorder %v7113, 0.0
      %v7205 = vand.u32 %v7113, 2147483648
      %v7206 = vsel %vm7204, %v7205, %v7203
      %v7207 = vrsqrt.pop %v7117
      %v7208 = vmul.f32 %v7117, %v7207
      %vm7209 = vcmp.eq.f32.partialorder %v7117, inf
      %v7210 = vsel %vm7209, %v7117, %v7208
      %vm7211 = vcmp.eq.f32.partialorder %v7117, 0.0
      %v7212 = vand.u32 %v7117, 2147483648
      %v7213 = vsel %vm7211, %v7212, %v7210
      %v7214 = vrsqrt.pop %v7122
      %v7215 = vmul.f32 %v7122, %v7214
      %vm7216 = vcmp.eq.f32.partialorder %v7122, inf
      %v7217 = vsel %vm7216, %v7122, %v7215
      %vm7218 = vcmp.eq.f32.partialorder %v7122, 0.0
      %v7219 = vand.u32 %v7122, 2147483648
      %v7220 = vsel %vm7218, %v7219, %v7217
      %v7221 = vadd.f32 %v7129, 1e-12
      %v7222 = vadd.f32 %v7136, 1e-12
      %v7223 = vadd.f32 %v7143, 1e-12
      %v7224 = vadd.f32 %v7150, 1e-12
      %v7225 = vadd.f32 %v7157, 1e-12
      %v7226 = vadd.f32 %v7164, 1e-12
      %v7227 = vadd.f32 %v7171, 1e-12
      %v7228 = vadd.f32 %v7178, 1e-12
      %v7229 = vadd.f32 %v7185, 1e-12
      %v7230 = vadd.f32 %v7192, 1e-12
      %v7231 = vadd.f32 %v7199, 1e-12
      %v7232 = vadd.f32 %v7206, 1e-12
      %v7233 = vadd.f32 %v7213, 1e-12
      %v7234 = vadd.f32 %v7220, 1e-12
      %v7235 = vrcp.pop %v7221
      %v7236 = vmul.f32 1.0, %v7235
      %v7237 = vrcp.pop %v7222
      %v7238 = vmul.f32 1.0, %v7237
      %v7239 = vrcp.pop %v7223
      %v7240 = vmul.f32 1.0, %v7239
      %v7241 = vrcp.pop %v7224
      %v7242 = vmul.f32 1.0, %v7241
      %v7243 = vrcp.pop %v7225
      %v7244 = vmul.f32 1.0, %v7243
      %v7245 = vrcp.pop %v7226
      %v7246 = vmul.f32 1.0, %v7245
      %v7247 = vrcp.pop %v7227
      %v7248 = vmul.f32 1.0, %v7247
      %v7249 = vrcp.pop %v7228
      %v7250 = vmul.f32 1.0, %v7249
      %v7251 = vrcp.pop %v7229
      %v7252 = vmul.f32 1.0, %v7251
      %v7253 = vrcp.pop %v7230
      %v7254 = vmul.f32 1.0, %v7253
      %v7255 = vrcp.pop %v7231
      %v7256 = vmul.f32 1.0, %v7255
      %v7257 = vrcp.pop %v7232
      %v7258 = vmul.f32 1.0, %v7257
      %v7259 = vrcp.pop %v7233
      %v7260 = vmul.f32 1.0, %v7259
      %v7261 = vrcp.pop %v7234
      %v7262 = vmul.f32 1.0, %v7261
      %v7263 = vmul.f32 %v4791, %v7236
      %v7264 = vmul.f32 %v4792, %v7236
      %v7265 = vmul.f32 %v4793, %v7236
      %v7266 = vmul.f32 %v4796, %v7238
      %v7267 = vmul.f32 %v4797, %v7238
      %v7268 = vmul.f32 %v4798, %v7238
      %v7269 = vmul.f32 %v4801, %v7240
      %v7270 = vmul.f32 %v4802, %v7240
      %v7271 = vmul.f32 %v4803, %v7240
      %v7272 = vmul.f32 %v4806, %v7242
      %v7273 = vmul.f32 %v4807, %v7242
      %v7274 = vmul.f32 %v4808, %v7242
      %v7275 = vmul.f32 %v4811, %v7244
      %v7276 = vmul.f32 %v4812, %v7244
      %v7277 = vmul.f32 %v4813, %v7244
      %v7278 = vmul.f32 %v4816, %v7246
      %v7279 = vmul.f32 %v4817, %v7246
      %v7280 = vmul.f32 %v4818, %v7246
      %v7281 = vmul.f32 %v4821, %v7248
      %v7282 = vmul.f32 %v4822, %v7248
      %v7283 = vmul.f32 %v4823, %v7248
      %v7284 = vmul.f32 %v4826, %v7250
      %v7285 = vmul.f32 %v4827, %v7250
      %v7286 = vmul.f32 %v4828, %v7250
      %v7287 = vmul.f32 %v4831, %v7252
      %v7288 = vmul.f32 %v4832, %v7252
      %v7289 = vmul.f32 %v4833, %v7252
      %v7290 = vmul.f32 %v4836, %v7254
      %v7291 = vmul.f32 %v4837, %v7254
      %v7292 = vmul.f32 %v4838, %v7254
      %v7293 = vmul.f32 %v4841, %v7256
      %v7294 = vmul.f32 %v4842, %v7256
      %v7295 = vmul.f32 %v4843, %v7256
      %v7296 = vmul.f32 %v4846, %v7258
      %v7297 = vmul.f32 %v4847, %v7258
      %v7298 = vmul.f32 %v4848, %v7258
      %v7299 = vmul.f32 %v4851, %v7260
      %v7300 = vmul.f32 %v4852, %v7260
      %v7301 = vmul.f32 %v4853, %v7260
      %v7302 = vmul.f32 %v4856, %v7262
      %v7303 = vmul.f32 %v4857, %v7262
      %v7304 = vmul.f32 %v4858, %v7262
      %v7305 = vsel %vm307, %v5968, %v6222
      %v7306 = vsel %vm307, %v5969, %v6223
      %v7307 = vsel %vm307, %v5970, %v6224
      %v7308 = vsel %vm307, %v5971, %v6225
      %v7309 = vsel %vm307, %v5972, %v6226
      %v7310 = vsel %vm307, %v5973, %v6227
      %v7311 = vsel %vm307, %v5974, %v6228
      %v7312 = vsel %vm307, %v5975, %v6229
      %v7313 = vsel %vm307, %v5976, %v6230
      %v7314 = vsel %vm307, %v5977, %v6231
      %v7315 = vsel %vm307, %v5978, %v6232
      %v7316 = vsel %vm307, %v5979, %v6233
      %v7317 = vsel %vm307, %v5980, %v6234
      %v7318 = vsel %vm307, %v5981, %v6235
      %v7319 = vsel %vm6334, %v7305, %v6518
      %v7320 = vsel %vm6334, %v7306, %v6520
      %v7321 = vsel %vm6334, %v7307, %v6522
      %v7322 = vsel %vm6334, %v7308, %v6524
      %v7323 = vsel %vm6334, %v7309, %v6526
      %v7324 = vsel %vm6334, %v7310, %v6528
      %v7325 = vsel %vm6334, %v7311, %v6530
      %v7326 = vsel %vm6334, %v7312, %v6532
      %v7327 = vsel %vm6334, %v7313, %v6534
      %v7328 = vsel %vm6334, %v7314, %v6536
      %v7329 = vsel %vm6334, %v7315, %v6538
      %v7330 = vsel %vm6334, %v7316, %v6540
      %v7331 = vsel %vm6334, %v7317, %v6542
      %v7332 = vsel %vm6334, %v7318, %v6544
      %v7333 = vsel %vm307, %v6519, %v6862
      %v7334 = vsel %vm307, %v6521, %v6864
      %v7335 = vsel %vm307, %v6523, %v6866
      %v7336 = vsel %vm307, %v6525, %v6868
      %v7337 = vsel %vm307, %v6527, %v6870
      %v7338 = vsel %vm307, %v6529, %v6872
      %v7339 = vsel %vm307, %v6531, %v6874
      %v7340 = vsel %vm307, %v6533, %v6876
      %v7341 = vsel %vm307, %v6535, %v6878
      %v7342 = vsel %vm307, %v6537, %v6880
      %v7343 = vsel %vm307, %v6539, %v6882
      %v7344 = vsel %vm307, %v6541, %v6884
      %v7345 = vsel %vm307, %v6543, %v6886
      %v7346 = vsel %vm307, %v6545, %v6888
      %v7347 = vsel %vm7002, %v6863, %v7263
      %v7348 = vsel %vm7002, %v6865, %v7266
      %v7349 = vsel %vm7002, %v6867, %v7269
      %v7350 = vsel %vm7002, %v6869, %v7272
      %v7351 = vsel %vm7002, %v6871, %v7275
      %v7352 = vsel %vm7002, %v6873, %v7278
      %v7353 = vsel %vm7002, %v6875, %v7281
      %v7354 = vsel %vm7002, %v6877, %v7284
      %v7355 = vsel %vm7002, %v6879, %v7287
      %v7356 = vsel %vm7002, %v6881, %v7290
      %v7357 = vsel %vm7002, %v6883, %v7293
      %v7358 = vsel %vm7002, %v6885, %v7296
      %v7359 = vsel %vm7002, %v6887, %v7299
      %v7360 = vsel %vm7002, %v6889, %v7302
      %7361 = vst [vmem:[%s154] sm:$0xff] %v7319
      %7362 = vst [vmem:[%s154 + $0x8] sm:$0xff] %v7333
      %7363 = vst [vmem:[%s154 + $0x10] sm:$0xff] %v7347
      %7364 = vst [vmem:[%s154 + $0x18] sm:$0xff] %v7264
      %7365 = vst.msk [vmem:[%s154 + $0x20] sm:$0xff] %vm307, %v7265
      %7366 = vst [vmem:[%s154 + $0x28] sm:$0x3f] %v7320
      %7367 = vst [vmem:[%s154 + $0x30] sm:$0x3f] %v7334
      %7368 = vst [vmem:[%s154 + $0x38] sm:$0x3f] %v7348
      %7369 = vst [vmem:[%s154 + $0x40] sm:$0x3f] %v7267
      %7370 = vst.msk [vmem:[%s154 + $0x48] sm:$0x3f] %vm2205, %v7268
      %7371 = vst [vmem:[%s154 + $0x50] sm:$0xff] %v7321
      %7372 = vst [vmem:[%s154 + $0x58] sm:$0xff] %v7335
      %7373 = vst [vmem:[%s154 + $0x60] sm:$0xff] %v7349
      %7374 = vst [vmem:[%s154 + $0x68] sm:$0xff] %v7270
      %7375 = vst.msk [vmem:[%s154 + $0x70] sm:$0xff] %vm307, %v7271
      %7376 = vst [vmem:[%s154 + $0x78] sm:$0x3f] %v7322
      %7377 = vst [vmem:[%s154 + $0x80] sm:$0x3f] %v7336
      %7378 = vst [vmem:[%s154 + $0x88] sm:$0x3f] %v7350
      %7379 = vst [vmem:[%s154 + $0x90] sm:$0x3f] %v7273
      %7380 = vst.msk [vmem:[%s154 + $0x98] sm:$0x3f] %vm2205, %v7274
      %7381 = vst [vmem:[%s154 + $0xa0] sm:$0xff] %v7323
      %7382 = vst [vmem:[%s154 + $0xa8] sm:$0xff] %v7337
      %7383 = vst [vmem:[%s154 + $0xb0] sm:$0xff] %v7351
      %7384 = vst [vmem:[%s154 + $0xb8] sm:$0xff] %v7276
      %7385 = vst.msk [vmem:[%s154 + $0xc0] sm:$0xff] %vm307, %v7277
      %7386 = vst [vmem:[%s154 + $0xc8] sm:$0x3f] %v7324
      %7387 = vst [vmem:[%s154 + $0xd0] sm:$0x3f] %v7338
      %7388 = vst [vmem:[%s154 + $0xd8] sm:$0x3f] %v7352
      %7389 = vst [vmem:[%s154 + $0xe0] sm:$0x3f] %v7279
      %7390 = vst.msk [vmem:[%s154 + $0xe8] sm:$0x3f] %vm2205, %v7280
      %7391 = vst [vmem:[%s154 + $0xf0] sm:$0xff] %v7325
      %7392 = vst [vmem:[%s154 + $0xf8] sm:$0xff] %v7339
      %7393 = vst [vmem:[%s154 + $0x100] sm:$0xff] %v7353
      %7394 = vst [vmem:[%s154 + $0x108] sm:$0xff] %v7282
      %7395 = vst.msk [vmem:[%s154 + $0x110] sm:$0xff] %vm307, %v7283
      %7396 = vst [vmem:[%s154 + $0x118] sm:$0x3f] %v7326
      %7397 = vst [vmem:[%s154 + $0x120] sm:$0x3f] %v7340
      %7398 = vst [vmem:[%s154 + $0x128] sm:$0x3f] %v7354
      %7399 = vst [vmem:[%s154 + $0x130] sm:$0x3f] %v7285
      %7400 = vst.msk [vmem:[%s154 + $0x138] sm:$0x3f] %vm2205, %v7286
      %7401 = vst [vmem:[%s154 + $0x140] sm:$0xff] %v7327
      %7402 = vst [vmem:[%s154 + $0x148] sm:$0xff] %v7341
      %7403 = vst [vmem:[%s154 + $0x150] sm:$0xff] %v7355
      %7404 = vst [vmem:[%s154 + $0x158] sm:$0xff] %v7288
      %7405 = vst.msk [vmem:[%s154 + $0x160] sm:$0xff] %vm307, %v7289
      %7406 = vst [vmem:[%s154 + $0x168] sm:$0x3f] %v7328
      %7407 = vst [vmem:[%s154 + $0x170] sm:$0x3f] %v7342
      %7408 = vst [vmem:[%s154 + $0x178] sm:$0x3f] %v7356
      %7409 = vst [vmem:[%s154 + $0x180] sm:$0x3f] %v7291
      %7410 = vst.msk [vmem:[%s154 + $0x188] sm:$0x3f] %vm2205, %v7292
      %7411 = vst [vmem:[%s154 + $0x190] sm:$0xff] %v7329
      %7412 = vst [vmem:[%s154 + $0x198] sm:$0xff] %v7343
      %7413 = vst [vmem:[%s154 + $0x1a0] sm:$0xff] %v7357
      %7414 = vst [vmem:[%s154 + $0x1a8] sm:$0xff] %v7294
      %7415 = vst.msk [vmem:[%s154 + $0x1b0] sm:$0xff] %vm307, %v7295
      %7416 = vst [vmem:[%s154 + $0x1b8] sm:$0x3f] %v7330
      %7417 = vst [vmem:[%s154 + $0x1c0] sm:$0x3f] %v7344
      %7418 = vst [vmem:[%s154 + $0x1c8] sm:$0x3f] %v7358
      %7419 = vst [vmem:[%s154 + $0x1d0] sm:$0x3f] %v7297
      %7420 = vst.msk [vmem:[%s154 + $0x1d8] sm:$0x3f] %vm2205, %v7298
      %7421 = vst [vmem:[%s154 + $0x1e0] sm:$0xff] %v7331
      %7422 = vst [vmem:[%s154 + $0x1e8] sm:$0xff] %v7345
      %7423 = vst [vmem:[%s154 + $0x1f0] sm:$0xff] %v7359
      %7424 = vst [vmem:[%s154 + $0x1f8] sm:$0xff] %v7300
      %7425 = vst.msk [vmem:[%s154 + $0x200] sm:$0xff] %vm307, %v7301
      %7426 = vst [vmem:[%s154 + $0x208] sm:$0x3f] %v7332
      %7427 = vst [vmem:[%s154 + $0x210] sm:$0x3f] %v7346
      %7428 = vst [vmem:[%s154 + $0x218] sm:$0x3f] %v7360
      %7429 = vst [vmem:[%s154 + $0x220] sm:$0x3f] %v7303
      %7430 = vst.msk [vmem:[%s154 + $0x228] sm:$0x3f] %vm2205, %v7304
      %s7431 = smul.u32 7, %s14
      %p7432 = scmp.lt.s32.totalorder %s7431, 13
      %s7433 = scalar_select %p7432, %s7431, 13
      %s7434 = smul.addr %s7433, 10
      %s7435 = smul.addr %s7434, 8
      %s7436 = scalar_lea.vmem %s1, %s7435
      %s7437 = smul.u32 7, %s14
      %p7438 = scmp.lt.s32.totalorder %s7437, 13
      %s7439 = scalar_select %p7438, %s7437, 13
      %s7440 = smul.addr %s7439, 2
      %s7441 = smul.addr %s7440, 8
      %s7442 = scalar_lea.vmem %s2, %s7441
      // Predicated region
      $region25: #{apl_pallas.1} parent=23 // pred_check
        %p7443 = pneg %p58
      $region26: #{apl_pallas.1} parent=23 // pred_check_branch
        %7445 = sbr.rel (%p7443) target = $region28
      $region27: #{apl_pallas.1} parent=23 // pred_region
        %s7446 = smul.u32 7, %s14
      $region28: #{apl_pallas.1} parent=23 // pred_fallthru
        _
      // Predicated region
      $region29: #{apl_pallas.1} parent=23 // pred_check
        %p7447 = pneg %p84
      $region30: #{apl_pallas.1} parent=23 // pred_check_branch
        %7449 = sbr.rel (%p7447) target = $region32
      $region31: #{apl_pallas.1} parent=23 // pred_region
        %s7450 = smul.u32 7, %s14
      $region32: #{apl_pallas.1} parent=23 // pred_fallthru
        _
    $region24: #{apl_pallas.1} parent=5 // pred_fallthru
      _
    %p7451 = scmp.le.s32.totalorder 2, %s9
    // Predicated region
    $region33: #{apl_pallas.1} parent=5 // pred_check
      %p7452 = pneg %p7451
    $region34: #{apl_pallas.1} parent=5 // pred_check_branch
      %7454 = sbr.rel (%p7452) target = $region36
    $region35: #{apl_pallas.1} parent=5 // pred_region
      %s7455 = ssub.s32 %s9, 2
      // Predicated region
      $region37: #{apl_pallas.1} parent=35 // pred_check
        %p7456 = pneg %p64
      $region38: #{apl_pallas.1} parent=35 // pred_check_branch
        %7458 = sbr.rel (%p7456) target = $region40
      $region39: #{apl_pallas.1} parent=35 // pred_region
        %s7459 = smul.u32 7, %s15
        %p7460 = scmp.lt.s32.totalorder %s7459, 13
        %s7461 = scalar_select %p7460, %s7459, 13
        %s7462 = smul.addr %s7461, 10
        %s7463 = smul.addr %s7462, 8
        %s7464 = scalar_lea.vmem %s1, %s7463
      $region40: #{apl_pallas.1} parent=35 // pred_fallthru
        _
      // Predicated region
      $region41: #{apl_pallas.1} parent=35 // pred_check
        %p7465 = pneg %p90
      $region42: #{apl_pallas.1} parent=35 // pred_check_branch
        %7467 = sbr.rel (%p7465) target = $region44
      $region43: #{apl_pallas.1} parent=35 // pred_region
        %s7468 = smul.u32 7, %s15
        %p7469 = scmp.lt.s32.totalorder %s7468, 13
        %s7470 = scalar_select %p7469, %s7468, 13
        %s7471 = smul.addr %s7470, 2
        %s7472 = smul.addr %s7471, 8
        %s7473 = scalar_lea.vmem %s2, %s7472
      $region44: #{apl_pallas.1} parent=35 // pred_fallthru
        _
    $region36: #{apl_pallas.1} parent=5 // pred_fallthru
      _
  $region6: #{apl_pallas.1} parent=0 // loop_footer
    %s13 = sadd.s32 1, %s9
  $region7: #{apl_pallas.1} parent=0 // loop_footer_branch
    %8 = sbr.rel target = $region3
  $region8: #{apl_pallas.1} parent=0 // loop_exit
    _

</llo_original>
